<compile_context>
chip_gen: v7x
topology: tpu7x:2x2x1
jax: 0.10.0
libtpu: 0.0.40
codegen_flags: <defaults>
</compile_context>

<pallas_src>
import functools

import jax
import jax.numpy as jnp
from jax import lax
from jax.experimental import pallas as pl
from jax.experimental.pallas import tpu as pltpu

THETA = 20.0
DIRECTIONS = [[i, j, k] for i in (-1, 0, 1) for j in (-1, 0, 1) for k in (-1, 0, 1)]
DIRECTIONS.remove([0, 0, 0])
NDIR = len(DIRECTIONS)              # 26
BATCH_SAMPLING = 99999999.0         # scipy distance_transform_edt sampling on batch axis


def _round_up(x, m):
    return (x + m - 1) // m * m


def _kl(x, y):
    # torch.nn.KLDivLoss(reduction='none'): where(target>0, target*(log(target)-input), 0)
    return jnp.where(y > 0, y * (jnp.log(y) - x), 0.0)


def _shift(x, dhw_shift):
    """y[pos] = x[pos + shift] along the (D, H, W) axes of an (N,D,H,W) array; 0 out of range."""
    y = x
    for ax, s in zip((1, 2, 3), dhw_shift):
        if s == 0:
            continue
        n = y.shape[ax]
        pad = jnp.zeros_like(lax.slice_in_dim(y, 0, 1, axis=ax))
        if s == 1:
            y = jnp.concatenate([lax.slice_in_dim(y, 1, n, axis=ax), pad], axis=ax)
        else:
            y = jnp.concatenate([pad, lax.slice_in_dim(y, 0, n - 1, axis=ax)], axis=ax)
    return y


# -----------------------------------------------------------------------------
# Kernel 1: per-voxel KL boundary detector (kl_vals = max of W/H/D shifted KLs,
# border rows forced to -1).  Logits are read once per tile via a halo DMA; the
# three shifted neighbours are static lane-offset slices of the halo buffer.
# -----------------------------------------------------------------------------
def _kl_boundary_kernel(coords_ref, preds_hbm, kl_ref, phalo, sem,
                        *, D, H, W, TV, PAD):
    i = pl.program_id(0)
    col0 = pl.multiple_of(i * TV, TV)
    width = TV + 2 * PAD
    cp = pltpu.make_async_copy(preds_hbm.at[:, pl.ds(col0, width)], phalo, sem.at[0])
    cp.start()
    cp.wait()

    x = phalo[:, PAD:PAD + TV]                              # (C, TV) current logits
    d_i = coords_ref[0:1, :]
    h_i = coords_ref[1:2, :]
    w_i = coords_ref[2:3, :]

    best = None
    for off, border_idx, border_val in ((1, w_i, W - 1),        # W-shift ("horiz")
                                        (W, h_i, H - 1),        # H-shift ("vert")
                                        (H * W, d_i, D - 1)):   # D-shift ("depth")
        y = phalo[:, PAD + off:PAD + off + TV]              # (C, TV) neighbour logits
        klm = jnp.mean(_kl(x, y), axis=0, keepdims=True)    # (1, TV)
        klm = jnp.where(border_idx == float(border_val), -1.0, klm)
        best = klm if best is None else jnp.maximum(best, klm)
    kl_ref[...] = best


# -----------------------------------------------------------------------------
# Kernel 2: tiled exact Euclidean distance transform of the GT boundary
# (replaces scipy.ndimage.distance_transform_edt).  grid = (query tiles,
# candidate tiles); candidates are boundary-compacted and tiles past the
# boundary count are skipped.  dist^2 tile on the MXU; batch penalty separate.
# -----------------------------------------------------------------------------
def _edt_kernel(nb_ref, q_ref, b_ref, out_ref, acc_ref, *, TN):
    j = pl.program_id(1)
    col0 = j * TN
    nb = nb_ref[0]

    @pl.when(j == 0)
    def _():
        acc_ref[...] = jnp.full(acc_ref.shape, jnp.inf, acc_ref.dtype)

    @pl.when(col0 < nb)
    def _():
        a = q_ref[...]                    # (8, TM)  rows: d, h, w, n, 0, 0, 0, 0
        b = b_ref[...]                    # (TN, 8)  cols: d, h, w, 0, n, 0, 0, 0
        # spatial gram matrix on the MXU (batch rows/cols are zeroed on one side)
        g = jnp.dot(b, a, preferred_element_type=jnp.float32)           # (TN, TM)
        a2 = jnp.sum(a[0:3, :] * a[0:3, :], axis=0, keepdims=True)      # (1, TM)
        b2 = jnp.sum(b[:, 0:3] * b[:, 0:3], axis=1, keepdims=True)      # (TN, 1)
        d2 = jnp.maximum(a2 + b2 - 2.0 * g, 0.0)
        pen = (b[:, 4:5] - a[3:4, :]) * BATCH_SAMPLING                  # cross-batch penalty
        d2 = d2 + pen * pen
        row = lax.broadcasted_iota(jnp.int32, (b.shape[0], 1), 0) + col0
        d2 = jnp.where(row < nb, d2, jnp.inf)                           # only boundary candidates
        acc_ref[...] = jnp.minimum(acc_ref[...], jnp.min(d2, axis=0, keepdims=True))

    @pl.when(j == pl.num_programs(1) - 1)
    def _():
        out_ref[...] = jnp.sqrt(acc_ref[...])


# -----------------------------------------------------------------------------
# Kernel 3: 26-direction Active Boundary term.  One halo DMA per tile for the
# logits and one for the boundary distance; keep/in-range masks built in-kernel
# from coordinate rows; fused d_pi/sum/argmin pass, then a BCE pass reading
# d_pi back from a small (32, TV) VMEM scratch.
# -----------------------------------------------------------------------------
def _abl_kernel(coords_ref, pdb_ref, preds_hbm, gdist_hbm, out_ref,
                phalo, ghalo, dpi_scr, sem, *, D, H, W, TV, PAD):
    i = pl.program_id(0)
    col0 = pl.multiple_of(i * TV, TV)
    width = TV + 2 * PAD
    cpp = pltpu.make_async_copy(preds_hbm.at[:, pl.ds(col0, width)], phalo, sem.at[0])
    cpg = pltpu.make_async_copy(gdist_hbm.at[:, pl.ds(col0, width)], ghalo, sem.at[1])
    cpp.start()
    cpg.start()
    cpp.wait()
    cpg.wait()

    x = phalo[:, PAD:PAD + TV]                              # (C, TV) logits of this tile
    gd = ghalo[:, PAD:PAD + TV]                             # (1, TV) GT boundary distance
    d_i = coords_ref[0:1, :]
    h_i = coords_ref[1:2, :]
    w_i = coords_ref[2:3, :]
    n_i = coords_ref[3:4, :]

    dims = (D, H, W)
    axis_idx = (d_i, h_i, w_i)
    quirk_idx = (n_i, d_i, h_i)     # the reference compares (n, d, h) against (D,H,W)-derived borders

    sum_dpi = jnp.zeros((1, TV), jnp.float32)
    min_dist = None
    min_idx = jnp.zeros((1, TV), jnp.float32)

    # ---- pass 1 (fused): masked d_pi, running sum, running first-occurrence argmin ----
    for m, (d0, d1, d2) in enumerate(DIRECTIONS):
        off = d0 * H * W + d1 * W + d2
        y = phalo[:, PAD + off:PAD + off + TV]              # (C, TV) neighbour logits
        klm = jnp.mean(_kl(x, y), axis=0, keepdims=True)    # (1, TV)
        # in-range mask: positions where the reference's shifted copy is zero-filled
        inr = None
        for k, comp in enumerate((d0, d1, d2)):
            if comp == 1:
                c = axis_idx[k] < float(dims[k] - 1)
            elif comp == -1:
                c = axis_idx[k] > 0.0
            else:
                continue
            inr = c if inr is None else jnp.logical_and(inr, c)
        klm = jnp.where(inr, klm, 0.0)                      # out-of-range neighbour => kl = 0
        dpi = jnp.exp(klm)
        # keep mask -- reproduces the reference's index/axis pairing (n,d,h vs D,H,W borders)
        for k, comp in enumerate((d0, d1, d2)):
            if comp == 1:
                z = dims[k] - 1
            elif comp == -1:
                z = 0
            else:
                z = 1
            if z != 1:
                dpi = jnp.where(quirk_idx[k] == float(z), dpi, 0.0)
        dpi_scr[m:m + 1, :] = dpi
        sum_dpi = sum_dpi + dpi
        nd = jnp.where(inr, ghalo[:, PAD + off:PAD + off + TV], 0.0)
        if min_dist is None:
            min_dist = nd
        else:
            upd = nd < min_dist
            min_idx = jnp.where(upd, float(m), min_idx)
            min_dist = jnp.where(upd, nd, min_dist)

    # ---- pass 2: BCE-with-logits against the argmin-scattered target ----
    inv_sum = pl.reciprocal(sum_dpi, approx=True)
    lo = 0.2 / NDIR
    bce_sum = jnp.zeros((1, TV), jnp.float32)
    for m in range(NDIR):
        z = dpi_scr[m:m + 1, :] * inv_sum
        t = jnp.where(min_idx == float(m), 0.8, lo)
        bce = (1.0 - t) * z + jnp.maximum(-z, 0.0) + jnp.log(1.0 + jnp.exp(-jnp.abs(z)))
        bce_sum = bce_sum + bce

    weight = jnp.minimum(gd, THETA) * (1.0 / THETA)
    loss = weight * (bce_sum * (1.0 / NDIR))
    valid = jnp.logical_and(pdb_ref[...] > 0, gd != 0.0)
    out_ref[...] = jnp.where(valid, loss, 0.0)


# -----------------------------------------------------------------------------
# JAX glue
# -----------------------------------------------------------------------------
def active_boundary_loss(logits, target):
    logits = logits.astype(jnp.float32)
    N, C, D, H, W = logits.shape
    V = N * D * H * W

    TV = min(512, _round_up(V, 128))         # voxel tile (lanes), multiple of 128
    Vp = _round_up(V, TV)
    PAD = _round_up(H * W + W + 1, 128)      # halo covering every 26-neighbour flat offset
    TM = TV                                  # EDT query tile
    TN = TV                                  # EDT candidate tile
    halo_w = TV + 2 * PAD
    grid_v = Vp // TV
    cparams = pltpu.CompilerParams(dimension_semantics=("parallel",),
                                   vmem_limit_bytes=32 * 1024 * 1024)

    # channels-on-sublane / voxels-on-lane layout, zero-padded halo on both sides
    preds_cl = jnp.transpose(logits, (1, 0, 2, 3, 4)).reshape(C, V)
    preds_pad = jnp.pad(preds_cl, ((0, 0), (PAD, (Vp - V) + PAD)))

    nn_, dd_, hh_, ww_ = jnp.meshgrid(jnp.arange(N), jnp.arange(D), jnp.arange(H),
                                      jnp.arange(W), indexing="ij")
    n_f = nn_.reshape(V).astype(jnp.float32)
    d_f = dd_.reshape(V).astype(jnp.float32)
    h_f = hh_.reshape(V).astype(jnp.float32)
    w_f = ww_.reshape(V).astype(jnp.float32)
    zeros_v = jnp.zeros((V,), jnp.float32)
    coords_q = jnp.stack([d_f, h_f, w_f, n_f, zeros_v, zeros_v, zeros_v, zeros_v], axis=0)
    coords_q = jnp.pad(coords_q, ((0, 0), (0, Vp - V)))      # (8, Vp)

    # ---- kernel 1: boundary detector kl_vals --------------------------------------
    kl_vals = pl.pallas_call(
        functools.partial(_kl_boundary_kernel, D=D, H=H, W=W, TV=TV, PAD=PAD),
        out_shape=jax.ShapeDtypeStruct((1, Vp), jnp.float32),
        grid=(grid_v,),
        in_specs=[pl.BlockSpec((8, TV), lambda i: (0, i)),
                  pl.BlockSpec(memory_space=pl.ANY)],
        out_specs=pl.BlockSpec((1, TV), lambda i: (0, i)),
        scratch_shapes=[pltpu.VMEM((C, halo_w), jnp.float32),
                        pltpu.SemaphoreType.DMA((1,))],
        compiler_params=cparams,
    )(coords_q, preds_pad)

    # TODO(synk): torch.quantile / torch.nonzero need a global sort & dynamic shapes --
    # threshold in plain JAX; the pdb gather is replaced by a dense mask.
    kl_flat = kl_vals[0, :V]
    threshold = jnp.quantile(kl_flat, 0.99)
    pdb = kl_flat >= threshold
    n_pdb = jnp.sum(pdb).astype(jnp.float32)
    pdb_pad = jnp.pad(pdb.astype(jnp.float32), (0, Vp - V)).reshape(1, Vp)

    # ---- GT boundary + tiled, boundary-compacted EDT -------------------------------
    t5 = target.reshape(N, D, H, W).astype(jnp.float32)
    gt_sum = _shift(t5, (0, 0, 1)) + _shift(t5, (0, 1, 0)) + _shift(t5, (1, 0, 0))
    gdb = (t5 * 3.0 != gt_sum).reshape(V)
    nb = jnp.sum(gdb).astype(jnp.int32).reshape(1)
    order = jnp.argsort(jnp.where(gdb, 0, 1))                # boundary voxels first
    bcols = jnp.stack([d_f, h_f, w_f, zeros_v, n_f, zeros_v, zeros_v, zeros_v], axis=1)
    bcoords = jnp.pad(bcols[order], ((0, Vp - V), (0, 0)))   # (Vp, 8)

    gdist = pl.pallas_call(
        functools.partial(_edt_kernel, TN=TN),
        out_shape=jax.ShapeDtypeStruct((1, Vp), jnp.float32),
        grid=(Vp // TM, Vp // TN),
        in_specs=[pl.BlockSpec(memory_space=pltpu.MemorySpace.SMEM),
                  pl.BlockSpec((8, TM), lambda i, j: (0, i)),
                  pl.BlockSpec((TN, 8), lambda i, j: (j, 0))],
        out_specs=pl.BlockSpec((1, TM), lambda i, j: (0, i)),
        scratch_shapes=[pltpu.VMEM((1, TM), jnp.float32)],
        compiler_params=pltpu.CompilerParams(dimension_semantics=("parallel", "arbitrary"),
                                             vmem_limit_bytes=32 * 1024 * 1024),
    )(nb, coords_q, bcoords)

    gdist_pad = jnp.pad(gdist, ((0, 0), (PAD, PAD)))

    # ---- kernel 3: 26-direction ABL term --------------------------------------------
    loss_map = pl.pallas_call(
        functools.partial(_abl_kernel, D=D, H=H, W=W, TV=TV, PAD=PAD),
        out_shape=jax.ShapeDtypeStruct((1, Vp), jnp.float32),
        grid=(grid_v,),
        in_specs=[pl.BlockSpec((8, TV), lambda i: (0, i)),
                  pl.BlockSpec((1, TV), lambda i: (0, i)),
                  pl.BlockSpec(memory_space=pl.ANY),
                  pl.BlockSpec(memory_space=pl.ANY)],
        out_specs=pl.BlockSpec((1, TV), lambda i: (0, i)),
        scratch_shapes=[pltpu.VMEM((C, halo_w), jnp.float32),
                        pltpu.VMEM((1, halo_w), jnp.float32),
                        pltpu.VMEM((32, TV), jnp.float32),
                        pltpu.SemaphoreType.DMA((2,))],
        compiler_params=cparams,
    )(coords_q, pdb_pad, preds_pad, gdist_pad)

    return jnp.sum(loss_map) / n_pdb


if __name__ == "__main__":
    key = jax.random.PRNGKey(0)
    k1, k2 = jax.random.split(key)
    # D=2 guarantees at least one unmasked direction per voxel (the reference
    # produces NaN via 0/0 normalization when all 26 directions are masked).
    N, C, D, H, W = 2, 4, 2, 8, 8
    logits = jax.random.normal(k1, (N, C, D, H, W), dtype=jnp.float32)
    target = jax.random.randint(k2, (N, D, H, W), 0, C, dtype=jnp.int32)

    loss = jax.jit(active_boundary_loss)(logits, target)
    loss = jax.block_until_ready(loss)
    assert bool(jnp.isfinite(loss)), f"loss is not finite: {loss}"
    print("KERNEL_OK")
</pallas_src>

<mosaic_0001>
module attributes {stable_mosaic.version = 11 : i64} {
  func.func @_kl_boundary_kernel(%arg0: i32, %arg1: memref<8x256xf32, #tpu.memory_space<vmem>>, %arg2: memref<4x512xf32, #tpu.memory_space<any>>, %arg3: memref<1x256xf32, #tpu.memory_space<vmem>>, %arg4: memref<4x512xf32, #tpu.memory_space<vmem>>, %arg5: memref<1x!tpu.dma_semaphore, #tpu.memory_space<semaphore_mem>>) attributes {dimension_semantics = [#tpu.dimension_semantics<parallel>], iteration_bounds = array<i64: 1>, scalar_prefetch = 0 : i64, scratch_operands = 2 : i64, tpu.core_type = #tpu.core_type<tc>, window_params = [{transform_indices = @transform_0, window_bounds = array<i64: 8, 256>}, {}, {transform_indices = @transform_2, window_bounds = array<i64: 1, 256>}]} {
    %c256_i32 = arith.constant 256 : i32
    %0 = arith.muli %arg0, %c256_i32 : i32
    %1 = tpu.assume_multiple %0, 256 : i32
    %c0_i32 = arith.constant 0 : i32
    %c0_i32_0 = arith.constant 0 : i32
    %2 = tpu.memref_slice %arg2[%c0_i32_0, %1] : memref<4x512xf32, #tpu.memory_space<any>> -> memref<4x512xf32, #tpu.memory_space<any>>
    %3 = tpu.memref_slice %arg5[%c0_i32] : memref<1x!tpu.dma_semaphore, #tpu.memory_space<semaphore_mem>> -> memref<1x!tpu.dma_semaphore, #tpu.memory_space<semaphore_mem>>
    %4 = tpu.memref_squeeze %3 : memref<1x!tpu.dma_semaphore, #tpu.memory_space<semaphore_mem>> -> memref<!tpu.dma_semaphore, #tpu.memory_space<semaphore_mem>>
    tpu.enqueue_dma source(%2 : memref<4x512xf32, #tpu.memory_space<any>>) target(%arg4 : memref<4x512xf32, #tpu.memory_space<vmem>>) target_semaphore(%4 : memref<!tpu.dma_semaphore, #tpu.memory_space<semaphore_mem>>)
    %c0_i32_1 = arith.constant 0 : i32
    %c0_i32_2 = arith.constant 0 : i32
    %5 = tpu.memref_slice %arg2[%c0_i32_2, %1] : memref<4x512xf32, #tpu.memory_space<any>> -> memref<4x512xf32, #tpu.memory_space<any>>
    %6 = tpu.memref_slice %arg5[%c0_i32_1] : memref<1x!tpu.dma_semaphore, #tpu.memory_space<semaphore_mem>> -> memref<1x!tpu.dma_semaphore, #tpu.memory_space<semaphore_mem>>
    %7 = tpu.memref_squeeze %6 : memref<1x!tpu.dma_semaphore, #tpu.memory_space<semaphore_mem>> -> memref<!tpu.dma_semaphore, #tpu.memory_space<semaphore_mem>>
    tpu.wait_dma2 semaphore(%7 : memref<!tpu.dma_semaphore, #tpu.memory_space<semaphore_mem>>) src(%5 : memref<4x512xf32, #tpu.memory_space<any>>) dst(%arg4 : memref<4x512xf32, #tpu.memory_space<vmem>>)
    %c0 = arith.constant 0 : index
    %c128 = arith.constant 128 : index
    %8 = vector.load %arg4[%c0, %c128] : memref<4x512xf32, #tpu.memory_space<vmem>>, vector<4x256xf32>
    %c0_3 = arith.constant 0 : index
    %c0_4 = arith.constant 0 : index
    %9 = vector.load %arg1[%c0_3, %c0_4] : memref<8x256xf32, #tpu.memory_space<vmem>>, vector<1x256xf32>
    %c1 = arith.constant 1 : index
    %c0_5 = arith.constant 0 : index
    %10 = vector.load %arg1[%c1, %c0_5] : memref<8x256xf32, #tpu.memory_space<vmem>>, vector<1x256xf32>
    %c2 = arith.constant 2 : index
    %c0_6 = arith.constant 0 : index
    %11 = vector.load %arg1[%c2, %c0_6] : memref<8x256xf32, #tpu.memory_space<vmem>>, vector<1x256xf32>
    %c0_7 = arith.constant 0 : index
    %c129 = arith.constant 129 : index
    %12 = vector.load %arg4[%c0_7, %c129] : memref<4x512xf32, #tpu.memory_space<vmem>>, vector<4x256xf32>
    %cst = arith.constant 0.000000e+00 : f32
    %13 = vector.broadcast %cst : f32 to vector<4x256xf32>
    %14 = arith.cmpf ogt, %12, %13 : vector<4x256xf32>
    %15 = math.log %12 : vector<4x256xf32>
    %16 = arith.subf %15, %8 : vector<4x256xf32>
    %17 = arith.mulf %12, %16 : vector<4x256xf32>
    %cst_8 = arith.constant 0.000000e+00 : f32
    %18 = vector.broadcast %cst_8 : f32 to vector<4x256xf32>
    %19 = arith.select %14, %17, %18 : vector<4x256xi1>, vector<4x256xf32>
    %cst_9 = arith.constant dense<0.000000e+00> : vector<256xf32>
    %20 = vector.multi_reduction <add>, %19, %cst_9 [0] : vector<4x256xf32> to vector<256xf32>
    %21 = vector.shape_cast %20 : vector<256xf32> to vector<1x256xf32>
    %cst_10 = arith.constant 4.000000e+00 : f32
    %22 = vector.broadcast %cst_10 : f32 to vector<1x256xf32>
    %23 = arith.divf %21, %22 : vector<1x256xf32>
    %cst_11 = arith.constant 7.000000e+00 : f32
    %24 = vector.broadcast %cst_11 : f32 to vector<1x256xf32>
    %25 = arith.cmpf oeq, %11, %24 : vector<1x256xf32>
    %cst_12 = arith.constant -1.000000e+00 : f32
    %26 = vector.broadcast %cst_12 : f32 to vector<1x256xf32>
    %27 = arith.select %25, %26, %23 : vector<1x256xi1>, vector<1x256xf32>
    %c0_13 = arith.constant 0 : index
    %c136 = arith.constant 136 : index
    %28 = vector.load %arg4[%c0_13, %c136] : memref<4x512xf32, #tpu.memory_space<vmem>>, vector<4x256xf32>
    %cst_14 = arith.constant 0.000000e+00 : f32
    %29 = vector.broadcast %cst_14 : f32 to vector<4x256xf32>
    %30 = arith.cmpf ogt, %28, %29 : vector<4x256xf32>
    %31 = math.log %28 : vector<4x256xf32>
    %32 = arith.subf %31, %8 : vector<4x256xf32>
    %33 = arith.mulf %28, %32 : vector<4x256xf32>
    %cst_15 = arith.constant 0.000000e+00 : f32
    %34 = vector.broadcast %cst_15 : f32 to vector<4x256xf32>
    %35 = arith.select %30, %33, %34 : vector<4x256xi1>, vector<4x256xf32>
    %cst_16 = arith.constant dense<0.000000e+00> : vector<256xf32>
    %36 = vector.multi_reduction <add>, %35, %cst_16 [0] : vector<4x256xf32> to vector<256xf32>
    %37 = vector.shape_cast %36 : vector<256xf32> to vector<1x256xf32>
    %cst_17 = arith.constant 4.000000e+00 : f32
    %38 = vector.broadcast %cst_17 : f32 to vector<1x256xf32>
    %39 = arith.divf %37, %38 : vector<1x256xf32>
    %cst_18 = arith.constant 7.000000e+00 : f32
    %40 = vector.broadcast %cst_18 : f32 to vector<1x256xf32>
    %41 = arith.cmpf oeq, %10, %40 : vector<1x256xf32>
    %cst_19 = arith.constant -1.000000e+00 : f32
    %42 = vector.broadcast %cst_19 : f32 to vector<1x256xf32>
    %43 = arith.select %41, %42, %39 : vector<1x256xi1>, vector<1x256xf32>
    %44 = arith.maximumf %27, %43 : vector<1x256xf32>
    %c0_20 = arith.constant 0 : index
    %c192 = arith.constant 192 : index
    %45 = vector.load %arg4[%c0_20, %c192] : memref<4x512xf32, #tpu.memory_space<vmem>>, vector<4x256xf32>
    %cst_21 = arith.constant 0.000000e+00 : f32
    %46 = vector.broadcast %cst_21 : f32 to vector<4x256xf32>
    %47 = arith.cmpf ogt, %45, %46 : vector<4x256xf32>
    %48 = math.log %45 : vector<4x256xf32>
    %49 = arith.subf %48, %8 : vector<4x256xf32>
    %50 = arith.mulf %45, %49 : vector<4x256xf32>
    %cst_22 = arith.constant 0.000000e+00 : f32
    %51 = vector.broadcast %cst_22 : f32 to vector<4x256xf32>
    %52 = arith.select %47, %50, %51 : vector<4x256xi1>, vector<4x256xf32>
    %cst_23 = arith.constant dense<0.000000e+00> : vector<256xf32>
    %53 = vector.multi_reduction <add>, %52, %cst_23 [0] : vector<4x256xf32> to vector<256xf32>
    %54 = vector.shape_cast %53 : vector<256xf32> to vector<1x256xf32>
    %cst_24 = arith.constant 4.000000e+00 : f32
    %55 = vector.broadcast %cst_24 : f32 to vector<1x256xf32>
    %56 = arith.divf %54, %55 : vector<1x256xf32>
    %cst_25 = arith.constant 1.000000e+00 : f32
    %57 = vector.broadcast %cst_25 : f32 to vector<1x256xf32>
    %58 = arith.cmpf oeq, %9, %57 : vector<1x256xf32>
    %cst_26 = arith.constant -1.000000e+00 : f32
    %59 = vector.broadcast %cst_26 : f32 to vector<1x256xf32>
    %60 = arith.select %58, %59, %56 : vector<1x256xi1>, vector<1x256xf32>
    %61 = arith.maximumf %44, %60 : vector<1x256xf32>
    %c0_27 = arith.constant 0 : index
    %c0_28 = arith.constant 0 : index
    %62 = vector.load %arg3[%c0_27, %c0_28] : memref<1x256xf32, #tpu.memory_space<vmem>>, vector<1x256xf32>
    tpu.vector_store %arg3[%c0_27, %c0_28], %61 {strides = array<i32>} : memref<1x256xf32, #tpu.memory_space<vmem>>, vector<1x256xf32>,
    return
  }
  func.func @transform_0(%arg0: i32) -> (i32, i32) {
    %c0_i32 = arith.constant 0 : i32
    %c0_i32_0 = arith.constant 0 : i32
    return %c0_i32, %arg0 : i32, i32
  }
  func.func @transform_2(%arg0: i32) -> (i32, i32) {
    %c0_i32 = arith.constant 0 : i32
    %c0_i32_0 = arith.constant 0 : i32
    return %c0_i32, %arg0 : i32, i32
  }
}

module attributes {stable_mosaic.version = 11 : i64} {
  func.func @_edt_kernel(%arg0: i32, %arg1: i32, %arg2: memref<1xi32, #tpu.memory_space<smem>>, %arg3: memref<8x256xf32, #tpu.memory_space<vmem>>, %arg4: memref<256x8xf32, #tpu.memory_space<vmem>>, %arg5: memref<1x256xf32, #tpu.memory_space<vmem>>, %arg6: memref<1x256xf32, #tpu.memory_space<vmem>>) attributes {dimension_semantics = [#tpu.dimension_semantics<parallel>, #tpu.dimension_semantics<arbitrary>], iteration_bounds = array<i64: 1, 1>, scalar_prefetch = 0 : i64, scratch_operands = 1 : i64, tpu.core_type = #tpu.core_type<tc>, window_params = [{transform_indices = @transform_0, window_bounds = array<i64: 1>}, {transform_indices = @transform_1, window_bounds = array<i64: 8, 256>}, {transform_indices = @transform_2, window_bounds = array<i64: 256, 8>}, {transform_indices = @transform_3, window_bounds = array<i64: 1, 256>}]} {
    %c256_i32 = arith.constant 256 : i32
    %0 = arith.muli %arg1, %c256_i32 : i32
    %c0 = arith.constant 0 : index
    %1 = memref.load %arg2[%c0] : memref<1xi32, #tpu.memory_space<smem>>
    %c0_i32 = arith.constant 0 : i32
    %2 = arith.cmpi eq, %arg1, %c0_i32 : i32
    %3 = arith.extui %2 : i1 to i32
    %c0_i32_0 = arith.constant 0 : i32
    %4 = arith.cmpi ne, %3, %c0_i32_0 : i32
    scf.if %4 {
      %cst = arith.constant 0x7F800000 : f32
      %11 = vector.broadcast %cst : f32 to vector<1x256xf32>
      %c0_4 = arith.constant 0 : index
      %c0_5 = arith.constant 0 : index
      %12 = vector.load %arg6[%c0_4, %c0_5] : memref<1x256xf32, #tpu.memory_space<vmem>>, vector<1x256xf32>
      tpu.vector_store %arg6[%c0_4, %c0_5], %11 {strides = array<i32>} : memref<1x256xf32, #tpu.memory_space<vmem>>, vector<1x256xf32>,
    } else {
    }
    %5 = arith.cmpi slt, %0, %1 : i32
    %6 = arith.extui %5 : i1 to i32
    %c0_i32_1 = arith.constant 0 : i32
    %7 = arith.cmpi ne, %6, %c0_i32_1 : i32
    scf.if %7 {
      %c0_4 = arith.constant 0 : index
      %c0_5 = arith.constant 0 : index
      %11 = vector.load %arg3[%c0_4, %c0_5] : memref<8x256xf32, #tpu.memory_space<vmem>>, vector<8x256xf32>
      %c0_6 = arith.constant 0 : index
      %c0_7 = arith.constant 0 : index
      %12 = vector.load %arg4[%c0_6, %c0_7] : memref<256x8xf32, #tpu.memory_space<vmem>>, vector<256x8xf32>
      %cst = arith.constant dense<0.000000e+00> : vector<256x256xf32>
      %13 = tpu.matmul %12, %11, %cst {dimension_numbers = #tpu.dot_dimension_numbers<[1], [0], [0], [1], [0, 0, 1, 1], [], []>} : vector<256x8xf32>, vector<8x256xf32>, vector<256x256xf32> -> vector<256x256xf32>
      %14 = vector.extract_strided_slice %11 {offsets = [0, 0], sizes = [3, 256], strides = [1, 1]} : vector<8x256xf32> to vector<3x256xf32>
      %15 = vector.extract_strided_slice %11 {offsets = [0, 0], sizes = [3, 256], strides = [1, 1]} : vector<8x256xf32> to vector<3x256xf32>
      %16 = arith.mulf %14, %15 : vector<3x256xf32>
      %cst_8 = arith.constant dense<0.000000e+00> : vector<256xf32>
      %17 = vector.multi_reduction <add>, %16, %cst_8 [0] : vector<3x256xf32> to vector<256xf32>
      %18 = vector.shape_cast %17 : vector<256xf32> to vector<1x256xf32>
      %19 = vector.extract_strided_slice %12 {offsets = [0, 0], sizes = [256, 3], strides = [1, 1]} : vector<256x8xf32> to vector<256x3xf32>
      %20 = vector.extract_strided_slice %12 {offsets = [0, 0], sizes = [256, 3], strides = [1, 1]} : vector<256x8xf32> to vector<256x3xf32>
      %21 = arith.mulf %19, %20 : vector<256x3xf32>
      %cst_9 = arith.constant dense<0.000000e+00> : vector<256xf32>
      %22 = vector.multi_reduction <add>, %21, %cst_9 [1] : vector<256x3xf32> to vector<256xf32>
      %23 = vector.shape_cast %22 : vector<256xf32> to vector<256x1xf32>
      %24 = vector.broadcast %18 : vector<1x256xf32> to vector<256x256xf32>
      %25 = vector.broadcast %23 : vector<256x1xf32> to vector<256x256xf32>
      %26 = arith.addf %24, %25 : vector<256x256xf32>
      %cst_10 = arith.constant 2.000000e+00 : f32
      %27 = vector.broadcast %cst_10 : f32 to vector<256x256xf32>
      %28 = arith.mulf %27, %13 : vector<256x256xf32>
      %29 = arith.subf %26, %28 : vector<256x256xf32>
      %cst_11 = arith.constant 0.000000e+00 : f32
      %30 = vector.broadcast %cst_11 : f32 to vector<256x256xf32>
      %31 = arith.maximumf %29, %30 : vector<256x256xf32>
      %32 = vector.extract_strided_slice %12 {offsets = [0, 4], sizes = [256, 1], strides = [1, 1]} : vector<256x8xf32> to vector<256x1xf32>
      %33 = vector.extract_strided_slice %11 {offsets = [3, 0], sizes = [1, 256], strides = [1, 1]} : vector<8x256xf32> to vector<1x256xf32>
      %34 = vector.broadcast %32 : vector<256x1xf32> to vector<256x256xf32>
      %35 = vector.broadcast %33 : vector<1x256xf32> to vector<256x256xf32>
      %36 = arith.subf %34, %35 : vector<256x256xf32>
      %cst_12 = arith.constant 1.000000e+08 : f32
      %37 = vector.broadcast %cst_12 : f32 to vector<256x256xf32>
      %38 = arith.mulf %36, %37 : vector<256x256xf32>
      %39 = arith.mulf %38, %38 : vector<256x256xf32>
      %40 = arith.addf %31, %39 : vector<256x256xf32>
      %41 = tpu.iota {dimensions = array<i32: 0>} : vector<256x1xi32>
      %42 = vector.broadcast %0 : i32 to vector<256x1xi32>
      %43 = arith.addi %41, %42 : vector<256x1xi32>
      %44 = vector.broadcast %1 : i32 to vector<256x1xi32>
      %45 = arith.cmpi slt, %43, %44 : vector<256x1xi32>
      %cst_13 = arith.constant 0x7F800000 : f32
      %46 = vector.shape_cast %45 : vector<256x1xi1> to vector<256x1xi1>
      %47 = vector.broadcast %46 : vector<256x1xi1> to vector<256x256xi1>
      %48 = vector.broadcast %cst_13 : f32 to vector<256x256xf32>
      %49 = arith.select %47, %40, %48 : vector<256x256xi1>, vector<256x256xf32>
      %c0_14 = arith.constant 0 : index
      %c0_15 = arith.constant 0 : index
      %50 = vector.load %arg6[%c0_14, %c0_15] : memref<1x256xf32, #tpu.memory_space<vmem>>, vector<1x256xf32>
      %cst_16 = arith.constant dense<0x7F800000> : vector<256xf32>
      %51 = vector.multi_reduction <minimumf>, %49, %cst_16 [0] : vector<256x256xf32> to vector<256xf32>
      %52 = vector.shape_cast %51 : vector<256xf32> to vector<1x256xf32>
      %53 = arith.minimumf %50, %52 : vector<1x256xf32>
      %c0_17 = arith.constant 0 : index
      %c0_18 = arith.constant 0 : index
      %54 = vector.load %arg6[%c0_17, %c0_18] : memref<1x256xf32, #tpu.memory_space<vmem>>, vector<1x256xf32>
      tpu.vector_store %arg6[%c0_17, %c0_18], %53 {strides = array<i32>} : memref<1x256xf32, #tpu.memory_space<vmem>>, vector<1x256xf32>,
    } else {
    }
    %c0_i32_2 = arith.constant 0 : i32
    %8 = arith.cmpi eq, %arg1, %c0_i32_2 : i32
    %9 = arith.extui %8 : i1 to i32
    %c0_i32_3 = arith.constant 0 : i32
    %10 = arith.cmpi ne, %9, %c0_i32_3 : i32
    scf.if %10 {
      %c0_4 = arith.constant 0 : index
      %c0_5 = arith.constant 0 : index
      %11 = vector.load %arg6[%c0_4, %c0_5] : memref<1x256xf32, #tpu.memory_space<vmem>>, vector<1x256xf32>
      %12 = math.sqrt %11 : vector<1x256xf32>
      %c0_6 = arith.constant 0 : index
      %c0_7 = arith.constant 0 : index
      %13 = vector.load %arg5[%c0_6, %c0_7] : memref<1x256xf32, #tpu.memory_space<vmem>>, vector<1x256xf32>
      tpu.vector_store %arg5[%c0_6, %c0_7], %12 {strides = array<i32>} : memref<1x256xf32, #tpu.memory_space<vmem>>, vector<1x256xf32>,
    } else {
    }
    return
  }
  func.func @transform_0(%arg0: i32, %arg1: i32) -> i32 {
    %c0_i32 = arith.constant 0 : i32
    %c0_i32_0 = arith.constant 0 : i32
    return %c0_i32 : i32
  }
  func.func @transform_1(%arg0: i32, %arg1: i32) -> (i32, i32) {
    %c0_i32 = arith.constant 0 : i32
    %c0_i32_0 = arith.constant 0 : i32
    return %c0_i32, %arg0 : i32, i32
  }
  func.func @transform_2(%arg0: i32, %arg1: i32) -> (i32, i32) {
    %c0_i32 = arith.constant 0 : i32
    %c0_i32_0 = arith.constant 0 : i32
    return %arg1, %c0_i32 : i32, i32
  }
  func.func @transform_3(%arg0: i32, %arg1: i32) -> (i32, i32) {
    %c0_i32 = arith.constant 0 : i32
    %c0_i32_0 = arith.constant 0 : i32
    return %c0_i32, %arg0 : i32, i32
  }
}

module attributes {stable_mosaic.version = 11 : i64} {
  func.func @_abl_kernel(%arg0: i32, %arg1: memref<8x256xf32, #tpu.memory_space<vmem>>, %arg2: memref<1x256xf32, #tpu.memory_space<vmem>>, %arg3: memref<4x512xf32, #tpu.memory_space<any>>, %arg4: memref<1x512xf32, #tpu.memory_space<any>>, %arg5: memref<1x256xf32, #tpu.memory_space<vmem>>, %arg6: memref<4x512xf32, #tpu.memory_space<vmem>>, %arg7: memref<1x512xf32, #tpu.memory_space<vmem>>, %arg8: memref<32x256xf32, #tpu.memory_space<vmem>>, %arg9: memref<2x!tpu.dma_semaphore, #tpu.memory_space<semaphore_mem>>) attributes {dimension_semantics = [#tpu.dimension_semantics<parallel>], iteration_bounds = array<i64: 1>, scalar_prefetch = 0 : i64, scratch_operands = 4 : i64, tpu.core_type = #tpu.core_type<tc>, window_params = [{transform_indices = @transform_0, window_bounds = array<i64: 8, 256>}, {transform_indices = @transform_1, window_bounds = array<i64: 1, 256>}, {}, {}, {transform_indices = @transform_4, window_bounds = array<i64: 1, 256>}]} {
    %c256_i32 = arith.constant 256 : i32
    %0 = arith.muli %arg0, %c256_i32 : i32
    %1 = tpu.assume_multiple %0, 256 : i32
    %c0_i32 = arith.constant 0 : i32
    %c0_i32_0 = arith.constant 0 : i32
    %2 = tpu.memref_slice %arg3[%c0_i32_0, %1] : memref<4x512xf32, #tpu.memory_space<any>> -> memref<4x512xf32, #tpu.memory_space<any>>
    %3 = tpu.memref_slice %arg9[%c0_i32] : memref<2x!tpu.dma_semaphore, #tpu.memory_space<semaphore_mem>> -> memref<1x!tpu.dma_semaphore, #tpu.memory_space<semaphore_mem>>
    %4 = tpu.memref_squeeze %3 : memref<1x!tpu.dma_semaphore, #tpu.memory_space<semaphore_mem>> -> memref<!tpu.dma_semaphore, #tpu.memory_space<semaphore_mem>>
    tpu.enqueue_dma source(%2 : memref<4x512xf32, #tpu.memory_space<any>>) target(%arg6 : memref<4x512xf32, #tpu.memory_space<vmem>>) target_semaphore(%4 : memref<!tpu.dma_semaphore, #tpu.memory_space<semaphore_mem>>)
    %c1_i32 = arith.constant 1 : i32
    %c0_i32_1 = arith.constant 0 : i32
    %5 = tpu.memref_slice %arg4[%c0_i32_1, %1] : memref<1x512xf32, #tpu.memory_space<any>> -> memref<1x512xf32, #tpu.memory_space<any>>
    %6 = tpu.memref_slice %arg9[%c1_i32] : memref<2x!tpu.dma_semaphore, #tpu.memory_space<semaphore_mem>> -> memref<1x!tpu.dma_semaphore, #tpu.memory_space<semaphore_mem>>
    %7 = tpu.memref_squeeze %6 : memref<1x!tpu.dma_semaphore, #tpu.memory_space<semaphore_mem>> -> memref<!tpu.dma_semaphore, #tpu.memory_space<semaphore_mem>>
    tpu.enqueue_dma source(%5 : memref<1x512xf32, #tpu.memory_space<any>>) target(%arg7 : memref<1x512xf32, #tpu.memory_space<vmem>>) target_semaphore(%7 : memref<!tpu.dma_semaphore, #tpu.memory_space<semaphore_mem>>)
    %c0_i32_2 = arith.constant 0 : i32
    %c0_i32_3 = arith.constant 0 : i32
    %8 = tpu.memref_slice %arg3[%c0_i32_3, %1] : memref<4x512xf32, #tpu.memory_space<any>> -> memref<4x512xf32, #tpu.memory_space<any>>
    %9 = tpu.memref_slice %arg9[%c0_i32_2] : memref<2x!tpu.dma_semaphore, #tpu.memory_space<semaphore_mem>> -> memref<1x!tpu.dma_semaphore, #tpu.memory_space<semaphore_mem>>
    %10 = tpu.memref_squeeze %9 : memref<1x!tpu.dma_semaphore, #tpu.memory_space<semaphore_mem>> -> memref<!tpu.dma_semaphore, #tpu.memory_space<semaphore_mem>>
    tpu.wait_dma2 semaphore(%10 : memref<!tpu.dma_semaphore, #tpu.memory_space<semaphore_mem>>) src(%8 : memref<4x512xf32, #tpu.memory_space<any>>) dst(%arg6 : memref<4x512xf32, #tpu.memory_space<vmem>>)
    %c1_i32_4 = arith.constant 1 : i32
    %c0_i32_5 = arith.constant 0 : i32
    %11 = tpu.memref_slice %arg4[%c0_i32_5, %1] : memref<1x512xf32, #tpu.memory_space<any>> -> memref<1x512xf32, #tpu.memory_space<any>>
    %12 = tpu.memref_slice %arg9[%c1_i32_4] : memref<2x!tpu.dma_semaphore, #tpu.memory_space<semaphore_mem>> -> memref<1x!tpu.dma_semaphore, #tpu.memory_space<semaphore_mem>>
    %13 = tpu.memref_squeeze %12 : memref<1x!tpu.dma_semaphore, #tpu.memory_space<semaphore_mem>> -> memref<!tpu.dma_semaphore, #tpu.memory_space<semaphore_mem>>
    tpu.wait_dma2 semaphore(%13 : memref<!tpu.dma_semaphore, #tpu.memory_space<semaphore_mem>>) src(%11 : memref<1x512xf32, #tpu.memory_space<any>>) dst(%arg7 : memref<1x512xf32, #tpu.memory_space<vmem>>)
    %c0 = arith.constant 0 : index
    %c128 = arith.constant 128 : index
    %14 = vector.load %arg6[%c0, %c128] : memref<4x512xf32, #tpu.memory_space<vmem>>, vector<4x256xf32>
    %c0_6 = arith.constant 0 : index
    %c128_7 = arith.constant 128 : index
    %15 = vector.load %arg7[%c0_6, %c128_7] : memref<1x512xf32, #tpu.memory_space<vmem>>, vector<1x256xf32>
    %c0_8 = arith.constant 0 : index
    %c0_9 = arith.constant 0 : index
    %16 = vector.load %arg1[%c0_8, %c0_9] : memref<8x256xf32, #tpu.memory_space<vmem>>, vector<1x256xf32>
    %c1 = arith.constant 1 : index
    %c0_10 = arith.constant 0 : index
    %17 = vector.load %arg1[%c1, %c0_10] : memref<8x256xf32, #tpu.memory_space<vmem>>, vector<1x256xf32>
    %c2 = arith.constant 2 : index
    %c0_11 = arith.constant 0 : index
    %18 = vector.load %arg1[%c2, %c0_11] : memref<8x256xf32, #tpu.memory_space<vmem>>, vector<1x256xf32>
    %c3 = arith.constant 3 : index
    %c0_12 = arith.constant 0 : index
    %19 = vector.load %arg1[%c3, %c0_12] : memref<8x256xf32, #tpu.memory_space<vmem>>, vector<1x256xf32>
    %cst = arith.constant 0.000000e+00 : f32
    %20 = vector.broadcast %cst : f32 to vector<1x256xf32>
    %cst_13 = arith.constant 0.000000e+00 : f32
    %21 = vector.broadcast %cst_13 : f32 to vector<1x256xf32>
    %c0_14 = arith.constant 0 : index
    %c55 = arith.constant 55 : index
    %22 = vector.load %arg6[%c0_14, %c55] : memref<4x512xf32, #tpu.memory_space<vmem>>, vector<4x256xf32>
    %cst_15 = arith.constant 0.000000e+00 : f32
    %23 = vector.broadcast %cst_15 : f32 to vector<4x256xf32>
    %24 = arith.cmpf ogt, %22, %23 : vector<4x256xf32>
    %25 = math.log %22 : vector<4x256xf32>
    %26 = arith.subf %25, %14 : vector<4x256xf32>
    %27 = arith.mulf %22, %26 : vector<4x256xf32>
    %cst_16 = arith.constant 0.000000e+00 : f32
    %28 = vector.broadcast %cst_16 : f32 to vector<4x256xf32>
    %29 = arith.select %24, %27, %28 : vector<4x256xi1>, vector<4x256xf32>
    %cst_17 = arith.constant dense<0.000000e+00> : vector<256xf32>
    %30 = vector.multi_reduction <add>, %29, %cst_17 [0] : vector<4x256xf32> to vector<256xf32>
    %31 = vector.shape_cast %30 : vector<256xf32> to vector<1x256xf32>
    %cst_18 = arith.constant 4.000000e+00 : f32
    %32 = vector.broadcast %cst_18 : f32 to vector<1x256xf32>
    %33 = arith.divf %31, %32 : vector<1x256xf32>
    %cst_19 = arith.constant 0.000000e+00 : f32
    %34 = vector.broadcast %cst_19 : f32 to vector<1x256xf32>
    %35 = arith.cmpf ogt, %16, %34 : vector<1x256xf32>
    %cst_20 = arith.constant 0.000000e+00 : f32
    %36 = vector.broadcast %cst_20 : f32 to vector<1x256xf32>
    %37 = arith.cmpf ogt, %17, %36 : vector<1x256xf32>
    %38 = arith.andi %35, %37 : vector<1x256xi1>
    %cst_21 = arith.constant 0.000000e+00 : f32
    %39 = vector.broadcast %cst_21 : f32 to vector<1x256xf32>
    %40 = arith.cmpf ogt, %18, %39 : vector<1x256xf32>
    %41 = arith.andi %38, %40 : vector<1x256xi1>
    %cst_22 = arith.constant 0.000000e+00 : f32
    %42 = vector.broadcast %cst_22 : f32 to vector<1x256xf32>
    %43 = arith.select %41, %33, %42 : vector<1x256xi1>, vector<1x256xf32>
    %44 = math.exp %43 : vector<1x256xf32>
    %cst_23 = arith.constant 0.000000e+00 : f32
    %45 = vector.broadcast %cst_23 : f32 to vector<1x256xf32>
    %46 = arith.cmpf oeq, %19, %45 : vector<1x256xf32>
    %cst_24 = arith.constant 0.000000e+00 : f32
    %47 = vector.broadcast %cst_24 : f32 to vector<1x256xf32>
    %48 = arith.select %46, %44, %47 : vector<1x256xi1>, vector<1x256xf32>
    %cst_25 = arith.constant 0.000000e+00 : f32
    %49 = vector.broadcast %cst_25 : f32 to vector<1x256xf32>
    %50 = arith.cmpf oeq, %16, %49 : vector<1x256xf32>
    %cst_26 = arith.constant 0.000000e+00 : f32
    %51 = vector.broadcast %cst_26 : f32 to vector<1x256xf32>
    %52 = arith.select %50, %48, %51 : vector<1x256xi1>, vector<1x256xf32>
    %cst_27 = arith.constant 0.000000e+00 : f32
    %53 = vector.broadcast %cst_27 : f32 to vector<1x256xf32>
    %54 = arith.cmpf oeq, %17, %53 : vector<1x256xf32>
    %cst_28 = arith.constant 0.000000e+00 : f32
    %55 = vector.broadcast %cst_28 : f32 to vector<1x256xf32>
    %56 = arith.select %54, %52, %55 : vector<1x256xi1>, vector<1x256xf32>
    %c0_29 = arith.constant 0 : index
    %c0_30 = arith.constant 0 : index
    %57 = vector.load %arg8[%c0_29, %c0_30] : memref<32x256xf32, #tpu.memory_space<vmem>>, vector<1x256xf32>
    tpu.vector_store %arg8[%c0_29, %c0_30], %56 {strides = array<i32>} : memref<32x256xf32, #tpu.memory_space<vmem>>, vector<1x256xf32>,
    %58 = arith.addf %20, %56 : vector<1x256xf32>
    %c0_31 = arith.constant 0 : index
    %c55_32 = arith.constant 55 : index
    %59 = vector.load %arg7[%c0_31, %c55_32] : memref<1x512xf32, #tpu.memory_space<vmem>>, vector<1x256xf32>
    %cst_33 = arith.constant 0.000000e+00 : f32
    %60 = vector.broadcast %cst_33 : f32 to vector<1x256xf32>
    %61 = arith.select %41, %59, %60 : vector<1x256xi1>, vector<1x256xf32>
    %c0_34 = arith.constant 0 : index
    %c56 = arith.constant 56 : index
    %62 = vector.load %arg6[%c0_34, %c56] : memref<4x512xf32, #tpu.memory_space<vmem>>, vector<4x256xf32>
    %cst_35 = arith.constant 0.000000e+00 : f32
    %63 = vector.broadcast %cst_35 : f32 to vector<4x256xf32>
    %64 = arith.cmpf ogt, %62, %63 : vector<4x256xf32>
    %65 = math.log %62 : vector<4x256xf32>
    %66 = arith.subf %65, %14 : vector<4x256xf32>
    %67 = arith.mulf %62, %66 : vector<4x256xf32>
    %cst_36 = arith.constant 0.000000e+00 : f32
    %68 = vector.broadcast %cst_36 : f32 to vector<4x256xf32>
    %69 = arith.select %64, %67, %68 : vector<4x256xi1>, vector<4x256xf32>
    %cst_37 = arith.constant dense<0.000000e+00> : vector<256xf32>
    %70 = vector.multi_reduction <add>, %69, %cst_37 [0] : vector<4x256xf32> to vector<256xf32>
    %71 = vector.shape_cast %70 : vector<256xf32> to vector<1x256xf32>
    %cst_38 = arith.constant 4.000000e+00 : f32
    %72 = vector.broadcast %cst_38 : f32 to vector<1x256xf32>
    %73 = arith.divf %71, %72 : vector<1x256xf32>
    %cst_39 = arith.constant 0.000000e+00 : f32
    %74 = vector.broadcast %cst_39 : f32 to vector<1x256xf32>
    %75 = arith.cmpf ogt, %16, %74 : vector<1x256xf32>
    %cst_40 = arith.constant 0.000000e+00 : f32
    %76 = vector.broadcast %cst_40 : f32 to vector<1x256xf32>
    %77 = arith.cmpf ogt, %17, %76 : vector<1x256xf32>
    %78 = arith.andi %75, %77 : vector<1x256xi1>
    %cst_41 = arith.constant 0.000000e+00 : f32
    %79 = vector.broadcast %cst_41 : f32 to vector<1x256xf32>
    %80 = arith.select %78, %73, %79 : vector<1x256xi1>, vector<1x256xf32>
    %81 = math.exp %80 : vector<1x256xf32>
    %cst_42 = arith.constant 0.000000e+00 : f32
    %82 = vector.broadcast %cst_42 : f32 to vector<1x256xf32>
    %83 = arith.cmpf oeq, %19, %82 : vector<1x256xf32>
    %cst_43 = arith.constant 0.000000e+00 : f32
    %84 = vector.broadcast %cst_43 : f32 to vector<1x256xf32>
    %85 = arith.select %83, %81, %84 : vector<1x256xi1>, vector<1x256xf32>
    %cst_44 = arith.constant 0.000000e+00 : f32
    %86 = vector.broadcast %cst_44 : f32 to vector<1x256xf32>
    %87 = arith.cmpf oeq, %16, %86 : vector<1x256xf32>
    %cst_45 = arith.constant 0.000000e+00 : f32
    %88 = vector.broadcast %cst_45 : f32 to vector<1x256xf32>
    %89 = arith.select %87, %85, %88 : vector<1x256xi1>, vector<1x256xf32>
    %c1_46 = arith.constant 1 : index
    %c0_47 = arith.constant 0 : index
    %90 = vector.load %arg8[%c1_46, %c0_47] : memref<32x256xf32, #tpu.memory_space<vmem>>, vector<1x256xf32>
    tpu.vector_store %arg8[%c1_46, %c0_47], %89 {strides = array<i32>} : memref<32x256xf32, #tpu.memory_space<vmem>>, vector<1x256xf32>,
    %91 = arith.addf %58, %89 : vector<1x256xf32>
    %c0_48 = arith.constant 0 : index
    %c56_49 = arith.constant 56 : index
    %92 = vector.load %arg7[%c0_48, %c56_49] : memref<1x512xf32, #tpu.memory_space<vmem>>, vector<1x256xf32>
    %cst_50 = arith.constant 0.000000e+00 : f32
    %93 = vector.broadcast %cst_50 : f32 to vector<1x256xf32>
    %94 = arith.select %78, %92, %93 : vector<1x256xi1>, vector<1x256xf32>
    %95 = arith.cmpf olt, %94, %61 : vector<1x256xf32>
    %cst_51 = arith.constant 1.000000e+00 : f32
    %96 = vector.broadcast %cst_51 : f32 to vector<1x256xf32>
    %97 = arith.select %95, %96, %21 : vector<1x256xi1>, vector<1x256xf32>
    %98 = arith.select %95, %94, %61 : vector<1x256xi1>, vector<1x256xf32>
    %c0_52 = arith.constant 0 : index
    %c57 = arith.constant 57 : index
    %99 = vector.load %arg6[%c0_52, %c57] : memref<4x512xf32, #tpu.memory_space<vmem>>, vector<4x256xf32>
    %cst_53 = arith.constant 0.000000e+00 : f32
    %100 = vector.broadcast %cst_53 : f32 to vector<4x256xf32>
    %101 = arith.cmpf ogt, %99, %100 : vector<4x256xf32>
    %102 = math.log %99 : vector<4x256xf32>
    %103 = arith.subf %102, %14 : vector<4x256xf32>
    %104 = arith.mulf %99, %103 : vector<4x256xf32>
    %cst_54 = arith.constant 0.000000e+00 : f32
    %105 = vector.broadcast %cst_54 : f32 to vector<4x256xf32>
    %106 = arith.select %101, %104, %105 : vector<4x256xi1>, vector<4x256xf32>
    %cst_55 = arith.constant dense<0.000000e+00> : vector<256xf32>
    %107 = vector.multi_reduction <add>, %106, %cst_55 [0] : vector<4x256xf32> to vector<256xf32>
    %108 = vector.shape_cast %107 : vector<256xf32> to vector<1x256xf32>
    %cst_56 = arith.constant 4.000000e+00 : f32
    %109 = vector.broadcast %cst_56 : f32 to vector<1x256xf32>
    %110 = arith.divf %108, %109 : vector<1x256xf32>
    %cst_57 = arith.constant 0.000000e+00 : f32
    %111 = vector.broadcast %cst_57 : f32 to vector<1x256xf32>
    %112 = arith.cmpf ogt, %16, %111 : vector<1x256xf32>
    %cst_58 = arith.constant 0.000000e+00 : f32
    %113 = vector.broadcast %cst_58 : f32 to vector<1x256xf32>
    %114 = arith.cmpf ogt, %17, %113 : vector<1x256xf32>
    %115 = arith.andi %112, %114 : vector<1x256xi1>
    %cst_59 = arith.constant 7.000000e+00 : f32
    %116 = vector.broadcast %cst_59 : f32 to vector<1x256xf32>
    %117 = arith.cmpf olt, %18, %116 : vector<1x256xf32>
    %118 = arith.andi %115, %117 : vector<1x256xi1>
    %cst_60 = arith.constant 0.000000e+00 : f32
    %119 = vector.broadcast %cst_60 : f32 to vector<1x256xf32>
    %120 = arith.select %118, %110, %119 : vector<1x256xi1>, vector<1x256xf32>
    %121 = math.exp %120 : vector<1x256xf32>
    %cst_61 = arith.constant 0.000000e+00 : f32
    %122 = vector.broadcast %cst_61 : f32 to vector<1x256xf32>
    %123 = arith.cmpf oeq, %19, %122 : vector<1x256xf32>
    %cst_62 = arith.constant 0.000000e+00 : f32
    %124 = vector.broadcast %cst_62 : f32 to vector<1x256xf32>
    %125 = arith.select %123, %121, %124 : vector<1x256xi1>, vector<1x256xf32>
    %cst_63 = arith.constant 0.000000e+00 : f32
    %126 = vector.broadcast %cst_63 : f32 to vector<1x256xf32>
    %127 = arith.cmpf oeq, %16, %126 : vector<1x256xf32>
    %cst_64 = arith.constant 0.000000e+00 : f32
    %128 = vector.broadcast %cst_64 : f32 to vector<1x256xf32>
    %129 = arith.select %127, %125, %128 : vector<1x256xi1>, vector<1x256xf32>
    %cst_65 = arith.constant 7.000000e+00 : f32
    %130 = vector.broadcast %cst_65 : f32 to vector<1x256xf32>
    %131 = arith.cmpf oeq, %17, %130 : vector<1x256xf32>
    %cst_66 = arith.constant 0.000000e+00 : f32
    %132 = vector.broadcast %cst_66 : f32 to vector<1x256xf32>
    %133 = arith.select %131, %129, %132 : vector<1x256xi1>, vector<1x256xf32>
    %c2_67 = arith.constant 2 : index
    %c0_68 = arith.constant 0 : index
    %134 = vector.load %arg8[%c2_67, %c0_68] : memref<32x256xf32, #tpu.memory_space<vmem>>, vector<1x256xf32>
    tpu.vector_store %arg8[%c2_67, %c0_68], %133 {strides = array<i32>} : memref<32x256xf32, #tpu.memory_space<vmem>>, vector<1x256xf32>,
    %135 = arith.addf %91, %133 : vector<1x256xf32>
    %c0_69 = arith.constant 0 : index
    %c57_70 = arith.constant 57 : index
    %136 = vector.load %arg7[%c0_69, %c57_70] : memref<1x512xf32, #tpu.memory_space<vmem>>, vector<1x256xf32>
    %cst_71 = arith.constant 0.000000e+00 : f32
    %137 = vector.broadcast %cst_71 : f32 to vector<1x256xf32>
    %138 = arith.select %118, %136, %137 : vector<1x256xi1>, vector<1x256xf32>
    %139 = arith.cmpf olt, %138, %98 : vector<1x256xf32>
    %cst_72 = arith.constant 2.000000e+00 : f32
    %140 = vector.broadcast %cst_72 : f32 to vector<1x256xf32>
    %141 = arith.select %139, %140, %97 : vector<1x256xi1>, vector<1x256xf32>
    %142 = arith.select %139, %138, %98 : vector<1x256xi1>, vector<1x256xf32>
    %c0_73 = arith.constant 0 : index
    %c63 = arith.constant 63 : index
    %143 = vector.load %arg6[%c0_73, %c63] : memref<4x512xf32, #tpu.memory_space<vmem>>, vector<4x256xf32>
    %cst_74 = arith.constant 0.000000e+00 : f32
    %144 = vector.broadcast %cst_74 : f32 to vector<4x256xf32>
    %145 = arith.cmpf ogt, %143, %144 : vector<4x256xf32>
    %146 = math.log %143 : vector<4x256xf32>
    %147 = arith.subf %146, %14 : vector<4x256xf32>
    %148 = arith.mulf %143, %147 : vector<4x256xf32>
    %cst_75 = arith.constant 0.000000e+00 : f32
    %149 = vector.broadcast %cst_75 : f32 to vector<4x256xf32>
    %150 = arith.select %145, %148, %149 : vector<4x256xi1>, vector<4x256xf32>
    %cst_76 = arith.constant dense<0.000000e+00> : vector<256xf32>
    %151 = vector.multi_reduction <add>, %150, %cst_76 [0] : vector<4x256xf32> to vector<256xf32>
    %152 = vector.shape_cast %151 : vector<256xf32> to vector<1x256xf32>
    %cst_77 = arith.constant 4.000000e+00 : f32
    %153 = vector.broadcast %cst_77 : f32 to vector<1x256xf32>
    %154 = arith.divf %152, %153 : vector<1x256xf32>
    %cst_78 = arith.constant 0.000000e+00 : f32
    %155 = vector.broadcast %cst_78 : f32 to vector<1x256xf32>
    %156 = arith.cmpf ogt, %16, %155 : vector<1x256xf32>
    %cst_79 = arith.constant 0.000000e+00 : f32
    %157 = vector.broadcast %cst_79 : f32 to vector<1x256xf32>
    %158 = arith.cmpf ogt, %18, %157 : vector<1x256xf32>
    %159 = arith.andi %156, %158 : vector<1x256xi1>
    %cst_80 = arith.constant 0.000000e+00 : f32
    %160 = vector.broadcast %cst_80 : f32 to vector<1x256xf32>
    %161 = arith.select %159, %154, %160 : vector<1x256xi1>, vector<1x256xf32>
    %162 = math.exp %161 : vector<1x256xf32>
    %cst_81 = arith.constant 0.000000e+00 : f32
    %163 = vector.broadcast %cst_81 : f32 to vector<1x256xf32>
    %164 = arith.cmpf oeq, %19, %163 : vector<1x256xf32>
    %cst_82 = arith.constant 0.000000e+00 : f32
    %165 = vector.broadcast %cst_82 : f32 to vector<1x256xf32>
    %166 = arith.select %164, %162, %165 : vector<1x256xi1>, vector<1x256xf32>
    %cst_83 = arith.constant 0.000000e+00 : f32
    %167 = vector.broadcast %cst_83 : f32 to vector<1x256xf32>
    %168 = arith.cmpf oeq, %17, %167 : vector<1x256xf32>
    %cst_84 = arith.constant 0.000000e+00 : f32
    %169 = vector.broadcast %cst_84 : f32 to vector<1x256xf32>
    %170 = arith.select %168, %166, %169 : vector<1x256xi1>, vector<1x256xf32>
    %c3_85 = arith.constant 3 : index
    %c0_86 = arith.constant 0 : index
    %171 = vector.load %arg8[%c3_85, %c0_86] : memref<32x256xf32, #tpu.memory_space<vmem>>, vector<1x256xf32>
    tpu.vector_store %arg8[%c3_85, %c0_86], %170 {strides = array<i32>} : memref<32x256xf32, #tpu.memory_space<vmem>>, vector<1x256xf32>,
    %172 = arith.addf %135, %170 : vector<1x256xf32>
    %c0_87 = arith.constant 0 : index
    %c63_88 = arith.constant 63 : index
    %173 = vector.load %arg7[%c0_87, %c63_88] : memref<1x512xf32, #tpu.memory_space<vmem>>, vector<1x256xf32>
    %cst_89 = arith.constant 0.000000e+00 : f32
    %174 = vector.broadcast %cst_89 : f32 to vector<1x256xf32>
    %175 = arith.select %159, %173, %174 : vector<1x256xi1>, vector<1x256xf32>
    %176 = arith.cmpf olt, %175, %142 : vector<1x256xf32>
    %cst_90 = arith.constant 3.000000e+00 : f32
    %177 = vector.broadcast %cst_90 : f32 to vector<1x256xf32>
    %178 = arith.select %176, %177, %141 : vector<1x256xi1>, vector<1x256xf32>
    %179 = arith.select %176, %175, %142 : vector<1x256xi1>, vector<1x256xf32>
    %c0_91 = arith.constant 0 : index
    %c64 = arith.constant 64 : index
    %180 = vector.load %arg6[%c0_91, %c64] : memref<4x512xf32, #tpu.memory_space<vmem>>, vector<4x256xf32>
    %cst_92 = arith.constant 0.000000e+00 : f32
    %181 = vector.broadcast %cst_92 : f32 to vector<4x256xf32>
    %182 = arith.cmpf ogt, %180, %181 : vector<4x256xf32>
    %183 = math.log %180 : vector<4x256xf32>
    %184 = arith.subf %183, %14 : vector<4x256xf32>
    %185 = arith.mulf %180, %184 : vector<4x256xf32>
    %cst_93 = arith.constant 0.000000e+00 : f32
    %186 = vector.broadcast %cst_93 : f32 to vector<4x256xf32>
    %187 = arith.select %182, %185, %186 : vector<4x256xi1>, vector<4x256xf32>
    %cst_94 = arith.constant dense<0.000000e+00> : vector<256xf32>
    %188 = vector.multi_reduction <add>, %187, %cst_94 [0] : vector<4x256xf32> to vector<256xf32>
    %189 = vector.shape_cast %188 : vector<256xf32> to vector<1x256xf32>
    %cst_95 = arith.constant 4.000000e+00 : f32
    %190 = vector.broadcast %cst_95 : f32 to vector<1x256xf32>
    %191 = arith.divf %189, %190 : vector<1x256xf32>
    %cst_96 = arith.constant 0.000000e+00 : f32
    %192 = vector.broadcast %cst_96 : f32 to vector<1x256xf32>
    %193 = arith.cmpf ogt, %16, %192 : vector<1x256xf32>
    %cst_97 = arith.constant 0.000000e+00 : f32
    %194 = vector.broadcast %cst_97 : f32 to vector<1x256xf32>
    %195 = arith.select %193, %191, %194 : vector<1x256xi1>, vector<1x256xf32>
    %196 = math.exp %195 : vector<1x256xf32>
    %cst_98 = arith.constant 0.000000e+00 : f32
    %197 = vector.broadcast %cst_98 : f32 to vector<1x256xf32>
    %198 = arith.cmpf oeq, %19, %197 : vector<1x256xf32>
    %cst_99 = arith.constant 0.000000e+00 : f32
    %199 = vector.broadcast %cst_99 : f32 to vector<1x256xf32>
    %200 = arith.select %198, %196, %199 : vector<1x256xi1>, vector<1x256xf32>
    %c4 = arith.constant 4 : index
    %c0_100 = arith.constant 0 : index
    %201 = vector.load %arg8[%c4, %c0_100] : memref<32x256xf32, #tpu.memory_space<vmem>>, vector<1x256xf32>
    tpu.vector_store %arg8[%c4, %c0_100], %200 {strides = array<i32>} : memref<32x256xf32, #tpu.memory_space<vmem>>, vector<1x256xf32>,
    %202 = arith.addf %172, %200 : vector<1x256xf32>
    %c0_101 = arith.constant 0 : index
    %c64_102 = arith.constant 64 : index
    %203 = vector.load %arg7[%c0_101, %c64_102] : memref<1x512xf32, #tpu.memory_space<vmem>>, vector<1x256xf32>
    %cst_103 = arith.constant 0.000000e+00 : f32
    %204 = vector.broadcast %cst_103 : f32 to vector<1x256xf32>
    %205 = arith.select %193, %203, %204 : vector<1x256xi1>, vector<1x256xf32>
    %206 = arith.cmpf olt, %205, %179 : vector<1x256xf32>
    %cst_104 = arith.constant 4.000000e+00 : f32
    %207 = vector.broadcast %cst_104 : f32 to vector<1x256xf32>
    %208 = arith.select %206, %207, %178 : vector<1x256xi1>, vector<1x256xf32>
    %209 = arith.select %206, %205, %179 : vector<1x256xi1>, vector<1x256xf32>
    %c0_105 = arith.constant 0 : index
    %c65 = arith.constant 65 : index
    %210 = vector.load %arg6[%c0_105, %c65] : memref<4x512xf32, #tpu.memory_space<vmem>>, vector<4x256xf32>
    %cst_106 = arith.constant 0.000000e+00 : f32
    %211 = vector.broadcast %cst_106 : f32 to vector<4x256xf32>
    %212 = arith.cmpf ogt, %210, %211 : vector<4x256xf32>
    %213 = math.log %210 : vector<4x256xf32>
    %214 = arith.subf %213, %14 : vector<4x256xf32>
    %215 = arith.mulf %210, %214 : vector<4x256xf32>
    %cst_107 = arith.constant 0.000000e+00 : f32
    %216 = vector.broadcast %cst_107 : f32 to vector<4x256xf32>
    %217 = arith.select %212, %215, %216 : vector<4x256xi1>, vector<4x256xf32>
    %cst_108 = arith.constant dense<0.000000e+00> : vector<256xf32>
    %218 = vector.multi_reduction <add>, %217, %cst_108 [0] : vector<4x256xf32> to vector<256xf32>
    %219 = vector.shape_cast %218 : vector<256xf32> to vector<1x256xf32>
    %cst_109 = arith.constant 4.000000e+00 : f32
    %220 = vector.broadcast %cst_109 : f32 to vector<1x256xf32>
    %221 = arith.divf %219, %220 : vector<1x256xf32>
    %cst_110 = arith.constant 0.000000e+00 : f32
    %222 = vector.broadcast %cst_110 : f32 to vector<1x256xf32>
    %223 = arith.cmpf ogt, %16, %222 : vector<1x256xf32>
    %cst_111 = arith.constant 7.000000e+00 : f32
    %224 = vector.broadcast %cst_111 : f32 to vector<1x256xf32>
    %225 = arith.cmpf olt, %18, %224 : vector<1x256xf32>
    %226 = arith.andi %223, %225 : vector<1x256xi1>
    %cst_112 = arith.constant 0.000000e+00 : f32
    %227 = vector.broadcast %cst_112 : f32 to vector<1x256xf32>
    %228 = arith.select %226, %221, %227 : vector<1x256xi1>, vector<1x256xf32>
    %229 = math.exp %228 : vector<1x256xf32>
    %cst_113 = arith.constant 0.000000e+00 : f32
    %230 = vector.broadcast %cst_113 : f32 to vector<1x256xf32>
    %231 = arith.cmpf oeq, %19, %230 : vector<1x256xf32>
    %cst_114 = arith.constant 0.000000e+00 : f32
    %232 = vector.broadcast %cst_114 : f32 to vector<1x256xf32>
    %233 = arith.select %231, %229, %232 : vector<1x256xi1>, vector<1x256xf32>
    %cst_115 = arith.constant 7.000000e+00 : f32
    %234 = vector.broadcast %cst_115 : f32 to vector<1x256xf32>
    %235 = arith.cmpf oeq, %17, %234 : vector<1x256xf32>
    %cst_116 = arith.constant 0.000000e+00 : f32
    %236 = vector.broadcast %cst_116 : f32 to vector<1x256xf32>
    %237 = arith.select %235, %233, %236 : vector<1x256xi1>, vector<1x256xf32>
    %c5 = arith.constant 5 : index
    %c0_117 = arith.constant 0 : index
    %238 = vector.load %arg8[%c5, %c0_117] : memref<32x256xf32, #tpu.memory_space<vmem>>, vector<1x256xf32>
    tpu.vector_store %arg8[%c5, %c0_117], %237 {strides = array<i32>} : memref<32x256xf32, #tpu.memory_space<vmem>>, vector<1x256xf32>,
    %239 = arith.addf %202, %237 : vector<1x256xf32>
    %c0_118 = arith.constant 0 : index
    %c65_119 = arith.constant 65 : index
    %240 = vector.load %arg7[%c0_118, %c65_119] : memref<1x512xf32, #tpu.memory_space<vmem>>, vector<1x256xf32>
    %cst_120 = arith.constant 0.000000e+00 : f32
    %241 = vector.broadcast %cst_120 : f32 to vector<1x256xf32>
    %242 = arith.select %226, %240, %241 : vector<1x256xi1>, vector<1x256xf32>
    %243 = arith.cmpf olt, %242, %209 : vector<1x256xf32>
    %cst_121 = arith.constant 5.000000e+00 : f32
    %244 = vector.broadcast %cst_121 : f32 to vector<1x256xf32>
    %245 = arith.select %243, %244, %208 : vector<1x256xi1>, vector<1x256xf32>
    %246 = arith.select %243, %242, %209 : vector<1x256xi1>, vector<1x256xf32>
    %c0_122 = arith.constant 0 : index
    %c71 = arith.constant 71 : index
    %247 = vector.load %arg6[%c0_122, %c71] : memref<4x512xf32, #tpu.memory_space<vmem>>, vector<4x256xf32>
    %cst_123 = arith.constant 0.000000e+00 : f32
    %248 = vector.broadcast %cst_123 : f32 to vector<4x256xf32>
    %249 = arith.cmpf ogt, %247, %248 : vector<4x256xf32>
    %250 = math.log %247 : vector<4x256xf32>
    %251 = arith.subf %250, %14 : vector<4x256xf32>
    %252 = arith.mulf %247, %251 : vector<4x256xf32>
    %cst_124 = arith.constant 0.000000e+00 : f32
    %253 = vector.broadcast %cst_124 : f32 to vector<4x256xf32>
    %254 = arith.select %249, %252, %253 : vector<4x256xi1>, vector<4x256xf32>
    %cst_125 = arith.constant dense<0.000000e+00> : vector<256xf32>
    %255 = vector.multi_reduction <add>, %254, %cst_125 [0] : vector<4x256xf32> to vector<256xf32>
    %256 = vector.shape_cast %255 : vector<256xf32> to vector<1x256xf32>
    %cst_126 = arith.constant 4.000000e+00 : f32
    %257 = vector.broadcast %cst_126 : f32 to vector<1x256xf32>
    %258 = arith.divf %256, %257 : vector<1x256xf32>
    %cst_127 = arith.constant 0.000000e+00 : f32
    %259 = vector.broadcast %cst_127 : f32 to vector<1x256xf32>
    %260 = arith.cmpf ogt, %16, %259 : vector<1x256xf32>
    %cst_128 = arith.constant 7.000000e+00 : f32
    %261 = vector.broadcast %cst_128 : f32 to vector<1x256xf32>
    %262 = arith.cmpf olt, %17, %261 : vector<1x256xf32>
    %263 = arith.andi %260, %262 : vector<1x256xi1>
    %cst_129 = arith.constant 0.000000e+00 : f32
    %264 = vector.broadcast %cst_129 : f32 to vector<1x256xf32>
    %265 = arith.cmpf ogt, %18, %264 : vector<1x256xf32>
    %266 = arith.andi %263, %265 : vector<1x256xi1>
    %cst_130 = arith.constant 0.000000e+00 : f32
    %267 = vector.broadcast %cst_130 : f32 to vector<1x256xf32>
    %268 = arith.select %266, %258, %267 : vector<1x256xi1>, vector<1x256xf32>
    %269 = math.exp %268 : vector<1x256xf32>
    %cst_131 = arith.constant 0.000000e+00 : f32
    %270 = vector.broadcast %cst_131 : f32 to vector<1x256xf32>
    %271 = arith.cmpf oeq, %19, %270 : vector<1x256xf32>
    %cst_132 = arith.constant 0.000000e+00 : f32
    %272 = vector.broadcast %cst_132 : f32 to vector<1x256xf32>
    %273 = arith.select %271, %269, %272 : vector<1x256xi1>, vector<1x256xf32>
    %cst_133 = arith.constant 7.000000e+00 : f32
    %274 = vector.broadcast %cst_133 : f32 to vector<1x256xf32>
    %275 = arith.cmpf oeq, %16, %274 : vector<1x256xf32>
    %cst_134 = arith.constant 0.000000e+00 : f32
    %276 = vector.broadcast %cst_134 : f32 to vector<1x256xf32>
    %277 = arith.select %275, %273, %276 : vector<1x256xi1>, vector<1x256xf32>
    %cst_135 = arith.constant 0.000000e+00 : f32
    %278 = vector.broadcast %cst_135 : f32 to vector<1x256xf32>
    %279 = arith.cmpf oeq, %17, %278 : vector<1x256xf32>
    %cst_136 = arith.constant 0.000000e+00 : f32
    %280 = vector.broadcast %cst_136 : f32 to vector<1x256xf32>
    %281 = arith.select %279, %277, %280 : vector<1x256xi1>, vector<1x256xf32>
    %c6 = arith.constant 6 : index
    %c0_137 = arith.constant 0 : index
    %282 = vector.load %arg8[%c6, %c0_137] : memref<32x256xf32, #tpu.memory_space<vmem>>, vector<1x256xf32>
    tpu.vector_store %arg8[%c6, %c0_137], %281 {strides = array<i32>} : memref<32x256xf32, #tpu.memory_space<vmem>>, vector<1x256xf32>,
    %283 = arith.addf %239, %281 : vector<1x256xf32>
    %c0_138 = arith.constant 0 : index
    %c71_139 = arith.constant 71 : index
    %284 = vector.load %arg7[%c0_138, %c71_139] : memref<1x512xf32, #tpu.memory_space<vmem>>, vector<1x256xf32>
    %cst_140 = arith.constant 0.000000e+00 : f32
    %285 = vector.broadcast %cst_140 : f32 to vector<1x256xf32>
    %286 = arith.select %266, %284, %285 : vector<1x256xi1>, vector<1x256xf32>
    %287 = arith.cmpf olt, %286, %246 : vector<1x256xf32>
    %cst_141 = arith.constant 6.000000e+00 : f32
    %288 = vector.broadcast %cst_141 : f32 to vector<1x256xf32>
    %289 = arith.select %287, %288, %245 : vector<1x256xi1>, vector<1x256xf32>
    %290 = arith.select %287, %286, %246 : vector<1x256xi1>, vector<1x256xf32>
    %c0_142 = arith.constant 0 : index
    %c72 = arith.constant 72 : index
    %291 = vector.load %arg6[%c0_142, %c72] : memref<4x512xf32, #tpu.memory_space<vmem>>, vector<4x256xf32>
    %cst_143 = arith.constant 0.000000e+00 : f32
    %292 = vector.broadcast %cst_143 : f32 to vector<4x256xf32>
    %293 = arith.cmpf ogt, %291, %292 : vector<4x256xf32>
    %294 = math.log %291 : vector<4x256xf32>
    %295 = arith.subf %294, %14 : vector<4x256xf32>
    %296 = arith.mulf %291, %295 : vector<4x256xf32>
    %cst_144 = arith.constant 0.000000e+00 : f32
    %297 = vector.broadcast %cst_144 : f32 to vector<4x256xf32>
    %298 = arith.select %293, %296, %297 : vector<4x256xi1>, vector<4x256xf32>
    %cst_145 = arith.constant dense<0.000000e+00> : vector<256xf32>
    %299 = vector.multi_reduction <add>, %298, %cst_145 [0] : vector<4x256xf32> to vector<256xf32>
    %300 = vector.shape_cast %299 : vector<256xf32> to vector<1x256xf32>
    %cst_146 = arith.constant 4.000000e+00 : f32
    %301 = vector.broadcast %cst_146 : f32 to vector<1x256xf32>
    %302 = arith.divf %300, %301 : vector<1x256xf32>
    %cst_147 = arith.constant 0.000000e+00 : f32
    %303 = vector.broadcast %cst_147 : f32 to vector<1x256xf32>
    %304 = arith.cmpf ogt, %16, %303 : vector<1x256xf32>
    %cst_148 = arith.constant 7.000000e+00 : f32
    %305 = vector.broadcast %cst_148 : f32 to vector<1x256xf32>
    %306 = arith.cmpf olt, %17, %305 : vector<1x256xf32>
    %307 = arith.andi %304, %306 : vector<1x256xi1>
    %cst_149 = arith.constant 0.000000e+00 : f32
    %308 = vector.broadcast %cst_149 : f32 to vector<1x256xf32>
    %309 = arith.select %307, %302, %308 : vector<1x256xi1>, vector<1x256xf32>
    %310 = math.exp %309 : vector<1x256xf32>
    %cst_150 = arith.constant 0.000000e+00 : f32
    %311 = vector.broadcast %cst_150 : f32 to vector<1x256xf32>
    %312 = arith.cmpf oeq, %19, %311 : vector<1x256xf32>
    %cst_151 = arith.constant 0.000000e+00 : f32
    %313 = vector.broadcast %cst_151 : f32 to vector<1x256xf32>
    %314 = arith.select %312, %310, %313 : vector<1x256xi1>, vector<1x256xf32>
    %cst_152 = arith.constant 7.000000e+00 : f32
    %315 = vector.broadcast %cst_152 : f32 to vector<1x256xf32>
    %316 = arith.cmpf oeq, %16, %315 : vector<1x256xf32>
    %cst_153 = arith.constant 0.000000e+00 : f32
    %317 = vector.broadcast %cst_153 : f32 to vector<1x256xf32>
    %318 = arith.select %316, %314, %317 : vector<1x256xi1>, vector<1x256xf32>
    %c7 = arith.constant 7 : index
    %c0_154 = arith.constant 0 : index
    %319 = vector.load %arg8[%c7, %c0_154] : memref<32x256xf32, #tpu.memory_space<vmem>>, vector<1x256xf32>
    tpu.vector_store %arg8[%c7, %c0_154], %318 {strides = array<i32>} : memref<32x256xf32, #tpu.memory_space<vmem>>, vector<1x256xf32>,
    %320 = arith.addf %283, %318 : vector<1x256xf32>
    %c0_155 = arith.constant 0 : index
    %c72_156 = arith.constant 72 : index
    %321 = vector.load %arg7[%c0_155, %c72_156] : memref<1x512xf32, #tpu.memory_space<vmem>>, vector<1x256xf32>
    %cst_157 = arith.constant 0.000000e+00 : f32
    %322 = vector.broadcast %cst_157 : f32 to vector<1x256xf32>
    %323 = arith.select %307, %321, %322 : vector<1x256xi1>, vector<1x256xf32>
    %324 = arith.cmpf olt, %323, %290 : vector<1x256xf32>
    %cst_158 = arith.constant 7.000000e+00 : f32
    %325 = vector.broadcast %cst_158 : f32 to vector<1x256xf32>
    %326 = arith.select %324, %325, %289 : vector<1x256xi1>, vector<1x256xf32>
    %327 = arith.select %324, %323, %290 : vector<1x256xi1>, vector<1x256xf32>
    %c0_159 = arith.constant 0 : index
    %c73 = arith.constant 73 : index
    %328 = vector.load %arg6[%c0_159, %c73] : memref<4x512xf32, #tpu.memory_space<vmem>>, vector<4x256xf32>
    %cst_160 = arith.constant 0.000000e+00 : f32
    %329 = vector.broadcast %cst_160 : f32 to vector<4x256xf32>
    %330 = arith.cmpf ogt, %328, %329 : vector<4x256xf32>
    %331 = math.log %328 : vector<4x256xf32>
    %332 = arith.subf %331, %14 : vector<4x256xf32>
    %333 = arith.mulf %328, %332 : vector<4x256xf32>
    %cst_161 = arith.constant 0.000000e+00 : f32
    %334 = vector.broadcast %cst_161 : f32 to vector<4x256xf32>
    %335 = arith.select %330, %333, %334 : vector<4x256xi1>, vector<4x256xf32>
    %cst_162 = arith.constant dense<0.000000e+00> : vector<256xf32>
    %336 = vector.multi_reduction <add>, %335, %cst_162 [0] : vector<4x256xf32> to vector<256xf32>
    %337 = vector.shape_cast %336 : vector<256xf32> to vector<1x256xf32>
    %cst_163 = arith.constant 4.000000e+00 : f32
    %338 = vector.broadcast %cst_163 : f32 to vector<1x256xf32>
    %339 = arith.divf %337, %338 : vector<1x256xf32>
    %cst_164 = arith.constant 0.000000e+00 : f32
    %340 = vector.broadcast %cst_164 : f32 to vector<1x256xf32>
    %341 = arith.cmpf ogt, %16, %340 : vector<1x256xf32>
    %cst_165 = arith.constant 7.000000e+00 : f32
    %342 = vector.broadcast %cst_165 : f32 to vector<1x256xf32>
    %343 = arith.cmpf olt, %17, %342 : vector<1x256xf32>
    %344 = arith.andi %341, %343 : vector<1x256xi1>
    %cst_166 = arith.constant 7.000000e+00 : f32
    %345 = vector.broadcast %cst_166 : f32 to vector<1x256xf32>
    %346 = arith.cmpf olt, %18, %345 : vector<1x256xf32>
    %347 = arith.andi %344, %346 : vector<1x256xi1>
    %cst_167 = arith.constant 0.000000e+00 : f32
    %348 = vector.broadcast %cst_167 : f32 to vector<1x256xf32>
    %349 = arith.select %347, %339, %348 : vector<1x256xi1>, vector<1x256xf32>
    %350 = math.exp %349 : vector<1x256xf32>
    %cst_168 = arith.constant 0.000000e+00 : f32
    %351 = vector.broadcast %cst_168 : f32 to vector<1x256xf32>
    %352 = arith.cmpf oeq, %19, %351 : vector<1x256xf32>
    %cst_169 = arith.constant 0.000000e+00 : f32
    %353 = vector.broadcast %cst_169 : f32 to vector<1x256xf32>
    %354 = arith.select %352, %350, %353 : vector<1x256xi1>, vector<1x256xf32>
    %cst_170 = arith.constant 7.000000e+00 : f32
    %355 = vector.broadcast %cst_170 : f32 to vector<1x256xf32>
    %356 = arith.cmpf oeq, %16, %355 : vector<1x256xf32>
    %cst_171 = arith.constant 0.000000e+00 : f32
    %357 = vector.broadcast %cst_171 : f32 to vector<1x256xf32>
    %358 = arith.select %356, %354, %357 : vector<1x256xi1>, vector<1x256xf32>
    %cst_172 = arith.constant 7.000000e+00 : f32
    %359 = vector.broadcast %cst_172 : f32 to vector<1x256xf32>
    %360 = arith.cmpf oeq, %17, %359 : vector<1x256xf32>
    %cst_173 = arith.constant 0.000000e+00 : f32
    %361 = vector.broadcast %cst_173 : f32 to vector<1x256xf32>
    %362 = arith.select %360, %358, %361 : vector<1x256xi1>, vector<1x256xf32>
    %c8 = arith.constant 8 : index
    %c0_174 = arith.constant 0 : index
    %363 = vector.load %arg8[%c8, %c0_174] : memref<32x256xf32, #tpu.memory_space<vmem>>, vector<1x256xf32>
    tpu.vector_store %arg8[%c8, %c0_174], %362 {strides = array<i32>} : memref<32x256xf32, #tpu.memory_space<vmem>>, vector<1x256xf32>,
    %364 = arith.addf %320, %362 : vector<1x256xf32>
    %c0_175 = arith.constant 0 : index
    %c73_176 = arith.constant 73 : index
    %365 = vector.load %arg7[%c0_175, %c73_176] : memref<1x512xf32, #tpu.memory_space<vmem>>, vector<1x256xf32>
    %cst_177 = arith.constant 0.000000e+00 : f32
    %366 = vector.broadcast %cst_177 : f32 to vector<1x256xf32>
    %367 = arith.select %347, %365, %366 : vector<1x256xi1>, vector<1x256xf32>
    %368 = arith.cmpf olt, %367, %327 : vector<1x256xf32>
    %cst_178 = arith.constant 8.000000e+00 : f32
    %369 = vector.broadcast %cst_178 : f32 to vector<1x256xf32>
    %370 = arith.select %368, %369, %326 : vector<1x256xi1>, vector<1x256xf32>
    %371 = arith.select %368, %367, %327 : vector<1x256xi1>, vector<1x256xf32>
    %c0_179 = arith.constant 0 : index
    %c119 = arith.constant 119 : index
    %372 = vector.load %arg6[%c0_179, %c119] : memref<4x512xf32, #tpu.memory_space<vmem>>, vector<4x256xf32>
    %cst_180 = arith.constant 0.000000e+00 : f32
    %373 = vector.broadcast %cst_180 : f32 to vector<4x256xf32>
    %374 = arith.cmpf ogt, %372, %373 : vector<4x256xf32>
    %375 = math.log %372 : vector<4x256xf32>
    %376 = arith.subf %375, %14 : vector<4x256xf32>
    %377 = arith.mulf %372, %376 : vector<4x256xf32>
    %cst_181 = arith.constant 0.000000e+00 : f32
    %378 = vector.broadcast %cst_181 : f32 to vector<4x256xf32>
    %379 = arith.select %374, %377, %378 : vector<4x256xi1>, vector<4x256xf32>
    %cst_182 = arith.constant dense<0.000000e+00> : vector<256xf32>
    %380 = vector.multi_reduction <add>, %379, %cst_182 [0] : vector<4x256xf32> to vector<256xf32>
    %381 = vector.shape_cast %380 : vector<256xf32> to vector<1x256xf32>
    %cst_183 = arith.constant 4.000000e+00 : f32
    %382 = vector.broadcast %cst_183 : f32 to vector<1x256xf32>
    %383 = arith.divf %381, %382 : vector<1x256xf32>
    %cst_184 = arith.constant 0.000000e+00 : f32
    %384 = vector.broadcast %cst_184 : f32 to vector<1x256xf32>
    %385 = arith.cmpf ogt, %17, %384 : vector<1x256xf32>
    %cst_185 = arith.constant 0.000000e+00 : f32
    %386 = vector.broadcast %cst_185 : f32 to vector<1x256xf32>
    %387 = arith.cmpf ogt, %18, %386 : vector<1x256xf32>
    %388 = arith.andi %385, %387 : vector<1x256xi1>
    %cst_186 = arith.constant 0.000000e+00 : f32
    %389 = vector.broadcast %cst_186 : f32 to vector<1x256xf32>
    %390 = arith.select %388, %383, %389 : vector<1x256xi1>, vector<1x256xf32>
    %391 = math.exp %390 : vector<1x256xf32>
    %cst_187 = arith.constant 0.000000e+00 : f32
    %392 = vector.broadcast %cst_187 : f32 to vector<1x256xf32>
    %393 = arith.cmpf oeq, %16, %392 : vector<1x256xf32>
    %cst_188 = arith.constant 0.000000e+00 : f32
    %394 = vector.broadcast %cst_188 : f32 to vector<1x256xf32>
    %395 = arith.select %393, %391, %394 : vector<1x256xi1>, vector<1x256xf32>
    %cst_189 = arith.constant 0.000000e+00 : f32
    %396 = vector.broadcast %cst_189 : f32 to vector<1x256xf32>
    %397 = arith.cmpf oeq, %17, %396 : vector<1x256xf32>
    %cst_190 = arith.constant 0.000000e+00 : f32
    %398 = vector.broadcast %cst_190 : f32 to vector<1x256xf32>
    %399 = arith.select %397, %395, %398 : vector<1x256xi1>, vector<1x256xf32>
    %c9 = arith.constant 9 : index
    %c0_191 = arith.constant 0 : index
    %400 = vector.load %arg8[%c9, %c0_191] : memref<32x256xf32, #tpu.memory_space<vmem>>, vector<1x256xf32>
    tpu.vector_store %arg8[%c9, %c0_191], %399 {strides = array<i32>} : memref<32x256xf32, #tpu.memory_space<vmem>>, vector<1x256xf32>,
    %401 = arith.addf %364, %399 : vector<1x256xf32>
    %c0_192 = arith.constant 0 : index
    %c119_193 = arith.constant 119 : index
    %402 = vector.load %arg7[%c0_192, %c119_193] : memref<1x512xf32, #tpu.memory_space<vmem>>, vector<1x256xf32>
    %cst_194 = arith.constant 0.000000e+00 : f32
    %403 = vector.broadcast %cst_194 : f32 to vector<1x256xf32>
    %404 = arith.select %388, %402, %403 : vector<1x256xi1>, vector<1x256xf32>
    %405 = arith.cmpf olt, %404, %371 : vector<1x256xf32>
    %cst_195 = arith.constant 9.000000e+00 : f32
    %406 = vector.broadcast %cst_195 : f32 to vector<1x256xf32>
    %407 = arith.select %405, %406, %370 : vector<1x256xi1>, vector<1x256xf32>
    %408 = arith.select %405, %404, %371 : vector<1x256xi1>, vector<1x256xf32>
    %c0_196 = arith.constant 0 : index
    %c120 = arith.constant 120 : index
    %409 = vector.load %arg6[%c0_196, %c120] : memref<4x512xf32, #tpu.memory_space<vmem>>, vector<4x256xf32>
    %cst_197 = arith.constant 0.000000e+00 : f32
    %410 = vector.broadcast %cst_197 : f32 to vector<4x256xf32>
    %411 = arith.cmpf ogt, %409, %410 : vector<4x256xf32>
    %412 = math.log %409 : vector<4x256xf32>
    %413 = arith.subf %412, %14 : vector<4x256xf32>
    %414 = arith.mulf %409, %413 : vector<4x256xf32>
    %cst_198 = arith.constant 0.000000e+00 : f32
    %415 = vector.broadcast %cst_198 : f32 to vector<4x256xf32>
    %416 = arith.select %411, %414, %415 : vector<4x256xi1>, vector<4x256xf32>
    %cst_199 = arith.constant dense<0.000000e+00> : vector<256xf32>
    %417 = vector.multi_reduction <add>, %416, %cst_199 [0] : vector<4x256xf32> to vector<256xf32>
    %418 = vector.shape_cast %417 : vector<256xf32> to vector<1x256xf32>
    %cst_200 = arith.constant 4.000000e+00 : f32
    %419 = vector.broadcast %cst_200 : f32 to vector<1x256xf32>
    %420 = arith.divf %418, %419 : vector<1x256xf32>
    %cst_201 = arith.constant 0.000000e+00 : f32
    %421 = vector.broadcast %cst_201 : f32 to vector<1x256xf32>
    %422 = arith.cmpf ogt, %17, %421 : vector<1x256xf32>
    %cst_202 = arith.constant 0.000000e+00 : f32
    %423 = vector.broadcast %cst_202 : f32 to vector<1x256xf32>
    %424 = arith.select %422, %420, %423 : vector<1x256xi1>, vector<1x256xf32>
    %425 = math.exp %424 : vector<1x256xf32>
    %cst_203 = arith.constant 0.000000e+00 : f32
    %426 = vector.broadcast %cst_203 : f32 to vector<1x256xf32>
    %427 = arith.cmpf oeq, %16, %426 : vector<1x256xf32>
    %cst_204 = arith.constant 0.000000e+00 : f32
    %428 = vector.broadcast %cst_204 : f32 to vector<1x256xf32>
    %429 = arith.select %427, %425, %428 : vector<1x256xi1>, vector<1x256xf32>
    %c10 = arith.constant 10 : index
    %c0_205 = arith.constant 0 : index
    %430 = vector.load %arg8[%c10, %c0_205] : memref<32x256xf32, #tpu.memory_space<vmem>>, vector<1x256xf32>
    tpu.vector_store %arg8[%c10, %c0_205], %429 {strides = array<i32>} : memref<32x256xf32, #tpu.memory_space<vmem>>, vector<1x256xf32>,
    %431 = arith.addf %401, %429 : vector<1x256xf32>
    %c0_206 = arith.constant 0 : index
    %c120_207 = arith.constant 120 : index
    %432 = vector.load %arg7[%c0_206, %c120_207] : memref<1x512xf32, #tpu.memory_space<vmem>>, vector<1x256xf32>
    %cst_208 = arith.constant 0.000000e+00 : f32
    %433 = vector.broadcast %cst_208 : f32 to vector<1x256xf32>
    %434 = arith.select %422, %432, %433 : vector<1x256xi1>, vector<1x256xf32>
    %435 = arith.cmpf olt, %434, %408 : vector<1x256xf32>
    %cst_209 = arith.constant 1.000000e+01 : f32
    %436 = vector.broadcast %cst_209 : f32 to vector<1x256xf32>
    %437 = arith.select %435, %436, %407 : vector<1x256xi1>, vector<1x256xf32>
    %438 = arith.select %435, %434, %408 : vector<1x256xi1>, vector<1x256xf32>
    %c0_210 = arith.constant 0 : index
    %c121 = arith.constant 121 : index
    %439 = vector.load %arg6[%c0_210, %c121] : memref<4x512xf32, #tpu.memory_space<vmem>>, vector<4x256xf32>
    %cst_211 = arith.constant 0.000000e+00 : f32
    %440 = vector.broadcast %cst_211 : f32 to vector<4x256xf32>
    %441 = arith.cmpf ogt, %439, %440 : vector<4x256xf32>
    %442 = math.log %439 : vector<4x256xf32>
    %443 = arith.subf %442, %14 : vector<4x256xf32>
    %444 = arith.mulf %439, %443 : vector<4x256xf32>
    %cst_212 = arith.constant 0.000000e+00 : f32
    %445 = vector.broadcast %cst_212 : f32 to vector<4x256xf32>
    %446 = arith.select %441, %444, %445 : vector<4x256xi1>, vector<4x256xf32>
    %cst_213 = arith.constant dense<0.000000e+00> : vector<256xf32>
    %447 = vector.multi_reduction <add>, %446, %cst_213 [0] : vector<4x256xf32> to vector<256xf32>
    %448 = vector.shape_cast %447 : vector<256xf32> to vector<1x256xf32>
    %cst_214 = arith.constant 4.000000e+00 : f32
    %449 = vector.broadcast %cst_214 : f32 to vector<1x256xf32>
    %450 = arith.divf %448, %449 : vector<1x256xf32>
    %cst_215 = arith.constant 0.000000e+00 : f32
    %451 = vector.broadcast %cst_215 : f32 to vector<1x256xf32>
    %452 = arith.cmpf ogt, %17, %451 : vector<1x256xf32>
    %cst_216 = arith.constant 7.000000e+00 : f32
    %453 = vector.broadcast %cst_216 : f32 to vector<1x256xf32>
    %454 = arith.cmpf olt, %18, %453 : vector<1x256xf32>
    %455 = arith.andi %452, %454 : vector<1x256xi1>
    %cst_217 = arith.constant 0.000000e+00 : f32
    %456 = vector.broadcast %cst_217 : f32 to vector<1x256xf32>
    %457 = arith.select %455, %450, %456 : vector<1x256xi1>, vector<1x256xf32>
    %458 = math.exp %457 : vector<1x256xf32>
    %cst_218 = arith.constant 0.000000e+00 : f32
    %459 = vector.broadcast %cst_218 : f32 to vector<1x256xf32>
    %460 = arith.cmpf oeq, %16, %459 : vector<1x256xf32>
    %cst_219 = arith.constant 0.000000e+00 : f32
    %461 = vector.broadcast %cst_219 : f32 to vector<1x256xf32>
    %462 = arith.select %460, %458, %461 : vector<1x256xi1>, vector<1x256xf32>
    %cst_220 = arith.constant 7.000000e+00 : f32
    %463 = vector.broadcast %cst_220 : f32 to vector<1x256xf32>
    %464 = arith.cmpf oeq, %17, %463 : vector<1x256xf32>
    %cst_221 = arith.constant 0.000000e+00 : f32
    %465 = vector.broadcast %cst_221 : f32 to vector<1x256xf32>
    %466 = arith.select %464, %462, %465 : vector<1x256xi1>, vector<1x256xf32>
    %c11 = arith.constant 11 : index
    %c0_222 = arith.constant 0 : index
    %467 = vector.load %arg8[%c11, %c0_222] : memref<32x256xf32, #tpu.memory_space<vmem>>, vector<1x256xf32>
    tpu.vector_store %arg8[%c11, %c0_222], %466 {strides = array<i32>} : memref<32x256xf32, #tpu.memory_space<vmem>>, vector<1x256xf32>,
    %468 = arith.addf %431, %466 : vector<1x256xf32>
    %c0_223 = arith.constant 0 : index
    %c121_224 = arith.constant 121 : index
    %469 = vector.load %arg7[%c0_223, %c121_224] : memref<1x512xf32, #tpu.memory_space<vmem>>, vector<1x256xf32>
    %cst_225 = arith.constant 0.000000e+00 : f32
    %470 = vector.broadcast %cst_225 : f32 to vector<1x256xf32>
    %471 = arith.select %455, %469, %470 : vector<1x256xi1>, vector<1x256xf32>
    %472 = arith.cmpf olt, %471, %438 : vector<1x256xf32>
    %cst_226 = arith.constant 1.100000e+01 : f32
    %473 = vector.broadcast %cst_226 : f32 to vector<1x256xf32>
    %474 = arith.select %472, %473, %437 : vector<1x256xi1>, vector<1x256xf32>
    %475 = arith.select %472, %471, %438 : vector<1x256xi1>, vector<1x256xf32>
    %c0_227 = arith.constant 0 : index
    %c127 = arith.constant 127 : index
    %476 = vector.load %arg6[%c0_227, %c127] : memref<4x512xf32, #tpu.memory_space<vmem>>, vector<4x256xf32>
    %cst_228 = arith.constant 0.000000e+00 : f32
    %477 = vector.broadcast %cst_228 : f32 to vector<4x256xf32>
    %478 = arith.cmpf ogt, %476, %477 : vector<4x256xf32>
    %479 = math.log %476 : vector<4x256xf32>
    %480 = arith.subf %479, %14 : vector<4x256xf32>
    %481 = arith.mulf %476, %480 : vector<4x256xf32>
    %cst_229 = arith.constant 0.000000e+00 : f32
    %482 = vector.broadcast %cst_229 : f32 to vector<4x256xf32>
    %483 = arith.select %478, %481, %482 : vector<4x256xi1>, vector<4x256xf32>
    %cst_230 = arith.constant dense<0.000000e+00> : vector<256xf32>
    %484 = vector.multi_reduction <add>, %483, %cst_230 [0] : vector<4x256xf32> to vector<256xf32>
    %485 = vector.shape_cast %484 : vector<256xf32> to vector<1x256xf32>
    %cst_231 = arith.constant 4.000000e+00 : f32
    %486 = vector.broadcast %cst_231 : f32 to vector<1x256xf32>
    %487 = arith.divf %485, %486 : vector<1x256xf32>
    %cst_232 = arith.constant 0.000000e+00 : f32
    %488 = vector.broadcast %cst_232 : f32 to vector<1x256xf32>
    %489 = arith.cmpf ogt, %18, %488 : vector<1x256xf32>
    %cst_233 = arith.constant 0.000000e+00 : f32
    %490 = vector.broadcast %cst_233 : f32 to vector<1x256xf32>
    %491 = arith.select %489, %487, %490 : vector<1x256xi1>, vector<1x256xf32>
    %492 = math.exp %491 : vector<1x256xf32>
    %cst_234 = arith.constant 0.000000e+00 : f32
    %493 = vector.broadcast %cst_234 : f32 to vector<1x256xf32>
    %494 = arith.cmpf oeq, %17, %493 : vector<1x256xf32>
    %cst_235 = arith.constant 0.000000e+00 : f32
    %495 = vector.broadcast %cst_235 : f32 to vector<1x256xf32>
    %496 = arith.select %494, %492, %495 : vector<1x256xi1>, vector<1x256xf32>
    %c12 = arith.constant 12 : index
    %c0_236 = arith.constant 0 : index
    %497 = vector.load %arg8[%c12, %c0_236] : memref<32x256xf32, #tpu.memory_space<vmem>>, vector<1x256xf32>
    tpu.vector_store %arg8[%c12, %c0_236], %496 {strides = array<i32>} : memref<32x256xf32, #tpu.memory_space<vmem>>, vector<1x256xf32>,
    %498 = arith.addf %468, %496 : vector<1x256xf32>
    %c0_237 = arith.constant 0 : index
    %c127_238 = arith.constant 127 : index
    %499 = vector.load %arg7[%c0_237, %c127_238] : memref<1x512xf32, #tpu.memory_space<vmem>>, vector<1x256xf32>
    %cst_239 = arith.constant 0.000000e+00 : f32
    %500 = vector.broadcast %cst_239 : f32 to vector<1x256xf32>
    %501 = arith.select %489, %499, %500 : vector<1x256xi1>, vector<1x256xf32>
    %502 = arith.cmpf olt, %501, %475 : vector<1x256xf32>
    %cst_240 = arith.constant 1.200000e+01 : f32
    %503 = vector.broadcast %cst_240 : f32 to vector<1x256xf32>
    %504 = arith.select %502, %503, %474 : vector<1x256xi1>, vector<1x256xf32>
    %505 = arith.select %502, %501, %475 : vector<1x256xi1>, vector<1x256xf32>
    %c0_241 = arith.constant 0 : index
    %c129 = arith.constant 129 : index
    %506 = vector.load %arg6[%c0_241, %c129] : memref<4x512xf32, #tpu.memory_space<vmem>>, vector<4x256xf32>
    %cst_242 = arith.constant 0.000000e+00 : f32
    %507 = vector.broadcast %cst_242 : f32 to vector<4x256xf32>
    %508 = arith.cmpf ogt, %506, %507 : vector<4x256xf32>
    %509 = math.log %506 : vector<4x256xf32>
    %510 = arith.subf %509, %14 : vector<4x256xf32>
    %511 = arith.mulf %506, %510 : vector<4x256xf32>
    %cst_243 = arith.constant 0.000000e+00 : f32
    %512 = vector.broadcast %cst_243 : f32 to vector<4x256xf32>
    %513 = arith.select %508, %511, %512 : vector<4x256xi1>, vector<4x256xf32>
    %cst_244 = arith.constant dense<0.000000e+00> : vector<256xf32>
    %514 = vector.multi_reduction <add>, %513, %cst_244 [0] : vector<4x256xf32> to vector<256xf32>
    %515 = vector.shape_cast %514 : vector<256xf32> to vector<1x256xf32>
    %cst_245 = arith.constant 4.000000e+00 : f32
    %516 = vector.broadcast %cst_245 : f32 to vector<1x256xf32>
    %517 = arith.divf %515, %516 : vector<1x256xf32>
    %cst_246 = arith.constant 7.000000e+00 : f32
    %518 = vector.broadcast %cst_246 : f32 to vector<1x256xf32>
    %519 = arith.cmpf olt, %18, %518 : vector<1x256xf32>
    %cst_247 = arith.constant 0.000000e+00 : f32
    %520 = vector.broadcast %cst_247 : f32 to vector<1x256xf32>
    %521 = arith.select %519, %517, %520 : vector<1x256xi1>, vector<1x256xf32>
    %522 = math.exp %521 : vector<1x256xf32>
    %cst_248 = arith.constant 7.000000e+00 : f32
    %523 = vector.broadcast %cst_248 : f32 to vector<1x256xf32>
    %524 = arith.cmpf oeq, %17, %523 : vector<1x256xf32>
    %cst_249 = arith.constant 0.000000e+00 : f32
    %525 = vector.broadcast %cst_249 : f32 to vector<1x256xf32>
    %526 = arith.select %524, %522, %525 : vector<1x256xi1>, vector<1x256xf32>
    %c13 = arith.constant 13 : index
    %c0_250 = arith.constant 0 : index
    %527 = vector.load %arg8[%c13, %c0_250] : memref<32x256xf32, #tpu.memory_space<vmem>>, vector<1x256xf32>
    tpu.vector_store %arg8[%c13, %c0_250], %526 {strides = array<i32>} : memref<32x256xf32, #tpu.memory_space<vmem>>, vector<1x256xf32>,
    %528 = arith.addf %498, %526 : vector<1x256xf32>
    %c0_251 = arith.constant 0 : index
    %c129_252 = arith.constant 129 : index
    %529 = vector.load %arg7[%c0_251, %c129_252] : memref<1x512xf32, #tpu.memory_space<vmem>>, vector<1x256xf32>
    %cst_253 = arith.constant 0.000000e+00 : f32
    %530 = vector.broadcast %cst_253 : f32 to vector<1x256xf32>
    %531 = arith.select %519, %529, %530 : vector<1x256xi1>, vector<1x256xf32>
    %532 = arith.cmpf olt, %531, %505 : vector<1x256xf32>
    %cst_254 = arith.constant 1.300000e+01 : f32
    %533 = vector.broadcast %cst_254 : f32 to vector<1x256xf32>
    %534 = arith.select %532, %533, %504 : vector<1x256xi1>, vector<1x256xf32>
    %535 = arith.select %532, %531, %505 : vector<1x256xi1>, vector<1x256xf32>
    %c0_255 = arith.constant 0 : index
    %c135 = arith.constant 135 : index
    %536 = vector.load %arg6[%c0_255, %c135] : memref<4x512xf32, #tpu.memory_space<vmem>>, vector<4x256xf32>
    %cst_256 = arith.constant 0.000000e+00 : f32
    %537 = vector.broadcast %cst_256 : f32 to vector<4x256xf32>
    %538 = arith.cmpf ogt, %536, %537 : vector<4x256xf32>
    %539 = math.log %536 : vector<4x256xf32>
    %540 = arith.subf %539, %14 : vector<4x256xf32>
    %541 = arith.mulf %536, %540 : vector<4x256xf32>
    %cst_257 = arith.constant 0.000000e+00 : f32
    %542 = vector.broadcast %cst_257 : f32 to vector<4x256xf32>
    %543 = arith.select %538, %541, %542 : vector<4x256xi1>, vector<4x256xf32>
    %cst_258 = arith.constant dense<0.000000e+00> : vector<256xf32>
    %544 = vector.multi_reduction <add>, %543, %cst_258 [0] : vector<4x256xf32> to vector<256xf32>
    %545 = vector.shape_cast %544 : vector<256xf32> to vector<1x256xf32>
    %cst_259 = arith.constant 4.000000e+00 : f32
    %546 = vector.broadcast %cst_259 : f32 to vector<1x256xf32>
    %547 = arith.divf %545, %546 : vector<1x256xf32>
    %cst_260 = arith.constant 7.000000e+00 : f32
    %548 = vector.broadcast %cst_260 : f32 to vector<1x256xf32>
    %549 = arith.cmpf olt, %17, %548 : vector<1x256xf32>
    %cst_261 = arith.constant 0.000000e+00 : f32
    %550 = vector.broadcast %cst_261 : f32 to vector<1x256xf32>
    %551 = arith.cmpf ogt, %18, %550 : vector<1x256xf32>
    %552 = arith.andi %549, %551 : vector<1x256xi1>
    %cst_262 = arith.constant 0.000000e+00 : f32
    %553 = vector.broadcast %cst_262 : f32 to vector<1x256xf32>
    %554 = arith.select %552, %547, %553 : vector<1x256xi1>, vector<1x256xf32>
    %555 = math.exp %554 : vector<1x256xf32>
    %cst_263 = arith.constant 7.000000e+00 : f32
    %556 = vector.broadcast %cst_263 : f32 to vector<1x256xf32>
    %557 = arith.cmpf oeq, %16, %556 : vector<1x256xf32>
    %cst_264 = arith.constant 0.000000e+00 : f32
    %558 = vector.broadcast %cst_264 : f32 to vector<1x256xf32>
    %559 = arith.select %557, %555, %558 : vector<1x256xi1>, vector<1x256xf32>
    %cst_265 = arith.constant 0.000000e+00 : f32
    %560 = vector.broadcast %cst_265 : f32 to vector<1x256xf32>
    %561 = arith.cmpf oeq, %17, %560 : vector<1x256xf32>
    %cst_266 = arith.constant 0.000000e+00 : f32
    %562 = vector.broadcast %cst_266 : f32 to vector<1x256xf32>
    %563 = arith.select %561, %559, %562 : vector<1x256xi1>, vector<1x256xf32>
    %c14 = arith.constant 14 : index
    %c0_267 = arith.constant 0 : index
    %564 = vector.load %arg8[%c14, %c0_267] : memref<32x256xf32, #tpu.memory_space<vmem>>, vector<1x256xf32>
    tpu.vector_store %arg8[%c14, %c0_267], %563 {strides = array<i32>} : memref<32x256xf32, #tpu.memory_space<vmem>>, vector<1x256xf32>,
    %565 = arith.addf %528, %563 : vector<1x256xf32>
    %c0_268 = arith.constant 0 : index
    %c135_269 = arith.constant 135 : index
    %566 = vector.load %arg7[%c0_268, %c135_269] : memref<1x512xf32, #tpu.memory_space<vmem>>, vector<1x256xf32>
    %cst_270 = arith.constant 0.000000e+00 : f32
    %567 = vector.broadcast %cst_270 : f32 to vector<1x256xf32>
    %568 = arith.select %552, %566, %567 : vector<1x256xi1>, vector<1x256xf32>
    %569 = arith.cmpf olt, %568, %535 : vector<1x256xf32>
    %cst_271 = arith.constant 1.400000e+01 : f32
    %570 = vector.broadcast %cst_271 : f32 to vector<1x256xf32>
    %571 = arith.select %569, %570, %534 : vector<1x256xi1>, vector<1x256xf32>
    %572 = arith.select %569, %568, %535 : vector<1x256xi1>, vector<1x256xf32>
    %c0_272 = arith.constant 0 : index
    %c136 = arith.constant 136 : index
    %573 = vector.load %arg6[%c0_272, %c136] : memref<4x512xf32, #tpu.memory_space<vmem>>, vector<4x256xf32>
    %cst_273 = arith.constant 0.000000e+00 : f32
    %574 = vector.broadcast %cst_273 : f32 to vector<4x256xf32>
    %575 = arith.cmpf ogt, %573, %574 : vector<4x256xf32>
    %576 = math.log %573 : vector<4x256xf32>
    %577 = arith.subf %576, %14 : vector<4x256xf32>
    %578 = arith.mulf %573, %577 : vector<4x256xf32>
    %cst_274 = arith.constant 0.000000e+00 : f32
    %579 = vector.broadcast %cst_274 : f32 to vector<4x256xf32>
    %580 = arith.select %575, %578, %579 : vector<4x256xi1>, vector<4x256xf32>
    %cst_275 = arith.constant dense<0.000000e+00> : vector<256xf32>
    %581 = vector.multi_reduction <add>, %580, %cst_275 [0] : vector<4x256xf32> to vector<256xf32>
    %582 = vector.shape_cast %581 : vector<256xf32> to vector<1x256xf32>
    %cst_276 = arith.constant 4.000000e+00 : f32
    %583 = vector.broadcast %cst_276 : f32 to vector<1x256xf32>
    %584 = arith.divf %582, %583 : vector<1x256xf32>
    %cst_277 = arith.constant 7.000000e+00 : f32
    %585 = vector.broadcast %cst_277 : f32 to vector<1x256xf32>
    %586 = arith.cmpf olt, %17, %585 : vector<1x256xf32>
    %cst_278 = arith.constant 0.000000e+00 : f32
    %587 = vector.broadcast %cst_278 : f32 to vector<1x256xf32>
    %588 = arith.select %586, %584, %587 : vector<1x256xi1>, vector<1x256xf32>
    %589 = math.exp %588 : vector<1x256xf32>
    %cst_279 = arith.constant 7.000000e+00 : f32
    %590 = vector.broadcast %cst_279 : f32 to vector<1x256xf32>
    %591 = arith.cmpf oeq, %16, %590 : vector<1x256xf32>
    %cst_280 = arith.constant 0.000000e+00 : f32
    %592 = vector.broadcast %cst_280 : f32 to vector<1x256xf32>
    %593 = arith.select %591, %589, %592 : vector<1x256xi1>, vector<1x256xf32>
    %c15 = arith.constant 15 : index
    %c0_281 = arith.constant 0 : index
    %594 = vector.load %arg8[%c15, %c0_281] : memref<32x256xf32, #tpu.memory_space<vmem>>, vector<1x256xf32>
    tpu.vector_store %arg8[%c15, %c0_281], %593 {strides = array<i32>} : memref<32x256xf32, #tpu.memory_space<vmem>>, vector<1x256xf32>,
    %595 = arith.addf %565, %593 : vector<1x256xf32>
    %c0_282 = arith.constant 0 : index
    %c136_283 = arith.constant 136 : index
    %596 = vector.load %arg7[%c0_282, %c136_283] : memref<1x512xf32, #tpu.memory_space<vmem>>, vector<1x256xf32>
    %cst_284 = arith.constant 0.000000e+00 : f32
    %597 = vector.broadcast %cst_284 : f32 to vector<1x256xf32>
    %598 = arith.select %586, %596, %597 : vector<1x256xi1>, vector<1x256xf32>
    %599 = arith.cmpf olt, %598, %572 : vector<1x256xf32>
    %cst_285 = arith.constant 1.500000e+01 : f32
    %600 = vector.broadcast %cst_285 : f32 to vector<1x256xf32>
    %601 = arith.select %599, %600, %571 : vector<1x256xi1>, vector<1x256xf32>
    %602 = arith.select %599, %598, %572 : vector<1x256xi1>, vector<1x256xf32>
    %c0_286 = arith.constant 0 : index
    %c137 = arith.constant 137 : index
    %603 = vector.load %arg6[%c0_286, %c137] : memref<4x512xf32, #tpu.memory_space<vmem>>, vector<4x256xf32>
    %cst_287 = arith.constant 0.000000e+00 : f32
    %604 = vector.broadcast %cst_287 : f32 to vector<4x256xf32>
    %605 = arith.cmpf ogt, %603, %604 : vector<4x256xf32>
    %606 = math.log %603 : vector<4x256xf32>
    %607 = arith.subf %606, %14 : vector<4x256xf32>
    %608 = arith.mulf %603, %607 : vector<4x256xf32>
    %cst_288 = arith.constant 0.000000e+00 : f32
    %609 = vector.broadcast %cst_288 : f32 to vector<4x256xf32>
    %610 = arith.select %605, %608, %609 : vector<4x256xi1>, vector<4x256xf32>
    %cst_289 = arith.constant dense<0.000000e+00> : vector<256xf32>
    %611 = vector.multi_reduction <add>, %610, %cst_289 [0] : vector<4x256xf32> to vector<256xf32>
    %612 = vector.shape_cast %611 : vector<256xf32> to vector<1x256xf32>
    %cst_290 = arith.constant 4.000000e+00 : f32
    %613 = vector.broadcast %cst_290 : f32 to vector<1x256xf32>
    %614 = arith.divf %612, %613 : vector<1x256xf32>
    %cst_291 = arith.constant 7.000000e+00 : f32
    %615 = vector.broadcast %cst_291 : f32 to vector<1x256xf32>
    %616 = arith.cmpf olt, %17, %615 : vector<1x256xf32>
    %cst_292 = arith.constant 7.000000e+00 : f32
    %617 = vector.broadcast %cst_292 : f32 to vector<1x256xf32>
    %618 = arith.cmpf olt, %18, %617 : vector<1x256xf32>
    %619 = arith.andi %616, %618 : vector<1x256xi1>
    %cst_293 = arith.constant 0.000000e+00 : f32
    %620 = vector.broadcast %cst_293 : f32 to vector<1x256xf32>
    %621 = arith.select %619, %614, %620 : vector<1x256xi1>, vector<1x256xf32>
    %622 = math.exp %621 : vector<1x256xf32>
    %cst_294 = arith.constant 7.000000e+00 : f32
    %623 = vector.broadcast %cst_294 : f32 to vector<1x256xf32>
    %624 = arith.cmpf oeq, %16, %623 : vector<1x256xf32>
    %cst_295 = arith.constant 0.000000e+00 : f32
    %625 = vector.broadcast %cst_295 : f32 to vector<1x256xf32>
    %626 = arith.select %624, %622, %625 : vector<1x256xi1>, vector<1x256xf32>
    %cst_296 = arith.constant 7.000000e+00 : f32
    %627 = vector.broadcast %cst_296 : f32 to vector<1x256xf32>
    %628 = arith.cmpf oeq, %17, %627 : vector<1x256xf32>
    %cst_297 = arith.constant 0.000000e+00 : f32
    %629 = vector.broadcast %cst_297 : f32 to vector<1x256xf32>
    %630 = arith.select %628, %626, %629 : vector<1x256xi1>, vector<1x256xf32>
    %c16 = arith.constant 16 : index
    %c0_298 = arith.constant 0 : index
    %631 = vector.load %arg8[%c16, %c0_298] : memref<32x256xf32, #tpu.memory_space<vmem>>, vector<1x256xf32>
    tpu.vector_store %arg8[%c16, %c0_298], %630 {strides = array<i32>} : memref<32x256xf32, #tpu.memory_space<vmem>>, vector<1x256xf32>,
    %632 = arith.addf %595, %630 : vector<1x256xf32>
    %c0_299 = arith.constant 0 : index
    %c137_300 = arith.constant 137 : index
    %633 = vector.load %arg7[%c0_299, %c137_300] : memref<1x512xf32, #tpu.memory_space<vmem>>, vector<1x256xf32>
    %cst_301 = arith.constant 0.000000e+00 : f32
    %634 = vector.broadcast %cst_301 : f32 to vector<1x256xf32>
    %635 = arith.select %619, %633, %634 : vector<1x256xi1>, vector<1x256xf32>
    %636 = arith.cmpf olt, %635, %602 : vector<1x256xf32>
    %cst_302 = arith.constant 1.600000e+01 : f32
    %637 = vector.broadcast %cst_302 : f32 to vector<1x256xf32>
    %638 = arith.select %636, %637, %601 : vector<1x256xi1>, vector<1x256xf32>
    %639 = arith.select %636, %635, %602 : vector<1x256xi1>, vector<1x256xf32>
    %c0_303 = arith.constant 0 : index
    %c183 = arith.constant 183 : index
    %640 = vector.load %arg6[%c0_303, %c183] : memref<4x512xf32, #tpu.memory_space<vmem>>, vector<4x256xf32>
    %cst_304 = arith.constant 0.000000e+00 : f32
    %641 = vector.broadcast %cst_304 : f32 to vector<4x256xf32>
    %642 = arith.cmpf ogt, %640, %641 : vector<4x256xf32>
    %643 = math.log %640 : vector<4x256xf32>
    %644 = arith.subf %643, %14 : vector<4x256xf32>
    %645 = arith.mulf %640, %644 : vector<4x256xf32>
    %cst_305 = arith.constant 0.000000e+00 : f32
    %646 = vector.broadcast %cst_305 : f32 to vector<4x256xf32>
    %647 = arith.select %642, %645, %646 : vector<4x256xi1>, vector<4x256xf32>
    %cst_306 = arith.constant dense<0.000000e+00> : vector<256xf32>
    %648 = vector.multi_reduction <add>, %647, %cst_306 [0] : vector<4x256xf32> to vector<256xf32>
    %649 = vector.shape_cast %648 : vector<256xf32> to vector<1x256xf32>
    %cst_307 = arith.constant 4.000000e+00 : f32
    %650 = vector.broadcast %cst_307 : f32 to vector<1x256xf32>
    %651 = arith.divf %649, %650 : vector<1x256xf32>
    %cst_308 = arith.constant 1.000000e+00 : f32
    %652 = vector.broadcast %cst_308 : f32 to vector<1x256xf32>
    %653 = arith.cmpf olt, %16, %652 : vector<1x256xf32>
    %cst_309 = arith.constant 0.000000e+00 : f32
    %654 = vector.broadcast %cst_309 : f32 to vector<1x256xf32>
    %655 = arith.cmpf ogt, %17, %654 : vector<1x256xf32>
    %656 = arith.andi %653, %655 : vector<1x256xi1>
    %cst_310 = arith.constant 0.000000e+00 : f32
    %657 = vector.broadcast %cst_310 : f32 to vector<1x256xf32>
    %658 = arith.cmpf ogt, %18, %657 : vector<1x256xf32>
    %659 = arith.andi %656, %658 : vector<1x256xi1>
    %cst_311 = arith.constant 0.000000e+00 : f32
    %660 = vector.broadcast %cst_311 : f32 to vector<1x256xf32>
    %661 = arith.select %659, %651, %660 : vector<1x256xi1>, vector<1x256xf32>
    %662 = math.exp %661 : vector<1x256xf32>
    %cst_312 = arith.constant 0.000000e+00 : f32
    %663 = vector.broadcast %cst_312 : f32 to vector<1x256xf32>
    %664 = arith.cmpf oeq, %16, %663 : vector<1x256xf32>
    %cst_313 = arith.constant 0.000000e+00 : f32
    %665 = vector.broadcast %cst_313 : f32 to vector<1x256xf32>
    %666 = arith.select %664, %662, %665 : vector<1x256xi1>, vector<1x256xf32>
    %cst_314 = arith.constant 0.000000e+00 : f32
    %667 = vector.broadcast %cst_314 : f32 to vector<1x256xf32>
    %668 = arith.cmpf oeq, %17, %667 : vector<1x256xf32>
    %cst_315 = arith.constant 0.000000e+00 : f32
    %669 = vector.broadcast %cst_315 : f32 to vector<1x256xf32>
    %670 = arith.select %668, %666, %669 : vector<1x256xi1>, vector<1x256xf32>
    %c17 = arith.constant 17 : index
    %c0_316 = arith.constant 0 : index
    %671 = vector.load %arg8[%c17, %c0_316] : memref<32x256xf32, #tpu.memory_space<vmem>>, vector<1x256xf32>
    tpu.vector_store %arg8[%c17, %c0_316], %670 {strides = array<i32>} : memref<32x256xf32, #tpu.memory_space<vmem>>, vector<1x256xf32>,
    %672 = arith.addf %632, %670 : vector<1x256xf32>
    %c0_317 = arith.constant 0 : index
    %c183_318 = arith.constant 183 : index
    %673 = vector.load %arg7[%c0_317, %c183_318] : memref<1x512xf32, #tpu.memory_space<vmem>>, vector<1x256xf32>
    %cst_319 = arith.constant 0.000000e+00 : f32
    %674 = vector.broadcast %cst_319 : f32 to vector<1x256xf32>
    %675 = arith.select %659, %673, %674 : vector<1x256xi1>, vector<1x256xf32>
    %676 = arith.cmpf olt, %675, %639 : vector<1x256xf32>
    %cst_320 = arith.constant 1.700000e+01 : f32
    %677 = vector.broadcast %cst_320 : f32 to vector<1x256xf32>
    %678 = arith.select %676, %677, %638 : vector<1x256xi1>, vector<1x256xf32>
    %679 = arith.select %676, %675, %639 : vector<1x256xi1>, vector<1x256xf32>
    %c0_321 = arith.constant 0 : index
    %c184 = arith.constant 184 : index
    %680 = vector.load %arg6[%c0_321, %c184] : memref<4x512xf32, #tpu.memory_space<vmem>>, vector<4x256xf32>
    %cst_322 = arith.constant 0.000000e+00 : f32
    %681 = vector.broadcast %cst_322 : f32 to vector<4x256xf32>
    %682 = arith.cmpf ogt, %680, %681 : vector<4x256xf32>
    %683 = math.log %680 : vector<4x256xf32>
    %684 = arith.subf %683, %14 : vector<4x256xf32>
    %685 = arith.mulf %680, %684 : vector<4x256xf32>
    %cst_323 = arith.constant 0.000000e+00 : f32
    %686 = vector.broadcast %cst_323 : f32 to vector<4x256xf32>
    %687 = arith.select %682, %685, %686 : vector<4x256xi1>, vector<4x256xf32>
    %cst_324 = arith.constant dense<0.000000e+00> : vector<256xf32>
    %688 = vector.multi_reduction <add>, %687, %cst_324 [0] : vector<4x256xf32> to vector<256xf32>
    %689 = vector.shape_cast %688 : vector<256xf32> to vector<1x256xf32>
    %cst_325 = arith.constant 4.000000e+00 : f32
    %690 = vector.broadcast %cst_325 : f32 to vector<1x256xf32>
    %691 = arith.divf %689, %690 : vector<1x256xf32>
    %cst_326 = arith.constant 1.000000e+00 : f32
    %692 = vector.broadcast %cst_326 : f32 to vector<1x256xf32>
    %693 = arith.cmpf olt, %16, %692 : vector<1x256xf32>
    %cst_327 = arith.constant 0.000000e+00 : f32
    %694 = vector.broadcast %cst_327 : f32 to vector<1x256xf32>
    %695 = arith.cmpf ogt, %17, %694 : vector<1x256xf32>
    %696 = arith.andi %693, %695 : vector<1x256xi1>
    %cst_328 = arith.constant 0.000000e+00 : f32
    %697 = vector.broadcast %cst_328 : f32 to vector<1x256xf32>
    %698 = arith.select %696, %691, %697 : vector<1x256xi1>, vector<1x256xf32>
    %699 = math.exp %698 : vector<1x256xf32>
    %cst_329 = arith.constant 0.000000e+00 : f32
    %700 = vector.broadcast %cst_329 : f32 to vector<1x256xf32>
    %701 = arith.cmpf oeq, %16, %700 : vector<1x256xf32>
    %cst_330 = arith.constant 0.000000e+00 : f32
    %702 = vector.broadcast %cst_330 : f32 to vector<1x256xf32>
    %703 = arith.select %701, %699, %702 : vector<1x256xi1>, vector<1x256xf32>
    %c18 = arith.constant 18 : index
    %c0_331 = arith.constant 0 : index
    %704 = vector.load %arg8[%c18, %c0_331] : memref<32x256xf32, #tpu.memory_space<vmem>>, vector<1x256xf32>
    tpu.vector_store %arg8[%c18, %c0_331], %703 {strides = array<i32>} : memref<32x256xf32, #tpu.memory_space<vmem>>, vector<1x256xf32>,
    %705 = arith.addf %672, %703 : vector<1x256xf32>
    %c0_332 = arith.constant 0 : index
    %c184_333 = arith.constant 184 : index
    %706 = vector.load %arg7[%c0_332, %c184_333] : memref<1x512xf32, #tpu.memory_space<vmem>>, vector<1x256xf32>
    %cst_334 = arith.constant 0.000000e+00 : f32
    %707 = vector.broadcast %cst_334 : f32 to vector<1x256xf32>
    %708 = arith.select %696, %706, %707 : vector<1x256xi1>, vector<1x256xf32>
    %709 = arith.cmpf olt, %708, %679 : vector<1x256xf32>
    %cst_335 = arith.constant 1.800000e+01 : f32
    %710 = vector.broadcast %cst_335 : f32 to vector<1x256xf32>
    %711 = arith.select %709, %710, %678 : vector<1x256xi1>, vector<1x256xf32>
    %712 = arith.select %709, %708, %679 : vector<1x256xi1>, vector<1x256xf32>
    %c0_336 = arith.constant 0 : index
    %c185 = arith.constant 185 : index
    %713 = vector.load %arg6[%c0_336, %c185] : memref<4x512xf32, #tpu.memory_space<vmem>>, vector<4x256xf32>
    %cst_337 = arith.constant 0.000000e+00 : f32
    %714 = vector.broadcast %cst_337 : f32 to vector<4x256xf32>
    %715 = arith.cmpf ogt, %713, %714 : vector<4x256xf32>
    %716 = math.log %713 : vector<4x256xf32>
    %717 = arith.subf %716, %14 : vector<4x256xf32>
    %718 = arith.mulf %713, %717 : vector<4x256xf32>
    %cst_338 = arith.constant 0.000000e+00 : f32
    %719 = vector.broadcast %cst_338 : f32 to vector<4x256xf32>
    %720 = arith.select %715, %718, %719 : vector<4x256xi1>, vector<4x256xf32>
    %cst_339 = arith.constant dense<0.000000e+00> : vector<256xf32>
    %721 = vector.multi_reduction <add>, %720, %cst_339 [0] : vector<4x256xf32> to vector<256xf32>
    %722 = vector.shape_cast %721 : vector<256xf32> to vector<1x256xf32>
    %cst_340 = arith.constant 4.000000e+00 : f32
    %723 = vector.broadcast %cst_340 : f32 to vector<1x256xf32>
    %724 = arith.divf %722, %723 : vector<1x256xf32>
    %cst_341 = arith.constant 1.000000e+00 : f32
    %725 = vector.broadcast %cst_341 : f32 to vector<1x256xf32>
    %726 = arith.cmpf olt, %16, %725 : vector<1x256xf32>
    %cst_342 = arith.constant 0.000000e+00 : f32
    %727 = vector.broadcast %cst_342 : f32 to vector<1x256xf32>
    %728 = arith.cmpf ogt, %17, %727 : vector<1x256xf32>
    %729 = arith.andi %726, %728 : vector<1x256xi1>
    %cst_343 = arith.constant 7.000000e+00 : f32
    %730 = vector.broadcast %cst_343 : f32 to vector<1x256xf32>
    %731 = arith.cmpf olt, %18, %730 : vector<1x256xf32>
    %732 = arith.andi %729, %731 : vector<1x256xi1>
    %cst_344 = arith.constant 0.000000e+00 : f32
    %733 = vector.broadcast %cst_344 : f32 to vector<1x256xf32>
    %734 = arith.select %732, %724, %733 : vector<1x256xi1>, vector<1x256xf32>
    %735 = math.exp %734 : vector<1x256xf32>
    %cst_345 = arith.constant 0.000000e+00 : f32
    %736 = vector.broadcast %cst_345 : f32 to vector<1x256xf32>
    %737 = arith.cmpf oeq, %16, %736 : vector<1x256xf32>
    %cst_346 = arith.constant 0.000000e+00 : f32
    %738 = vector.broadcast %cst_346 : f32 to vector<1x256xf32>
    %739 = arith.select %737, %735, %738 : vector<1x256xi1>, vector<1x256xf32>
    %cst_347 = arith.constant 7.000000e+00 : f32
    %740 = vector.broadcast %cst_347 : f32 to vector<1x256xf32>
    %741 = arith.cmpf oeq, %17, %740 : vector<1x256xf32>
    %cst_348 = arith.constant 0.000000e+00 : f32
    %742 = vector.broadcast %cst_348 : f32 to vector<1x256xf32>
    %743 = arith.select %741, %739, %742 : vector<1x256xi1>, vector<1x256xf32>
    %c19 = arith.constant 19 : index
    %c0_349 = arith.constant 0 : index
    %744 = vector.load %arg8[%c19, %c0_349] : memref<32x256xf32, #tpu.memory_space<vmem>>, vector<1x256xf32>
    tpu.vector_store %arg8[%c19, %c0_349], %743 {strides = array<i32>} : memref<32x256xf32, #tpu.memory_space<vmem>>, vector<1x256xf32>,
    %745 = arith.addf %705, %743 : vector<1x256xf32>
    %c0_350 = arith.constant 0 : index
    %c185_351 = arith.constant 185 : index
    %746 = vector.load %arg7[%c0_350, %c185_351] : memref<1x512xf32, #tpu.memory_space<vmem>>, vector<1x256xf32>
    %cst_352 = arith.constant 0.000000e+00 : f32
    %747 = vector.broadcast %cst_352 : f32 to vector<1x256xf32>
    %748 = arith.select %732, %746, %747 : vector<1x256xi1>, vector<1x256xf32>
    %749 = arith.cmpf olt, %748, %712 : vector<1x256xf32>
    %cst_353 = arith.constant 1.900000e+01 : f32
    %750 = vector.broadcast %cst_353 : f32 to vector<1x256xf32>
    %751 = arith.select %749, %750, %711 : vector<1x256xi1>, vector<1x256xf32>
    %752 = arith.select %749, %748, %712 : vector<1x256xi1>, vector<1x256xf32>
    %c0_354 = arith.constant 0 : index
    %c191 = arith.constant 191 : index
    %753 = vector.load %arg6[%c0_354, %c191] : memref<4x512xf32, #tpu.memory_space<vmem>>, vector<4x256xf32>
    %cst_355 = arith.constant 0.000000e+00 : f32
    %754 = vector.broadcast %cst_355 : f32 to vector<4x256xf32>
    %755 = arith.cmpf ogt, %753, %754 : vector<4x256xf32>
    %756 = math.log %753 : vector<4x256xf32>
    %757 = arith.subf %756, %14 : vector<4x256xf32>
    %758 = arith.mulf %753, %757 : vector<4x256xf32>
    %cst_356 = arith.constant 0.000000e+00 : f32
    %759 = vector.broadcast %cst_356 : f32 to vector<4x256xf32>
    %760 = arith.select %755, %758, %759 : vector<4x256xi1>, vector<4x256xf32>
    %cst_357 = arith.constant dense<0.000000e+00> : vector<256xf32>
    %761 = vector.multi_reduction <add>, %760, %cst_357 [0] : vector<4x256xf32> to vector<256xf32>
    %762 = vector.shape_cast %761 : vector<256xf32> to vector<1x256xf32>
    %cst_358 = arith.constant 4.000000e+00 : f32
    %763 = vector.broadcast %cst_358 : f32 to vector<1x256xf32>
    %764 = arith.divf %762, %763 : vector<1x256xf32>
    %cst_359 = arith.constant 1.000000e+00 : f32
    %765 = vector.broadcast %cst_359 : f32 to vector<1x256xf32>
    %766 = arith.cmpf olt, %16, %765 : vector<1x256xf32>
    %cst_360 = arith.constant 0.000000e+00 : f32
    %767 = vector.broadcast %cst_360 : f32 to vector<1x256xf32>
    %768 = arith.cmpf ogt, %18, %767 : vector<1x256xf32>
    %769 = arith.andi %766, %768 : vector<1x256xi1>
    %cst_361 = arith.constant 0.000000e+00 : f32
    %770 = vector.broadcast %cst_361 : f32 to vector<1x256xf32>
    %771 = arith.select %769, %764, %770 : vector<1x256xi1>, vector<1x256xf32>
    %772 = math.exp %771 : vector<1x256xf32>
    %cst_362 = arith.constant 0.000000e+00 : f32
    %773 = vector.broadcast %cst_362 : f32 to vector<1x256xf32>
    %774 = arith.cmpf oeq, %17, %773 : vector<1x256xf32>
    %cst_363 = arith.constant 0.000000e+00 : f32
    %775 = vector.broadcast %cst_363 : f32 to vector<1x256xf32>
    %776 = arith.select %774, %772, %775 : vector<1x256xi1>, vector<1x256xf32>
    %c20 = arith.constant 20 : index
    %c0_364 = arith.constant 0 : index
    %777 = vector.load %arg8[%c20, %c0_364] : memref<32x256xf32, #tpu.memory_space<vmem>>, vector<1x256xf32>
    tpu.vector_store %arg8[%c20, %c0_364], %776 {strides = array<i32>} : memref<32x256xf32, #tpu.memory_space<vmem>>, vector<1x256xf32>,
    %778 = arith.addf %745, %776 : vector<1x256xf32>
    %c0_365 = arith.constant 0 : index
    %c191_366 = arith.constant 191 : index
    %779 = vector.load %arg7[%c0_365, %c191_366] : memref<1x512xf32, #tpu.memory_space<vmem>>, vector<1x256xf32>
    %cst_367 = arith.constant 0.000000e+00 : f32
    %780 = vector.broadcast %cst_367 : f32 to vector<1x256xf32>
    %781 = arith.select %769, %779, %780 : vector<1x256xi1>, vector<1x256xf32>
    %782 = arith.cmpf olt, %781, %752 : vector<1x256xf32>
    %cst_368 = arith.constant 2.000000e+01 : f32
    %783 = vector.broadcast %cst_368 : f32 to vector<1x256xf32>
    %784 = arith.select %782, %783, %751 : vector<1x256xi1>, vector<1x256xf32>
    %785 = arith.select %782, %781, %752 : vector<1x256xi1>, vector<1x256xf32>
    %c0_369 = arith.constant 0 : index
    %c192 = arith.constant 192 : index
    %786 = vector.load %arg6[%c0_369, %c192] : memref<4x512xf32, #tpu.memory_space<vmem>>, vector<4x256xf32>
    %cst_370 = arith.constant 0.000000e+00 : f32
    %787 = vector.broadcast %cst_370 : f32 to vector<4x256xf32>
    %788 = arith.cmpf ogt, %786, %787 : vector<4x256xf32>
    %789 = math.log %786 : vector<4x256xf32>
    %790 = arith.subf %789, %14 : vector<4x256xf32>
    %791 = arith.mulf %786, %790 : vector<4x256xf32>
    %cst_371 = arith.constant 0.000000e+00 : f32
    %792 = vector.broadcast %cst_371 : f32 to vector<4x256xf32>
    %793 = arith.select %788, %791, %792 : vector<4x256xi1>, vector<4x256xf32>
    %cst_372 = arith.constant dense<0.000000e+00> : vector<256xf32>
    %794 = vector.multi_reduction <add>, %793, %cst_372 [0] : vector<4x256xf32> to vector<256xf32>
    %795 = vector.shape_cast %794 : vector<256xf32> to vector<1x256xf32>
    %cst_373 = arith.constant 4.000000e+00 : f32
    %796 = vector.broadcast %cst_373 : f32 to vector<1x256xf32>
    %797 = arith.divf %795, %796 : vector<1x256xf32>
    %cst_374 = arith.constant 1.000000e+00 : f32
    %798 = vector.broadcast %cst_374 : f32 to vector<1x256xf32>
    %799 = arith.cmpf olt, %16, %798 : vector<1x256xf32>
    %cst_375 = arith.constant 0.000000e+00 : f32
    %800 = vector.broadcast %cst_375 : f32 to vector<1x256xf32>
    %801 = arith.select %799, %797, %800 : vector<1x256xi1>, vector<1x256xf32>
    %802 = math.exp %801 : vector<1x256xf32>
    %c21 = arith.constant 21 : index
    %c0_376 = arith.constant 0 : index
    %803 = vector.load %arg8[%c21, %c0_376] : memref<32x256xf32, #tpu.memory_space<vmem>>, vector<1x256xf32>
    tpu.vector_store %arg8[%c21, %c0_376], %802 {strides = array<i32>} : memref<32x256xf32, #tpu.memory_space<vmem>>, vector<1x256xf32>,
    %804 = arith.addf %778, %802 : vector<1x256xf32>
    %c0_377 = arith.constant 0 : index
    %c192_378 = arith.constant 192 : index
    %805 = vector.load %arg7[%c0_377, %c192_378] : memref<1x512xf32, #tpu.memory_space<vmem>>, vector<1x256xf32>
    %cst_379 = arith.constant 0.000000e+00 : f32
    %806 = vector.broadcast %cst_379 : f32 to vector<1x256xf32>
    %807 = arith.select %799, %805, %806 : vector<1x256xi1>, vector<1x256xf32>
    %808 = arith.cmpf olt, %807, %785 : vector<1x256xf32>
    %cst_380 = arith.constant 2.100000e+01 : f32
    %809 = vector.broadcast %cst_380 : f32 to vector<1x256xf32>
    %810 = arith.select %808, %809, %784 : vector<1x256xi1>, vector<1x256xf32>
    %811 = arith.select %808, %807, %785 : vector<1x256xi1>, vector<1x256xf32>
    %c0_381 = arith.constant 0 : index
    %c193 = arith.constant 193 : index
    %812 = vector.load %arg6[%c0_381, %c193] : memref<4x512xf32, #tpu.memory_space<vmem>>, vector<4x256xf32>
    %cst_382 = arith.constant 0.000000e+00 : f32
    %813 = vector.broadcast %cst_382 : f32 to vector<4x256xf32>
    %814 = arith.cmpf ogt, %812, %813 : vector<4x256xf32>
    %815 = math.log %812 : vector<4x256xf32>
    %816 = arith.subf %815, %14 : vector<4x256xf32>
    %817 = arith.mulf %812, %816 : vector<4x256xf32>
    %cst_383 = arith.constant 0.000000e+00 : f32
    %818 = vector.broadcast %cst_383 : f32 to vector<4x256xf32>
    %819 = arith.select %814, %817, %818 : vector<4x256xi1>, vector<4x256xf32>
    %cst_384 = arith.constant dense<0.000000e+00> : vector<256xf32>
    %820 = vector.multi_reduction <add>, %819, %cst_384 [0] : vector<4x256xf32> to vector<256xf32>
    %821 = vector.shape_cast %820 : vector<256xf32> to vector<1x256xf32>
    %cst_385 = arith.constant 4.000000e+00 : f32
    %822 = vector.broadcast %cst_385 : f32 to vector<1x256xf32>
    %823 = arith.divf %821, %822 : vector<1x256xf32>
    %cst_386 = arith.constant 1.000000e+00 : f32
    %824 = vector.broadcast %cst_386 : f32 to vector<1x256xf32>
    %825 = arith.cmpf olt, %16, %824 : vector<1x256xf32>
    %cst_387 = arith.constant 7.000000e+00 : f32
    %826 = vector.broadcast %cst_387 : f32 to vector<1x256xf32>
    %827 = arith.cmpf olt, %18, %826 : vector<1x256xf32>
    %828 = arith.andi %825, %827 : vector<1x256xi1>
    %cst_388 = arith.constant 0.000000e+00 : f32
    %829 = vector.broadcast %cst_388 : f32 to vector<1x256xf32>
    %830 = arith.select %828, %823, %829 : vector<1x256xi1>, vector<1x256xf32>
    %831 = math.exp %830 : vector<1x256xf32>
    %cst_389 = arith.constant 7.000000e+00 : f32
    %832 = vector.broadcast %cst_389 : f32 to vector<1x256xf32>
    %833 = arith.cmpf oeq, %17, %832 : vector<1x256xf32>
    %cst_390 = arith.constant 0.000000e+00 : f32
    %834 = vector.broadcast %cst_390 : f32 to vector<1x256xf32>
    %835 = arith.select %833, %831, %834 : vector<1x256xi1>, vector<1x256xf32>
    %c22 = arith.constant 22 : index
    %c0_391 = arith.constant 0 : index
    %836 = vector.load %arg8[%c22, %c0_391] : memref<32x256xf32, #tpu.memory_space<vmem>>, vector<1x256xf32>
    tpu.vector_store %arg8[%c22, %c0_391], %835 {strides = array<i32>} : memref<32x256xf32, #tpu.memory_space<vmem>>, vector<1x256xf32>,
    %837 = arith.addf %804, %835 : vector<1x256xf32>
    %c0_392 = arith.constant 0 : index
    %c193_393 = arith.constant 193 : index
    %838 = vector.load %arg7[%c0_392, %c193_393] : memref<1x512xf32, #tpu.memory_space<vmem>>, vector<1x256xf32>
    %cst_394 = arith.constant 0.000000e+00 : f32
    %839 = vector.broadcast %cst_394 : f32 to vector<1x256xf32>
    %840 = arith.select %828, %838, %839 : vector<1x256xi1>, vector<1x256xf32>
    %841 = arith.cmpf olt, %840, %811 : vector<1x256xf32>
    %cst_395 = arith.constant 2.200000e+01 : f32
    %842 = vector.broadcast %cst_395 : f32 to vector<1x256xf32>
    %843 = arith.select %841, %842, %810 : vector<1x256xi1>, vector<1x256xf32>
    %844 = arith.select %841, %840, %811 : vector<1x256xi1>, vector<1x256xf32>
    %c0_396 = arith.constant 0 : index
    %c199 = arith.constant 199 : index
    %845 = vector.load %arg6[%c0_396, %c199] : memref<4x512xf32, #tpu.memory_space<vmem>>, vector<4x256xf32>
    %cst_397 = arith.constant 0.000000e+00 : f32
    %846 = vector.broadcast %cst_397 : f32 to vector<4x256xf32>
    %847 = arith.cmpf ogt, %845, %846 : vector<4x256xf32>
    %848 = math.log %845 : vector<4x256xf32>
    %849 = arith.subf %848, %14 : vector<4x256xf32>
    %850 = arith.mulf %845, %849 : vector<4x256xf32>
    %cst_398 = arith.constant 0.000000e+00 : f32
    %851 = vector.broadcast %cst_398 : f32 to vector<4x256xf32>
    %852 = arith.select %847, %850, %851 : vector<4x256xi1>, vector<4x256xf32>
    %cst_399 = arith.constant dense<0.000000e+00> : vector<256xf32>
    %853 = vector.multi_reduction <add>, %852, %cst_399 [0] : vector<4x256xf32> to vector<256xf32>
    %854 = vector.shape_cast %853 : vector<256xf32> to vector<1x256xf32>
    %cst_400 = arith.constant 4.000000e+00 : f32
    %855 = vector.broadcast %cst_400 : f32 to vector<1x256xf32>
    %856 = arith.divf %854, %855 : vector<1x256xf32>
    %cst_401 = arith.constant 1.000000e+00 : f32
    %857 = vector.broadcast %cst_401 : f32 to vector<1x256xf32>
    %858 = arith.cmpf olt, %16, %857 : vector<1x256xf32>
    %cst_402 = arith.constant 7.000000e+00 : f32
    %859 = vector.broadcast %cst_402 : f32 to vector<1x256xf32>
    %860 = arith.cmpf olt, %17, %859 : vector<1x256xf32>
    %861 = arith.andi %858, %860 : vector<1x256xi1>
    %cst_403 = arith.constant 0.000000e+00 : f32
    %862 = vector.broadcast %cst_403 : f32 to vector<1x256xf32>
    %863 = arith.cmpf ogt, %18, %862 : vector<1x256xf32>
    %864 = arith.andi %861, %863 : vector<1x256xi1>
    %cst_404 = arith.constant 0.000000e+00 : f32
    %865 = vector.broadcast %cst_404 : f32 to vector<1x256xf32>
    %866 = arith.select %864, %856, %865 : vector<1x256xi1>, vector<1x256xf32>
    %867 = math.exp %866 : vector<1x256xf32>
    %cst_405 = arith.constant 7.000000e+00 : f32
    %868 = vector.broadcast %cst_405 : f32 to vector<1x256xf32>
    %869 = arith.cmpf oeq, %16, %868 : vector<1x256xf32>
    %cst_406 = arith.constant 0.000000e+00 : f32
    %870 = vector.broadcast %cst_406 : f32 to vector<1x256xf32>
    %871 = arith.select %869, %867, %870 : vector<1x256xi1>, vector<1x256xf32>
    %cst_407 = arith.constant 0.000000e+00 : f32
    %872 = vector.broadcast %cst_407 : f32 to vector<1x256xf32>
    %873 = arith.cmpf oeq, %17, %872 : vector<1x256xf32>
    %cst_408 = arith.constant 0.000000e+00 : f32
    %874 = vector.broadcast %cst_408 : f32 to vector<1x256xf32>
    %875 = arith.select %873, %871, %874 : vector<1x256xi1>, vector<1x256xf32>
    %c23 = arith.constant 23 : index
    %c0_409 = arith.constant 0 : index
    %876 = vector.load %arg8[%c23, %c0_409] : memref<32x256xf32, #tpu.memory_space<vmem>>, vector<1x256xf32>
    tpu.vector_store %arg8[%c23, %c0_409], %875 {strides = array<i32>} : memref<32x256xf32, #tpu.memory_space<vmem>>, vector<1x256xf32>,
    %877 = arith.addf %837, %875 : vector<1x256xf32>
    %c0_410 = arith.constant 0 : index
    %c199_411 = arith.constant 199 : index
    %878 = vector.load %arg7[%c0_410, %c199_411] : memref<1x512xf32, #tpu.memory_space<vmem>>, vector<1x256xf32>
    %cst_412 = arith.constant 0.000000e+00 : f32
    %879 = vector.broadcast %cst_412 : f32 to vector<1x256xf32>
    %880 = arith.select %864, %878, %879 : vector<1x256xi1>, vector<1x256xf32>
    %881 = arith.cmpf olt, %880, %844 : vector<1x256xf32>
    %cst_413 = arith.constant 2.300000e+01 : f32
    %882 = vector.broadcast %cst_413 : f32 to vector<1x256xf32>
    %883 = arith.select %881, %882, %843 : vector<1x256xi1>, vector<1x256xf32>
    %884 = arith.select %881, %880, %844 : vector<1x256xi1>, vector<1x256xf32>
    %c0_414 = arith.constant 0 : index
    %c200 = arith.constant 200 : index
    %885 = vector.load %arg6[%c0_414, %c200] : memref<4x512xf32, #tpu.memory_space<vmem>>, vector<4x256xf32>
    %cst_415 = arith.constant 0.000000e+00 : f32
    %886 = vector.broadcast %cst_415 : f32 to vector<4x256xf32>
    %887 = arith.cmpf ogt, %885, %886 : vector<4x256xf32>
    %888 = math.log %885 : vector<4x256xf32>
    %889 = arith.subf %888, %14 : vector<4x256xf32>
    %890 = arith.mulf %885, %889 : vector<4x256xf32>
    %cst_416 = arith.constant 0.000000e+00 : f32
    %891 = vector.broadcast %cst_416 : f32 to vector<4x256xf32>
    %892 = arith.select %887, %890, %891 : vector<4x256xi1>, vector<4x256xf32>
    %cst_417 = arith.constant dense<0.000000e+00> : vector<256xf32>
    %893 = vector.multi_reduction <add>, %892, %cst_417 [0] : vector<4x256xf32> to vector<256xf32>
    %894 = vector.shape_cast %893 : vector<256xf32> to vector<1x256xf32>
    %cst_418 = arith.constant 4.000000e+00 : f32
    %895 = vector.broadcast %cst_418 : f32 to vector<1x256xf32>
    %896 = arith.divf %894, %895 : vector<1x256xf32>
    %cst_419 = arith.constant 1.000000e+00 : f32
    %897 = vector.broadcast %cst_419 : f32 to vector<1x256xf32>
    %898 = arith.cmpf olt, %16, %897 : vector<1x256xf32>
    %cst_420 = arith.constant 7.000000e+00 : f32
    %899 = vector.broadcast %cst_420 : f32 to vector<1x256xf32>
    %900 = arith.cmpf olt, %17, %899 : vector<1x256xf32>
    %901 = arith.andi %898, %900 : vector<1x256xi1>
    %cst_421 = arith.constant 0.000000e+00 : f32
    %902 = vector.broadcast %cst_421 : f32 to vector<1x256xf32>
    %903 = arith.select %901, %896, %902 : vector<1x256xi1>, vector<1x256xf32>
    %904 = math.exp %903 : vector<1x256xf32>
    %cst_422 = arith.constant 7.000000e+00 : f32
    %905 = vector.broadcast %cst_422 : f32 to vector<1x256xf32>
    %906 = arith.cmpf oeq, %16, %905 : vector<1x256xf32>
    %cst_423 = arith.constant 0.000000e+00 : f32
    %907 = vector.broadcast %cst_423 : f32 to vector<1x256xf32>
    %908 = arith.select %906, %904, %907 : vector<1x256xi1>, vector<1x256xf32>
    %c24 = arith.constant 24 : index
    %c0_424 = arith.constant 0 : index
    %909 = vector.load %arg8[%c24, %c0_424] : memref<32x256xf32, #tpu.memory_space<vmem>>, vector<1x256xf32>
    tpu.vector_store %arg8[%c24, %c0_424], %908 {strides = array<i32>} : memref<32x256xf32, #tpu.memory_space<vmem>>, vector<1x256xf32>,
    %910 = arith.addf %877, %908 : vector<1x256xf32>
    %c0_425 = arith.constant 0 : index
    %c200_426 = arith.constant 200 : index
    %911 = vector.load %arg7[%c0_425, %c200_426] : memref<1x512xf32, #tpu.memory_space<vmem>>, vector<1x256xf32>
    %cst_427 = arith.constant 0.000000e+00 : f32
    %912 = vector.broadcast %cst_427 : f32 to vector<1x256xf32>
    %913 = arith.select %901, %911, %912 : vector<1x256xi1>, vector<1x256xf32>
    %914 = arith.cmpf olt, %913, %884 : vector<1x256xf32>
    %cst_428 = arith.constant 2.400000e+01 : f32
    %915 = vector.broadcast %cst_428 : f32 to vector<1x256xf32>
    %916 = arith.select %914, %915, %883 : vector<1x256xi1>, vector<1x256xf32>
    %917 = arith.select %914, %913, %884 : vector<1x256xi1>, vector<1x256xf32>
    %c0_429 = arith.constant 0 : index
    %c201 = arith.constant 201 : index
    %918 = vector.load %arg6[%c0_429, %c201] : memref<4x512xf32, #tpu.memory_space<vmem>>, vector<4x256xf32>
    %cst_430 = arith.constant 0.000000e+00 : f32
    %919 = vector.broadcast %cst_430 : f32 to vector<4x256xf32>
    %920 = arith.cmpf ogt, %918, %919 : vector<4x256xf32>
    %921 = math.log %918 : vector<4x256xf32>
    %922 = arith.subf %921, %14 : vector<4x256xf32>
    %923 = arith.mulf %918, %922 : vector<4x256xf32>
    %cst_431 = arith.constant 0.000000e+00 : f32
    %924 = vector.broadcast %cst_431 : f32 to vector<4x256xf32>
    %925 = arith.select %920, %923, %924 : vector<4x256xi1>, vector<4x256xf32>
    %cst_432 = arith.constant dense<0.000000e+00> : vector<256xf32>
    %926 = vector.multi_reduction <add>, %925, %cst_432 [0] : vector<4x256xf32> to vector<256xf32>
    %927 = vector.shape_cast %926 : vector<256xf32> to vector<1x256xf32>
    %cst_433 = arith.constant 4.000000e+00 : f32
    %928 = vector.broadcast %cst_433 : f32 to vector<1x256xf32>
    %929 = arith.divf %927, %928 : vector<1x256xf32>
    %cst_434 = arith.constant 1.000000e+00 : f32
    %930 = vector.broadcast %cst_434 : f32 to vector<1x256xf32>
    %931 = arith.cmpf olt, %16, %930 : vector<1x256xf32>
    %cst_435 = arith.constant 7.000000e+00 : f32
    %932 = vector.broadcast %cst_435 : f32 to vector<1x256xf32>
    %933 = arith.cmpf olt, %17, %932 : vector<1x256xf32>
    %934 = arith.andi %931, %933 : vector<1x256xi1>
    %cst_436 = arith.constant 7.000000e+00 : f32
    %935 = vector.broadcast %cst_436 : f32 to vector<1x256xf32>
    %936 = arith.cmpf olt, %18, %935 : vector<1x256xf32>
    %937 = arith.andi %934, %936 : vector<1x256xi1>
    %cst_437 = arith.constant 0.000000e+00 : f32
    %938 = vector.broadcast %cst_437 : f32 to vector<1x256xf32>
    %939 = arith.select %937, %929, %938 : vector<1x256xi1>, vector<1x256xf32>
    %940 = math.exp %939 : vector<1x256xf32>
    %cst_438 = arith.constant 7.000000e+00 : f32
    %941 = vector.broadcast %cst_438 : f32 to vector<1x256xf32>
    %942 = arith.cmpf oeq, %16, %941 : vector<1x256xf32>
    %cst_439 = arith.constant 0.000000e+00 : f32
    %943 = vector.broadcast %cst_439 : f32 to vector<1x256xf32>
    %944 = arith.select %942, %940, %943 : vector<1x256xi1>, vector<1x256xf32>
    %cst_440 = arith.constant 7.000000e+00 : f32
    %945 = vector.broadcast %cst_440 : f32 to vector<1x256xf32>
    %946 = arith.cmpf oeq, %17, %945 : vector<1x256xf32>
    %cst_441 = arith.constant 0.000000e+00 : f32
    %947 = vector.broadcast %cst_441 : f32 to vector<1x256xf32>
    %948 = arith.select %946, %944, %947 : vector<1x256xi1>, vector<1x256xf32>
    %c25 = arith.constant 25 : index
    %c0_442 = arith.constant 0 : index
    %949 = vector.load %arg8[%c25, %c0_442] : memref<32x256xf32, #tpu.memory_space<vmem>>, vector<1x256xf32>
    tpu.vector_store %arg8[%c25, %c0_442], %948 {strides = array<i32>} : memref<32x256xf32, #tpu.memory_space<vmem>>, vector<1x256xf32>,
    %950 = arith.addf %910, %948 : vector<1x256xf32>
    %c0_443 = arith.constant 0 : index
    %c201_444 = arith.constant 201 : index
    %951 = vector.load %arg7[%c0_443, %c201_444] : memref<1x512xf32, #tpu.memory_space<vmem>>, vector<1x256xf32>
    %cst_445 = arith.constant 0.000000e+00 : f32
    %952 = vector.broadcast %cst_445 : f32 to vector<1x256xf32>
    %953 = arith.select %937, %951, %952 : vector<1x256xi1>, vector<1x256xf32>
    %954 = arith.cmpf olt, %953, %917 : vector<1x256xf32>
    %cst_446 = arith.constant 2.500000e+01 : f32
    %955 = vector.broadcast %cst_446 : f32 to vector<1x256xf32>
    %956 = arith.select %954, %955, %916 : vector<1x256xi1>, vector<1x256xf32>
    %957 = tpu.reciprocal %950 {approx = true} : vector<1x256xf32> -> vector<1x256xf32>
    %cst_447 = arith.constant 0.000000e+00 : f32
    %958 = vector.broadcast %cst_447 : f32 to vector<1x256xf32>
    %c0_448 = arith.constant 0 : index
    %c0_449 = arith.constant 0 : index
    %959 = vector.load %arg8[%c0_448, %c0_449] : memref<32x256xf32, #tpu.memory_space<vmem>>, vector<1x256xf32>
    %960 = arith.mulf %959, %957 : vector<1x256xf32>
    %cst_450 = arith.constant 0.000000e+00 : f32
    %961 = vector.broadcast %cst_450 : f32 to vector<1x256xf32>
    %962 = arith.cmpf oeq, %956, %961 : vector<1x256xf32>
    %cst_451 = arith.constant 8.000000e-01 : f32
    %cst_452 = arith.constant 0.0076923077 : f32
    %963 = vector.broadcast %cst_451 : f32 to vector<1x256xf32>
    %964 = vector.broadcast %cst_452 : f32 to vector<1x256xf32>
    %965 = arith.select %962, %963, %964 : vector<1x256xi1>, vector<1x256xf32>
    %cst_453 = arith.constant 1.000000e+00 : f32
    %966 = vector.broadcast %cst_453 : f32 to vector<1x256xf32>
    %967 = arith.subf %966, %965 : vector<1x256xf32>
    %968 = arith.mulf %967, %960 : vector<1x256xf32>
    %cst_454 = arith.constant 0.000000e+00 : f32
    %969 = vector.broadcast %cst_454 : f32 to vector<1x256xf32>
    %970 = arith.subf %969, %960 : vector<1x256xf32>
    %cst_455 = arith.constant 0.000000e+00 : f32
    %971 = vector.broadcast %cst_455 : f32 to vector<1x256xf32>
    %972 = arith.maximumf %970, %971 : vector<1x256xf32>
    %973 = arith.addf %968, %972 : vector<1x256xf32>
    %974 = math.absf %960 : vector<1x256xf32>
    %cst_456 = arith.constant 0.000000e+00 : f32
    %975 = vector.broadcast %cst_456 : f32 to vector<1x256xf32>
    %976 = arith.subf %975, %974 : vector<1x256xf32>
    %977 = math.exp %976 : vector<1x256xf32>
    %cst_457 = arith.constant 1.000000e+00 : f32
    %978 = vector.broadcast %cst_457 : f32 to vector<1x256xf32>
    %979 = arith.addf %978, %977 : vector<1x256xf32>
    %980 = math.log %979 : vector<1x256xf32>
    %981 = arith.addf %973, %980 : vector<1x256xf32>
    %982 = arith.addf %958, %981 : vector<1x256xf32>
    %c1_458 = arith.constant 1 : index
    %c0_459 = arith.constant 0 : index
    %983 = vector.load %arg8[%c1_458, %c0_459] : memref<32x256xf32, #tpu.memory_space<vmem>>, vector<1x256xf32>
    %984 = arith.mulf %983, %957 : vector<1x256xf32>
    %cst_460 = arith.constant 1.000000e+00 : f32
    %985 = vector.broadcast %cst_460 : f32 to vector<1x256xf32>
    %986 = arith.cmpf oeq, %956, %985 : vector<1x256xf32>
    %cst_461 = arith.constant 8.000000e-01 : f32
    %cst_462 = arith.constant 0.0076923077 : f32
    %987 = vector.broadcast %cst_461 : f32 to vector<1x256xf32>
    %988 = vector.broadcast %cst_462 : f32 to vector<1x256xf32>
    %989 = arith.select %986, %987, %988 : vector<1x256xi1>, vector<1x256xf32>
    %cst_463 = arith.constant 1.000000e+00 : f32
    %990 = vector.broadcast %cst_463 : f32 to vector<1x256xf32>
    %991 = arith.subf %990, %989 : vector<1x256xf32>
    %992 = arith.mulf %991, %984 : vector<1x256xf32>
    %cst_464 = arith.constant 0.000000e+00 : f32
    %993 = vector.broadcast %cst_464 : f32 to vector<1x256xf32>
    %994 = arith.subf %993, %984 : vector<1x256xf32>
    %cst_465 = arith.constant 0.000000e+00 : f32
    %995 = vector.broadcast %cst_465 : f32 to vector<1x256xf32>
    %996 = arith.maximumf %994, %995 : vector<1x256xf32>
    %997 = arith.addf %992, %996 : vector<1x256xf32>
    %998 = math.absf %984 : vector<1x256xf32>
    %cst_466 = arith.constant 0.000000e+00 : f32
    %999 = vector.broadcast %cst_466 : f32 to vector<1x256xf32>
    %1000 = arith.subf %999, %998 : vector<1x256xf32>
    %1001 = math.exp %1000 : vector<1x256xf32>
    %cst_467 = arith.constant 1.000000e+00 : f32
    %1002 = vector.broadcast %cst_467 : f32 to vector<1x256xf32>
    %1003 = arith.addf %1002, %1001 : vector<1x256xf32>
    %1004 = math.log %1003 : vector<1x256xf32>
    %1005 = arith.addf %997, %1004 : vector<1x256xf32>
    %1006 = arith.addf %982, %1005 : vector<1x256xf32>
    %c2_468 = arith.constant 2 : index
    %c0_469 = arith.constant 0 : index
    %1007 = vector.load %arg8[%c2_468, %c0_469] : memref<32x256xf32, #tpu.memory_space<vmem>>, vector<1x256xf32>
    %1008 = arith.mulf %1007, %957 : vector<1x256xf32>
    %cst_470 = arith.constant 2.000000e+00 : f32
    %1009 = vector.broadcast %cst_470 : f32 to vector<1x256xf32>
    %1010 = arith.cmpf oeq, %956, %1009 : vector<1x256xf32>
    %cst_471 = arith.constant 8.000000e-01 : f32
    %cst_472 = arith.constant 0.0076923077 : f32
    %1011 = vector.broadcast %cst_471 : f32 to vector<1x256xf32>
    %1012 = vector.broadcast %cst_472 : f32 to vector<1x256xf32>
    %1013 = arith.select %1010, %1011, %1012 : vector<1x256xi1>, vector<1x256xf32>
    %cst_473 = arith.constant 1.000000e+00 : f32
    %1014 = vector.broadcast %cst_473 : f32 to vector<1x256xf32>
    %1015 = arith.subf %1014, %1013 : vector<1x256xf32>
    %1016 = arith.mulf %1015, %1008 : vector<1x256xf32>
    %cst_474 = arith.constant 0.000000e+00 : f32
    %1017 = vector.broadcast %cst_474 : f32 to vector<1x256xf32>
    %1018 = arith.subf %1017, %1008 : vector<1x256xf32>
    %cst_475 = arith.constant 0.000000e+00 : f32
    %1019 = vector.broadcast %cst_475 : f32 to vector<1x256xf32>
    %1020 = arith.maximumf %1018, %1019 : vector<1x256xf32>
    %1021 = arith.addf %1016, %1020 : vector<1x256xf32>
    %1022 = math.absf %1008 : vector<1x256xf32>
    %cst_476 = arith.constant 0.000000e+00 : f32
    %1023 = vector.broadcast %cst_476 : f32 to vector<1x256xf32>
    %1024 = arith.subf %1023, %1022 : vector<1x256xf32>
    %1025 = math.exp %1024 : vector<1x256xf32>
    %cst_477 = arith.constant 1.000000e+00 : f32
    %1026 = vector.broadcast %cst_477 : f32 to vector<1x256xf32>
    %1027 = arith.addf %1026, %1025 : vector<1x256xf32>
    %1028 = math.log %1027 : vector<1x256xf32>
    %1029 = arith.addf %1021, %1028 : vector<1x256xf32>
    %1030 = arith.addf %1006, %1029 : vector<1x256xf32>
    %c3_478 = arith.constant 3 : index
    %c0_479 = arith.constant 0 : index
    %1031 = vector.load %arg8[%c3_478, %c0_479] : memref<32x256xf32, #tpu.memory_space<vmem>>, vector<1x256xf32>
    %1032 = arith.mulf %1031, %957 : vector<1x256xf32>
    %cst_480 = arith.constant 3.000000e+00 : f32
    %1033 = vector.broadcast %cst_480 : f32 to vector<1x256xf32>
    %1034 = arith.cmpf oeq, %956, %1033 : vector<1x256xf32>
    %cst_481 = arith.constant 8.000000e-01 : f32
    %cst_482 = arith.constant 0.0076923077 : f32
    %1035 = vector.broadcast %cst_481 : f32 to vector<1x256xf32>
    %1036 = vector.broadcast %cst_482 : f32 to vector<1x256xf32>
    %1037 = arith.select %1034, %1035, %1036 : vector<1x256xi1>, vector<1x256xf32>
    %cst_483 = arith.constant 1.000000e+00 : f32
    %1038 = vector.broadcast %cst_483 : f32 to vector<1x256xf32>
    %1039 = arith.subf %1038, %1037 : vector<1x256xf32>
    %1040 = arith.mulf %1039, %1032 : vector<1x256xf32>
    %cst_484 = arith.constant 0.000000e+00 : f32
    %1041 = vector.broadcast %cst_484 : f32 to vector<1x256xf32>
    %1042 = arith.subf %1041, %1032 : vector<1x256xf32>
    %cst_485 = arith.constant 0.000000e+00 : f32
    %1043 = vector.broadcast %cst_485 : f32 to vector<1x256xf32>
    %1044 = arith.maximumf %1042, %1043 : vector<1x256xf32>
    %1045 = arith.addf %1040, %1044 : vector<1x256xf32>
    %1046 = math.absf %1032 : vector<1x256xf32>
    %cst_486 = arith.constant 0.000000e+00 : f32
    %1047 = vector.broadcast %cst_486 : f32 to vector<1x256xf32>
    %1048 = arith.subf %1047, %1046 : vector<1x256xf32>
    %1049 = math.exp %1048 : vector<1x256xf32>
    %cst_487 = arith.constant 1.000000e+00 : f32
    %1050 = vector.broadcast %cst_487 : f32 to vector<1x256xf32>
    %1051 = arith.addf %1050, %1049 : vector<1x256xf32>
    %1052 = math.log %1051 : vector<1x256xf32>
    %1053 = arith.addf %1045, %1052 : vector<1x256xf32>
    %1054 = arith.addf %1030, %1053 : vector<1x256xf32>
    %c4_488 = arith.constant 4 : index
    %c0_489 = arith.constant 0 : index
    %1055 = vector.load %arg8[%c4_488, %c0_489] : memref<32x256xf32, #tpu.memory_space<vmem>>, vector<1x256xf32>
    %1056 = arith.mulf %1055, %957 : vector<1x256xf32>
    %cst_490 = arith.constant 4.000000e+00 : f32
    %1057 = vector.broadcast %cst_490 : f32 to vector<1x256xf32>
    %1058 = arith.cmpf oeq, %956, %1057 : vector<1x256xf32>
    %cst_491 = arith.constant 8.000000e-01 : f32
    %cst_492 = arith.constant 0.0076923077 : f32
    %1059 = vector.broadcast %cst_491 : f32 to vector<1x256xf32>
    %1060 = vector.broadcast %cst_492 : f32 to vector<1x256xf32>
    %1061 = arith.select %1058, %1059, %1060 : vector<1x256xi1>, vector<1x256xf32>
    %cst_493 = arith.constant 1.000000e+00 : f32
    %1062 = vector.broadcast %cst_493 : f32 to vector<1x256xf32>
    %1063 = arith.subf %1062, %1061 : vector<1x256xf32>
    %1064 = arith.mulf %1063, %1056 : vector<1x256xf32>
    %cst_494 = arith.constant 0.000000e+00 : f32
    %1065 = vector.broadcast %cst_494 : f32 to vector<1x256xf32>
    %1066 = arith.subf %1065, %1056 : vector<1x256xf32>
    %cst_495 = arith.constant 0.000000e+00 : f32
    %1067 = vector.broadcast %cst_495 : f32 to vector<1x256xf32>
    %1068 = arith.maximumf %1066, %1067 : vector<1x256xf32>
    %1069 = arith.addf %1064, %1068 : vector<1x256xf32>
    %1070 = math.absf %1056 : vector<1x256xf32>
    %cst_496 = arith.constant 0.000000e+00 : f32
    %1071 = vector.broadcast %cst_496 : f32 to vector<1x256xf32>
    %1072 = arith.subf %1071, %1070 : vector<1x256xf32>
    %1073 = math.exp %1072 : vector<1x256xf32>
    %cst_497 = arith.constant 1.000000e+00 : f32
    %1074 = vector.broadcast %cst_497 : f32 to vector<1x256xf32>
    %1075 = arith.addf %1074, %1073 : vector<1x256xf32>
    %1076 = math.log %1075 : vector<1x256xf32>
    %1077 = arith.addf %1069, %1076 : vector<1x256xf32>
    %1078 = arith.addf %1054, %1077 : vector<1x256xf32>
    %c5_498 = arith.constant 5 : index
    %c0_499 = arith.constant 0 : index
    %1079 = vector.load %arg8[%c5_498, %c0_499] : memref<32x256xf32, #tpu.memory_space<vmem>>, vector<1x256xf32>
    %1080 = arith.mulf %1079, %957 : vector<1x256xf32>
    %cst_500 = arith.constant 5.000000e+00 : f32
    %1081 = vector.broadcast %cst_500 : f32 to vector<1x256xf32>
    %1082 = arith.cmpf oeq, %956, %1081 : vector<1x256xf32>
    %cst_501 = arith.constant 8.000000e-01 : f32
    %cst_502 = arith.constant 0.0076923077 : f32
    %1083 = vector.broadcast %cst_501 : f32 to vector<1x256xf32>
    %1084 = vector.broadcast %cst_502 : f32 to vector<1x256xf32>
    %1085 = arith.select %1082, %1083, %1084 : vector<1x256xi1>, vector<1x256xf32>
    %cst_503 = arith.constant 1.000000e+00 : f32
    %1086 = vector.broadcast %cst_503 : f32 to vector<1x256xf32>
    %1087 = arith.subf %1086, %1085 : vector<1x256xf32>
    %1088 = arith.mulf %1087, %1080 : vector<1x256xf32>
    %cst_504 = arith.constant 0.000000e+00 : f32
    %1089 = vector.broadcast %cst_504 : f32 to vector<1x256xf32>
    %1090 = arith.subf %1089, %1080 : vector<1x256xf32>
    %cst_505 = arith.constant 0.000000e+00 : f32
    %1091 = vector.broadcast %cst_505 : f32 to vector<1x256xf32>
    %1092 = arith.maximumf %1090, %1091 : vector<1x256xf32>
    %1093 = arith.addf %1088, %1092 : vector<1x256xf32>
    %1094 = math.absf %1080 : vector<1x256xf32>
    %cst_506 = arith.constant 0.000000e+00 : f32
    %1095 = vector.broadcast %cst_506 : f32 to vector<1x256xf32>
    %1096 = arith.subf %1095, %1094 : vector<1x256xf32>
    %1097 = math.exp %1096 : vector<1x256xf32>
    %cst_507 = arith.constant 1.000000e+00 : f32
    %1098 = vector.broadcast %cst_507 : f32 to vector<1x256xf32>
    %1099 = arith.addf %1098, %1097 : vector<1x256xf32>
    %1100 = math.log %1099 : vector<1x256xf32>
    %1101 = arith.addf %1093, %1100 : vector<1x256xf32>
    %1102 = arith.addf %1078, %1101 : vector<1x256xf32>
    %c6_508 = arith.constant 6 : index
    %c0_509 = arith.constant 0 : index
    %1103 = vector.load %arg8[%c6_508, %c0_509] : memref<32x256xf32, #tpu.memory_space<vmem>>, vector<1x256xf32>
    %1104 = arith.mulf %1103, %957 : vector<1x256xf32>
    %cst_510 = arith.constant 6.000000e+00 : f32
    %1105 = vector.broadcast %cst_510 : f32 to vector<1x256xf32>
    %1106 = arith.cmpf oeq, %956, %1105 : vector<1x256xf32>
    %cst_511 = arith.constant 8.000000e-01 : f32
    %cst_512 = arith.constant 0.0076923077 : f32
    %1107 = vector.broadcast %cst_511 : f32 to vector<1x256xf32>
    %1108 = vector.broadcast %cst_512 : f32 to vector<1x256xf32>
    %1109 = arith.select %1106, %1107, %1108 : vector<1x256xi1>, vector<1x256xf32>
    %cst_513 = arith.constant 1.000000e+00 : f32
    %1110 = vector.broadcast %cst_513 : f32 to vector<1x256xf32>
    %1111 = arith.subf %1110, %1109 : vector<1x256xf32>
    %1112 = arith.mulf %1111, %1104 : vector<1x256xf32>
    %cst_514 = arith.constant 0.000000e+00 : f32
    %1113 = vector.broadcast %cst_514 : f32 to vector<1x256xf32>
    %1114 = arith.subf %1113, %1104 : vector<1x256xf32>
    %cst_515 = arith.constant 0.000000e+00 : f32
    %1115 = vector.broadcast %cst_515 : f32 to vector<1x256xf32>
    %1116 = arith.maximumf %1114, %1115 : vector<1x256xf32>
    %1117 = arith.addf %1112, %1116 : vector<1x256xf32>
    %1118 = math.absf %1104 : vector<1x256xf32>
    %cst_516 = arith.constant 0.000000e+00 : f32
    %1119 = vector.broadcast %cst_516 : f32 to vector<1x256xf32>
    %1120 = arith.subf %1119, %1118 : vector<1x256xf32>
    %1121 = math.exp %1120 : vector<1x256xf32>
    %cst_517 = arith.constant 1.000000e+00 : f32
    %1122 = vector.broadcast %cst_517 : f32 to vector<1x256xf32>
    %1123 = arith.addf %1122, %1121 : vector<1x256xf32>
    %1124 = math.log %1123 : vector<1x256xf32>
    %1125 = arith.addf %1117, %1124 : vector<1x256xf32>
    %1126 = arith.addf %1102, %1125 : vector<1x256xf32>
    %c7_518 = arith.constant 7 : index
    %c0_519 = arith.constant 0 : index
    %1127 = vector.load %arg8[%c7_518, %c0_519] : memref<32x256xf32, #tpu.memory_space<vmem>>, vector<1x256xf32>
    %1128 = arith.mulf %1127, %957 : vector<1x256xf32>
    %cst_520 = arith.constant 7.000000e+00 : f32
    %1129 = vector.broadcast %cst_520 : f32 to vector<1x256xf32>
    %1130 = arith.cmpf oeq, %956, %1129 : vector<1x256xf32>
    %cst_521 = arith.constant 8.000000e-01 : f32
    %cst_522 = arith.constant 0.0076923077 : f32
    %1131 = vector.broadcast %cst_521 : f32 to vector<1x256xf32>
    %1132 = vector.broadcast %cst_522 : f32 to vector<1x256xf32>
    %1133 = arith.select %1130, %1131, %1132 : vector<1x256xi1>, vector<1x256xf32>
    %cst_523 = arith.constant 1.000000e+00 : f32
    %1134 = vector.broadcast %cst_523 : f32 to vector<1x256xf32>
    %1135 = arith.subf %1134, %1133 : vector<1x256xf32>
    %1136 = arith.mulf %1135, %1128 : vector<1x256xf32>
    %cst_524 = arith.constant 0.000000e+00 : f32
    %1137 = vector.broadcast %cst_524 : f32 to vector<1x256xf32>
    %1138 = arith.subf %1137, %1128 : vector<1x256xf32>
    %cst_525 = arith.constant 0.000000e+00 : f32
    %1139 = vector.broadcast %cst_525 : f32 to vector<1x256xf32>
    %1140 = arith.maximumf %1138, %1139 : vector<1x256xf32>
    %1141 = arith.addf %1136, %1140 : vector<1x256xf32>
    %1142 = math.absf %1128 : vector<1x256xf32>
    %cst_526 = arith.constant 0.000000e+00 : f32
    %1143 = vector.broadcast %cst_526 : f32 to vector<1x256xf32>
    %1144 = arith.subf %1143, %1142 : vector<1x256xf32>
    %1145 = math.exp %1144 : vector<1x256xf32>
    %cst_527 = arith.constant 1.000000e+00 : f32
    %1146 = vector.broadcast %cst_527 : f32 to vector<1x256xf32>
    %1147 = arith.addf %1146, %1145 : vector<1x256xf32>
    %1148 = math.log %1147 : vector<1x256xf32>
    %1149 = arith.addf %1141, %1148 : vector<1x256xf32>
    %1150 = arith.addf %1126, %1149 : vector<1x256xf32>
    %c8_528 = arith.constant 8 : index
    %c0_529 = arith.constant 0 : index
    %1151 = vector.load %arg8[%c8_528, %c0_529] : memref<32x256xf32, #tpu.memory_space<vmem>>, vector<1x256xf32>
    %1152 = arith.mulf %1151, %957 : vector<1x256xf32>
    %cst_530 = arith.constant 8.000000e+00 : f32
    %1153 = vector.broadcast %cst_530 : f32 to vector<1x256xf32>
    %1154 = arith.cmpf oeq, %956, %1153 : vector<1x256xf32>
    %cst_531 = arith.constant 8.000000e-01 : f32
    %cst_532 = arith.constant 0.0076923077 : f32
    %1155 = vector.broadcast %cst_531 : f32 to vector<1x256xf32>
    %1156 = vector.broadcast %cst_532 : f32 to vector<1x256xf32>
    %1157 = arith.select %1154, %1155, %1156 : vector<1x256xi1>, vector<1x256xf32>
    %cst_533 = arith.constant 1.000000e+00 : f32
    %1158 = vector.broadcast %cst_533 : f32 to vector<1x256xf32>
    %1159 = arith.subf %1158, %1157 : vector<1x256xf32>
    %1160 = arith.mulf %1159, %1152 : vector<1x256xf32>
    %cst_534 = arith.constant 0.000000e+00 : f32
    %1161 = vector.broadcast %cst_534 : f32 to vector<1x256xf32>
    %1162 = arith.subf %1161, %1152 : vector<1x256xf32>
    %cst_535 = arith.constant 0.000000e+00 : f32
    %1163 = vector.broadcast %cst_535 : f32 to vector<1x256xf32>
    %1164 = arith.maximumf %1162, %1163 : vector<1x256xf32>
    %1165 = arith.addf %1160, %1164 : vector<1x256xf32>
    %1166 = math.absf %1152 : vector<1x256xf32>
    %cst_536 = arith.constant 0.000000e+00 : f32
    %1167 = vector.broadcast %cst_536 : f32 to vector<1x256xf32>
    %1168 = arith.subf %1167, %1166 : vector<1x256xf32>
    %1169 = math.exp %1168 : vector<1x256xf32>
    %cst_537 = arith.constant 1.000000e+00 : f32
    %1170 = vector.broadcast %cst_537 : f32 to vector<1x256xf32>
    %1171 = arith.addf %1170, %1169 : vector<1x256xf32>
    %1172 = math.log %1171 : vector<1x256xf32>
    %1173 = arith.addf %1165, %1172 : vector<1x256xf32>
    %1174 = arith.addf %1150, %1173 : vector<1x256xf32>
    %c9_538 = arith.constant 9 : index
    %c0_539 = arith.constant 0 : index
    %1175 = vector.load %arg8[%c9_538, %c0_539] : memref<32x256xf32, #tpu.memory_space<vmem>>, vector<1x256xf32>
    %1176 = arith.mulf %1175, %957 : vector<1x256xf32>
    %cst_540 = arith.constant 9.000000e+00 : f32
    %1177 = vector.broadcast %cst_540 : f32 to vector<1x256xf32>
    %1178 = arith.cmpf oeq, %956, %1177 : vector<1x256xf32>
    %cst_541 = arith.constant 8.000000e-01 : f32
    %cst_542 = arith.constant 0.0076923077 : f32
    %1179 = vector.broadcast %cst_541 : f32 to vector<1x256xf32>
    %1180 = vector.broadcast %cst_542 : f32 to vector<1x256xf32>
    %1181 = arith.select %1178, %1179, %1180 : vector<1x256xi1>, vector<1x256xf32>
    %cst_543 = arith.constant 1.000000e+00 : f32
    %1182 = vector.broadcast %cst_543 : f32 to vector<1x256xf32>
    %1183 = arith.subf %1182, %1181 : vector<1x256xf32>
    %1184 = arith.mulf %1183, %1176 : vector<1x256xf32>
    %cst_544 = arith.constant 0.000000e+00 : f32
    %1185 = vector.broadcast %cst_544 : f32 to vector<1x256xf32>
    %1186 = arith.subf %1185, %1176 : vector<1x256xf32>
    %cst_545 = arith.constant 0.000000e+00 : f32
    %1187 = vector.broadcast %cst_545 : f32 to vector<1x256xf32>
    %1188 = arith.maximumf %1186, %1187 : vector<1x256xf32>
    %1189 = arith.addf %1184, %1188 : vector<1x256xf32>
    %1190 = math.absf %1176 : vector<1x256xf32>
    %cst_546 = arith.constant 0.000000e+00 : f32
    %1191 = vector.broadcast %cst_546 : f32 to vector<1x256xf32>
    %1192 = arith.subf %1191, %1190 : vector<1x256xf32>
    %1193 = math.exp %1192 : vector<1x256xf32>
    %cst_547 = arith.constant 1.000000e+00 : f32
    %1194 = vector.broadcast %cst_547 : f32 to vector<1x256xf32>
    %1195 = arith.addf %1194, %1193 : vector<1x256xf32>
    %1196 = math.log %1195 : vector<1x256xf32>
    %1197 = arith.addf %1189, %1196 : vector<1x256xf32>
    %1198 = arith.addf %1174, %1197 : vector<1x256xf32>
    %c10_548 = arith.constant 10 : index
    %c0_549 = arith.constant 0 : index
    %1199 = vector.load %arg8[%c10_548, %c0_549] : memref<32x256xf32, #tpu.memory_space<vmem>>, vector<1x256xf32>
    %1200 = arith.mulf %1199, %957 : vector<1x256xf32>
    %cst_550 = arith.constant 1.000000e+01 : f32
    %1201 = vector.broadcast %cst_550 : f32 to vector<1x256xf32>
    %1202 = arith.cmpf oeq, %956, %1201 : vector<1x256xf32>
    %cst_551 = arith.constant 8.000000e-01 : f32
    %cst_552 = arith.constant 0.0076923077 : f32
    %1203 = vector.broadcast %cst_551 : f32 to vector<1x256xf32>
    %1204 = vector.broadcast %cst_552 : f32 to vector<1x256xf32>
    %1205 = arith.select %1202, %1203, %1204 : vector<1x256xi1>, vector<1x256xf32>
    %cst_553 = arith.constant 1.000000e+00 : f32
    %1206 = vector.broadcast %cst_553 : f32 to vector<1x256xf32>
    %1207 = arith.subf %1206, %1205 : vector<1x256xf32>
    %1208 = arith.mulf %1207, %1200 : vector<1x256xf32>
    %cst_554 = arith.constant 0.000000e+00 : f32
    %1209 = vector.broadcast %cst_554 : f32 to vector<1x256xf32>
    %1210 = arith.subf %1209, %1200 : vector<1x256xf32>
    %cst_555 = arith.constant 0.000000e+00 : f32
    %1211 = vector.broadcast %cst_555 : f32 to vector<1x256xf32>
    %1212 = arith.maximumf %1210, %1211 : vector<1x256xf32>
    %1213 = arith.addf %1208, %1212 : vector<1x256xf32>
    %1214 = math.absf %1200 : vector<1x256xf32>
    %cst_556 = arith.constant 0.000000e+00 : f32
    %1215 = vector.broadcast %cst_556 : f32 to vector<1x256xf32>
    %1216 = arith.subf %1215, %1214 : vector<1x256xf32>
    %1217 = math.exp %1216 : vector<1x256xf32>
    %cst_557 = arith.constant 1.000000e+00 : f32
    %1218 = vector.broadcast %cst_557 : f32 to vector<1x256xf32>
    %1219 = arith.addf %1218, %1217 : vector<1x256xf32>
    %1220 = math.log %1219 : vector<1x256xf32>
    %1221 = arith.addf %1213, %1220 : vector<1x256xf32>
    %1222 = arith.addf %1198, %1221 : vector<1x256xf32>
    %c11_558 = arith.constant 11 : index
    %c0_559 = arith.constant 0 : index
    %1223 = vector.load %arg8[%c11_558, %c0_559] : memref<32x256xf32, #tpu.memory_space<vmem>>, vector<1x256xf32>
    %1224 = arith.mulf %1223, %957 : vector<1x256xf32>
    %cst_560 = arith.constant 1.100000e+01 : f32
    %1225 = vector.broadcast %cst_560 : f32 to vector<1x256xf32>
    %1226 = arith.cmpf oeq, %956, %1225 : vector<1x256xf32>
    %cst_561 = arith.constant 8.000000e-01 : f32
    %cst_562 = arith.constant 0.0076923077 : f32
    %1227 = vector.broadcast %cst_561 : f32 to vector<1x256xf32>
    %1228 = vector.broadcast %cst_562 : f32 to vector<1x256xf32>
    %1229 = arith.select %1226, %1227, %1228 : vector<1x256xi1>, vector<1x256xf32>
    %cst_563 = arith.constant 1.000000e+00 : f32
    %1230 = vector.broadcast %cst_563 : f32 to vector<1x256xf32>
    %1231 = arith.subf %1230, %1229 : vector<1x256xf32>
    %1232 = arith.mulf %1231, %1224 : vector<1x256xf32>
    %cst_564 = arith.constant 0.000000e+00 : f32
    %1233 = vector.broadcast %cst_564 : f32 to vector<1x256xf32>
    %1234 = arith.subf %1233, %1224 : vector<1x256xf32>
    %cst_565 = arith.constant 0.000000e+00 : f32
    %1235 = vector.broadcast %cst_565 : f32 to vector<1x256xf32>
    %1236 = arith.maximumf %1234, %1235 : vector<1x256xf32>
    %1237 = arith.addf %1232, %1236 : vector<1x256xf32>
    %1238 = math.absf %1224 : vector<1x256xf32>
    %cst_566 = arith.constant 0.000000e+00 : f32
    %1239 = vector.broadcast %cst_566 : f32 to vector<1x256xf32>
    %1240 = arith.subf %1239, %1238 : vector<1x256xf32>
    %1241 = math.exp %1240 : vector<1x256xf32>
    %cst_567 = arith.constant 1.000000e+00 : f32
    %1242 = vector.broadcast %cst_567 : f32 to vector<1x256xf32>
    %1243 = arith.addf %1242, %1241 : vector<1x256xf32>
    %1244 = math.log %1243 : vector<1x256xf32>
    %1245 = arith.addf %1237, %1244 : vector<1x256xf32>
    %1246 = arith.addf %1222, %1245 : vector<1x256xf32>
    %c12_568 = arith.constant 12 : index
    %c0_569 = arith.constant 0 : index
    %1247 = vector.load %arg8[%c12_568, %c0_569] : memref<32x256xf32, #tpu.memory_space<vmem>>, vector<1x256xf32>
    %1248 = arith.mulf %1247, %957 : vector<1x256xf32>
    %cst_570 = arith.constant 1.200000e+01 : f32
    %1249 = vector.broadcast %cst_570 : f32 to vector<1x256xf32>
    %1250 = arith.cmpf oeq, %956, %1249 : vector<1x256xf32>
    %cst_571 = arith.constant 8.000000e-01 : f32
    %cst_572 = arith.constant 0.0076923077 : f32
    %1251 = vector.broadcast %cst_571 : f32 to vector<1x256xf32>
    %1252 = vector.broadcast %cst_572 : f32 to vector<1x256xf32>
    %1253 = arith.select %1250, %1251, %1252 : vector<1x256xi1>, vector<1x256xf32>
    %cst_573 = arith.constant 1.000000e+00 : f32
    %1254 = vector.broadcast %cst_573 : f32 to vector<1x256xf32>
    %1255 = arith.subf %1254, %1253 : vector<1x256xf32>
    %1256 = arith.mulf %1255, %1248 : vector<1x256xf32>
    %cst_574 = arith.constant 0.000000e+00 : f32
    %1257 = vector.broadcast %cst_574 : f32 to vector<1x256xf32>
    %1258 = arith.subf %1257, %1248 : vector<1x256xf32>
    %cst_575 = arith.constant 0.000000e+00 : f32
    %1259 = vector.broadcast %cst_575 : f32 to vector<1x256xf32>
    %1260 = arith.maximumf %1258, %1259 : vector<1x256xf32>
    %1261 = arith.addf %1256, %1260 : vector<1x256xf32>
    %1262 = math.absf %1248 : vector<1x256xf32>
    %cst_576 = arith.constant 0.000000e+00 : f32
    %1263 = vector.broadcast %cst_576 : f32 to vector<1x256xf32>
    %1264 = arith.subf %1263, %1262 : vector<1x256xf32>
    %1265 = math.exp %1264 : vector<1x256xf32>
    %cst_577 = arith.constant 1.000000e+00 : f32
    %1266 = vector.broadcast %cst_577 : f32 to vector<1x256xf32>
    %1267 = arith.addf %1266, %1265 : vector<1x256xf32>
    %1268 = math.log %1267 : vector<1x256xf32>
    %1269 = arith.addf %1261, %1268 : vector<1x256xf32>
    %1270 = arith.addf %1246, %1269 : vector<1x256xf32>
    %c13_578 = arith.constant 13 : index
    %c0_579 = arith.constant 0 : index
    %1271 = vector.load %arg8[%c13_578, %c0_579] : memref<32x256xf32, #tpu.memory_space<vmem>>, vector<1x256xf32>
    %1272 = arith.mulf %1271, %957 : vector<1x256xf32>
    %cst_580 = arith.constant 1.300000e+01 : f32
    %1273 = vector.broadcast %cst_580 : f32 to vector<1x256xf32>
    %1274 = arith.cmpf oeq, %956, %1273 : vector<1x256xf32>
    %cst_581 = arith.constant 8.000000e-01 : f32
    %cst_582 = arith.constant 0.0076923077 : f32
    %1275 = vector.broadcast %cst_581 : f32 to vector<1x256xf32>
    %1276 = vector.broadcast %cst_582 : f32 to vector<1x256xf32>
    %1277 = arith.select %1274, %1275, %1276 : vector<1x256xi1>, vector<1x256xf32>
    %cst_583 = arith.constant 1.000000e+00 : f32
    %1278 = vector.broadcast %cst_583 : f32 to vector<1x256xf32>
    %1279 = arith.subf %1278, %1277 : vector<1x256xf32>
    %1280 = arith.mulf %1279, %1272 : vector<1x256xf32>
    %cst_584 = arith.constant 0.000000e+00 : f32
    %1281 = vector.broadcast %cst_584 : f32 to vector<1x256xf32>
    %1282 = arith.subf %1281, %1272 : vector<1x256xf32>
    %cst_585 = arith.constant 0.000000e+00 : f32
    %1283 = vector.broadcast %cst_585 : f32 to vector<1x256xf32>
    %1284 = arith.maximumf %1282, %1283 : vector<1x256xf32>
    %1285 = arith.addf %1280, %1284 : vector<1x256xf32>
    %1286 = math.absf %1272 : vector<1x256xf32>
    %cst_586 = arith.constant 0.000000e+00 : f32
    %1287 = vector.broadcast %cst_586 : f32 to vector<1x256xf32>
    %1288 = arith.subf %1287, %1286 : vector<1x256xf32>
    %1289 = math.exp %1288 : vector<1x256xf32>
    %cst_587 = arith.constant 1.000000e+00 : f32
    %1290 = vector.broadcast %cst_587 : f32 to vector<1x256xf32>
    %1291 = arith.addf %1290, %1289 : vector<1x256xf32>
    %1292 = math.log %1291 : vector<1x256xf32>
    %1293 = arith.addf %1285, %1292 : vector<1x256xf32>
    %1294 = arith.addf %1270, %1293 : vector<1x256xf32>
    %c14_588 = arith.constant 14 : index
    %c0_589 = arith.constant 0 : index
    %1295 = vector.load %arg8[%c14_588, %c0_589] : memref<32x256xf32, #tpu.memory_space<vmem>>, vector<1x256xf32>
    %1296 = arith.mulf %1295, %957 : vector<1x256xf32>
    %cst_590 = arith.constant 1.400000e+01 : f32
    %1297 = vector.broadcast %cst_590 : f32 to vector<1x256xf32>
    %1298 = arith.cmpf oeq, %956, %1297 : vector<1x256xf32>
    %cst_591 = arith.constant 8.000000e-01 : f32
    %cst_592 = arith.constant 0.0076923077 : f32
    %1299 = vector.broadcast %cst_591 : f32 to vector<1x256xf32>
    %1300 = vector.broadcast %cst_592 : f32 to vector<1x256xf32>
    %1301 = arith.select %1298, %1299, %1300 : vector<1x256xi1>, vector<1x256xf32>
    %cst_593 = arith.constant 1.000000e+00 : f32
    %1302 = vector.broadcast %cst_593 : f32 to vector<1x256xf32>
    %1303 = arith.subf %1302, %1301 : vector<1x256xf32>
    %1304 = arith.mulf %1303, %1296 : vector<1x256xf32>
    %cst_594 = arith.constant 0.000000e+00 : f32
    %1305 = vector.broadcast %cst_594 : f32 to vector<1x256xf32>
    %1306 = arith.subf %1305, %1296 : vector<1x256xf32>
    %cst_595 = arith.constant 0.000000e+00 : f32
    %1307 = vector.broadcast %cst_595 : f32 to vector<1x256xf32>
    %1308 = arith.maximumf %1306, %1307 : vector<1x256xf32>
    %1309 = arith.addf %1304, %1308 : vector<1x256xf32>
    %1310 = math.absf %1296 : vector<1x256xf32>
    %cst_596 = arith.constant 0.000000e+00 : f32
    %1311 = vector.broadcast %cst_596 : f32 to vector<1x256xf32>
    %1312 = arith.subf %1311, %1310 : vector<1x256xf32>
    %1313 = math.exp %1312 : vector<1x256xf32>
    %cst_597 = arith.constant 1.000000e+00 : f32
    %1314 = vector.broadcast %cst_597 : f32 to vector<1x256xf32>
    %1315 = arith.addf %1314, %1313 : vector<1x256xf32>
    %1316 = math.log %1315 : vector<1x256xf32>
    %1317 = arith.addf %1309, %1316 : vector<1x256xf32>
    %1318 = arith.addf %1294, %1317 : vector<1x256xf32>
    %c15_598 = arith.constant 15 : index
    %c0_599 = arith.constant 0 : index
    %1319 = vector.load %arg8[%c15_598, %c0_599] : memref<32x256xf32, #tpu.memory_space<vmem>>, vector<1x256xf32>
    %1320 = arith.mulf %1319, %957 : vector<1x256xf32>
    %cst_600 = arith.constant 1.500000e+01 : f32
    %1321 = vector.broadcast %cst_600 : f32 to vector<1x256xf32>
    %1322 = arith.cmpf oeq, %956, %1321 : vector<1x256xf32>
    %cst_601 = arith.constant 8.000000e-01 : f32
    %cst_602 = arith.constant 0.0076923077 : f32
    %1323 = vector.broadcast %cst_601 : f32 to vector<1x256xf32>
    %1324 = vector.broadcast %cst_602 : f32 to vector<1x256xf32>
    %1325 = arith.select %1322, %1323, %1324 : vector<1x256xi1>, vector<1x256xf32>
    %cst_603 = arith.constant 1.000000e+00 : f32
    %1326 = vector.broadcast %cst_603 : f32 to vector<1x256xf32>
    %1327 = arith.subf %1326, %1325 : vector<1x256xf32>
    %1328 = arith.mulf %1327, %1320 : vector<1x256xf32>
    %cst_604 = arith.constant 0.000000e+00 : f32
    %1329 = vector.broadcast %cst_604 : f32 to vector<1x256xf32>
    %1330 = arith.subf %1329, %1320 : vector<1x256xf32>
    %cst_605 = arith.constant 0.000000e+00 : f32
    %1331 = vector.broadcast %cst_605 : f32 to vector<1x256xf32>
    %1332 = arith.maximumf %1330, %1331 : vector<1x256xf32>
    %1333 = arith.addf %1328, %1332 : vector<1x256xf32>
    %1334 = math.absf %1320 : vector<1x256xf32>
    %cst_606 = arith.constant 0.000000e+00 : f32
    %1335 = vector.broadcast %cst_606 : f32 to vector<1x256xf32>
    %1336 = arith.subf %1335, %1334 : vector<1x256xf32>
    %1337 = math.exp %1336 : vector<1x256xf32>
    %cst_607 = arith.constant 1.000000e+00 : f32
    %1338 = vector.broadcast %cst_607 : f32 to vector<1x256xf32>
    %1339 = arith.addf %1338, %1337 : vector<1x256xf32>
    %1340 = math.log %1339 : vector<1x256xf32>
    %1341 = arith.addf %1333, %1340 : vector<1x256xf32>
    %1342 = arith.addf %1318, %1341 : vector<1x256xf32>
    %c16_608 = arith.constant 16 : index
    %c0_609 = arith.constant 0 : index
    %1343 = vector.load %arg8[%c16_608, %c0_609] : memref<32x256xf32, #tpu.memory_space<vmem>>, vector<1x256xf32>
    %1344 = arith.mulf %1343, %957 : vector<1x256xf32>
    %cst_610 = arith.constant 1.600000e+01 : f32
    %1345 = vector.broadcast %cst_610 : f32 to vector<1x256xf32>
    %1346 = arith.cmpf oeq, %956, %1345 : vector<1x256xf32>
    %cst_611 = arith.constant 8.000000e-01 : f32
    %cst_612 = arith.constant 0.0076923077 : f32
    %1347 = vector.broadcast %cst_611 : f32 to vector<1x256xf32>
    %1348 = vector.broadcast %cst_612 : f32 to vector<1x256xf32>
    %1349 = arith.select %1346, %1347, %1348 : vector<1x256xi1>, vector<1x256xf32>
    %cst_613 = arith.constant 1.000000e+00 : f32
    %1350 = vector.broadcast %cst_613 : f32 to vector<1x256xf32>
    %1351 = arith.subf %1350, %1349 : vector<1x256xf32>
    %1352 = arith.mulf %1351, %1344 : vector<1x256xf32>
    %cst_614 = arith.constant 0.000000e+00 : f32
    %1353 = vector.broadcast %cst_614 : f32 to vector<1x256xf32>
    %1354 = arith.subf %1353, %1344 : vector<1x256xf32>
    %cst_615 = arith.constant 0.000000e+00 : f32
    %1355 = vector.broadcast %cst_615 : f32 to vector<1x256xf32>
    %1356 = arith.maximumf %1354, %1355 : vector<1x256xf32>
    %1357 = arith.addf %1352, %1356 : vector<1x256xf32>
    %1358 = math.absf %1344 : vector<1x256xf32>
    %cst_616 = arith.constant 0.000000e+00 : f32
    %1359 = vector.broadcast %cst_616 : f32 to vector<1x256xf32>
    %1360 = arith.subf %1359, %1358 : vector<1x256xf32>
    %1361 = math.exp %1360 : vector<1x256xf32>
    %cst_617 = arith.constant 1.000000e+00 : f32
    %1362 = vector.broadcast %cst_617 : f32 to vector<1x256xf32>
    %1363 = arith.addf %1362, %1361 : vector<1x256xf32>
    %1364 = math.log %1363 : vector<1x256xf32>
    %1365 = arith.addf %1357, %1364 : vector<1x256xf32>
    %1366 = arith.addf %1342, %1365 : vector<1x256xf32>
    %c17_618 = arith.constant 17 : index
    %c0_619 = arith.constant 0 : index
    %1367 = vector.load %arg8[%c17_618, %c0_619] : memref<32x256xf32, #tpu.memory_space<vmem>>, vector<1x256xf32>
    %1368 = arith.mulf %1367, %957 : vector<1x256xf32>
    %cst_620 = arith.constant 1.700000e+01 : f32
    %1369 = vector.broadcast %cst_620 : f32 to vector<1x256xf32>
    %1370 = arith.cmpf oeq, %956, %1369 : vector<1x256xf32>
    %cst_621 = arith.constant 8.000000e-01 : f32
    %cst_622 = arith.constant 0.0076923077 : f32
    %1371 = vector.broadcast %cst_621 : f32 to vector<1x256xf32>
    %1372 = vector.broadcast %cst_622 : f32 to vector<1x256xf32>
    %1373 = arith.select %1370, %1371, %1372 : vector<1x256xi1>, vector<1x256xf32>
    %cst_623 = arith.constant 1.000000e+00 : f32
    %1374 = vector.broadcast %cst_623 : f32 to vector<1x256xf32>
    %1375 = arith.subf %1374, %1373 : vector<1x256xf32>
    %1376 = arith.mulf %1375, %1368 : vector<1x256xf32>
    %cst_624 = arith.constant 0.000000e+00 : f32
    %1377 = vector.broadcast %cst_624 : f32 to vector<1x256xf32>
    %1378 = arith.subf %1377, %1368 : vector<1x256xf32>
    %cst_625 = arith.constant 0.000000e+00 : f32
    %1379 = vector.broadcast %cst_625 : f32 to vector<1x256xf32>
    %1380 = arith.maximumf %1378, %1379 : vector<1x256xf32>
    %1381 = arith.addf %1376, %1380 : vector<1x256xf32>
    %1382 = math.absf %1368 : vector<1x256xf32>
    %cst_626 = arith.constant 0.000000e+00 : f32
    %1383 = vector.broadcast %cst_626 : f32 to vector<1x256xf32>
    %1384 = arith.subf %1383, %1382 : vector<1x256xf32>
    %1385 = math.exp %1384 : vector<1x256xf32>
    %cst_627 = arith.constant 1.000000e+00 : f32
    %1386 = vector.broadcast %cst_627 : f32 to vector<1x256xf32>
    %1387 = arith.addf %1386, %1385 : vector<1x256xf32>
    %1388 = math.log %1387 : vector<1x256xf32>
    %1389 = arith.addf %1381, %1388 : vector<1x256xf32>
    %1390 = arith.addf %1366, %1389 : vector<1x256xf32>
    %c18_628 = arith.constant 18 : index
    %c0_629 = arith.constant 0 : index
    %1391 = vector.load %arg8[%c18_628, %c0_629] : memref<32x256xf32, #tpu.memory_space<vmem>>, vector<1x256xf32>
    %1392 = arith.mulf %1391, %957 : vector<1x256xf32>
    %cst_630 = arith.constant 1.800000e+01 : f32
    %1393 = vector.broadcast %cst_630 : f32 to vector<1x256xf32>
    %1394 = arith.cmpf oeq, %956, %1393 : vector<1x256xf32>
    %cst_631 = arith.constant 8.000000e-01 : f32
    %cst_632 = arith.constant 0.0076923077 : f32
    %1395 = vector.broadcast %cst_631 : f32 to vector<1x256xf32>
    %1396 = vector.broadcast %cst_632 : f32 to vector<1x256xf32>
    %1397 = arith.select %1394, %1395, %1396 : vector<1x256xi1>, vector<1x256xf32>
    %cst_633 = arith.constant 1.000000e+00 : f32
    %1398 = vector.broadcast %cst_633 : f32 to vector<1x256xf32>
    %1399 = arith.subf %1398, %1397 : vector<1x256xf32>
    %1400 = arith.mulf %1399, %1392 : vector<1x256xf32>
    %cst_634 = arith.constant 0.000000e+00 : f32
    %1401 = vector.broadcast %cst_634 : f32 to vector<1x256xf32>
    %1402 = arith.subf %1401, %1392 : vector<1x256xf32>
    %cst_635 = arith.constant 0.000000e+00 : f32
    %1403 = vector.broadcast %cst_635 : f32 to vector<1x256xf32>
    %1404 = arith.maximumf %1402, %1403 : vector<1x256xf32>
    %1405 = arith.addf %1400, %1404 : vector<1x256xf32>
    %1406 = math.absf %1392 : vector<1x256xf32>
    %cst_636 = arith.constant 0.000000e+00 : f32
    %1407 = vector.broadcast %cst_636 : f32 to vector<1x256xf32>
    %1408 = arith.subf %1407, %1406 : vector<1x256xf32>
    %1409 = math.exp %1408 : vector<1x256xf32>
    %cst_637 = arith.constant 1.000000e+00 : f32
    %1410 = vector.broadcast %cst_637 : f32 to vector<1x256xf32>
    %1411 = arith.addf %1410, %1409 : vector<1x256xf32>
    %1412 = math.log %1411 : vector<1x256xf32>
    %1413 = arith.addf %1405, %1412 : vector<1x256xf32>
    %1414 = arith.addf %1390, %1413 : vector<1x256xf32>
    %c19_638 = arith.constant 19 : index
    %c0_639 = arith.constant 0 : index
    %1415 = vector.load %arg8[%c19_638, %c0_639] : memref<32x256xf32, #tpu.memory_space<vmem>>, vector<1x256xf32>
    %1416 = arith.mulf %1415, %957 : vector<1x256xf32>
    %cst_640 = arith.constant 1.900000e+01 : f32
    %1417 = vector.broadcast %cst_640 : f32 to vector<1x256xf32>
    %1418 = arith.cmpf oeq, %956, %1417 : vector<1x256xf32>
    %cst_641 = arith.constant 8.000000e-01 : f32
    %cst_642 = arith.constant 0.0076923077 : f32
    %1419 = vector.broadcast %cst_641 : f32 to vector<1x256xf32>
    %1420 = vector.broadcast %cst_642 : f32 to vector<1x256xf32>
    %1421 = arith.select %1418, %1419, %1420 : vector<1x256xi1>, vector<1x256xf32>
    %cst_643 = arith.constant 1.000000e+00 : f32
    %1422 = vector.broadcast %cst_643 : f32 to vector<1x256xf32>
    %1423 = arith.subf %1422, %1421 : vector<1x256xf32>
    %1424 = arith.mulf %1423, %1416 : vector<1x256xf32>
    %cst_644 = arith.constant 0.000000e+00 : f32
    %1425 = vector.broadcast %cst_644 : f32 to vector<1x256xf32>
    %1426 = arith.subf %1425, %1416 : vector<1x256xf32>
    %cst_645 = arith.constant 0.000000e+00 : f32
    %1427 = vector.broadcast %cst_645 : f32 to vector<1x256xf32>
    %1428 = arith.maximumf %1426, %1427 : vector<1x256xf32>
    %1429 = arith.addf %1424, %1428 : vector<1x256xf32>
    %1430 = math.absf %1416 : vector<1x256xf32>
    %cst_646 = arith.constant 0.000000e+00 : f32
    %1431 = vector.broadcast %cst_646 : f32 to vector<1x256xf32>
    %1432 = arith.subf %1431, %1430 : vector<1x256xf32>
    %1433 = math.exp %1432 : vector<1x256xf32>
    %cst_647 = arith.constant 1.000000e+00 : f32
    %1434 = vector.broadcast %cst_647 : f32 to vector<1x256xf32>
    %1435 = arith.addf %1434, %1433 : vector<1x256xf32>
    %1436 = math.log %1435 : vector<1x256xf32>
    %1437 = arith.addf %1429, %1436 : vector<1x256xf32>
    %1438 = arith.addf %1414, %1437 : vector<1x256xf32>
    %c20_648 = arith.constant 20 : index
    %c0_649 = arith.constant 0 : index
    %1439 = vector.load %arg8[%c20_648, %c0_649] : memref<32x256xf32, #tpu.memory_space<vmem>>, vector<1x256xf32>
    %1440 = arith.mulf %1439, %957 : vector<1x256xf32>
    %cst_650 = arith.constant 2.000000e+01 : f32
    %1441 = vector.broadcast %cst_650 : f32 to vector<1x256xf32>
    %1442 = arith.cmpf oeq, %956, %1441 : vector<1x256xf32>
    %cst_651 = arith.constant 8.000000e-01 : f32
    %cst_652 = arith.constant 0.0076923077 : f32
    %1443 = vector.broadcast %cst_651 : f32 to vector<1x256xf32>
    %1444 = vector.broadcast %cst_652 : f32 to vector<1x256xf32>
    %1445 = arith.select %1442, %1443, %1444 : vector<1x256xi1>, vector<1x256xf32>
    %cst_653 = arith.constant 1.000000e+00 : f32
    %1446 = vector.broadcast %cst_653 : f32 to vector<1x256xf32>
    %1447 = arith.subf %1446, %1445 : vector<1x256xf32>
    %1448 = arith.mulf %1447, %1440 : vector<1x256xf32>
    %cst_654 = arith.constant 0.000000e+00 : f32
    %1449 = vector.broadcast %cst_654 : f32 to vector<1x256xf32>
    %1450 = arith.subf %1449, %1440 : vector<1x256xf32>
    %cst_655 = arith.constant 0.000000e+00 : f32
    %1451 = vector.broadcast %cst_655 : f32 to vector<1x256xf32>
    %1452 = arith.maximumf %1450, %1451 : vector<1x256xf32>
    %1453 = arith.addf %1448, %1452 : vector<1x256xf32>
    %1454 = math.absf %1440 : vector<1x256xf32>
    %cst_656 = arith.constant 0.000000e+00 : f32
    %1455 = vector.broadcast %cst_656 : f32 to vector<1x256xf32>
    %1456 = arith.subf %1455, %1454 : vector<1x256xf32>
    %1457 = math.exp %1456 : vector<1x256xf32>
    %cst_657 = arith.constant 1.000000e+00 : f32
    %1458 = vector.broadcast %cst_657 : f32 to vector<1x256xf32>
    %1459 = arith.addf %1458, %1457 : vector<1x256xf32>
    %1460 = math.log %1459 : vector<1x256xf32>
    %1461 = arith.addf %1453, %1460 : vector<1x256xf32>
    %1462 = arith.addf %1438, %1461 : vector<1x256xf32>
    %c21_658 = arith.constant 21 : index
    %c0_659 = arith.constant 0 : index
    %1463 = vector.load %arg8[%c21_658, %c0_659] : memref<32x256xf32, #tpu.memory_space<vmem>>, vector<1x256xf32>
    %1464 = arith.mulf %1463, %957 : vector<1x256xf32>
    %cst_660 = arith.constant 2.100000e+01 : f32
    %1465 = vector.broadcast %cst_660 : f32 to vector<1x256xf32>
    %1466 = arith.cmpf oeq, %956, %1465 : vector<1x256xf32>
    %cst_661 = arith.constant 8.000000e-01 : f32
    %cst_662 = arith.constant 0.0076923077 : f32
    %1467 = vector.broadcast %cst_661 : f32 to vector<1x256xf32>
    %1468 = vector.broadcast %cst_662 : f32 to vector<1x256xf32>
    %1469 = arith.select %1466, %1467, %1468 : vector<1x256xi1>, vector<1x256xf32>
    %cst_663 = arith.constant 1.000000e+00 : f32
    %1470 = vector.broadcast %cst_663 : f32 to vector<1x256xf32>
    %1471 = arith.subf %1470, %1469 : vector<1x256xf32>
    %1472 = arith.mulf %1471, %1464 : vector<1x256xf32>
    %cst_664 = arith.constant 0.000000e+00 : f32
    %1473 = vector.broadcast %cst_664 : f32 to vector<1x256xf32>
    %1474 = arith.subf %1473, %1464 : vector<1x256xf32>
    %cst_665 = arith.constant 0.000000e+00 : f32
    %1475 = vector.broadcast %cst_665 : f32 to vector<1x256xf32>
    %1476 = arith.maximumf %1474, %1475 : vector<1x256xf32>
    %1477 = arith.addf %1472, %1476 : vector<1x256xf32>
    %1478 = math.absf %1464 : vector<1x256xf32>
    %cst_666 = arith.constant 0.000000e+00 : f32
    %1479 = vector.broadcast %cst_666 : f32 to vector<1x256xf32>
    %1480 = arith.subf %1479, %1478 : vector<1x256xf32>
    %1481 = math.exp %1480 : vector<1x256xf32>
    %cst_667 = arith.constant 1.000000e+00 : f32
    %1482 = vector.broadcast %cst_667 : f32 to vector<1x256xf32>
    %1483 = arith.addf %1482, %1481 : vector<1x256xf32>
    %1484 = math.log %1483 : vector<1x256xf32>
    %1485 = arith.addf %1477, %1484 : vector<1x256xf32>
    %1486 = arith.addf %1462, %1485 : vector<1x256xf32>
    %c22_668 = arith.constant 22 : index
    %c0_669 = arith.constant 0 : index
    %1487 = vector.load %arg8[%c22_668, %c0_669] : memref<32x256xf32, #tpu.memory_space<vmem>>, vector<1x256xf32>
    %1488 = arith.mulf %1487, %957 : vector<1x256xf32>
    %cst_670 = arith.constant 2.200000e+01 : f32
    %1489 = vector.broadcast %cst_670 : f32 to vector<1x256xf32>
    %1490 = arith.cmpf oeq, %956, %1489 : vector<1x256xf32>
    %cst_671 = arith.constant 8.000000e-01 : f32
    %cst_672 = arith.constant 0.0076923077 : f32
    %1491 = vector.broadcast %cst_671 : f32 to vector<1x256xf32>
    %1492 = vector.broadcast %cst_672 : f32 to vector<1x256xf32>
    %1493 = arith.select %1490, %1491, %1492 : vector<1x256xi1>, vector<1x256xf32>
    %cst_673 = arith.constant 1.000000e+00 : f32
    %1494 = vector.broadcast %cst_673 : f32 to vector<1x256xf32>
    %1495 = arith.subf %1494, %1493 : vector<1x256xf32>
    %1496 = arith.mulf %1495, %1488 : vector<1x256xf32>
    %cst_674 = arith.constant 0.000000e+00 : f32
    %1497 = vector.broadcast %cst_674 : f32 to vector<1x256xf32>
    %1498 = arith.subf %1497, %1488 : vector<1x256xf32>
    %cst_675 = arith.constant 0.000000e+00 : f32
    %1499 = vector.broadcast %cst_675 : f32 to vector<1x256xf32>
    %1500 = arith.maximumf %1498, %1499 : vector<1x256xf32>
    %1501 = arith.addf %1496, %1500 : vector<1x256xf32>
    %1502 = math.absf %1488 : vector<1x256xf32>
    %cst_676 = arith.constant 0.000000e+00 : f32
    %1503 = vector.broadcast %cst_676 : f32 to vector<1x256xf32>
    %1504 = arith.subf %1503, %1502 : vector<1x256xf32>
    %1505 = math.exp %1504 : vector<1x256xf32>
    %cst_677 = arith.constant 1.000000e+00 : f32
    %1506 = vector.broadcast %cst_677 : f32 to vector<1x256xf32>
    %1507 = arith.addf %1506, %1505 : vector<1x256xf32>
    %1508 = math.log %1507 : vector<1x256xf32>
    %1509 = arith.addf %1501, %1508 : vector<1x256xf32>
    %1510 = arith.addf %1486, %1509 : vector<1x256xf32>
    %c23_678 = arith.constant 23 : index
    %c0_679 = arith.constant 0 : index
    %1511 = vector.load %arg8[%c23_678, %c0_679] : memref<32x256xf32, #tpu.memory_space<vmem>>, vector<1x256xf32>
    %1512 = arith.mulf %1511, %957 : vector<1x256xf32>
    %cst_680 = arith.constant 2.300000e+01 : f32
    %1513 = vector.broadcast %cst_680 : f32 to vector<1x256xf32>
    %1514 = arith.cmpf oeq, %956, %1513 : vector<1x256xf32>
    %cst_681 = arith.constant 8.000000e-01 : f32
    %cst_682 = arith.constant 0.0076923077 : f32
    %1515 = vector.broadcast %cst_681 : f32 to vector<1x256xf32>
    %1516 = vector.broadcast %cst_682 : f32 to vector<1x256xf32>
    %1517 = arith.select %1514, %1515, %1516 : vector<1x256xi1>, vector<1x256xf32>
    %cst_683 = arith.constant 1.000000e+00 : f32
    %1518 = vector.broadcast %cst_683 : f32 to vector<1x256xf32>
    %1519 = arith.subf %1518, %1517 : vector<1x256xf32>
    %1520 = arith.mulf %1519, %1512 : vector<1x256xf32>
    %cst_684 = arith.constant 0.000000e+00 : f32
    %1521 = vector.broadcast %cst_684 : f32 to vector<1x256xf32>
    %1522 = arith.subf %1521, %1512 : vector<1x256xf32>
    %cst_685 = arith.constant 0.000000e+00 : f32
    %1523 = vector.broadcast %cst_685 : f32 to vector<1x256xf32>
    %1524 = arith.maximumf %1522, %1523 : vector<1x256xf32>
    %1525 = arith.addf %1520, %1524 : vector<1x256xf32>
    %1526 = math.absf %1512 : vector<1x256xf32>
    %cst_686 = arith.constant 0.000000e+00 : f32
    %1527 = vector.broadcast %cst_686 : f32 to vector<1x256xf32>
    %1528 = arith.subf %1527, %1526 : vector<1x256xf32>
    %1529 = math.exp %1528 : vector<1x256xf32>
    %cst_687 = arith.constant 1.000000e+00 : f32
    %1530 = vector.broadcast %cst_687 : f32 to vector<1x256xf32>
    %1531 = arith.addf %1530, %1529 : vector<1x256xf32>
    %1532 = math.log %1531 : vector<1x256xf32>
    %1533 = arith.addf %1525, %1532 : vector<1x256xf32>
    %1534 = arith.addf %1510, %1533 : vector<1x256xf32>
    %c24_688 = arith.constant 24 : index
    %c0_689 = arith.constant 0 : index
    %1535 = vector.load %arg8[%c24_688, %c0_689] : memref<32x256xf32, #tpu.memory_space<vmem>>, vector<1x256xf32>
    %1536 = arith.mulf %1535, %957 : vector<1x256xf32>
    %cst_690 = arith.constant 2.400000e+01 : f32
    %1537 = vector.broadcast %cst_690 : f32 to vector<1x256xf32>
    %1538 = arith.cmpf oeq, %956, %1537 : vector<1x256xf32>
    %cst_691 = arith.constant 8.000000e-01 : f32
    %cst_692 = arith.constant 0.0076923077 : f32
    %1539 = vector.broadcast %cst_691 : f32 to vector<1x256xf32>
    %1540 = vector.broadcast %cst_692 : f32 to vector<1x256xf32>
    %1541 = arith.select %1538, %1539, %1540 : vector<1x256xi1>, vector<1x256xf32>
    %cst_693 = arith.constant 1.000000e+00 : f32
    %1542 = vector.broadcast %cst_693 : f32 to vector<1x256xf32>
    %1543 = arith.subf %1542, %1541 : vector<1x256xf32>
    %1544 = arith.mulf %1543, %1536 : vector<1x256xf32>
    %cst_694 = arith.constant 0.000000e+00 : f32
    %1545 = vector.broadcast %cst_694 : f32 to vector<1x256xf32>
    %1546 = arith.subf %1545, %1536 : vector<1x256xf32>
    %cst_695 = arith.constant 0.000000e+00 : f32
    %1547 = vector.broadcast %cst_695 : f32 to vector<1x256xf32>
    %1548 = arith.maximumf %1546, %1547 : vector<1x256xf32>
    %1549 = arith.addf %1544, %1548 : vector<1x256xf32>
    %1550 = math.absf %1536 : vector<1x256xf32>
    %cst_696 = arith.constant 0.000000e+00 : f32
    %1551 = vector.broadcast %cst_696 : f32 to vector<1x256xf32>
    %1552 = arith.subf %1551, %1550 : vector<1x256xf32>
    %1553 = math.exp %1552 : vector<1x256xf32>
    %cst_697 = arith.constant 1.000000e+00 : f32
    %1554 = vector.broadcast %cst_697 : f32 to vector<1x256xf32>
    %1555 = arith.addf %1554, %1553 : vector<1x256xf32>
    %1556 = math.log %1555 : vector<1x256xf32>
    %1557 = arith.addf %1549, %1556 : vector<1x256xf32>
    %1558 = arith.addf %1534, %1557 : vector<1x256xf32>
    %c25_698 = arith.constant 25 : index
    %c0_699 = arith.constant 0 : index
    %1559 = vector.load %arg8[%c25_698, %c0_699] : memref<32x256xf32, #tpu.memory_space<vmem>>, vector<1x256xf32>
    %1560 = arith.mulf %1559, %957 : vector<1x256xf32>
    %cst_700 = arith.constant 2.500000e+01 : f32
    %1561 = vector.broadcast %cst_700 : f32 to vector<1x256xf32>
    %1562 = arith.cmpf oeq, %956, %1561 : vector<1x256xf32>
    %cst_701 = arith.constant 8.000000e-01 : f32
    %cst_702 = arith.constant 0.0076923077 : f32
    %1563 = vector.broadcast %cst_701 : f32 to vector<1x256xf32>
    %1564 = vector.broadcast %cst_702 : f32 to vector<1x256xf32>
    %1565 = arith.select %1562, %1563, %1564 : vector<1x256xi1>, vector<1x256xf32>
    %cst_703 = arith.constant 1.000000e+00 : f32
    %1566 = vector.broadcast %cst_703 : f32 to vector<1x256xf32>
    %1567 = arith.subf %1566, %1565 : vector<1x256xf32>
    %1568 = arith.mulf %1567, %1560 : vector<1x256xf32>
    %cst_704 = arith.constant 0.000000e+00 : f32
    %1569 = vector.broadcast %cst_704 : f32 to vector<1x256xf32>
    %1570 = arith.subf %1569, %1560 : vector<1x256xf32>
    %cst_705 = arith.constant 0.000000e+00 : f32
    %1571 = vector.broadcast %cst_705 : f32 to vector<1x256xf32>
    %1572 = arith.maximumf %1570, %1571 : vector<1x256xf32>
    %1573 = arith.addf %1568, %1572 : vector<1x256xf32>
    %1574 = math.absf %1560 : vector<1x256xf32>
    %cst_706 = arith.constant 0.000000e+00 : f32
    %1575 = vector.broadcast %cst_706 : f32 to vector<1x256xf32>
    %1576 = arith.subf %1575, %1574 : vector<1x256xf32>
    %1577 = math.exp %1576 : vector<1x256xf32>
    %cst_707 = arith.constant 1.000000e+00 : f32
    %1578 = vector.broadcast %cst_707 : f32 to vector<1x256xf32>
    %1579 = arith.addf %1578, %1577 : vector<1x256xf32>
    %1580 = math.log %1579 : vector<1x256xf32>
    %1581 = arith.addf %1573, %1580 : vector<1x256xf32>
    %1582 = arith.addf %1558, %1581 : vector<1x256xf32>
    %cst_708 = arith.constant 2.000000e+01 : f32
    %1583 = vector.broadcast %cst_708 : f32 to vector<1x256xf32>
    %1584 = arith.minimumf %15, %1583 : vector<1x256xf32>
    %cst_709 = arith.constant 5.000000e-02 : f32
    %1585 = vector.broadcast %cst_709 : f32 to vector<1x256xf32>
    %1586 = arith.mulf %1584, %1585 : vector<1x256xf32>
    %cst_710 = arith.constant 0.0384615399 : f32
    %1587 = vector.broadcast %cst_710 : f32 to vector<1x256xf32>
    %1588 = arith.mulf %1582, %1587 : vector<1x256xf32>
    %1589 = arith.mulf %1586, %1588 : vector<1x256xf32>
    %c0_711 = arith.constant 0 : index
    %c0_712 = arith.constant 0 : index
    %1590 = vector.load %arg2[%c0_711, %c0_712] : memref<1x256xf32, #tpu.memory_space<vmem>>, vector<1x256xf32>
    %cst_713 = arith.constant 0.000000e+00 : f32
    %1591 = vector.broadcast %cst_713 : f32 to vector<1x256xf32>
    %1592 = arith.cmpf ogt, %1590, %1591 : vector<1x256xf32>
    %cst_714 = arith.constant 0.000000e+00 : f32
    %1593 = vector.broadcast %cst_714 : f32 to vector<1x256xf32>
    %1594 = arith.cmpf one, %15, %1593 : vector<1x256xf32>
    %1595 = arith.andi %1592, %1594 : vector<1x256xi1>
    %cst_715 = arith.constant 0.000000e+00 : f32
    %1596 = vector.broadcast %cst_715 : f32 to vector<1x256xf32>
    %1597 = arith.select %1595, %1589, %1596 : vector<1x256xi1>, vector<1x256xf32>
    %c0_716 = arith.constant 0 : index
    %c0_717 = arith.constant 0 : index
    %1598 = vector.load %arg5[%c0_716, %c0_717] : memref<1x256xf32, #tpu.memory_space<vmem>>, vector<1x256xf32>
    tpu.vector_store %arg5[%c0_716, %c0_717], %1597 {strides = array<i32>} : memref<1x256xf32, #tpu.memory_space<vmem>>, vector<1x256xf32>,
    return
  }
  func.func @transform_0(%arg0: i32) -> (i32, i32) {
    %c0_i32 = arith.constant 0 : i32
    %c0_i32_0 = arith.constant 0 : i32
    return %c0_i32, %arg0 : i32, i32
  }
  func.func @transform_1(%arg0: i32) -> (i32, i32) {
    %c0_i32 = arith.constant 0 : i32
    %c0_i32_0 = arith.constant 0 : i32
    return %c0_i32, %arg0 : i32, i32
  }
  func.func @transform_4(%arg0: i32) -> (i32, i32) {
    %c0_i32 = arith.constant 0 : i32
    %c0_i32_0 = arith.constant 0 : i32
    return %c0_i32, %arg0 : i32, i32
  }
}

</mosaic_0001>

<llo_original>
// kernel: active_boundary_loss.3
$region0: #{active_boundary_loss.3}
  #allocation0 [shape = 'u32[]', space=smem, size = 0x4, offset = 0x4, fixed_abs, tag = 'smem constant byte address 0x4 - core index']
  #allocation1 [shape = 'u32[144,128]{1,0:T(1,128)}', space=vmem, size = 0x12000, scoped, tag = 'internal scratch']
  #allocation2 [shape = 'f32[4,512]{1,0:T(4,128)}', space=vmem, size = 0x2000, scoped, tag = 'scratch operand']
  #allocation3 [shape = 's32[1]{0}', space=sflag, size = 0x4, scoped, tag = 'scratch operand']
  #allocation4 [shape = 's32[]', space=sflag, size = 0x4, offset = 0, fixed_abs, tag = 'sflag constant byte address 0x0 - dummy sync flag']
  %s0 = inlined_call_operand.vmem [shape: f32[8,256], index: 0, kind: input, shape index: {}]
  %s1 = inlined_call_operand.vmem [shape: f32[4,512], index: 1, kind: input, shape index: {}]
  %s2 = inlined_call_operand.vmem [shape: f32[1,256], index: 2, kind: output, shape index: {}]
  %s3 = sld [smem:[#allocation0]]
  $region48: #{active_boundary_loss.3} parent=0
    _
  %s5 = ssub.s32 1, %s3
  %s6 = scalar_select 0, %s5, %s3
  // Predicated region
  $region2: #{active_boundary_loss.3} parent=0 // pred_check
    _
  $region3: #{active_boundary_loss.3} parent=0 // pred_check_branch
    %8 = sbr.rel (0) target = $region5
  $region4: #{active_boundary_loss.3} parent=0 // pred_region
    _
  $region5: #{active_boundary_loss.3} parent=0 // pred_fallthru
    _
  %s9 = smul.u32 0, 256
  %s10 = sshra.s32 %s9, 7
  %s11 = sand.u32 %s9, 127
  %s12 = smul.addr %s10, 4
  %s13 = scalar_lea.vmem %s1, %s12
  %p15 = scmp.lt.u32.totalorder 16, 8
  %p16 = pneg %p15
  // Predicated region
  $region6: #{active_boundary_loss.3} parent=0 // pred_check
    _
  $region7: #{active_boundary_loss.3} parent=0 // pred_check_branch
    %18 = sbr.rel (%p15) target = $region9
  $region8: #{active_boundary_loss.3} parent=0 // pred_region
    %s33 = sand.u32 16, 7
    %p34 = scmp.eq.s32.totalorder %s33, 0
    // Predicated region
    $region21: #{active_boundary_loss.3} parent=8 // pred_check
      %p35 = pneg %p34
    $region22: #{active_boundary_loss.3} parent=8 // pred_check_branch
      %37 = sbr.rel (%p35) target = $region24
    $region23: #{active_boundary_loss.3} parent=8 // pred_region
      loop: start=0, step=1, limit=1
      $region25: #{active_boundary_loss.3} parent=23 // loop_pre_header
        _
      $region26: #{active_boundary_loss.3} parent=23 // loop_header
        %s39 = sphi 0, %s43
        %p40 = scmp.ge.s32.totalorder %s39, 1
        %s44 = sphi %s13, %s13
        %s45 = sphi [#allocation2], [#allocation2]
      $region27: #{active_boundary_loss.3} parent=23 // loop_header_branch
        %42 = sbr.rel (%p40) target = $region31
      $region28: #{active_boundary_loss.3} parent=23 // loop_body
        %v46 = vld [vmem:[%s44] sm:$0xff]
        %47 = vst [vmem:[%s45] sm:$0xff] %v46
        %v48 = vld [vmem:[%s44 + $0x8] sm:$0xff]
        %49 = vst [vmem:[%s45 + $0x8] sm:$0xff] %v48
      $region29: #{active_boundary_loss.3} parent=23 // loop_footer
        %s43 = sadd.s32 1, %s39
      $region30: #{active_boundary_loss.3} parent=23 // loop_footer_branch
        %38 = sbr.rel target = $region26
      $region31: #{active_boundary_loss.3} parent=23 // loop_exit
        _
    $region24: #{active_boundary_loss.3} parent=8 // pred_fallthru
      _
    %p50 = pneg %p34
    // Predicated region
    $region32: #{active_boundary_loss.3} parent=8 // pred_check
      _
    $region33: #{active_boundary_loss.3} parent=8 // pred_check_branch
      %52 = sbr.rel (%p34) target = $region35
    $region34: #{active_boundary_loss.3} parent=8 // pred_region
      %s53 = sand.u32 16, 7
    $region35: #{active_boundary_loss.3} parent=8 // pred_fallthru
      _
  $region9: #{active_boundary_loss.3} parent=0 // pred_fallthru
    _
  // Predicated region
  $region10: #{active_boundary_loss.3} parent=0 // pred_check
    %p19 = pneg %p15
  $region11: #{active_boundary_loss.3} parent=0 // pred_check_branch
    %21 = sbr.rel (%p19) target = $region13
  $region12: #{active_boundary_loss.3} parent=0 // pred_region
    %s22 = sshllo.u32 0, 16
    loop: start=0, step=1, limit=1
    $region14: #{active_boundary_loss.3} parent=12 // loop_pre_header
      _
    $region15: #{active_boundary_loss.3} parent=12 // loop_header
      %s24 = sphi 0, %s28
      %p25 = scmp.ge.s32.totalorder %s24, 1
      %s29 = sphi %s13, %s13
      %s30 = sphi [#allocation2], [#allocation2]
    $region16: #{active_boundary_loss.3} parent=12 // loop_header_branch
      %27 = sbr.rel (%p25) target = $region20
    $region17: #{active_boundary_loss.3} parent=12 // loop_body
      %v31 = vld [vmem:[%s29] sm:%s22]
      %32 = vst [vmem:[%s30] sm:%s22] %v31
    $region18: #{active_boundary_loss.3} parent=12 // loop_footer
      %s28 = sadd.s32 1, %s24
    $region19: #{active_boundary_loss.3} parent=12 // loop_footer_branch
      %23 = sbr.rel target = $region15
    $region20: #{active_boundary_loss.3} parent=12 // loop_exit
      _
  $region13: #{active_boundary_loss.3} parent=0 // pred_fallthru
    _
  // Predicated region
  $region36: #{active_boundary_loss.3} parent=0 // pred_check
    _
  $region37: #{active_boundary_loss.3} parent=0 // pred_check_branch
    %56 = sbr.rel (0) target = $region39
  $region38: #{active_boundary_loss.3} parent=0 // pred_region
    %57 = vsyncadd [#allocation3], 256
  $region39: #{active_boundary_loss.3} parent=0 // pred_fallthru
    _
  %s58 = smul.u32 4, 1
  %s59 = smul.u32 %s58, 4
  %s60 = sshll.u32 %s59, 4
  %61 = dma.done [#allocation3], %s60
  %v62 = vld [vmem:[#allocation2 + $0x4] sm:$0xff]
  %v63 = vld [vmem:[%s0] ss:$8 sm:$0x3]
  %s64 = scalar_lea.vmem %s0, 1
  %v65 = vld [vmem:[%s64] ss:$8 sm:$0x3]
  %s66 = scalar_lea.vmem %s0, 2
  %v67 = vld [vmem:[%s66] ss:$8 sm:$0x3]
  %v68 = vld [vmem:[#allocation2 + $0x4] sm:$0xff]
  %v69 = vld [vmem:[#allocation2 + $0xc] sm:$0xf]
  %vm70 = vcmp.gt.f32.partialorder %v68, 0.0
  %vm71 = vcmp.gt.f32.partialorder %v69, 0.0
  %v72 = vlog2.pop %v68
  %v73 = vmul.f32 %v72, 0.6931472
  %v74 = vlog2.pop %v69
  %v75 = vmul.f32 %v74, 0.6931472
  %77 = vrot.lane.b32.xlu0 %v62, 1
  %v78 = vpop.permute.xlu0 %77
  %v79 = vrot.slane %v78, 4
  %vm80 = vcmask 7168
  %v81 = vsel %vm80, %v79, %v78
  %v84 = vsub.f32 %v73, %v81
  %v85 = vsub.f32 %v75, %v79
  %v86 = vmul.f32 %v68, %v84
  %v87 = vmul.f32 %v69, %v85
  %v88 = vsel %vm70, %v86, 0.0
  %v89 = vsel %vm71, %v87, 0.0
  %v91 = vcombine.high %v88, %v88
  %vm93 = vcmask 1043464
  %v94 = vsel %vm93, %v88, 0.0
  %v95 = vrot.slane %v94, 4
  %v96 = vadd.f32 %v94, %v95
  %v97 = vrot.slane %v96, 2
  %v98 = vadd.f32 %v96, %v97
  %v99 = vrot.slane %v98, 1
  %v100 = vadd.f32 %v98, %v99
  %vm101 = vcmask 1043456
  %v102 = vsel %vm101, %v91, 0.0
  %v103 = vrot.slane %v102, 4
  %v104 = vadd.f32 %v102, %v103
  %v105 = vrot.slane %v104, 2
  %v106 = vadd.f32 %v104, %v105
  %v107 = vrot.slane %v106, 1
  %v108 = vadd.f32 %v106, %v107
  %vm109 = vcmask 3072
  %v110 = vsel %vm109, %v89, 0.0
  %v111 = vrot.slane %v110, 4
  %v112 = vadd.f32 %v110, %v111
  %v113 = vrot.slane %v112, 2
  %v114 = vadd.f32 %v112, %v113
  %v115 = vrot.slane %v114, 1
  %v116 = vadd.f32 %v114, %v115
  %v117 = vrcp.pop 4.0
  %v118 = vmul.f32 %v100, %v117
  %v119 = vmul.f32 %v108, %v117
  %v120 = vmul.f32 %v116, %v117
  %vm121 = vcmp.eq.f32.partialorder %v67, 7.0
  %v125 = vcombine.low %v118, %v119
  %v127 = vunpack.c.l.s4 1966171168
  %v128 = vunpack.c.0.s8 %v127
  %v129 = vlaneseq
  %v130 = vshrl.u32 %v129, 7
  %v131 = vsub.s32 %v128, %v130
  %v132 = vrot.slane %v125, %v131
  %v134 = vunpack.c.l.s4 1966171168
  %v135 = vunpack.c.0.s8 %v134
  %v136 = vlaneseq
  %v137 = vshrl.u32 %v136, 7
  %v138 = vsub.s32 %v135, %v137
  %v139 = vrot.slane %v120, %v138
  %v140 = vcombine.low %v132, %v139
  %v142 = vunpack.c.l.s4 1966171168
  %v143 = vunpack.c.0.s8 %v142
  %v144 = vlaneseq
  %v145 = vshrl.u32 %v144, 7
  %v146 = vsub.s32 %v143, %v145
  %v147 = vrot.slane %v140, %v146
  %148 = vrot.lane.b32.xlu0 %v147, 127
  %v149 = vpop.permute.xlu0 %148
  %v150 = vrot.slane %v149, 1
  %vm151 = vcmask 1039360
  %v152 = vsel %vm151, %v149, %v150
  %v154 = vsel %vm121, -1.0, %v152
  %155 = vrot.lane.b32.xlu0 %v62, 8
  %v156 = vpop.permute.xlu0 %155
  %v157 = vrot.slane %v156, 4
  %vm158 = vcmask 64512
  %v159 = vsel %vm158, %v157, %v156
  %v162 = vsub.f32 %v73, %v159
  %v163 = vsub.f32 %v75, %v157
  %v164 = vmul.f32 %v68, %v162
  %v165 = vmul.f32 %v69, %v163
  %v166 = vsel %vm70, %v164, 0.0
  %v167 = vsel %vm71, %v165, 0.0
  %v169 = vcombine.high %v166, %v166
  %vm171 = vcmask 1043520
  %v172 = vsel %vm171, %v166, 0.0
  %v173 = vrot.slane %v172, 4
  %v174 = vadd.f32 %v172, %v173
  %v175 = vrot.slane %v174, 2
  %v176 = vadd.f32 %v174, %v175
  %v177 = vrot.slane %v176, 1
  %v178 = vadd.f32 %v176, %v177
  %v179 = vsel %vm101, %v169, 0.0
  %v180 = vrot.slane %v179, 4
  %v181 = vadd.f32 %v179, %v180
  %v182 = vrot.slane %v181, 2
  %v183 = vadd.f32 %v181, %v182
  %v184 = vrot.slane %v183, 1
  %v185 = vadd.f32 %v183, %v184
  %vm186 = vcmask 60416
  %v187 = vsel %vm186, %v167, 0.0
  %v188 = vrot.slane %v187, 4
  %v189 = vadd.f32 %v187, %v188
  %v190 = vrot.slane %v189, 2
  %v191 = vadd.f32 %v189, %v190
  %v192 = vrot.slane %v191, 1
  %v193 = vadd.f32 %v191, %v192
  %v194 = vmul.f32 %v178, %v117
  %v195 = vmul.f32 %v185, %v117
  %v196 = vmul.f32 %v193, %v117
  %vm197 = vcmp.eq.f32.partialorder %v65, 7.0
  %v201 = vcombine.low %v194, %v195
  %v203 = vunpack.c.l.s4 1966171168
  %v204 = vunpack.c.0.s8 %v203
  %v205 = vlaneseq
  %v206 = vshrl.u32 %v205, 7
  %v207 = vsub.s32 %v204, %v206
  %v208 = vrot.slane %v201, %v207
  %v210 = vunpack.c.l.s4 1966171168
  %v211 = vunpack.c.0.s8 %v210
  %v212 = vlaneseq
  %v213 = vshrl.u32 %v212, 7
  %v214 = vsub.s32 %v211, %v213
  %v215 = vrot.slane %v196, %v214
  %v216 = vcombine.low %v208, %v215
  %v218 = vunpack.c.l.s4 1966171168
  %v219 = vunpack.c.0.s8 %v218
  %v220 = vlaneseq
  %v221 = vshrl.u32 %v220, 7
  %v222 = vsub.s32 %v219, %v221
  %v223 = vrot.slane %v216, %v222
  %224 = vrot.lane.b32.xlu0 %v223, 120
  %v225 = vpop.permute.xlu0 %224
  %v226 = vrot.slane %v225, 1
  %vm227 = vcmask 982016
  %v228 = vsel %vm227, %v225, %v226
  %v230 = vsel %vm197, -1.0, %v228
  %v231 = vmax.f32 %v154, %v230
  %232 = vrot.lane.b32.xlu0 %v62, 64
  %v233 = vpop.permute.xlu0 %232
  %v234 = vrot.slane %v233, 4
  %vm235 = vcmask 523264
  %v236 = vsel %vm235, %v234, %v233
  %v239 = vsub.f32 %v73, %v236
  %v240 = vsub.f32 %v75, %v234
  %v241 = vmul.f32 %v68, %v239
  %v242 = vmul.f32 %v69, %v240
  %v243 = vsel %vm70, %v241, 0.0
  %v244 = vsel %vm71, %v242, 0.0
  %v246 = vcombine.high %v243, %v243
  %vm248 = vcmask 1043968
  %v249 = vsel %vm248, %v243, 0.0
  %v250 = vrot.slane %v249, 4
  %v251 = vadd.f32 %v249, %v250
  %v252 = vrot.slane %v251, 2
  %v253 = vadd.f32 %v251, %v252
  %v254 = vrot.slane %v253, 1
  %v255 = vadd.f32 %v253, %v254
  %v256 = vsel %vm101, %v246, 0.0
  %v257 = vrot.slane %v256, 4
  %v258 = vadd.f32 %v256, %v257
  %v259 = vrot.slane %v258, 2
  %v260 = vadd.f32 %v258, %v259
  %v261 = vrot.slane %v260, 1
  %v262 = vadd.f32 %v260, %v261
  %vm263 = vcmask 519168
  %v264 = vsel %vm263, %v244, 0.0
  %v265 = vrot.slane %v264, 4
  %v266 = vadd.f32 %v264, %v265
  %v267 = vrot.slane %v266, 2
  %v268 = vadd.f32 %v266, %v267
  %v269 = vrot.slane %v268, 1
  %v270 = vadd.f32 %v268, %v269
  %v271 = vmul.f32 %v255, %v117
  %v272 = vmul.f32 %v262, %v117
  %v273 = vmul.f32 %v270, %v117
  %vm274 = vcmp.eq.f32.partialorder %v63, 1.0
  %v278 = vcombine.low %v271, %v272
  %v280 = vunpack.c.l.s4 1966171168
  %v281 = vunpack.c.0.s8 %v280
  %v282 = vlaneseq
  %v283 = vshrl.u32 %v282, 7
  %v284 = vsub.s32 %v281, %v283
  %v285 = vrot.slane %v278, %v284
  %v287 = vunpack.c.l.s4 1966171168
  %v288 = vunpack.c.0.s8 %v287
  %v289 = vlaneseq
  %v290 = vshrl.u32 %v289, 7
  %v291 = vsub.s32 %v288, %v290
  %v292 = vrot.slane %v273, %v291
  %v293 = vcombine.low %v285, %v292
  %v295 = vunpack.c.l.s4 1966171168
  %v296 = vunpack.c.0.s8 %v295
  %v297 = vlaneseq
  %v298 = vshrl.u32 %v297, 7
  %v299 = vsub.s32 %v296, %v298
  %v300 = vrot.slane %v293, %v299
  %301 = vrot.lane.b32.xlu0 %v300, 64
  %v302 = vpop.permute.xlu0 %301
  %v303 = vrot.slane %v302, 1
  %v304 = vsel %vm235, %v302, %v303
  %v306 = vsel %vm274, -1.0, %v304
  %v307 = vmax.f32 %v231, %v306
  %v308 = vlaneseq
  %vm309 = vcmp.ge.s32.totalorder %v308, 0
  %vm310 = vcmp.lt.s32.totalorder %v308, 256
  %vm311 = vmand %vm309, %vm310
  %312 = vst.msk [vmem:[%s2] sm:$0x3] %vm311, %v307
  // Predicated region
  $region40: #{active_boundary_loss.3} parent=0 // pred_check
    _
  $region41: #{active_boundary_loss.3} parent=0 // pred_check_branch
    %314 = sbr.rel (0) target = $region43
  $region42: #{active_boundary_loss.3} parent=0 // pred_region
    _
  $region43: #{active_boundary_loss.3} parent=0 // pred_fallthru
    _
  // Predicated region
  $region44: #{active_boundary_loss.3} parent=0 // pred_check
    _
  $region45: #{active_boundary_loss.3} parent=0 // pred_check_branch
    %316 = sbr.rel (0) target = $region47
  $region46: #{active_boundary_loss.3} parent=0 // pred_region
    _
  $region47: #{active_boundary_loss.3} parent=0 // pred_fallthru
    _
  %317 = vsyncmov [#allocation3]
  %s318 = vpop.sfrf %317
  %p319 = scmp.eq.s32.totalorder %s318, 0
  %p320 = pneg %p319
  %322 = shalt.err (%p320)

// kernel: active_boundary_loss.4
$region0: #{active_boundary_loss.4}
  #allocation0 [shape = 'u32[]', space=smem, size = 0x4, offset = 0x4, fixed_abs, tag = 'smem constant byte address 0x4 - core index']
  #allocation1 [shape = 'u32[144,128]{1,0:T(1,128)}', space=vmem, size = 0x12000, scoped, tag = 'internal scratch']
  #allocation2 [shape = 'f32[1,256]{1,0:T(1,128)}', space=vmem, size = 0x400, scoped, tag = 'scratch operand']
  #allocation3 [shape = 's32[1]{0:T(128)S(6)}', space=smem, size = 0x200, scoped, tag = 'scoped memory for active_boundary_loss.4']
  %s0 = inlined_call_operand.<no memory space> [shape: s32[1], index: 0, kind: input, shape index: {}]
  %s1 = inlined_call_operand.vmem [shape: f32[8,256], index: 1, kind: input, shape index: {}]
  %s2 = inlined_call_operand.vmem [shape: f32[256,8], index: 2, kind: input, shape index: {}]
  %s3 = inlined_call_operand.vmem [shape: f32[1,256], index: 3, kind: output, shape index: {}]
  %s4 = sld [smem:[#allocation0]]
  $region34: #{active_boundary_loss.4} parent=0
    _
  %s6 = ssub.s32 1, %s4
  %s7 = scalar_select 0, %s6, %s4
  %8 = sst [smem:[#allocation3]] %s0
  // Predicated region
  $region2: #{active_boundary_loss.4} parent=0 // pred_check
    _
  $region3: #{active_boundary_loss.4} parent=0 // pred_check_branch
    %10 = sbr.rel (0) target = $region5
  $region4: #{active_boundary_loss.4} parent=0 // pred_region
    _
  $region5: #{active_boundary_loss.4} parent=0 // pred_fallthru
    _
  // Predicated region
  $region6: #{active_boundary_loss.4} parent=0 // pred_check
    _
  $region7: #{active_boundary_loss.4} parent=0 // pred_check_branch
    %12 = sbr.rel (0) target = $region9
  $region8: #{active_boundary_loss.4} parent=0 // pred_region
    _
  $region9: #{active_boundary_loss.4} parent=0 // pred_fallthru
    _
  // Predicated region
  $region10: #{active_boundary_loss.4} parent=0 // pred_check
    _
  $region11: #{active_boundary_loss.4} parent=0 // pred_check_branch
    %14 = sbr.rel (0) target = $region13
  $region12: #{active_boundary_loss.4} parent=0 // pred_region
    _
  $region13: #{active_boundary_loss.4} parent=0 // pred_fallthru
    _
  %s15 = smul.u32 0, 256
  %s16 = sld [smem:[#allocation3]]
  %p17 = scmp.eq.s32.totalorder 0, 0
  // Predicated region
  $region14: #{active_boundary_loss.4} parent=0 // pred_check
    %p18 = pneg %p17
  $region15: #{active_boundary_loss.4} parent=0 // pred_check_branch
    %20 = sbr.rel (%p18) target = $region17
  $region16: #{active_boundary_loss.4} parent=0 // pred_region
    %v21 = vlaneseq
    %vm22 = vcmp.ge.s32.totalorder %v21, 0
    %vm23 = vcmp.lt.s32.totalorder %v21, 256
    %vm24 = vmand %vm22, %vm23
    %25 = vst.msk [vmem:[#allocation2] sm:$0x3] %vm24, inf
  $region17: #{active_boundary_loss.4} parent=0 // pred_fallthru
    _
  %p26 = scmp.lt.s32.totalorder %s15, %s16
  // Predicated region
  $region18: #{active_boundary_loss.4} parent=0 // pred_check
    %p27 = pneg %p26
  $region19: #{active_boundary_loss.4} parent=0 // pred_check_branch
    %29 = sbr.rel (%p27) target = $region21
  $region20: #{active_boundary_loss.4} parent=0 // pred_region
    %v30 = vld [vmem:[%s1] sm:$0xff]
    %v31 = vld [vmem:[%s1 + $0x8] sm:$0xff]
    %v32 = vld [vmem:[%s2] sm:$0xff]
    %v33 = vld [vmem:[%s2 + $0x8] sm:$0xff]
    %v34 = vld [vmem:[%s2 + $0x10] sm:$0xff]
    %v35 = vld [vmem:[%s2 + $0x18] sm:$0xff]
    %v36 = vld [vmem:[%s2 + $0x20] sm:$0xff]
    %v37 = vld [vmem:[%s2 + $0x28] sm:$0xff]
    %v38 = vld [vmem:[%s2 + $0x30] sm:$0xff]
    %v39 = vld [vmem:[%s2 + $0x38] sm:$0xff]
    %v40 = vld [vmem:[%s2 + $0x40] sm:$0xff]
    %v41 = vld [vmem:[%s2 + $0x48] sm:$0xff]
    %v42 = vld [vmem:[%s2 + $0x50] sm:$0xff]
    %v43 = vld [vmem:[%s2 + $0x58] sm:$0xff]
    %v44 = vld [vmem:[%s2 + $0x60] sm:$0xff]
    %v45 = vld [vmem:[%s2 + $0x68] sm:$0xff]
    %v46 = vld [vmem:[%s2 + $0x70] sm:$0xff]
    %v47 = vld [vmem:[%s2 + $0x78] sm:$0xff]
    %v48 = vld [vmem:[%s2 + $0x80] sm:$0xff]
    %v49 = vld [vmem:[%s2 + $0x88] sm:$0xff]
    %v50 = vld [vmem:[%s2 + $0x90] sm:$0xff]
    %v51 = vld [vmem:[%s2 + $0x98] sm:$0xff]
    %v52 = vld [vmem:[%s2 + $0xa0] sm:$0xff]
    %v53 = vld [vmem:[%s2 + $0xa8] sm:$0xff]
    %v54 = vld [vmem:[%s2 + $0xb0] sm:$0xff]
    %v55 = vld [vmem:[%s2 + $0xb8] sm:$0xff]
    %v56 = vld [vmem:[%s2 + $0xc0] sm:$0xff]
    %v57 = vld [vmem:[%s2 + $0xc8] sm:$0xff]
    %v58 = vld [vmem:[%s2 + $0xd0] sm:$0xff]
    %v59 = vld [vmem:[%s2 + $0xd8] sm:$0xff]
    %v60 = vld [vmem:[%s2 + $0xe0] sm:$0xff]
    %v61 = vld [vmem:[%s2 + $0xe8] sm:$0xff]
    %v62 = vld [vmem:[%s2 + $0xf0] sm:$0xff]
    %v63 = vld [vmem:[%s2 + $0xf8] sm:$0xff]
    %vm64 = vcmask 64512
    %v66 = vsel %vm64, %v32, 0
    %v69 = vsel %vm64, %v33, 0
    %v72 = vsel %vm64, %v34, 0
    %v75 = vsel %vm64, %v35, 0
    %v78 = vsel %vm64, %v36, 0
    %v81 = vsel %vm64, %v37, 0
    %v84 = vsel %vm64, %v38, 0
    %v87 = vsel %vm64, %v39, 0
    %v90 = vsel %vm64, %v40, 0
    %v93 = vsel %vm64, %v41, 0
    %v96 = vsel %vm64, %v42, 0
    %v99 = vsel %vm64, %v43, 0
    %v102 = vsel %vm64, %v44, 0
    %v105 = vsel %vm64, %v45, 0
    %v108 = vsel %vm64, %v46, 0
    %v111 = vsel %vm64, %v47, 0
    %v114 = vsel %vm64, %v48, 0
    %v117 = vsel %vm64, %v49, 0
    %v120 = vsel %vm64, %v50, 0
    %v123 = vsel %vm64, %v51, 0
    %v126 = vsel %vm64, %v52, 0
    %v129 = vsel %vm64, %v53, 0
    %v132 = vsel %vm64, %v54, 0
    %v135 = vsel %vm64, %v55, 0
    %v138 = vsel %vm64, %v56, 0
    %v141 = vsel %vm64, %v57, 0
    %v144 = vsel %vm64, %v58, 0
    %v147 = vsel %vm64, %v59, 0
    %v150 = vsel %vm64, %v60, 0
    %v153 = vsel %vm64, %v61, 0
    %v156 = vsel %vm64, %v62, 0
    %v159 = vsel %vm64, %v63, 0
    %161 = vmatprep.subr.mxu0 %v31
    %162 = vmatpush1.msra.mxu0 %v30
    %163 = vmatprep.subr.mxu0 0.0
    %164 = vmatpush1.msra.mxu0 0.0
    %165 = vmatprep.subr.mxu0 0.0
    %166 = vmatpush1.msra.mxu0 0.0
    %167 = vmatprep.subr.mxu0 0.0
    %168 = vmatpush1.msra.mxu0 0.0
    %169 = vmatprep.subr.mxu0 0.0
    %170 = vmatpush1.msra.mxu0 0.0
    %171 = vmatprep.subr.mxu0 0.0
    %172 = vmatpush1.msra.mxu0 0.0
    %173 = vmatprep.subr.mxu0 0.0
    %174 = vmatpush1.msra.mxu0 0.0
    %175 = vmatprep.subr.mxu0 0.0
    %176 = vmatpush1.msra.mxu0 0.0
    %177 = vmatprep.subr.mxu0 0.0
    %178 = vmatpush1.msra.mxu0 0.0
    %179 = vmatprep.subr.mxu0 0.0
    %180 = vmatpush1.msra.mxu0 0.0
    %181 = vmatprep.subr.mxu0 0.0
    %182 = vmatpush1.msra.mxu0 0.0
    %183 = vmatprep.subr.mxu0 0.0
    %184 = vmatpush1.msra.mxu0 0.0
    %185 = vmatprep.subr.mxu0 0.0
    %186 = vmatpush1.msra.mxu0 0.0
    %187 = vmatprep.subr.mxu0 0.0
    %188 = vmatpush1.msra.mxu0 0.0
    %189 = vmatprep.subr.mxu0 0.0
    %190 = vmatpush1.msra.mxu0 0.0
    %191 = vmatprep.subr.mxu0 0.0
    %192 = vmatpush1.msra.mxu0 0.0
    %193 = vmatprep.subr.mxu0 0.0
    %194 = vmatpush1.msra.mxu0 0.0
    %195 = vmatprep.subr.mxu0 0.0
    %196 = vmatpush1.msra.mxu0 0.0
    %197 = vmatprep.subr.mxu0 0.0
    %198 = vmatpush1.msra.mxu0 0.0
    %199 = vmatprep.subr.mxu0 0.0
    %200 = vmatpush1.msra.mxu0 0.0
    %201 = vmatprep.subr.mxu0 0.0
    %202 = vmatpush1.msra.mxu0 0.0
    %203 = vmatprep.subr.mxu0 0.0
    %204 = vmatpush1.msra.mxu0 0.0
    %205 = vmatprep.subr.mxu0 0.0
    %206 = vmatpush1.msra.mxu0 0.0
    %207 = vmatprep.subr.mxu0 0.0
    %208 = vmatpush1.msra.mxu0 0.0
    %209 = vmatprep.subr.mxu0 0.0
    %210 = vmatpush1.msra.mxu0 0.0
    %211 = vmatprep.subr.mxu0 0.0
    %212 = vmatpush1.msra.mxu0 0.0
    %213 = vmatprep.subr.mxu0 0.0
    %214 = vmatpush1.msra.mxu0 0.0
    %215 = vmatprep.subr.mxu0 0.0
    %216 = vmatpush1.msra.mxu0 0.0
    %217 = vmatprep.subr.mxu0 0.0
    %218 = vmatpush1.msra.mxu0 0.0
    %219 = vmatprep.subr.mxu0 0.0
    %220 = vmatpush1.msra.mxu0 0.0
    %221 = vmatprep.subr.mxu0 0.0
    %222 = vmatpush1.msra.mxu0 0.0
    %223 = vmatprep.subr.mxu0 0.0
    %224 = vmatpush1.msra.mxu0 0.0
    %225 = vmatprep.mubr.f32.mxu0 0.0
    %226 = vmatmul.mubr.f32.gmra.mrb[0].mxu0 %v66
    %v227 = vpop.f32.mrb[0].mxu0
    %v228 = vadd.f32 0.0, %v227
    %v229 = vpop.f32.mrb[0].mxu0
    %v230 = vadd.f32 0.0, %v229
    %231 = vmatprep.mubr.f32.mxu0 0.0
    %232 = vmatmul.mubr.f32.gmra.mrb[0].mxu0 %v69
    %v233 = vpop.f32.mrb[0].mxu0
    %v234 = vadd.f32 0.0, %v233
    %v235 = vpop.f32.mrb[0].mxu0
    %v236 = vadd.f32 0.0, %v235
    %237 = vmatprep.mubr.f32.mxu0 0.0
    %238 = vmatmul.mubr.f32.gmra.mrb[0].mxu0 %v72
    %v239 = vpop.f32.mrb[0].mxu0
    %v240 = vadd.f32 0.0, %v239
    %v241 = vpop.f32.mrb[0].mxu0
    %v242 = vadd.f32 0.0, %v241
    %243 = vmatprep.mubr.f32.mxu0 0.0
    %244 = vmatmul.mubr.f32.gmra.mrb[0].mxu0 %v75
    %v245 = vpop.f32.mrb[0].mxu0
    %v246 = vadd.f32 0.0, %v245
    %v247 = vpop.f32.mrb[0].mxu0
    %v248 = vadd.f32 0.0, %v247
    %249 = vmatprep.mubr.f32.mxu0 0.0
    %250 = vmatmul.mubr.f32.gmra.mrb[0].mxu0 %v78
    %v251 = vpop.f32.mrb[0].mxu0
    %v252 = vadd.f32 0.0, %v251
    %v253 = vpop.f32.mrb[0].mxu0
    %v254 = vadd.f32 0.0, %v253
    %255 = vmatprep.mubr.f32.mxu0 0.0
    %256 = vmatmul.mubr.f32.gmra.mrb[0].mxu0 %v81
    %v257 = vpop.f32.mrb[0].mxu0
    %v258 = vadd.f32 0.0, %v257
    %v259 = vpop.f32.mrb[0].mxu0
    %v260 = vadd.f32 0.0, %v259
    %261 = vmatprep.mubr.f32.mxu0 0.0
    %262 = vmatmul.mubr.f32.gmra.mrb[0].mxu0 %v84
    %v263 = vpop.f32.mrb[0].mxu0
    %v264 = vadd.f32 0.0, %v263
    %v265 = vpop.f32.mrb[0].mxu0
    %v266 = vadd.f32 0.0, %v265
    %267 = vmatprep.mubr.f32.mxu0 0.0
    %268 = vmatmul.mubr.f32.gmra.mrb[0].mxu0 %v87
    %v269 = vpop.f32.mrb[0].mxu0
    %v270 = vadd.f32 0.0, %v269
    %v271 = vpop.f32.mrb[0].mxu0
    %v272 = vadd.f32 0.0, %v271
    %273 = vmatprep.mubr.f32.mxu0 0.0
    %274 = vmatmul.mubr.f32.gmra.mrb[0].mxu0 %v90
    %v275 = vpop.f32.mrb[0].mxu0
    %v276 = vadd.f32 0.0, %v275
    %v277 = vpop.f32.mrb[0].mxu0
    %v278 = vadd.f32 0.0, %v277
    %279 = vmatprep.mubr.f32.mxu0 0.0
    %280 = vmatmul.mubr.f32.gmra.mrb[0].mxu0 %v93
    %v281 = vpop.f32.mrb[0].mxu0
    %v282 = vadd.f32 0.0, %v281
    %v283 = vpop.f32.mrb[0].mxu0
    %v284 = vadd.f32 0.0, %v283
    %285 = vmatprep.mubr.f32.mxu0 0.0
    %286 = vmatmul.mubr.f32.gmra.mrb[0].mxu0 %v96
    %v287 = vpop.f32.mrb[0].mxu0
    %v288 = vadd.f32 0.0, %v287
    %v289 = vpop.f32.mrb[0].mxu0
    %v290 = vadd.f32 0.0, %v289
    %291 = vmatprep.mubr.f32.mxu0 0.0
    %292 = vmatmul.mubr.f32.gmra.mrb[0].mxu0 %v99
    %v293 = vpop.f32.mrb[0].mxu0
    %v294 = vadd.f32 0.0, %v293
    %v295 = vpop.f32.mrb[0].mxu0
    %v296 = vadd.f32 0.0, %v295
    %297 = vmatprep.mubr.f32.mxu0 0.0
    %298 = vmatmul.mubr.f32.gmra.mrb[0].mxu0 %v102
    %v299 = vpop.f32.mrb[0].mxu0
    %v300 = vadd.f32 0.0, %v299
    %v301 = vpop.f32.mrb[0].mxu0
    %v302 = vadd.f32 0.0, %v301
    %303 = vmatprep.mubr.f32.mxu0 0.0
    %304 = vmatmul.mubr.f32.gmra.mrb[0].mxu0 %v105
    %v305 = vpop.f32.mrb[0].mxu0
    %v306 = vadd.f32 0.0, %v305
    %v307 = vpop.f32.mrb[0].mxu0
    %v308 = vadd.f32 0.0, %v307
    %309 = vmatprep.mubr.f32.mxu0 0.0
    %310 = vmatmul.mubr.f32.gmra.mrb[0].mxu0 %v108
    %v311 = vpop.f32.mrb[0].mxu0
    %v312 = vadd.f32 0.0, %v311
    %v313 = vpop.f32.mrb[0].mxu0
    %v314 = vadd.f32 0.0, %v313
    %315 = vmatprep.mubr.f32.mxu0 0.0
    %316 = vmatmul.mubr.f32.gmra.mrb[0].mxu0 %v111
    %v317 = vpop.f32.mrb[0].mxu0
    %v318 = vadd.f32 0.0, %v317
    %v319 = vpop.f32.mrb[0].mxu0
    %v320 = vadd.f32 0.0, %v319
    %321 = vmatprep.mubr.f32.mxu0 0.0
    %322 = vmatmul.mubr.f32.gmra.mrb[0].mxu0 %v114
    %v323 = vpop.f32.mrb[0].mxu0
    %v324 = vadd.f32 0.0, %v323
    %v325 = vpop.f32.mrb[0].mxu0
    %v326 = vadd.f32 0.0, %v325
    %327 = vmatprep.mubr.f32.mxu0 0.0
    %328 = vmatmul.mubr.f32.gmra.mrb[0].mxu0 %v117
    %v329 = vpop.f32.mrb[0].mxu0
    %v330 = vadd.f32 0.0, %v329
    %v331 = vpop.f32.mrb[0].mxu0
    %v332 = vadd.f32 0.0, %v331
    %333 = vmatprep.mubr.f32.mxu0 0.0
    %334 = vmatmul.mubr.f32.gmra.mrb[0].mxu0 %v120
    %v335 = vpop.f32.mrb[0].mxu0
    %v336 = vadd.f32 0.0, %v335
    %v337 = vpop.f32.mrb[0].mxu0
    %v338 = vadd.f32 0.0, %v337
    %339 = vmatprep.mubr.f32.mxu0 0.0
    %340 = vmatmul.mubr.f32.gmra.mrb[0].mxu0 %v123
    %v341 = vpop.f32.mrb[0].mxu0
    %v342 = vadd.f32 0.0, %v341
    %v343 = vpop.f32.mrb[0].mxu0
    %v344 = vadd.f32 0.0, %v343
    %345 = vmatprep.mubr.f32.mxu0 0.0
    %346 = vmatmul.mubr.f32.gmra.mrb[0].mxu0 %v126
    %v347 = vpop.f32.mrb[0].mxu0
    %v348 = vadd.f32 0.0, %v347
    %v349 = vpop.f32.mrb[0].mxu0
    %v350 = vadd.f32 0.0, %v349
    %351 = vmatprep.mubr.f32.mxu0 0.0
    %352 = vmatmul.mubr.f32.gmra.mrb[0].mxu0 %v129
    %v353 = vpop.f32.mrb[0].mxu0
    %v354 = vadd.f32 0.0, %v353
    %v355 = vpop.f32.mrb[0].mxu0
    %v356 = vadd.f32 0.0, %v355
    %357 = vmatprep.mubr.f32.mxu0 0.0
    %358 = vmatmul.mubr.f32.gmra.mrb[0].mxu0 %v132
    %v359 = vpop.f32.mrb[0].mxu0
    %v360 = vadd.f32 0.0, %v359
    %v361 = vpop.f32.mrb[0].mxu0
    %v362 = vadd.f32 0.0, %v361
    %363 = vmatprep.mubr.f32.mxu0 0.0
    %364 = vmatmul.mubr.f32.gmra.mrb[0].mxu0 %v135
    %v365 = vpop.f32.mrb[0].mxu0
    %v366 = vadd.f32 0.0, %v365
    %v367 = vpop.f32.mrb[0].mxu0
    %v368 = vadd.f32 0.0, %v367
    %369 = vmatprep.mubr.f32.mxu0 0.0
    %370 = vmatmul.mubr.f32.gmra.mrb[0].mxu0 %v138
    %v371 = vpop.f32.mrb[0].mxu0
    %v372 = vadd.f32 0.0, %v371
    %v373 = vpop.f32.mrb[0].mxu0
    %v374 = vadd.f32 0.0, %v373
    %375 = vmatprep.mubr.f32.mxu0 0.0
    %376 = vmatmul.mubr.f32.gmra.mrb[0].mxu0 %v141
    %v377 = vpop.f32.mrb[0].mxu0
    %v378 = vadd.f32 0.0, %v377
    %v379 = vpop.f32.mrb[0].mxu0
    %v380 = vadd.f32 0.0, %v379
    %381 = vmatprep.mubr.f32.mxu0 0.0
    %382 = vmatmul.mubr.f32.gmra.mrb[0].mxu0 %v144
    %v383 = vpop.f32.mrb[0].mxu0
    %v384 = vadd.f32 0.0, %v383
    %v385 = vpop.f32.mrb[0].mxu0
    %v386 = vadd.f32 0.0, %v385
    %387 = vmatprep.mubr.f32.mxu0 0.0
    %388 = vmatmul.mubr.f32.gmra.mrb[0].mxu0 %v147
    %v389 = vpop.f32.mrb[0].mxu0
    %v390 = vadd.f32 0.0, %v389
    %v391 = vpop.f32.mrb[0].mxu0
    %v392 = vadd.f32 0.0, %v391
    %393 = vmatprep.mubr.f32.mxu0 0.0
    %394 = vmatmul.mubr.f32.gmra.mrb[0].mxu0 %v150
    %v395 = vpop.f32.mrb[0].mxu0
    %v396 = vadd.f32 0.0, %v395
    %v397 = vpop.f32.mrb[0].mxu0
    %v398 = vadd.f32 0.0, %v397
    %399 = vmatprep.mubr.f32.mxu0 0.0
    %400 = vmatmul.mubr.f32.gmra.mrb[0].mxu0 %v153
    %v401 = vpop.f32.mrb[0].mxu0
    %v402 = vadd.f32 0.0, %v401
    %v403 = vpop.f32.mrb[0].mxu0
    %v404 = vadd.f32 0.0, %v403
    %405 = vmatprep.mubr.f32.mxu0 0.0
    %406 = vmatmul.mubr.f32.gmra.mrb[0].mxu0 %v156
    %v407 = vpop.f32.mrb[0].mxu0
    %v408 = vadd.f32 0.0, %v407
    %v409 = vpop.f32.mrb[0].mxu0
    %v410 = vadd.f32 0.0, %v409
    %411 = vmatprep.mubr.f32.mxu0 0.0
    %412 = vmatmul.mubr.f32.gmra.mrb[0].mxu0 %v159
    %v413 = vpop.f32.mrb[0].mxu0
    %v414 = vadd.f32 0.0, %v413
    %v415 = vpop.f32.mrb[0].mxu0
    %v416 = vadd.f32 0.0, %v415
    %417 = vdwg.mxu0
    %v418 = vmul.f32 %v30, %v30
    %v419 = vmul.f32 %v31, %v31
    %vm420 = vcmask 1042432
    %v421 = vsel %vm420, %v418, 0.0
    %v422 = vrot.slane %v421, 4
    %v423 = vadd.f32 %v421, %v422
    %v424 = vrot.slane %v423, 2
    %v425 = vadd.f32 %v423, %v424
    %v426 = vrot.slane %v425, 1
    %v427 = vadd.f32 %v425, %v426
    %v428 = vsel %vm420, %v419, 0.0
    %v429 = vrot.slane %v428, 4
    %v430 = vadd.f32 %v428, %v429
    %v431 = vrot.slane %v430, 2
    %v432 = vadd.f32 %v430, %v431
    %v433 = vrot.slane %v432, 1
    %v434 = vadd.f32 %v432, %v433
    %v435 = vmul.f32 %v32, %v32
    %v436 = vmul.f32 %v33, %v33
    %v437 = vmul.f32 %v34, %v34
    %v438 = vmul.f32 %v35, %v35
    %v439 = vmul.f32 %v36, %v36
    %v440 = vmul.f32 %v37, %v37
    %v441 = vmul.f32 %v38, %v38
    %v442 = vmul.f32 %v39, %v39
    %v443 = vmul.f32 %v40, %v40
    %v444 = vmul.f32 %v41, %v41
    %v445 = vmul.f32 %v42, %v42
    %v446 = vmul.f32 %v43, %v43
    %v447 = vmul.f32 %v44, %v44
    %v448 = vmul.f32 %v45, %v45
    %v449 = vmul.f32 %v46, %v46
    %v450 = vmul.f32 %v47, %v47
    %v451 = vmul.f32 %v48, %v48
    %v452 = vmul.f32 %v49, %v49
    %v453 = vmul.f32 %v50, %v50
    %v454 = vmul.f32 %v51, %v51
    %v455 = vmul.f32 %v52, %v52
    %v456 = vmul.f32 %v53, %v53
    %v457 = vmul.f32 %v54, %v54
    %v458 = vmul.f32 %v55, %v55
    %v459 = vmul.f32 %v56, %v56
    %v460 = vmul.f32 %v57, %v57
    %v461 = vmul.f32 %v58, %v58
    %v462 = vmul.f32 %v59, %v59
    %v463 = vmul.f32 %v60, %v60
    %v464 = vmul.f32 %v61, %v61
    %v465 = vmul.f32 %v62, %v62
    %v466 = vmul.f32 %v63, %v63
    %vm467 = vcmask 23552
    %v468 = vsel %vm467, %v435, 0.0
    %469 = vadd.xlane.f32.xlu0 %v468
    %v470 = vpop.xlane.xlu0 %469
    %v471 = vsel %vm467, %v436, 0.0
    %472 = vadd.xlane.f32.xlu0 %v471
    %v473 = vpop.xlane.xlu0 %472
    %v474 = vsel %vm467, %v437, 0.0
    %475 = vadd.xlane.f32.xlu0 %v474
    %v476 = vpop.xlane.xlu0 %475
    %v477 = vsel %vm467, %v438, 0.0
    %478 = vadd.xlane.f32.xlu0 %v477
    %v479 = vpop.xlane.xlu0 %478
    %v480 = vsel %vm467, %v439, 0.0
    %481 = vadd.xlane.f32.xlu0 %v480
    %v482 = vpop.xlane.xlu0 %481
    %v483 = vsel %vm467, %v440, 0.0
    %484 = vadd.xlane.f32.xlu0 %v483
    %v485 = vpop.xlane.xlu0 %484
    %v486 = vsel %vm467, %v441, 0.0
    %487 = vadd.xlane.f32.xlu0 %v486
    %v488 = vpop.xlane.xlu0 %487
    %v489 = vsel %vm467, %v442, 0.0
    %490 = vadd.xlane.f32.xlu0 %v489
    %v491 = vpop.xlane.xlu0 %490
    %v492 = vsel %vm467, %v443, 0.0
    %493 = vadd.xlane.f32.xlu0 %v492
    %v494 = vpop.xlane.xlu0 %493
    %v495 = vsel %vm467, %v444, 0.0
    %496 = vadd.xlane.f32.xlu0 %v495
    %v497 = vpop.xlane.xlu0 %496
    %v498 = vsel %vm467, %v445, 0.0
    %499 = vadd.xlane.f32.xlu0 %v498
    %v500 = vpop.xlane.xlu0 %499
    %v501 = vsel %vm467, %v446, 0.0
    %502 = vadd.xlane.f32.xlu0 %v501
    %v503 = vpop.xlane.xlu0 %502
    %v504 = vsel %vm467, %v447, 0.0
    %505 = vadd.xlane.f32.xlu0 %v504
    %v506 = vpop.xlane.xlu0 %505
    %v507 = vsel %vm467, %v448, 0.0
    %508 = vadd.xlane.f32.xlu0 %v507
    %v509 = vpop.xlane.xlu0 %508
    %v510 = vsel %vm467, %v449, 0.0
    %511 = vadd.xlane.f32.xlu0 %v510
    %v512 = vpop.xlane.xlu0 %511
    %v513 = vsel %vm467, %v450, 0.0
    %514 = vadd.xlane.f32.xlu0 %v513
    %v515 = vpop.xlane.xlu0 %514
    %v516 = vsel %vm467, %v451, 0.0
    %517 = vadd.xlane.f32.xlu0 %v516
    %v518 = vpop.xlane.xlu0 %517
    %v519 = vsel %vm467, %v452, 0.0
    %520 = vadd.xlane.f32.xlu0 %v519
    %v521 = vpop.xlane.xlu0 %520
    %v522 = vsel %vm467, %v453, 0.0
    %523 = vadd.xlane.f32.xlu0 %v522
    %v524 = vpop.xlane.xlu0 %523
    %v525 = vsel %vm467, %v454, 0.0
    %526 = vadd.xlane.f32.xlu0 %v525
    %v527 = vpop.xlane.xlu0 %526
    %v528 = vsel %vm467, %v455, 0.0
    %529 = vadd.xlane.f32.xlu0 %v528
    %v530 = vpop.xlane.xlu0 %529
    %v531 = vsel %vm467, %v456, 0.0
    %532 = vadd.xlane.f32.xlu0 %v531
    %v533 = vpop.xlane.xlu0 %532
    %v534 = vsel %vm467, %v457, 0.0
    %535 = vadd.xlane.f32.xlu0 %v534
    %v536 = vpop.xlane.xlu0 %535
    %v537 = vsel %vm467, %v458, 0.0
    %538 = vadd.xlane.f32.xlu0 %v537
    %v539 = vpop.xlane.xlu0 %538
    %v540 = vsel %vm467, %v459, 0.0
    %541 = vadd.xlane.f32.xlu0 %v540
    %v542 = vpop.xlane.xlu0 %541
    %v543 = vsel %vm467, %v460, 0.0
    %544 = vadd.xlane.f32.xlu0 %v543
    %v545 = vpop.xlane.xlu0 %544
    %v546 = vsel %vm467, %v461, 0.0
    %547 = vadd.xlane.f32.xlu0 %v546
    %v548 = vpop.xlane.xlu0 %547
    %v549 = vsel %vm467, %v462, 0.0
    %550 = vadd.xlane.f32.xlu0 %v549
    %v551 = vpop.xlane.xlu0 %550
    %v552 = vsel %vm467, %v463, 0.0
    %553 = vadd.xlane.f32.xlu0 %v552
    %v554 = vpop.xlane.xlu0 %553
    %v555 = vsel %vm467, %v464, 0.0
    %556 = vadd.xlane.f32.xlu0 %v555
    %v557 = vpop.xlane.xlu0 %556
    %v558 = vsel %vm467, %v465, 0.0
    %559 = vadd.xlane.f32.xlu0 %v558
    %v560 = vpop.xlane.xlu0 %559
    %v561 = vsel %vm467, %v466, 0.0
    %562 = vadd.xlane.f32.xlu0 %v561
    %v563 = vpop.xlane.xlu0 %562
    %v564 = vadd.f32 %v427, %v470
    %v565 = vadd.f32 %v434, %v470
    %v566 = vadd.f32 %v427, %v473
    %v567 = vadd.f32 %v434, %v473
    %v568 = vadd.f32 %v427, %v476
    %v569 = vadd.f32 %v434, %v476
    %v570 = vadd.f32 %v427, %v479
    %v571 = vadd.f32 %v434, %v479
    %v572 = vadd.f32 %v427, %v482
    %v573 = vadd.f32 %v434, %v482
    %v574 = vadd.f32 %v427, %v485
    %v575 = vadd.f32 %v434, %v485
    %v576 = vadd.f32 %v427, %v488
    %v577 = vadd.f32 %v434, %v488
    %v578 = vadd.f32 %v427, %v491
    %v579 = vadd.f32 %v434, %v491
    %v580 = vadd.f32 %v427, %v494
    %v581 = vadd.f32 %v434, %v494
    %v582 = vadd.f32 %v427, %v497
    %v583 = vadd.f32 %v434, %v497
    %v584 = vadd.f32 %v427, %v500
    %v585 = vadd.f32 %v434, %v500
    %v586 = vadd.f32 %v427, %v503
    %v587 = vadd.f32 %v434, %v503
    %v588 = vadd.f32 %v427, %v506
    %v589 = vadd.f32 %v434, %v506
    %v590 = vadd.f32 %v427, %v509
    %v591 = vadd.f32 %v434, %v509
    %v592 = vadd.f32 %v427, %v512
    %v593 = vadd.f32 %v434, %v512
    %v594 = vadd.f32 %v427, %v515
    %v595 = vadd.f32 %v434, %v515
    %v596 = vadd.f32 %v427, %v518
    %v597 = vadd.f32 %v434, %v518
    %v598 = vadd.f32 %v427, %v521
    %v599 = vadd.f32 %v434, %v521
    %v600 = vadd.f32 %v427, %v524
    %v601 = vadd.f32 %v434, %v524
    %v602 = vadd.f32 %v427, %v527
    %v603 = vadd.f32 %v434, %v527
    %v604 = vadd.f32 %v427, %v530
    %v605 = vadd.f32 %v434, %v530
    %v606 = vadd.f32 %v427, %v533
    %v607 = vadd.f32 %v434, %v533
    %v608 = vadd.f32 %v427, %v536
    %v609 = vadd.f32 %v434, %v536
    %v610 = vadd.f32 %v427, %v539
    %v611 = vadd.f32 %v434, %v539
    %v612 = vadd.f32 %v427, %v542
    %v613 = vadd.f32 %v434, %v542
    %v614 = vadd.f32 %v427, %v545
    %v615 = vadd.f32 %v434, %v545
    %v616 = vadd.f32 %v427, %v548
    %v617 = vadd.f32 %v434, %v548
    %v618 = vadd.f32 %v427, %v551
    %v619 = vadd.f32 %v434, %v551
    %v620 = vadd.f32 %v427, %v554
    %v621 = vadd.f32 %v434, %v554
    %v622 = vadd.f32 %v427, %v557
    %v623 = vadd.f32 %v434, %v557
    %v624 = vadd.f32 %v427, %v560
    %v625 = vadd.f32 %v434, %v560
    %v626 = vadd.f32 %v427, %v563
    %v627 = vadd.f32 %v434, %v563
    %v628 = vmul.f32 %v228, 2.0
    %v629 = vmul.f32 %v230, 2.0
    %v630 = vmul.f32 %v234, 2.0
    %v631 = vmul.f32 %v236, 2.0
    %v632 = vmul.f32 %v240, 2.0
    %v633 = vmul.f32 %v242, 2.0
    %v634 = vmul.f32 %v246, 2.0
    %v635 = vmul.f32 %v248, 2.0
    %v636 = vmul.f32 %v252, 2.0
    %v637 = vmul.f32 %v254, 2.0
    %v638 = vmul.f32 %v258, 2.0
    %v639 = vmul.f32 %v260, 2.0
    %v640 = vmul.f32 %v264, 2.0
    %v641 = vmul.f32 %v266, 2.0
    %v642 = vmul.f32 %v270, 2.0
    %v643 = vmul.f32 %v272, 2.0
    %v644 = vmul.f32 %v276, 2.0
    %v645 = vmul.f32 %v278, 2.0
    %v646 = vmul.f32 %v282, 2.0
    %v647 = vmul.f32 %v284, 2.0
    %v648 = vmul.f32 %v288, 2.0
    %v649 = vmul.f32 %v290, 2.0
    %v650 = vmul.f32 %v294, 2.0
    %v651 = vmul.f32 %v296, 2.0
    %v652 = vmul.f32 %v300, 2.0
    %v653 = vmul.f32 %v302, 2.0
    %v654 = vmul.f32 %v306, 2.0
    %v655 = vmul.f32 %v308, 2.0
    %v656 = vmul.f32 %v312, 2.0
    %v657 = vmul.f32 %v314, 2.0
    %v658 = vmul.f32 %v318, 2.0
    %v659 = vmul.f32 %v320, 2.0
    %v660 = vmul.f32 %v324, 2.0
    %v661 = vmul.f32 %v326, 2.0
    %v662 = vmul.f32 %v330, 2.0
    %v663 = vmul.f32 %v332, 2.0
    %v664 = vmul.f32 %v336, 2.0
    %v665 = vmul.f32 %v338, 2.0
    %v666 = vmul.f32 %v342, 2.0
    %v667 = vmul.f32 %v344, 2.0
    %v668 = vmul.f32 %v348, 2.0
    %v669 = vmul.f32 %v350, 2.0
    %v670 = vmul.f32 %v354, 2.0
    %v671 = vmul.f32 %v356, 2.0
    %v672 = vmul.f32 %v360, 2.0
    %v673 = vmul.f32 %v362, 2.0
    %v674 = vmul.f32 %v366, 2.0
    %v675 = vmul.f32 %v368, 2.0
    %v676 = vmul.f32 %v372, 2.0
    %v677 = vmul.f32 %v374, 2.0
    %v678 = vmul.f32 %v378, 2.0
    %v679 = vmul.f32 %v380, 2.0
    %v680 = vmul.f32 %v384, 2.0
    %v681 = vmul.f32 %v386, 2.0
    %v682 = vmul.f32 %v390, 2.0
    %v683 = vmul.f32 %v392, 2.0
    %v684 = vmul.f32 %v396, 2.0
    %v685 = vmul.f32 %v398, 2.0
    %v686 = vmul.f32 %v402, 2.0
    %v687 = vmul.f32 %v404, 2.0
    %v688 = vmul.f32 %v408, 2.0
    %v689 = vmul.f32 %v410, 2.0
    %v690 = vmul.f32 %v414, 2.0
    %v691 = vmul.f32 %v416, 2.0
    %v692 = vsub.f32 %v564, %v628
    %v693 = vsub.f32 %v565, %v629
    %v694 = vsub.f32 %v566, %v630
    %v695 = vsub.f32 %v567, %v631
    %v696 = vsub.f32 %v568, %v632
    %v697 = vsub.f32 %v569, %v633
    %v698 = vsub.f32 %v570, %v634
    %v699 = vsub.f32 %v571, %v635
    %v700 = vsub.f32 %v572, %v636
    %v701 = vsub.f32 %v573, %v637
    %v702 = vsub.f32 %v574, %v638
    %v703 = vsub.f32 %v575, %v639
    %v704 = vsub.f32 %v576, %v640
    %v705 = vsub.f32 %v577, %v641
    %v706 = vsub.f32 %v578, %v642
    %v707 = vsub.f32 %v579, %v643
    %v708 = vsub.f32 %v580, %v644
    %v709 = vsub.f32 %v581, %v645
    %v710 = vsub.f32 %v582, %v646
    %v711 = vsub.f32 %v583, %v647
    %v712 = vsub.f32 %v584, %v648
    %v713 = vsub.f32 %v585, %v649
    %v714 = vsub.f32 %v586, %v650
    %v715 = vsub.f32 %v587, %v651
    %v716 = vsub.f32 %v588, %v652
    %v717 = vsub.f32 %v589, %v653
    %v718 = vsub.f32 %v590, %v654
    %v719 = vsub.f32 %v591, %v655
    %v720 = vsub.f32 %v592, %v656
    %v721 = vsub.f32 %v593, %v657
    %v722 = vsub.f32 %v594, %v658
    %v723 = vsub.f32 %v595, %v659
    %v724 = vsub.f32 %v596, %v660
    %v725 = vsub.f32 %v597, %v661
    %v726 = vsub.f32 %v598, %v662
    %v727 = vsub.f32 %v599, %v663
    %v728 = vsub.f32 %v600, %v664
    %v729 = vsub.f32 %v601, %v665
    %v730 = vsub.f32 %v602, %v666
    %v731 = vsub.f32 %v603, %v667
    %v732 = vsub.f32 %v604, %v668
    %v733 = vsub.f32 %v605, %v669
    %v734 = vsub.f32 %v606, %v670
    %v735 = vsub.f32 %v607, %v671
    %v736 = vsub.f32 %v608, %v672
    %v737 = vsub.f32 %v609, %v673
    %v738 = vsub.f32 %v610, %v674
    %v739 = vsub.f32 %v611, %v675
    %v740 = vsub.f32 %v612, %v676
    %v741 = vsub.f32 %v613, %v677
    %v742 = vsub.f32 %v614, %v678
    %v743 = vsub.f32 %v615, %v679
    %v744 = vsub.f32 %v616, %v680
    %v745 = vsub.f32 %v617, %v681
    %v746 = vsub.f32 %v618, %v682
    %v747 = vsub.f32 %v619, %v683
    %v748 = vsub.f32 %v620, %v684
    %v749 = vsub.f32 %v621, %v685
    %v750 = vsub.f32 %v622, %v686
    %v751 = vsub.f32 %v623, %v687
    %v752 = vsub.f32 %v624, %v688
    %v753 = vsub.f32 %v625, %v689
    %v754 = vsub.f32 %v626, %v690
    %v755 = vsub.f32 %v627, %v691
    %v756 = vmax.f32 %v692, 0.0
    %v757 = vmax.f32 %v693, 0.0
    %v758 = vmax.f32 %v694, 0.0
    %v759 = vmax.f32 %v695, 0.0
    %v760 = vmax.f32 %v696, 0.0
    %v761 = vmax.f32 %v697, 0.0
    %v762 = vmax.f32 %v698, 0.0
    %v763 = vmax.f32 %v699, 0.0
    %v764 = vmax.f32 %v700, 0.0
    %v765 = vmax.f32 %v701, 0.0
    %v766 = vmax.f32 %v702, 0.0
    %v767 = vmax.f32 %v703, 0.0
    %v768 = vmax.f32 %v704, 0.0
    %v769 = vmax.f32 %v705, 0.0
    %v770 = vmax.f32 %v706, 0.0
    %v771 = vmax.f32 %v707, 0.0
    %v772 = vmax.f32 %v708, 0.0
    %v773 = vmax.f32 %v709, 0.0
    %v774 = vmax.f32 %v710, 0.0
    %v775 = vmax.f32 %v711, 0.0
    %v776 = vmax.f32 %v712, 0.0
    %v777 = vmax.f32 %v713, 0.0
    %v778 = vmax.f32 %v714, 0.0
    %v779 = vmax.f32 %v715, 0.0
    %v780 = vmax.f32 %v716, 0.0
    %v781 = vmax.f32 %v717, 0.0
    %v782 = vmax.f32 %v718, 0.0
    %v783 = vmax.f32 %v719, 0.0
    %v784 = vmax.f32 %v720, 0.0
    %v785 = vmax.f32 %v721, 0.0
    %v786 = vmax.f32 %v722, 0.0
    %v787 = vmax.f32 %v723, 0.0
    %v788 = vmax.f32 %v724, 0.0
    %v789 = vmax.f32 %v725, 0.0
    %v790 = vmax.f32 %v726, 0.0
    %v791 = vmax.f32 %v727, 0.0
    %v792 = vmax.f32 %v728, 0.0
    %v793 = vmax.f32 %v729, 0.0
    %v794 = vmax.f32 %v730, 0.0
    %v795 = vmax.f32 %v731, 0.0
    %v796 = vmax.f32 %v732, 0.0
    %v797 = vmax.f32 %v733, 0.0
    %v798 = vmax.f32 %v734, 0.0
    %v799 = vmax.f32 %v735, 0.0
    %v800 = vmax.f32 %v736, 0.0
    %v801 = vmax.f32 %v737, 0.0
    %v802 = vmax.f32 %v738, 0.0
    %v803 = vmax.f32 %v739, 0.0
    %v804 = vmax.f32 %v740, 0.0
    %v805 = vmax.f32 %v741, 0.0
    %v806 = vmax.f32 %v742, 0.0
    %v807 = vmax.f32 %v743, 0.0
    %v808 = vmax.f32 %v744, 0.0
    %v809 = vmax.f32 %v745, 0.0
    %v810 = vmax.f32 %v746, 0.0
    %v811 = vmax.f32 %v747, 0.0
    %v812 = vmax.f32 %v748, 0.0
    %v813 = vmax.f32 %v749, 0.0
    %v814 = vmax.f32 %v750, 0.0
    %v815 = vmax.f32 %v751, 0.0
    %v816 = vmax.f32 %v752, 0.0
    %v817 = vmax.f32 %v753, 0.0
    %v818 = vmax.f32 %v754, 0.0
    %v819 = vmax.f32 %v755, 0.0
    %820 = vset.pattern.permute.xlu0 4
    %821 = vperm.xlu0 %820, %v32
    %v822 = vpop.permute.xlu0 %821
    %824 = vset.pattern.permute.xlu0 4
    %825 = vperm.xlu0 %824, %v33
    %v826 = vpop.permute.xlu0 %825
    %828 = vset.pattern.permute.xlu0 4
    %829 = vperm.xlu0 %828, %v34
    %v830 = vpop.permute.xlu0 %829
    %832 = vset.pattern.permute.xlu0 4
    %833 = vperm.xlu0 %832, %v35
    %v834 = vpop.permute.xlu0 %833
    %836 = vset.pattern.permute.xlu0 4
    %837 = vperm.xlu0 %836, %v36
    %v838 = vpop.permute.xlu0 %837
    %840 = vset.pattern.permute.xlu0 4
    %841 = vperm.xlu0 %840, %v37
    %v842 = vpop.permute.xlu0 %841
    %844 = vset.pattern.permute.xlu0 4
    %845 = vperm.xlu0 %844, %v38
    %v846 = vpop.permute.xlu0 %845
    %848 = vset.pattern.permute.xlu0 4
    %849 = vperm.xlu0 %848, %v39
    %v850 = vpop.permute.xlu0 %849
    %852 = vset.pattern.permute.xlu0 4
    %853 = vperm.xlu0 %852, %v40
    %v854 = vpop.permute.xlu0 %853
    %856 = vset.pattern.permute.xlu0 4
    %857 = vperm.xlu0 %856, %v41
    %v858 = vpop.permute.xlu0 %857
    %860 = vset.pattern.permute.xlu0 4
    %861 = vperm.xlu0 %860, %v42
    %v862 = vpop.permute.xlu0 %861
    %864 = vset.pattern.permute.xlu0 4
    %865 = vperm.xlu0 %864, %v43
    %v866 = vpop.permute.xlu0 %865
    %868 = vset.pattern.permute.xlu0 4
    %869 = vperm.xlu0 %868, %v44
    %v870 = vpop.permute.xlu0 %869
    %872 = vset.pattern.permute.xlu0 4
    %873 = vperm.xlu0 %872, %v45
    %v874 = vpop.permute.xlu0 %873
    %876 = vset.pattern.permute.xlu0 4
    %877 = vperm.xlu0 %876, %v46
    %v878 = vpop.permute.xlu0 %877
    %880 = vset.pattern.permute.xlu0 4
    %881 = vperm.xlu0 %880, %v47
    %v882 = vpop.permute.xlu0 %881
    %884 = vset.pattern.permute.xlu0 4
    %885 = vperm.xlu0 %884, %v48
    %v886 = vpop.permute.xlu0 %885
    %888 = vset.pattern.permute.xlu0 4
    %889 = vperm.xlu0 %888, %v49
    %v890 = vpop.permute.xlu0 %889
    %892 = vset.pattern.permute.xlu0 4
    %893 = vperm.xlu0 %892, %v50
    %v894 = vpop.permute.xlu0 %893
    %896 = vset.pattern.permute.xlu0 4
    %897 = vperm.xlu0 %896, %v51
    %v898 = vpop.permute.xlu0 %897
    %900 = vset.pattern.permute.xlu0 4
    %901 = vperm.xlu0 %900, %v52
    %v902 = vpop.permute.xlu0 %901
    %904 = vset.pattern.permute.xlu0 4
    %905 = vperm.xlu0 %904, %v53
    %v906 = vpop.permute.xlu0 %905
    %908 = vset.pattern.permute.xlu0 4
    %909 = vperm.xlu0 %908, %v54
    %v910 = vpop.permute.xlu0 %909
    %912 = vset.pattern.permute.xlu0 4
    %913 = vperm.xlu0 %912, %v55
    %v914 = vpop.permute.xlu0 %913
    %916 = vset.pattern.permute.xlu0 4
    %917 = vperm.xlu0 %916, %v56
    %v918 = vpop.permute.xlu0 %917
    %920 = vset.pattern.permute.xlu0 4
    %921 = vperm.xlu0 %920, %v57
    %v922 = vpop.permute.xlu0 %921
    %924 = vset.pattern.permute.xlu0 4
    %925 = vperm.xlu0 %924, %v58
    %v926 = vpop.permute.xlu0 %925
    %928 = vset.pattern.permute.xlu0 4
    %929 = vperm.xlu0 %928, %v59
    %v930 = vpop.permute.xlu0 %929
    %932 = vset.pattern.permute.xlu0 4
    %933 = vperm.xlu0 %932, %v60
    %v934 = vpop.permute.xlu0 %933
    %936 = vset.pattern.permute.xlu0 4
    %937 = vperm.xlu0 %936, %v61
    %v938 = vpop.permute.xlu0 %937
    %940 = vset.pattern.permute.xlu0 4
    %941 = vperm.xlu0 %940, %v62
    %v942 = vpop.permute.xlu0 %941
    %944 = vset.pattern.permute.xlu0 4
    %945 = vperm.xlu0 %944, %v63
    %v946 = vpop.permute.xlu0 %945
    %v948 = vlaneseq
    %v949 = vshrl.u32 %v948, 7
    %v950 = vsub.s32 3, %v949
    %v951 = vrot.slane %v30, %v950
    %v952 = vlaneseq
    %v953 = vshrl.u32 %v952, 7
    %v954 = vsub.s32 3, %v953
    %v955 = vrot.slane %v31, %v954
    %v956 = vsub.f32 %v822, %v951
    %v957 = vsub.f32 %v822, %v955
    %v958 = vsub.f32 %v826, %v951
    %v959 = vsub.f32 %v826, %v955
    %v960 = vsub.f32 %v830, %v951
    %v961 = vsub.f32 %v830, %v955
    %v962 = vsub.f32 %v834, %v951
    %v963 = vsub.f32 %v834, %v955
    %v964 = vsub.f32 %v838, %v951
    %v965 = vsub.f32 %v838, %v955
    %v966 = vsub.f32 %v842, %v951
    %v967 = vsub.f32 %v842, %v955
    %v968 = vsub.f32 %v846, %v951
    %v969 = vsub.f32 %v846, %v955
    %v970 = vsub.f32 %v850, %v951
    %v971 = vsub.f32 %v850, %v955
    %v972 = vsub.f32 %v854, %v951
    %v973 = vsub.f32 %v854, %v955
    %v974 = vsub.f32 %v858, %v951
    %v975 = vsub.f32 %v858, %v955
    %v976 = vsub.f32 %v862, %v951
    %v977 = vsub.f32 %v862, %v955
    %v978 = vsub.f32 %v866, %v951
    %v979 = vsub.f32 %v866, %v955
    %v980 = vsub.f32 %v870, %v951
    %v981 = vsub.f32 %v870, %v955
    %v982 = vsub.f32 %v874, %v951
    %v983 = vsub.f32 %v874, %v955
    %v984 = vsub.f32 %v878, %v951
    %v985 = vsub.f32 %v878, %v955
    %v986 = vsub.f32 %v882, %v951
    %v987 = vsub.f32 %v882, %v955
    %v988 = vsub.f32 %v886, %v951
    %v989 = vsub.f32 %v886, %v955
    %v990 = vsub.f32 %v890, %v951
    %v991 = vsub.f32 %v890, %v955
    %v992 = vsub.f32 %v894, %v951
    %v993 = vsub.f32 %v894, %v955
    %v994 = vsub.f32 %v898, %v951
    %v995 = vsub.f32 %v898, %v955
    %v996 = vsub.f32 %v902, %v951
    %v997 = vsub.f32 %v902, %v955
    %v998 = vsub.f32 %v906, %v951
    %v999 = vsub.f32 %v906, %v955
    %v1000 = vsub.f32 %v910, %v951
    %v1001 = vsub.f32 %v910, %v955
    %v1002 = vsub.f32 %v914, %v951
    %v1003 = vsub.f32 %v914, %v955
    %v1004 = vsub.f32 %v918, %v951
    %v1005 = vsub.f32 %v918, %v955
    %v1006 = vsub.f32 %v922, %v951
    %v1007 = vsub.f32 %v922, %v955
    %v1008 = vsub.f32 %v926, %v951
    %v1009 = vsub.f32 %v926, %v955
    %v1010 = vsub.f32 %v930, %v951
    %v1011 = vsub.f32 %v930, %v955
    %v1012 = vsub.f32 %v934, %v951
    %v1013 = vsub.f32 %v934, %v955
    %v1014 = vsub.f32 %v938, %v951
    %v1015 = vsub.f32 %v938, %v955
    %v1016 = vsub.f32 %v942, %v951
    %v1017 = vsub.f32 %v942, %v955
    %v1018 = vsub.f32 %v946, %v951
    %v1019 = vsub.f32 %v946, %v955
    %v1020 = vmul.f32 %v956, 1e+08
    %v1021 = vmul.f32 %v957, 1e+08
    %v1022 = vmul.f32 %v958, 1e+08
    %v1023 = vmul.f32 %v959, 1e+08
    %v1024 = vmul.f32 %v960, 1e+08
    %v1025 = vmul.f32 %v961, 1e+08
    %v1026 = vmul.f32 %v962, 1e+08
    %v1027 = vmul.f32 %v963, 1e+08
    %v1028 = vmul.f32 %v964, 1e+08
    %v1029 = vmul.f32 %v965, 1e+08
    %v1030 = vmul.f32 %v966, 1e+08
    %v1031 = vmul.f32 %v967, 1e+08
    %v1032 = vmul.f32 %v968, 1e+08
    %v1033 = vmul.f32 %v969, 1e+08
    %v1034 = vmul.f32 %v970, 1e+08
    %v1035 = vmul.f32 %v971, 1e+08
    %v1036 = vmul.f32 %v972, 1e+08
    %v1037 = vmul.f32 %v973, 1e+08
    %v1038 = vmul.f32 %v974, 1e+08
    %v1039 = vmul.f32 %v975, 1e+08
    %v1040 = vmul.f32 %v976, 1e+08
    %v1041 = vmul.f32 %v977, 1e+08
    %v1042 = vmul.f32 %v978, 1e+08
    %v1043 = vmul.f32 %v979, 1e+08
    %v1044 = vmul.f32 %v980, 1e+08
    %v1045 = vmul.f32 %v981, 1e+08
    %v1046 = vmul.f32 %v982, 1e+08
    %v1047 = vmul.f32 %v983, 1e+08
    %v1048 = vmul.f32 %v984, 1e+08
    %v1049 = vmul.f32 %v985, 1e+08
    %v1050 = vmul.f32 %v986, 1e+08
    %v1051 = vmul.f32 %v987, 1e+08
    %v1052 = vmul.f32 %v988, 1e+08
    %v1053 = vmul.f32 %v989, 1e+08
    %v1054 = vmul.f32 %v990, 1e+08
    %v1055 = vmul.f32 %v991, 1e+08
    %v1056 = vmul.f32 %v992, 1e+08
    %v1057 = vmul.f32 %v993, 1e+08
    %v1058 = vmul.f32 %v994, 1e+08
    %v1059 = vmul.f32 %v995, 1e+08
    %v1060 = vmul.f32 %v996, 1e+08
    %v1061 = vmul.f32 %v997, 1e+08
    %v1062 = vmul.f32 %v998, 1e+08
    %v1063 = vmul.f32 %v999, 1e+08
    %v1064 = vmul.f32 %v1000, 1e+08
    %v1065 = vmul.f32 %v1001, 1e+08
    %v1066 = vmul.f32 %v1002, 1e+08
    %v1067 = vmul.f32 %v1003, 1e+08
    %v1068 = vmul.f32 %v1004, 1e+08
    %v1069 = vmul.f32 %v1005, 1e+08
    %v1070 = vmul.f32 %v1006, 1e+08
    %v1071 = vmul.f32 %v1007, 1e+08
    %v1072 = vmul.f32 %v1008, 1e+08
    %v1073 = vmul.f32 %v1009, 1e+08
    %v1074 = vmul.f32 %v1010, 1e+08
    %v1075 = vmul.f32 %v1011, 1e+08
    %v1076 = vmul.f32 %v1012, 1e+08
    %v1077 = vmul.f32 %v1013, 1e+08
    %v1078 = vmul.f32 %v1014, 1e+08
    %v1079 = vmul.f32 %v1015, 1e+08
    %v1080 = vmul.f32 %v1016, 1e+08
    %v1081 = vmul.f32 %v1017, 1e+08
    %v1082 = vmul.f32 %v1018, 1e+08
    %v1083 = vmul.f32 %v1019, 1e+08
    %v1084 = vmul.f32 %v1020, %v1020
    %v1085 = vmul.f32 %v1021, %v1021
    %v1086 = vmul.f32 %v1022, %v1022
    %v1087 = vmul.f32 %v1023, %v1023
    %v1088 = vmul.f32 %v1024, %v1024
    %v1089 = vmul.f32 %v1025, %v1025
    %v1090 = vmul.f32 %v1026, %v1026
    %v1091 = vmul.f32 %v1027, %v1027
    %v1092 = vmul.f32 %v1028, %v1028
    %v1093 = vmul.f32 %v1029, %v1029
    %v1094 = vmul.f32 %v1030, %v1030
    %v1095 = vmul.f32 %v1031, %v1031
    %v1096 = vmul.f32 %v1032, %v1032
    %v1097 = vmul.f32 %v1033, %v1033
    %v1098 = vmul.f32 %v1034, %v1034
    %v1099 = vmul.f32 %v1035, %v1035
    %v1100 = vmul.f32 %v1036, %v1036
    %v1101 = vmul.f32 %v1037, %v1037
    %v1102 = vmul.f32 %v1038, %v1038
    %v1103 = vmul.f32 %v1039, %v1039
    %v1104 = vmul.f32 %v1040, %v1040
    %v1105 = vmul.f32 %v1041, %v1041
    %v1106 = vmul.f32 %v1042, %v1042
    %v1107 = vmul.f32 %v1043, %v1043
    %v1108 = vmul.f32 %v1044, %v1044
    %v1109 = vmul.f32 %v1045, %v1045
    %v1110 = vmul.f32 %v1046, %v1046
    %v1111 = vmul.f32 %v1047, %v1047
    %v1112 = vmul.f32 %v1048, %v1048
    %v1113 = vmul.f32 %v1049, %v1049
    %v1114 = vmul.f32 %v1050, %v1050
    %v1115 = vmul.f32 %v1051, %v1051
    %v1116 = vmul.f32 %v1052, %v1052
    %v1117 = vmul.f32 %v1053, %v1053
    %v1118 = vmul.f32 %v1054, %v1054
    %v1119 = vmul.f32 %v1055, %v1055
    %v1120 = vmul.f32 %v1056, %v1056
    %v1121 = vmul.f32 %v1057, %v1057
    %v1122 = vmul.f32 %v1058, %v1058
    %v1123 = vmul.f32 %v1059, %v1059
    %v1124 = vmul.f32 %v1060, %v1060
    %v1125 = vmul.f32 %v1061, %v1061
    %v1126 = vmul.f32 %v1062, %v1062
    %v1127 = vmul.f32 %v1063, %v1063
    %v1128 = vmul.f32 %v1064, %v1064
    %v1129 = vmul.f32 %v1065, %v1065
    %v1130 = vmul.f32 %v1066, %v1066
    %v1131 = vmul.f32 %v1067, %v1067
    %v1132 = vmul.f32 %v1068, %v1068
    %v1133 = vmul.f32 %v1069, %v1069
    %v1134 = vmul.f32 %v1070, %v1070
    %v1135 = vmul.f32 %v1071, %v1071
    %v1136 = vmul.f32 %v1072, %v1072
    %v1137 = vmul.f32 %v1073, %v1073
    %v1138 = vmul.f32 %v1074, %v1074
    %v1139 = vmul.f32 %v1075, %v1075
    %v1140 = vmul.f32 %v1076, %v1076
    %v1141 = vmul.f32 %v1077, %v1077
    %v1142 = vmul.f32 %v1078, %v1078
    %v1143 = vmul.f32 %v1079, %v1079
    %v1144 = vmul.f32 %v1080, %v1080
    %v1145 = vmul.f32 %v1081, %v1081
    %v1146 = vmul.f32 %v1082, %v1082
    %v1147 = vmul.f32 %v1083, %v1083
    %v1148 = vadd.f32 %v756, %v1084
    %v1149 = vadd.f32 %v757, %v1085
    %v1150 = vadd.f32 %v758, %v1086
    %v1151 = vadd.f32 %v759, %v1087
    %v1152 = vadd.f32 %v760, %v1088
    %v1153 = vadd.f32 %v761, %v1089
    %v1154 = vadd.f32 %v762, %v1090
    %v1155 = vadd.f32 %v763, %v1091
    %v1156 = vadd.f32 %v764, %v1092
    %v1157 = vadd.f32 %v765, %v1093
    %v1158 = vadd.f32 %v766, %v1094
    %v1159 = vadd.f32 %v767, %v1095
    %v1160 = vadd.f32 %v768, %v1096
    %v1161 = vadd.f32 %v769, %v1097
    %v1162 = vadd.f32 %v770, %v1098
    %v1163 = vadd.f32 %v771, %v1099
    %v1164 = vadd.f32 %v772, %v1100
    %v1165 = vadd.f32 %v773, %v1101
    %v1166 = vadd.f32 %v774, %v1102
    %v1167 = vadd.f32 %v775, %v1103
    %v1168 = vadd.f32 %v776, %v1104
    %v1169 = vadd.f32 %v777, %v1105
    %v1170 = vadd.f32 %v778, %v1106
    %v1171 = vadd.f32 %v779, %v1107
    %v1172 = vadd.f32 %v780, %v1108
    %v1173 = vadd.f32 %v781, %v1109
    %v1174 = vadd.f32 %v782, %v1110
    %v1175 = vadd.f32 %v783, %v1111
    %v1176 = vadd.f32 %v784, %v1112
    %v1177 = vadd.f32 %v785, %v1113
    %v1178 = vadd.f32 %v786, %v1114
    %v1179 = vadd.f32 %v787, %v1115
    %v1180 = vadd.f32 %v788, %v1116
    %v1181 = vadd.f32 %v789, %v1117
    %v1182 = vadd.f32 %v790, %v1118
    %v1183 = vadd.f32 %v791, %v1119
    %v1184 = vadd.f32 %v792, %v1120
    %v1185 = vadd.f32 %v793, %v1121
    %v1186 = vadd.f32 %v794, %v1122
    %v1187 = vadd.f32 %v795, %v1123
    %v1188 = vadd.f32 %v796, %v1124
    %v1189 = vadd.f32 %v797, %v1125
    %v1190 = vadd.f32 %v798, %v1126
    %v1191 = vadd.f32 %v799, %v1127
    %v1192 = vadd.f32 %v800, %v1128
    %v1193 = vadd.f32 %v801, %v1129
    %v1194 = vadd.f32 %v802, %v1130
    %v1195 = vadd.f32 %v803, %v1131
    %v1196 = vadd.f32 %v804, %v1132
    %v1197 = vadd.f32 %v805, %v1133
    %v1198 = vadd.f32 %v806, %v1134
    %v1199 = vadd.f32 %v807, %v1135
    %v1200 = vadd.f32 %v808, %v1136
    %v1201 = vadd.f32 %v809, %v1137
    %v1202 = vadd.f32 %v810, %v1138
    %v1203 = vadd.f32 %v811, %v1139
    %v1204 = vadd.f32 %v812, %v1140
    %v1205 = vadd.f32 %v813, %v1141
    %v1206 = vadd.f32 %v814, %v1142
    %v1207 = vadd.f32 %v815, %v1143
    %v1208 = vadd.f32 %v816, %v1144
    %v1209 = vadd.f32 %v817, %v1145
    %v1210 = vadd.f32 %v818, %v1146
    %v1211 = vadd.f32 %v819, %v1147
    %v1212 = vlaneseq
    %v1213 = vshrl.u32 %v1212, 7
    %v1214 = vadd.s32 %v1213, 8
    %v1215 = vadd.s32 %v1213, 16
    %v1216 = vadd.s32 %v1213, 24
    %v1217 = vadd.s32 %v1213, 32
    %v1218 = vadd.s32 %v1213, 40
    %v1219 = vadd.s32 %v1213, 48
    %v1220 = vadd.s32 %v1213, 56
    %v1221 = vadd.s32 %v1213, 64
    %v1222 = vadd.s32 %v1213, 72
    %v1223 = vadd.s32 %v1213, 80
    %v1224 = vadd.s32 %v1213, 88
    %v1225 = vadd.s32 %v1213, 96
    %v1226 = vadd.s32 %v1213, 104
    %v1227 = vadd.s32 %v1213, 112
    %v1228 = vadd.s32 %v1213, 120
    %v1229 = vadd.s32 %v1213, 128
    %v1230 = vadd.s32 %v1213, 136
    %v1231 = vadd.s32 %v1213, 144
    %v1232 = vadd.s32 %v1213, 152
    %v1233 = vadd.s32 %v1213, 160
    %v1234 = vadd.s32 %v1213, 168
    %v1235 = vadd.s32 %v1213, 176
    %v1236 = vadd.s32 %v1213, 184
    %v1237 = vadd.s32 %v1213, 192
    %v1238 = vadd.s32 %v1213, 200
    %v1239 = vadd.s32 %v1213, 208
    %v1240 = vadd.s32 %v1213, 216
    %v1241 = vadd.s32 %v1213, 224
    %v1242 = vadd.s32 %v1213, 232
    %v1243 = vadd.s32 %v1213, 240
    %v1244 = vadd.s32 %v1213, 248
    %v1245 = vstv %s15
    %v1246 = vadd.s32 %v1213, %v1245
    %v1247 = vadd.s32 %v1214, %v1245
    %v1248 = vadd.s32 %v1215, %v1245
    %v1249 = vadd.s32 %v1216, %v1245
    %v1250 = vadd.s32 %v1217, %v1245
    %v1251 = vadd.s32 %v1218, %v1245
    %v1252 = vadd.s32 %v1219, %v1245
    %v1253 = vadd.s32 %v1220, %v1245
    %v1254 = vadd.s32 %v1221, %v1245
    %v1255 = vadd.s32 %v1222, %v1245
    %v1256 = vadd.s32 %v1223, %v1245
    %v1257 = vadd.s32 %v1224, %v1245
    %v1258 = vadd.s32 %v1225, %v1245
    %v1259 = vadd.s32 %v1226, %v1245
    %v1260 = vadd.s32 %v1227, %v1245
    %v1261 = vadd.s32 %v1228, %v1245
    %v1262 = vadd.s32 %v1229, %v1245
    %v1263 = vadd.s32 %v1230, %v1245
    %v1264 = vadd.s32 %v1231, %v1245
    %v1265 = vadd.s32 %v1232, %v1245
    %v1266 = vadd.s32 %v1233, %v1245
    %v1267 = vadd.s32 %v1234, %v1245
    %v1268 = vadd.s32 %v1235, %v1245
    %v1269 = vadd.s32 %v1236, %v1245
    %v1270 = vadd.s32 %v1237, %v1245
    %v1271 = vadd.s32 %v1238, %v1245
    %v1272 = vadd.s32 %v1239, %v1245
    %v1273 = vadd.s32 %v1240, %v1245
    %v1274 = vadd.s32 %v1241, %v1245
    %v1275 = vadd.s32 %v1242, %v1245
    %v1276 = vadd.s32 %v1243, %v1245
    %v1277 = vadd.s32 %v1244, %v1245
    %v1278 = vstv %s16
    %vm1279 = vcmp.lt.s32.totalorder %v1246, %v1278
    %vm1280 = vcmp.lt.s32.totalorder %v1247, %v1278
    %vm1281 = vcmp.lt.s32.totalorder %v1248, %v1278
    %vm1282 = vcmp.lt.s32.totalorder %v1249, %v1278
    %vm1283 = vcmp.lt.s32.totalorder %v1250, %v1278
    %vm1284 = vcmp.lt.s32.totalorder %v1251, %v1278
    %vm1285 = vcmp.lt.s32.totalorder %v1252, %v1278
    %vm1286 = vcmp.lt.s32.totalorder %v1253, %v1278
    %vm1287 = vcmp.lt.s32.totalorder %v1254, %v1278
    %vm1288 = vcmp.lt.s32.totalorder %v1255, %v1278
    %vm1289 = vcmp.lt.s32.totalorder %v1256, %v1278
    %vm1290 = vcmp.lt.s32.totalorder %v1257, %v1278
    %vm1291 = vcmp.lt.s32.totalorder %v1258, %v1278
    %vm1292 = vcmp.lt.s32.totalorder %v1259, %v1278
    %vm1293 = vcmp.lt.s32.totalorder %v1260, %v1278
    %vm1294 = vcmp.lt.s32.totalorder %v1261, %v1278
    %vm1295 = vcmp.lt.s32.totalorder %v1262, %v1278
    %vm1296 = vcmp.lt.s32.totalorder %v1263, %v1278
    %vm1297 = vcmp.lt.s32.totalorder %v1264, %v1278
    %vm1298 = vcmp.lt.s32.totalorder %v1265, %v1278
    %vm1299 = vcmp.lt.s32.totalorder %v1266, %v1278
    %vm1300 = vcmp.lt.s32.totalorder %v1267, %v1278
    %vm1301 = vcmp.lt.s32.totalorder %v1268, %v1278
    %vm1302 = vcmp.lt.s32.totalorder %v1269, %v1278
    %vm1303 = vcmp.lt.s32.totalorder %v1270, %v1278
    %vm1304 = vcmp.lt.s32.totalorder %v1271, %v1278
    %vm1305 = vcmp.lt.s32.totalorder %v1272, %v1278
    %vm1306 = vcmp.lt.s32.totalorder %v1273, %v1278
    %vm1307 = vcmp.lt.s32.totalorder %v1274, %v1278
    %vm1308 = vcmp.lt.s32.totalorder %v1275, %v1278
    %vm1309 = vcmp.lt.s32.totalorder %v1276, %v1278
    %vm1310 = vcmp.lt.s32.totalorder %v1277, %v1278
    %v1311 = vsel %vm1279, 1, 0
    %v1312 = vsel %vm1280, 1, 0
    %v1313 = vsel %vm1281, 1, 0
    %v1314 = vsel %vm1282, 1, 0
    %v1315 = vsel %vm1283, 1, 0
    %v1316 = vsel %vm1284, 1, 0
    %v1317 = vsel %vm1285, 1, 0
    %v1318 = vsel %vm1286, 1, 0
    %v1319 = vsel %vm1287, 1, 0
    %v1320 = vsel %vm1288, 1, 0
    %v1321 = vsel %vm1289, 1, 0
    %v1322 = vsel %vm1290, 1, 0
    %v1323 = vsel %vm1291, 1, 0
    %v1324 = vsel %vm1292, 1, 0
    %v1325 = vsel %vm1293, 1, 0
    %v1326 = vsel %vm1294, 1, 0
    %v1327 = vsel %vm1295, 1, 0
    %v1328 = vsel %vm1296, 1, 0
    %v1329 = vsel %vm1297, 1, 0
    %v1330 = vsel %vm1298, 1, 0
    %v1331 = vsel %vm1299, 1, 0
    %v1332 = vsel %vm1300, 1, 0
    %v1333 = vsel %vm1301, 1, 0
    %v1334 = vsel %vm1302, 1, 0
    %v1335 = vsel %vm1303, 1, 0
    %v1336 = vsel %vm1304, 1, 0
    %v1337 = vsel %vm1305, 1, 0
    %v1338 = vsel %vm1306, 1, 0
    %v1339 = vsel %vm1307, 1, 0
    %v1340 = vsel %vm1308, 1, 0
    %v1341 = vsel %vm1309, 1, 0
    %v1342 = vsel %vm1310, 1, 0
    %vm1343 = vcmp.eq.s32.totalorder %v1311, 1
    %vm1344 = vcmp.eq.s32.totalorder %v1312, 1
    %vm1345 = vcmp.eq.s32.totalorder %v1313, 1
    %vm1346 = vcmp.eq.s32.totalorder %v1314, 1
    %vm1347 = vcmp.eq.s32.totalorder %v1315, 1
    %vm1348 = vcmp.eq.s32.totalorder %v1316, 1
    %vm1349 = vcmp.eq.s32.totalorder %v1317, 1
    %vm1350 = vcmp.eq.s32.totalorder %v1318, 1
    %vm1351 = vcmp.eq.s32.totalorder %v1319, 1
    %vm1352 = vcmp.eq.s32.totalorder %v1320, 1
    %vm1353 = vcmp.eq.s32.totalorder %v1321, 1
    %vm1354 = vcmp.eq.s32.totalorder %v1322, 1
    %vm1355 = vcmp.eq.s32.totalorder %v1323, 1
    %vm1356 = vcmp.eq.s32.totalorder %v1324, 1
    %vm1357 = vcmp.eq.s32.totalorder %v1325, 1
    %vm1358 = vcmp.eq.s32.totalorder %v1326, 1
    %vm1359 = vcmp.eq.s32.totalorder %v1327, 1
    %vm1360 = vcmp.eq.s32.totalorder %v1328, 1
    %vm1361 = vcmp.eq.s32.totalorder %v1329, 1
    %vm1362 = vcmp.eq.s32.totalorder %v1330, 1
    %vm1363 = vcmp.eq.s32.totalorder %v1331, 1
    %vm1364 = vcmp.eq.s32.totalorder %v1332, 1
    %vm1365 = vcmp.eq.s32.totalorder %v1333, 1
    %vm1366 = vcmp.eq.s32.totalorder %v1334, 1
    %vm1367 = vcmp.eq.s32.totalorder %v1335, 1
    %vm1368 = vcmp.eq.s32.totalorder %v1336, 1
    %vm1369 = vcmp.eq.s32.totalorder %v1337, 1
    %vm1370 = vcmp.eq.s32.totalorder %v1338, 1
    %vm1371 = vcmp.eq.s32.totalorder %v1339, 1
    %vm1372 = vcmp.eq.s32.totalorder %v1340, 1
    %vm1373 = vcmp.eq.s32.totalorder %v1341, 1
    %vm1374 = vcmp.eq.s32.totalorder %v1342, 1
    %v1375 = vsel %vm1343, %v1148, inf
    %v1376 = vsel %vm1343, %v1149, inf
    %v1377 = vsel %vm1344, %v1150, inf
    %v1378 = vsel %vm1344, %v1151, inf
    %v1379 = vsel %vm1345, %v1152, inf
    %v1380 = vsel %vm1345, %v1153, inf
    %v1381 = vsel %vm1346, %v1154, inf
    %v1382 = vsel %vm1346, %v1155, inf
    %v1383 = vsel %vm1347, %v1156, inf
    %v1384 = vsel %vm1347, %v1157, inf
    %v1385 = vsel %vm1348, %v1158, inf
    %v1386 = vsel %vm1348, %v1159, inf
    %v1387 = vsel %vm1349, %v1160, inf
    %v1388 = vsel %vm1349, %v1161, inf
    %v1389 = vsel %vm1350, %v1162, inf
    %v1390 = vsel %vm1350, %v1163, inf
    %v1391 = vsel %vm1351, %v1164, inf
    %v1392 = vsel %vm1351, %v1165, inf
    %v1393 = vsel %vm1352, %v1166, inf
    %v1394 = vsel %vm1352, %v1167, inf
    %v1395 = vsel %vm1353, %v1168, inf
    %v1396 = vsel %vm1353, %v1169, inf
    %v1397 = vsel %vm1354, %v1170, inf
    %v1398 = vsel %vm1354, %v1171, inf
    %v1399 = vsel %vm1355, %v1172, inf
    %v1400 = vsel %vm1355, %v1173, inf
    %v1401 = vsel %vm1356, %v1174, inf
    %v1402 = vsel %vm1356, %v1175, inf
    %v1403 = vsel %vm1357, %v1176, inf
    %v1404 = vsel %vm1357, %v1177, inf
    %v1405 = vsel %vm1358, %v1178, inf
    %v1406 = vsel %vm1358, %v1179, inf
    %v1407 = vsel %vm1359, %v1180, inf
    %v1408 = vsel %vm1359, %v1181, inf
    %v1409 = vsel %vm1360, %v1182, inf
    %v1410 = vsel %vm1360, %v1183, inf
    %v1411 = vsel %vm1361, %v1184, inf
    %v1412 = vsel %vm1361, %v1185, inf
    %v1413 = vsel %vm1362, %v1186, inf
    %v1414 = vsel %vm1362, %v1187, inf
    %v1415 = vsel %vm1363, %v1188, inf
    %v1416 = vsel %vm1363, %v1189, inf
    %v1417 = vsel %vm1364, %v1190, inf
    %v1418 = vsel %vm1364, %v1191, inf
    %v1419 = vsel %vm1365, %v1192, inf
    %v1420 = vsel %vm1365, %v1193, inf
    %v1421 = vsel %vm1366, %v1194, inf
    %v1422 = vsel %vm1366, %v1195, inf
    %v1423 = vsel %vm1367, %v1196, inf
    %v1424 = vsel %vm1367, %v1197, inf
    %v1425 = vsel %vm1368, %v1198, inf
    %v1426 = vsel %vm1368, %v1199, inf
    %v1427 = vsel %vm1369, %v1200, inf
    %v1428 = vsel %vm1369, %v1201, inf
    %v1429 = vsel %vm1370, %v1202, inf
    %v1430 = vsel %vm1370, %v1203, inf
    %v1431 = vsel %vm1371, %v1204, inf
    %v1432 = vsel %vm1371, %v1205, inf
    %v1433 = vsel %vm1372, %v1206, inf
    %v1434 = vsel %vm1372, %v1207, inf
    %v1435 = vsel %vm1373, %v1208, inf
    %v1436 = vsel %vm1373, %v1209, inf
    %v1437 = vsel %vm1374, %v1210, inf
    %v1438 = vsel %vm1374, %v1211, inf
    %v1439 = vld [vmem:[#allocation2] sm:$0x3]
    %v1440 = vmin.f32 %v1375, %v1379
    %v1441 = vmin.f32 %v1377, %v1381
    %v1442 = vmin.f32 %v1440, %v1383
    %v1443 = vmin.f32 %v1441, %v1385
    %v1444 = vmin.f32 %v1442, %v1387
    %v1445 = vmin.f32 %v1443, %v1389
    %v1446 = vmin.f32 %v1444, %v1391
    %v1447 = vmin.f32 %v1445, %v1393
    %v1448 = vmin.f32 %v1446, %v1395
    %v1449 = vmin.f32 %v1447, %v1397
    %v1450 = vmin.f32 %v1448, %v1399
    %v1451 = vmin.f32 %v1449, %v1401
    %v1452 = vmin.f32 %v1450, %v1403
    %v1453 = vmin.f32 %v1451, %v1405
    %v1454 = vmin.f32 %v1452, %v1407
    %v1455 = vmin.f32 %v1453, %v1409
    %v1456 = vmin.f32 %v1454, %v1411
    %v1457 = vmin.f32 %v1455, %v1413
    %v1458 = vmin.f32 %v1456, %v1415
    %v1459 = vmin.f32 %v1457, %v1417
    %v1460 = vmin.f32 %v1458, %v1419
    %v1461 = vmin.f32 %v1459, %v1421
    %v1462 = vmin.f32 %v1460, %v1423
    %v1463 = vmin.f32 %v1461, %v1425
    %v1464 = vmin.f32 %v1462, %v1427
    %v1465 = vmin.f32 %v1463, %v1429
    %v1466 = vmin.f32 %v1464, %v1431
    %v1467 = vmin.f32 %v1465, %v1433
    %v1468 = vmin.f32 %v1466, %v1435
    %v1469 = vmin.f32 %v1467, %v1437
    %v1470 = vmin.f32 %v1468, %v1469
    %v1471 = vrot.slane %v1470, 4
    %v1472 = vmin.f32 %v1470, %v1471
    %v1473 = vrot.slane %v1472, 2
    %v1474 = vmin.f32 %v1472, %v1473
    %v1475 = vrot.slane %v1474, 1
    %v1476 = vmin.f32 %v1474, %v1475
    %v1477 = vmin.f32 %v1376, %v1380
    %v1478 = vmin.f32 %v1378, %v1382
    %v1479 = vmin.f32 %v1477, %v1384
    %v1480 = vmin.f32 %v1478, %v1386
    %v1481 = vmin.f32 %v1479, %v1388
    %v1482 = vmin.f32 %v1480, %v1390
    %v1483 = vmin.f32 %v1481, %v1392
    %v1484 = vmin.f32 %v1482, %v1394
    %v1485 = vmin.f32 %v1483, %v1396
    %v1486 = vmin.f32 %v1484, %v1398
    %v1487 = vmin.f32 %v1485, %v1400
    %v1488 = vmin.f32 %v1486, %v1402
    %v1489 = vmin.f32 %v1487, %v1404
    %v1490 = vmin.f32 %v1488, %v1406
    %v1491 = vmin.f32 %v1489, %v1408
    %v1492 = vmin.f32 %v1490, %v1410
    %v1493 = vmin.f32 %v1491, %v1412
    %v1494 = vmin.f32 %v1492, %v1414
    %v1495 = vmin.f32 %v1493, %v1416
    %v1496 = vmin.f32 %v1494, %v1418
    %v1497 = vmin.f32 %v1495, %v1420
    %v1498 = vmin.f32 %v1496, %v1422
    %v1499 = vmin.f32 %v1497, %v1424
    %v1500 = vmin.f32 %v1498, %v1426
    %v1501 = vmin.f32 %v1499, %v1428
    %v1502 = vmin.f32 %v1500, %v1430
    %v1503 = vmin.f32 %v1501, %v1432
    %v1504 = vmin.f32 %v1502, %v1434
    %v1505 = vmin.f32 %v1503, %v1436
    %v1506 = vmin.f32 %v1504, %v1438
    %v1507 = vmin.f32 %v1505, %v1506
    %v1508 = vrot.slane %v1507, 4
    %v1509 = vmin.f32 %v1507, %v1508
    %v1510 = vrot.slane %v1509, 2
    %v1511 = vmin.f32 %v1509, %v1510
    %v1512 = vrot.slane %v1511, 1
    %v1513 = vmin.f32 %v1511, %v1512
    %v1516 = vcombine.low %v1476, %v1513
    %v1518 = vunpack.c.l.s4 1966171168
    %v1519 = vunpack.c.0.s8 %v1518
    %v1520 = vlaneseq
    %v1521 = vshrl.u32 %v1520, 7
    %v1522 = vsub.s32 %v1519, %v1521
    %v1523 = vrot.slane %v1516, %v1522
    %v1525 = vunpack.c.l.s4 1966171168
    %v1526 = vunpack.c.0.s8 %v1525
    %v1527 = vlaneseq
    %v1528 = vshrl.u32 %v1527, 7
    %v1529 = vsub.s32 %v1526, %v1528
    %v1530 = vrot.slane %v1523, %v1529
    %v1532 = vmin.f32 %v1439, %v1530
    %v1533 = vlaneseq
    %vm1534 = vcmp.ge.s32.totalorder %v1533, 0
    %vm1535 = vcmp.lt.s32.totalorder %v1533, 256
    %vm1536 = vmand %vm1534, %vm1535
    %1537 = vst.msk [vmem:[#allocation2] sm:$0x3] %vm1536, %v1532
  $region21: #{active_boundary_loss.4} parent=0 // pred_fallthru
    _
  // Predicated region
  $region22: #{active_boundary_loss.4} parent=0 // pred_check
    %p1538 = pneg %p17
  $region23: #{active_boundary_loss.4} parent=0 // pred_check_branch
    %1540 = sbr.rel (%p1538) target = $region25
  $region24: #{active_boundary_loss.4} parent=0 // pred_region
    %v1541 = vld [vmem:[#allocation2] sm:$0x3]
    %v1542 = vrsqrt.pop %v1541
    %v1543 = vmul.f32 %v1541, %v1542
    %vm1544 = vcmp.eq.f32.partialorder %v1541, inf
    %v1545 = vsel %vm1544, %v1541, %v1543
    %vm1546 = vcmp.eq.f32.partialorder %v1541, 0.0
    %v1547 = vand.u32 %v1541, 2147483648
    %v1548 = vsel %vm1546, %v1547, %v1545
    %v1549 = vlaneseq
    %vm1550 = vcmp.ge.s32.totalorder %v1549, 0
    %vm1551 = vcmp.lt.s32.totalorder %v1549, 256
    %vm1552 = vmand %vm1550, %vm1551
    %1553 = vst.msk [vmem:[%s3] sm:$0x3] %vm1552, %v1548
  $region25: #{active_boundary_loss.4} parent=0 // pred_fallthru
    _
  // Predicated region
  $region26: #{active_boundary_loss.4} parent=0 // pred_check
    _
  $region27: #{active_boundary_loss.4} parent=0 // pred_check_branch
    %1555 = sbr.rel (0) target = $region29
  $region28: #{active_boundary_loss.4} parent=0 // pred_region
    _
  $region29: #{active_boundary_loss.4} parent=0 // pred_fallthru
    _
  // Predicated region
  $region30: #{active_boundary_loss.4} parent=0 // pred_check
    _
  $region31: #{active_boundary_loss.4} parent=0 // pred_check_branch
    %1557 = sbr.rel (0) target = $region33
  $region32: #{active_boundary_loss.4} parent=0 // pred_region
    _
  $region33: #{active_boundary_loss.4} parent=0 // pred_fallthru
    _

// kernel: active_boundary_loss.5
$region0: #{active_boundary_loss.5}
  #allocation0 [shape = 'u32[]', space=smem, size = 0x4, offset = 0x4, fixed_abs, tag = 'smem constant byte address 0x4 - core index']
  #allocation1 [shape = 'u32[144,128]{1,0:T(1,128)}', space=vmem, size = 0x12000, scoped, tag = 'internal scratch']
  #allocation2 [shape = 'f32[4,512]{1,0:T(4,128)}', space=vmem, size = 0x2000, scoped, tag = 'scratch operand']
  #allocation3 [shape = 'f32[1,512]{1,0:T(1,128)}', space=vmem, size = 0x800, scoped, tag = 'scratch operand']
  #allocation4 [shape = 'f32[32,256]{1,0:T(8,128)}', space=vmem, size = 0x8000, scoped, tag = 'scratch operand']
  #allocation5 [shape = 's32[2]{0}', space=sflag, size = 0x8, scoped, tag = 'scratch operand']
  #allocation6 [shape = 's32[]', space=sflag, size = 0x4, offset = 0, fixed_abs, tag = 'sflag constant byte address 0x0 - dummy sync flag']
  #allocation7 [shape = 's32[]', space=sflag, size = 0x4, offset = 0, fixed_abs, tag = 'sflag constant byte address 0x0 - dummy sync flag']
  %s0 = inlined_call_operand.vmem [shape: f32[8,256], index: 0, kind: input, shape index: {}]
  %s1 = inlined_call_operand.vmem [shape: f32[1,256], index: 1, kind: input, shape index: {}]
  %s2 = inlined_call_operand.vmem [shape: f32[4,512], index: 2, kind: input, shape index: {}]
  %s3 = inlined_call_operand.vmem [shape: f32[1,512], index: 3, kind: input, shape index: {}]
  %s4 = inlined_call_operand.vmem [shape: f32[1,256], index: 4, kind: output, shape index: {}]
  %s5 = sld [smem:[#allocation0]]
  $region82: #{active_boundary_loss.5} parent=0
    _
  %s7 = ssub.s32 1, %s5
  %s8 = scalar_select 0, %s7, %s5
  // Predicated region
  $region2: #{active_boundary_loss.5} parent=0 // pred_check
    _
  $region3: #{active_boundary_loss.5} parent=0 // pred_check_branch
    %10 = sbr.rel (0) target = $region5
  $region4: #{active_boundary_loss.5} parent=0 // pred_region
    _
  $region5: #{active_boundary_loss.5} parent=0 // pred_fallthru
    _
  // Predicated region
  $region6: #{active_boundary_loss.5} parent=0 // pred_check
    _
  $region7: #{active_boundary_loss.5} parent=0 // pred_check_branch
    %12 = sbr.rel (0) target = $region9
  $region8: #{active_boundary_loss.5} parent=0 // pred_region
    _
  $region9: #{active_boundary_loss.5} parent=0 // pred_fallthru
    _
  %s13 = smul.u32 0, 256
  %s14 = sshra.s32 %s13, 7
  %s15 = sand.u32 %s13, 127
  %s16 = smul.addr %s14, 4
  %s17 = scalar_lea.vmem %s2, %s16
  %p19 = scmp.lt.u32.totalorder 16, 8
  %p20 = pneg %p19
  // Predicated region
  $region10: #{active_boundary_loss.5} parent=0 // pred_check
    _
  $region11: #{active_boundary_loss.5} parent=0 // pred_check_branch
    %22 = sbr.rel (%p19) target = $region13
  $region12: #{active_boundary_loss.5} parent=0 // pred_region
    %s37 = sand.u32 16, 7
    %p38 = scmp.eq.s32.totalorder %s37, 0
    // Predicated region
    $region25: #{active_boundary_loss.5} parent=12 // pred_check
      %p39 = pneg %p38
    $region26: #{active_boundary_loss.5} parent=12 // pred_check_branch
      %41 = sbr.rel (%p39) target = $region28
    $region27: #{active_boundary_loss.5} parent=12 // pred_region
      loop: start=0, step=1, limit=1
      $region29: #{active_boundary_loss.5} parent=27 // loop_pre_header
        _
      $region30: #{active_boundary_loss.5} parent=27 // loop_header
        %s43 = sphi 0, %s47
        %p44 = scmp.ge.s32.totalorder %s43, 1
        %s48 = sphi %s17, %s17
        %s49 = sphi [#allocation2], [#allocation2]
      $region31: #{active_boundary_loss.5} parent=27 // loop_header_branch
        %46 = sbr.rel (%p44) target = $region35
      $region32: #{active_boundary_loss.5} parent=27 // loop_body
        %v50 = vld [vmem:[%s48] sm:$0xff]
        %51 = vst [vmem:[%s49] sm:$0xff] %v50
        %v52 = vld [vmem:[%s48 + $0x8] sm:$0xff]
        %53 = vst [vmem:[%s49 + $0x8] sm:$0xff] %v52
      $region33: #{active_boundary_loss.5} parent=27 // loop_footer
        %s47 = sadd.s32 1, %s43
      $region34: #{active_boundary_loss.5} parent=27 // loop_footer_branch
        %42 = sbr.rel target = $region30
      $region35: #{active_boundary_loss.5} parent=27 // loop_exit
        _
    $region28: #{active_boundary_loss.5} parent=12 // pred_fallthru
      _
    %p54 = pneg %p38
    // Predicated region
    $region36: #{active_boundary_loss.5} parent=12 // pred_check
      _
    $region37: #{active_boundary_loss.5} parent=12 // pred_check_branch
      %56 = sbr.rel (%p38) target = $region39
    $region38: #{active_boundary_loss.5} parent=12 // pred_region
      %s57 = sand.u32 16, 7
    $region39: #{active_boundary_loss.5} parent=12 // pred_fallthru
      _
  $region13: #{active_boundary_loss.5} parent=0 // pred_fallthru
    _
  // Predicated region
  $region14: #{active_boundary_loss.5} parent=0 // pred_check
    %p23 = pneg %p19
  $region15: #{active_boundary_loss.5} parent=0 // pred_check_branch
    %25 = sbr.rel (%p23) target = $region17
  $region16: #{active_boundary_loss.5} parent=0 // pred_region
    %s26 = sshllo.u32 0, 16
    loop: start=0, step=1, limit=1
    $region18: #{active_boundary_loss.5} parent=16 // loop_pre_header
      _
    $region19: #{active_boundary_loss.5} parent=16 // loop_header
      %s28 = sphi 0, %s32
      %p29 = scmp.ge.s32.totalorder %s28, 1
      %s33 = sphi %s17, %s17
      %s34 = sphi [#allocation2], [#allocation2]
    $region20: #{active_boundary_loss.5} parent=16 // loop_header_branch
      %31 = sbr.rel (%p29) target = $region24
    $region21: #{active_boundary_loss.5} parent=16 // loop_body
      %v35 = vld [vmem:[%s33] sm:%s26]
      %36 = vst [vmem:[%s34] sm:%s26] %v35
    $region22: #{active_boundary_loss.5} parent=16 // loop_footer
      %s32 = sadd.s32 1, %s28
    $region23: #{active_boundary_loss.5} parent=16 // loop_footer_branch
      %27 = sbr.rel target = $region19
    $region24: #{active_boundary_loss.5} parent=16 // loop_exit
      _
  $region17: #{active_boundary_loss.5} parent=0 // pred_fallthru
    _
  // Predicated region
  $region40: #{active_boundary_loss.5} parent=0 // pred_check
    _
  $region41: #{active_boundary_loss.5} parent=0 // pred_check_branch
    %60 = sbr.rel (0) target = $region43
  $region42: #{active_boundary_loss.5} parent=0 // pred_region
    %61 = vsyncadd [#allocation5], 256
  $region43: #{active_boundary_loss.5} parent=0 // pred_fallthru
    _
  %s62 = scalar_lea.vmem %s3, %s14
  %s63 = scalar_lea.sflag [#allocation5], 1
  %p65 = scmp.lt.u32.totalorder 4, 8
  %p66 = pneg %p65
  // Predicated region
  $region44: #{active_boundary_loss.5} parent=0 // pred_check
    _
  $region45: #{active_boundary_loss.5} parent=0 // pred_check_branch
    %68 = sbr.rel (%p65) target = $region47
  $region46: #{active_boundary_loss.5} parent=0 // pred_region
    %s83 = sand.u32 4, 7
    %p84 = scmp.eq.s32.totalorder %s83, 0
    %p85 = pneg %p84
    // Predicated region
    $region59: #{active_boundary_loss.5} parent=46 // pred_check
      _
    $region60: #{active_boundary_loss.5} parent=46 // pred_check_branch
      %87 = sbr.rel (%p84) target = $region62
    $region61: #{active_boundary_loss.5} parent=46 // pred_region
      %s88 = sand.u32 4, 7
      %s89 = ssub.s32 4, %s88
      %s90 = scalar_lea.vmem %s62, %s89
      %s91 = ssub.s32 4, %s88
      %s92 = scalar_lea.vmem [#allocation3], %s91
      %s93 = sshllo.u32 0, %s88
      loop: start=0, step=1, limit=1
      $region63: #{active_boundary_loss.5} parent=61 // loop_pre_header
        _
      $region64: #{active_boundary_loss.5} parent=61 // loop_header
        %s95 = sphi 0, %s99
        %p96 = scmp.ge.s32.totalorder %s95, 1
        %s100 = sphi %s90, %s90
        %s101 = sphi %s92, %s92
      $region65: #{active_boundary_loss.5} parent=61 // loop_header_branch
        %98 = sbr.rel (%p96) target = $region69
      $region66: #{active_boundary_loss.5} parent=61 // loop_body
        %v102 = vld [vmem:[%s100] sm:%s93]
        %103 = vst [vmem:[%s101] sm:%s93] %v102
      $region67: #{active_boundary_loss.5} parent=61 // loop_footer
        %s99 = sadd.s32 1, %s95
      $region68: #{active_boundary_loss.5} parent=61 // loop_footer_branch
        %94 = sbr.rel target = $region64
      $region69: #{active_boundary_loss.5} parent=61 // loop_exit
        _
    $region62: #{active_boundary_loss.5} parent=46 // pred_fallthru
      _
  $region47: #{active_boundary_loss.5} parent=0 // pred_fallthru
    _
  // Predicated region
  $region48: #{active_boundary_loss.5} parent=0 // pred_check
    %p69 = pneg %p65
  $region49: #{active_boundary_loss.5} parent=0 // pred_check_branch
    %71 = sbr.rel (%p69) target = $region51
  $region50: #{active_boundary_loss.5} parent=0 // pred_region
    %s72 = sshllo.u32 0, 4
    loop: start=0, step=1, limit=1
    $region52: #{active_boundary_loss.5} parent=50 // loop_pre_header
      _
    $region53: #{active_boundary_loss.5} parent=50 // loop_header
      %s74 = sphi 0, %s78
      %p75 = scmp.ge.s32.totalorder %s74, 1
      %s79 = sphi %s62, %s62
      %s80 = sphi [#allocation3], [#allocation3]
    $region54: #{active_boundary_loss.5} parent=50 // loop_header_branch
      %77 = sbr.rel (%p75) target = $region58
    $region55: #{active_boundary_loss.5} parent=50 // loop_body
      %v81 = vld [vmem:[%s79] sm:%s72]
      %82 = vst [vmem:[%s80] sm:%s72] %v81
    $region56: #{active_boundary_loss.5} parent=50 // loop_footer
      %s78 = sadd.s32 1, %s74
    $region57: #{active_boundary_loss.5} parent=50 // loop_footer_branch
      %73 = sbr.rel target = $region53
    $region58: #{active_boundary_loss.5} parent=50 // loop_exit
      _
  $region51: #{active_boundary_loss.5} parent=0 // pred_fallthru
    _
  // Predicated region
  $region70: #{active_boundary_loss.5} parent=0 // pred_check
    _
  $region71: #{active_boundary_loss.5} parent=0 // pred_check_branch
    %106 = sbr.rel (0) target = $region73
  $region72: #{active_boundary_loss.5} parent=0 // pred_region
    %107 = vsyncadd %s63, 64
  $region73: #{active_boundary_loss.5} parent=0 // pred_fallthru
    _
  %s108 = smul.u32 4, 1
  %s109 = smul.u32 %s108, 4
  %s110 = sshll.u32 %s109, 4
  %111 = dma.done [#allocation5], %s110
  %s112 = smul.u32 1, 4
  %s113 = sshll.u32 %s112, 4
  %114 = dma.done %s63, %s113
  %v115 = vld [vmem:[#allocation2 + $0x4] sm:$0xff]
  %v116 = vld [vmem:[#allocation3 + $0x1] sm:$0x3]
  %v117 = vld [vmem:[%s0] ss:$8 sm:$0x3]
  %s118 = scalar_lea.vmem %s0, 1
  %v119 = vld [vmem:[%s118] ss:$8 sm:$0x3]
  %s120 = scalar_lea.vmem %s0, 2
  %v121 = vld [vmem:[%s120] ss:$8 sm:$0x3]
  %s122 = scalar_lea.vmem %s0, 3
  %v123 = vld [vmem:[%s122] ss:$8 sm:$0x3]
  %v124 = vld [vmem:[#allocation2] sm:$0xff]
  %v125 = vld [vmem:[#allocation2 + $0x8] sm:$0xf]
  %vm126 = vcmp.gt.f32.partialorder %v124, 0.0
  %vm127 = vcmp.gt.f32.partialorder %v125, 0.0
  %v128 = vlog2.pop %v124
  %v129 = vmul.f32 %v128, 0.6931472
  %v130 = vlog2.pop %v125
  %v131 = vmul.f32 %v130, 0.6931472
  %133 = vrot.lane.b32.xlu0 %v115, 55
  %v134 = vpop.permute.xlu0 %133
  %v135 = vrot.slane %v134, 4
  %vm136 = vcmask 449536
  %v137 = vsel %vm136, %v135, %v134
  %v140 = vsub.f32 %v129, %v137
  %v141 = vsub.f32 %v131, %v135
  %v142 = vmul.f32 %v124, %v140
  %v143 = vmul.f32 %v125, %v141
  %v144 = vsel %vm126, %v142, 0.0
  %v145 = vsel %vm127, %v143, 0.0
  %v147 = vcombine.high %v144, %v144
  %vm149 = vcmask 1043896
  %v150 = vsel %vm149, %v144, 0.0
  %v151 = vrot.slane %v150, 4
  %v152 = vadd.f32 %v150, %v151
  %v153 = vrot.slane %v152, 2
  %v154 = vadd.f32 %v152, %v153
  %v155 = vrot.slane %v154, 1
  %v156 = vadd.f32 %v154, %v155
  %vm157 = vcmask 1043456
  %v158 = vsel %vm157, %v147, 0.0
  %v159 = vrot.slane %v158, 4
  %v160 = vadd.f32 %v158, %v159
  %v161 = vrot.slane %v160, 2
  %v162 = vadd.f32 %v160, %v161
  %v163 = vrot.slane %v162, 1
  %v164 = vadd.f32 %v162, %v163
  %vm165 = vcmask 445440
  %v166 = vsel %vm165, %v145, 0.0
  %v167 = vrot.slane %v166, 4
  %v168 = vadd.f32 %v166, %v167
  %v169 = vrot.slane %v168, 2
  %v170 = vadd.f32 %v168, %v169
  %v171 = vrot.slane %v170, 1
  %v172 = vadd.f32 %v170, %v171
  %v173 = vrcp.pop 4.0
  %v174 = vmul.f32 %v156, %v173
  %v175 = vmul.f32 %v164, %v173
  %v176 = vmul.f32 %v172, %v173
  %vm177 = vcmp.gt.f32.partialorder %v117, 0.0
  %vm178 = vcmp.gt.f32.partialorder %v119, 0.0
  %vm179 = vmand %vm177, %vm178
  %vm180 = vcmp.gt.f32.partialorder %v121, 0.0
  %vm181 = vmand %vm179, %vm180
  %v185 = vcombine.low %v174, %v175
  %v187 = vunpack.c.l.s4 1966171168
  %v188 = vunpack.c.0.s8 %v187
  %v189 = vlaneseq
  %v190 = vshrl.u32 %v189, 7
  %v191 = vsub.s32 %v188, %v190
  %v192 = vrot.slane %v185, %v191
  %v194 = vunpack.c.l.s4 1966171168
  %v195 = vunpack.c.0.s8 %v194
  %v196 = vlaneseq
  %v197 = vshrl.u32 %v196, 7
  %v198 = vsub.s32 %v195, %v197
  %v199 = vrot.slane %v176, %v198
  %v200 = vcombine.low %v192, %v199
  %v202 = vunpack.c.l.s4 1966171168
  %v203 = vunpack.c.0.s8 %v202
  %v204 = vlaneseq
  %v205 = vshrl.u32 %v204, 7
  %v206 = vsub.s32 %v203, %v205
  %v207 = vrot.slane %v200, %v206
  %208 = vrot.lane.b32.xlu0 %v207, 73
  %v209 = vpop.permute.xlu0 %208
  %v210 = vrot.slane %v209, 1
  %vm211 = vcmask 596992
  %v212 = vsel %vm211, %v209, %v210
  %v214 = vsel %vm181, %v212, 0.0
  %v215 = vmul.f32 %v214, 1.442695
  %v216 = vpow.pop %v215
  %vm217 = vcmp.eq.f32.partialorder %v123, 0.0
  %v218 = vsel %vm217, %v216, 0.0
  %vm219 = vcmp.eq.f32.partialorder %v117, 0.0
  %v220 = vsel %vm219, %v218, 0.0
  %vm221 = vcmp.eq.f32.partialorder %v119, 0.0
  %v222 = vsel %vm221, %v220, 0.0
  %v223 = vlaneseq
  %vm224 = vcmp.ge.s32.totalorder %v223, 0
  %vm225 = vcmp.lt.s32.totalorder %v223, 256
  %vm226 = vmand %vm224, %vm225
  %227 = vst.msk [vmem:[#allocation4] ss:$8 sm:$0x3] %vm226, %v222
  %228 = vst.msk [vmem:[#allocation4] ss:$8 sm:$0x0] %vm226, %v222
  %v229 = vadd.f32 %v222, 0.0
  %v230 = vld [vmem:[#allocation3] sm:$0x7]
  %232 = vrot.lane.b32.xlu0 %v230, 73
  %v233 = vpop.permute.xlu0 %232
  %v234 = vrot.slane %v233, 1
  %v235 = vsel %vm211, %v233, %v234
  %v237 = vsel %vm181, %v235, 0.0
  %v238 = vld [vmem:[#allocation2] sm:$0xff]
  %v239 = vld [vmem:[#allocation2 + $0x8] sm:$0xf]
  %vm240 = vcmp.gt.f32.partialorder %v238, 0.0
  %vm241 = vcmp.gt.f32.partialorder %v239, 0.0
  %v242 = vlog2.pop %v238
  %v243 = vmul.f32 %v242, 0.6931472
  %v244 = vlog2.pop %v239
  %v245 = vmul.f32 %v244, 0.6931472
  %246 = vrot.lane.b32.xlu0 %v115, 56
  %v247 = vpop.permute.xlu0 %246
  %v248 = vrot.slane %v247, 4
  %vm249 = vcmask 457728
  %v250 = vsel %vm249, %v248, %v247
  %v253 = vsub.f32 %v243, %v250
  %v254 = vsub.f32 %v245, %v248
  %v255 = vmul.f32 %v238, %v253
  %v256 = vmul.f32 %v239, %v254
  %v257 = vsel %vm240, %v255, 0.0
  %v258 = vsel %vm241, %v256, 0.0
  %v260 = vcombine.high %v257, %v257
  %vm262 = vcmask 1043904
  %v263 = vsel %vm262, %v257, 0.0
  %v264 = vrot.slane %v263, 4
  %v265 = vadd.f32 %v263, %v264
  %v266 = vrot.slane %v265, 2
  %v267 = vadd.f32 %v265, %v266
  %v268 = vrot.slane %v267, 1
  %v269 = vadd.f32 %v267, %v268
  %v270 = vsel %vm157, %v260, 0.0
  %v271 = vrot.slane %v270, 4
  %v272 = vadd.f32 %v270, %v271
  %v273 = vrot.slane %v272, 2
  %v274 = vadd.f32 %v272, %v273
  %v275 = vrot.slane %v274, 1
  %v276 = vadd.f32 %v274, %v275
  %vm277 = vcmask 453632
  %v278 = vsel %vm277, %v258, 0.0
  %v279 = vrot.slane %v278, 4
  %v280 = vadd.f32 %v278, %v279
  %v281 = vrot.slane %v280, 2
  %v282 = vadd.f32 %v280, %v281
  %v283 = vrot.slane %v282, 1
  %v284 = vadd.f32 %v282, %v283
  %v285 = vmul.f32 %v269, %v173
  %v286 = vmul.f32 %v276, %v173
  %v287 = vmul.f32 %v284, %v173
  %v291 = vcombine.low %v285, %v286
  %v293 = vunpack.c.l.s4 1966171168
  %v294 = vunpack.c.0.s8 %v293
  %v295 = vlaneseq
  %v296 = vshrl.u32 %v295, 7
  %v297 = vsub.s32 %v294, %v296
  %v298 = vrot.slane %v291, %v297
  %v300 = vunpack.c.l.s4 1966171168
  %v301 = vunpack.c.0.s8 %v300
  %v302 = vlaneseq
  %v303 = vshrl.u32 %v302, 7
  %v304 = vsub.s32 %v301, %v303
  %v305 = vrot.slane %v287, %v304
  %v306 = vcombine.low %v298, %v305
  %v308 = vunpack.c.l.s4 1966171168
  %v309 = vunpack.c.0.s8 %v308
  %v310 = vlaneseq
  %v311 = vshrl.u32 %v310, 7
  %v312 = vsub.s32 %v309, %v311
  %v313 = vrot.slane %v306, %v312
  %314 = vrot.lane.b32.xlu0 %v313, 72
  %v315 = vpop.permute.xlu0 %314
  %v316 = vrot.slane %v315, 1
  %vm317 = vcmask 588800
  %v318 = vsel %vm317, %v315, %v316
  %v320 = vsel %vm179, %v318, 0.0
  %v321 = vmul.f32 %v320, 1.442695
  %v322 = vpow.pop %v321
  %v323 = vsel %vm217, %v322, 0.0
  %v324 = vsel %vm219, %v323, 0.0
  %s325 = scalar_lea.vmem [#allocation4], 1
  %326 = vst.msk [vmem:[%s325] ss:$8 sm:$0x3] %vm226, %v324
  %327 = vst.msk [vmem:[%s325] ss:$8 sm:$0x0] %vm226, %v324
  %v328 = vadd.f32 %v229, %v324
  %v329 = vld [vmem:[#allocation3] sm:$0x7]
  %331 = vrot.lane.b32.xlu0 %v329, 72
  %v332 = vpop.permute.xlu0 %331
  %v333 = vrot.slane %v332, 1
  %v334 = vsel %vm317, %v332, %v333
  %v336 = vsel %vm179, %v334, 0.0
  %vm337 = vcmp.lt.f32.partialorder %v336, %v237
  %v338 = vsel %vm337, 1.0, 0.0
  %v339 = vsel %vm337, %v336, %v237
  %v340 = vld [vmem:[#allocation2] sm:$0xff]
  %v341 = vld [vmem:[#allocation2 + $0x8] sm:$0xf]
  %vm342 = vcmp.gt.f32.partialorder %v340, 0.0
  %vm343 = vcmp.gt.f32.partialorder %v341, 0.0
  %v344 = vlog2.pop %v340
  %v345 = vmul.f32 %v344, 0.6931472
  %v346 = vlog2.pop %v341
  %v347 = vmul.f32 %v346, 0.6931472
  %348 = vrot.lane.b32.xlu0 %v115, 57
  %v349 = vpop.permute.xlu0 %348
  %v350 = vrot.slane %v349, 4
  %vm351 = vcmask 465920
  %v352 = vsel %vm351, %v350, %v349
  %v355 = vsub.f32 %v345, %v352
  %v356 = vsub.f32 %v347, %v350
  %v357 = vmul.f32 %v340, %v355
  %v358 = vmul.f32 %v341, %v356
  %v359 = vsel %vm342, %v357, 0.0
  %v360 = vsel %vm343, %v358, 0.0
  %v362 = vcombine.high %v359, %v359
  %vm364 = vcmask 1043912
  %v365 = vsel %vm364, %v359, 0.0
  %v366 = vrot.slane %v365, 4
  %v367 = vadd.f32 %v365, %v366
  %v368 = vrot.slane %v367, 2
  %v369 = vadd.f32 %v367, %v368
  %v370 = vrot.slane %v369, 1
  %v371 = vadd.f32 %v369, %v370
  %v372 = vsel %vm157, %v362, 0.0
  %v373 = vrot.slane %v372, 4
  %v374 = vadd.f32 %v372, %v373
  %v375 = vrot.slane %v374, 2
  %v376 = vadd.f32 %v374, %v375
  %v377 = vrot.slane %v376, 1
  %v378 = vadd.f32 %v376, %v377
  %vm379 = vcmask 461824
  %v380 = vsel %vm379, %v360, 0.0
  %v381 = vrot.slane %v380, 4
  %v382 = vadd.f32 %v380, %v381
  %v383 = vrot.slane %v382, 2
  %v384 = vadd.f32 %v382, %v383
  %v385 = vrot.slane %v384, 1
  %v386 = vadd.f32 %v384, %v385
  %v387 = vmul.f32 %v371, %v173
  %v388 = vmul.f32 %v378, %v173
  %v389 = vmul.f32 %v386, %v173
  %vm390 = vcmp.lt.f32.partialorder %v121, 7.0
  %vm391 = vmand %vm179, %vm390
  %v395 = vcombine.low %v387, %v388
  %v397 = vunpack.c.l.s4 1966171168
  %v398 = vunpack.c.0.s8 %v397
  %v399 = vlaneseq
  %v400 = vshrl.u32 %v399, 7
  %v401 = vsub.s32 %v398, %v400
  %v402 = vrot.slane %v395, %v401
  %v404 = vunpack.c.l.s4 1966171168
  %v405 = vunpack.c.0.s8 %v404
  %v406 = vlaneseq
  %v407 = vshrl.u32 %v406, 7
  %v408 = vsub.s32 %v405, %v407
  %v409 = vrot.slane %v389, %v408
  %v410 = vcombine.low %v402, %v409
  %v412 = vunpack.c.l.s4 1966171168
  %v413 = vunpack.c.0.s8 %v412
  %v414 = vlaneseq
  %v415 = vshrl.u32 %v414, 7
  %v416 = vsub.s32 %v413, %v415
  %v417 = vrot.slane %v410, %v416
  %418 = vrot.lane.b32.xlu0 %v417, 71
  %v419 = vpop.permute.xlu0 %418
  %v420 = vrot.slane %v419, 1
  %vm421 = vcmask 580608
  %v422 = vsel %vm421, %v419, %v420
  %v424 = vsel %vm391, %v422, 0.0
  %v425 = vmul.f32 %v424, 1.442695
  %v426 = vpow.pop %v425
  %v427 = vsel %vm217, %v426, 0.0
  %v428 = vsel %vm219, %v427, 0.0
  %vm429 = vcmp.eq.f32.partialorder %v119, 7.0
  %v430 = vsel %vm429, %v428, 0.0
  %s431 = scalar_lea.vmem [#allocation4], 2
  %432 = vst.msk [vmem:[%s431] ss:$8 sm:$0x3] %vm226, %v430
  %433 = vst.msk [vmem:[%s431] ss:$8 sm:$0x0] %vm226, %v430
  %v434 = vadd.f32 %v328, %v430
  %v435 = vld [vmem:[#allocation3] sm:$0x7]
  %437 = vrot.lane.b32.xlu0 %v435, 71
  %v438 = vpop.permute.xlu0 %437
  %v439 = vrot.slane %v438, 1
  %v440 = vsel %vm421, %v438, %v439
  %v442 = vsel %vm391, %v440, 0.0
  %vm443 = vcmp.lt.f32.partialorder %v442, %v339
  %v444 = vsel %vm443, 2.0, %v338
  %v445 = vsel %vm443, %v442, %v339
  %v446 = vld [vmem:[#allocation2] sm:$0xff]
  %v447 = vld [vmem:[#allocation2 + $0x8] sm:$0xf]
  %vm448 = vcmp.gt.f32.partialorder %v446, 0.0
  %vm449 = vcmp.gt.f32.partialorder %v447, 0.0
  %v450 = vlog2.pop %v446
  %v451 = vmul.f32 %v450, 0.6931472
  %v452 = vlog2.pop %v447
  %v453 = vmul.f32 %v452, 0.6931472
  %454 = vrot.lane.b32.xlu0 %v115, 63
  %v455 = vpop.permute.xlu0 %454
  %v456 = vrot.slane %v455, 4
  %vm457 = vcmask 515072
  %v458 = vsel %vm457, %v456, %v455
  %v461 = vsub.f32 %v451, %v458
  %v462 = vsub.f32 %v453, %v456
  %v463 = vmul.f32 %v446, %v461
  %v464 = vmul.f32 %v447, %v462
  %v465 = vsel %vm448, %v463, 0.0
  %v466 = vsel %vm449, %v464, 0.0
  %v468 = vcombine.high %v465, %v465
  %vm470 = vcmask 1043960
  %v471 = vsel %vm470, %v465, 0.0
  %v472 = vrot.slane %v471, 4
  %v473 = vadd.f32 %v471, %v472
  %v474 = vrot.slane %v473, 2
  %v475 = vadd.f32 %v473, %v474
  %v476 = vrot.slane %v475, 1
  %v477 = vadd.f32 %v475, %v476
  %v478 = vsel %vm157, %v468, 0.0
  %v479 = vrot.slane %v478, 4
  %v480 = vadd.f32 %v478, %v479
  %v481 = vrot.slane %v480, 2
  %v482 = vadd.f32 %v480, %v481
  %v483 = vrot.slane %v482, 1
  %v484 = vadd.f32 %v482, %v483
  %vm485 = vcmask 510976
  %v486 = vsel %vm485, %v466, 0.0
  %v487 = vrot.slane %v486, 4
  %v488 = vadd.f32 %v486, %v487
  %v489 = vrot.slane %v488, 2
  %v490 = vadd.f32 %v488, %v489
  %v491 = vrot.slane %v490, 1
  %v492 = vadd.f32 %v490, %v491
  %v493 = vmul.f32 %v477, %v173
  %v494 = vmul.f32 %v484, %v173
  %v495 = vmul.f32 %v492, %v173
  %vm496 = vmand %vm177, %vm180
  %v500 = vcombine.low %v493, %v494
  %v502 = vunpack.c.l.s4 1966171168
  %v503 = vunpack.c.0.s8 %v502
  %v504 = vlaneseq
  %v505 = vshrl.u32 %v504, 7
  %v506 = vsub.s32 %v503, %v505
  %v507 = vrot.slane %v500, %v506
  %v509 = vunpack.c.l.s4 1966171168
  %v510 = vunpack.c.0.s8 %v509
  %v511 = vlaneseq
  %v512 = vshrl.u32 %v511, 7
  %v513 = vsub.s32 %v510, %v512
  %v514 = vrot.slane %v495, %v513
  %v515 = vcombine.low %v507, %v514
  %v517 = vunpack.c.l.s4 1966171168
  %v518 = vunpack.c.0.s8 %v517
  %v519 = vlaneseq
  %v520 = vshrl.u32 %v519, 7
  %v521 = vsub.s32 %v518, %v520
  %v522 = vrot.slane %v515, %v521
  %523 = vrot.lane.b32.xlu0 %v522, 65
  %v524 = vpop.permute.xlu0 %523
  %v525 = vrot.slane %v524, 1
  %vm526 = vcmask 531456
  %v527 = vsel %vm526, %v524, %v525
  %v529 = vsel %vm496, %v527, 0.0
  %v530 = vmul.f32 %v529, 1.442695
  %v531 = vpow.pop %v530
  %v532 = vsel %vm217, %v531, 0.0
  %v533 = vsel %vm221, %v532, 0.0
  %s534 = scalar_lea.vmem [#allocation4], 3
  %535 = vst.msk [vmem:[%s534] ss:$8 sm:$0x3] %vm226, %v533
  %536 = vst.msk [vmem:[%s534] ss:$8 sm:$0x0] %vm226, %v533
  %v537 = vadd.f32 %v434, %v533
  %v538 = vld [vmem:[#allocation3] sm:$0x7]
  %540 = vrot.lane.b32.xlu0 %v538, 65
  %v541 = vpop.permute.xlu0 %540
  %v542 = vrot.slane %v541, 1
  %v543 = vsel %vm526, %v541, %v542
  %v545 = vsel %vm496, %v543, 0.0
  %vm546 = vcmp.lt.f32.partialorder %v545, %v445
  %v547 = vsel %vm546, 3.0, %v444
  %v548 = vsel %vm546, %v545, %v445
  %v549 = vld [vmem:[#allocation2] sm:$0xff]
  %v550 = vld [vmem:[#allocation2 + $0x8] sm:$0xf]
  %vm551 = vcmp.gt.f32.partialorder %v549, 0.0
  %vm552 = vcmp.gt.f32.partialorder %v550, 0.0
  %v553 = vlog2.pop %v549
  %v554 = vmul.f32 %v553, 0.6931472
  %v555 = vlog2.pop %v550
  %v556 = vmul.f32 %v555, 0.6931472
  %557 = vrot.lane.b32.xlu0 %v115, 64
  %v558 = vpop.permute.xlu0 %557
  %v559 = vrot.slane %v558, 4
  %vm560 = vcmask 523264
  %v561 = vsel %vm560, %v559, %v558
  %v564 = vsub.f32 %v554, %v561
  %v565 = vsub.f32 %v556, %v559
  %v566 = vmul.f32 %v549, %v564
  %v567 = vmul.f32 %v550, %v565
  %v568 = vsel %vm551, %v566, 0.0
  %v569 = vsel %vm552, %v567, 0.0
  %v571 = vcombine.high %v568, %v568
  %vm573 = vcmask 1043968
  %v574 = vsel %vm573, %v568, 0.0
  %v575 = vrot.slane %v574, 4
  %v576 = vadd.f32 %v574, %v575
  %v577 = vrot.slane %v576, 2
  %v578 = vadd.f32 %v576, %v577
  %v579 = vrot.slane %v578, 1
  %v580 = vadd.f32 %v578, %v579
  %v581 = vsel %vm157, %v571, 0.0
  %v582 = vrot.slane %v581, 4
  %v583 = vadd.f32 %v581, %v582
  %v584 = vrot.slane %v583, 2
  %v585 = vadd.f32 %v583, %v584
  %v586 = vrot.slane %v585, 1
  %v587 = vadd.f32 %v585, %v586
  %vm588 = vcmask 519168
  %v589 = vsel %vm588, %v569, 0.0
  %v590 = vrot.slane %v589, 4
  %v591 = vadd.f32 %v589, %v590
  %v592 = vrot.slane %v591, 2
  %v593 = vadd.f32 %v591, %v592
  %v594 = vrot.slane %v593, 1
  %v595 = vadd.f32 %v593, %v594
  %v596 = vmul.f32 %v580, %v173
  %v597 = vmul.f32 %v587, %v173
  %v598 = vmul.f32 %v595, %v173
  %v602 = vcombine.low %v596, %v597
  %v604 = vunpack.c.l.s4 1966171168
  %v605 = vunpack.c.0.s8 %v604
  %v606 = vlaneseq
  %v607 = vshrl.u32 %v606, 7
  %v608 = vsub.s32 %v605, %v607
  %v609 = vrot.slane %v602, %v608
  %v611 = vunpack.c.l.s4 1966171168
  %v612 = vunpack.c.0.s8 %v611
  %v613 = vlaneseq
  %v614 = vshrl.u32 %v613, 7
  %v615 = vsub.s32 %v612, %v614
  %v616 = vrot.slane %v598, %v615
  %v617 = vcombine.low %v609, %v616
  %v619 = vunpack.c.l.s4 1966171168
  %v620 = vunpack.c.0.s8 %v619
  %v621 = vlaneseq
  %v622 = vshrl.u32 %v621, 7
  %v623 = vsub.s32 %v620, %v622
  %v624 = vrot.slane %v617, %v623
  %625 = vrot.lane.b32.xlu0 %v624, 64
  %v626 = vpop.permute.xlu0 %625
  %v627 = vrot.slane %v626, 1
  %v628 = vsel %vm560, %v626, %v627
  %v630 = vsel %vm177, %v628, 0.0
  %v631 = vmul.f32 %v630, 1.442695
  %v632 = vpow.pop %v631
  %v633 = vsel %vm217, %v632, 0.0
  %s634 = scalar_lea.vmem [#allocation4], 4
  %635 = vst.msk [vmem:[%s634] ss:$8 sm:$0x3] %vm226, %v633
  %636 = vst.msk [vmem:[%s634] ss:$8 sm:$0x0] %vm226, %v633
  %v637 = vadd.f32 %v537, %v633
  %v638 = vld [vmem:[#allocation3] sm:$0x7]
  %640 = vrot.lane.b32.xlu0 %v638, 64
  %v641 = vpop.permute.xlu0 %640
  %v642 = vrot.slane %v641, 1
  %v643 = vsel %vm560, %v641, %v642
  %v645 = vsel %vm177, %v643, 0.0
  %vm646 = vcmp.lt.f32.partialorder %v645, %v548
  %v647 = vsel %vm646, 4.0, %v547
  %v648 = vsel %vm646, %v645, %v548
  %v649 = vld [vmem:[#allocation2] sm:$0xff]
  %v650 = vld [vmem:[#allocation2 + $0x8] sm:$0xf]
  %vm651 = vcmp.gt.f32.partialorder %v649, 0.0
  %vm652 = vcmp.gt.f32.partialorder %v650, 0.0
  %v653 = vlog2.pop %v649
  %v654 = vmul.f32 %v653, 0.6931472
  %v655 = vlog2.pop %v650
  %v656 = vmul.f32 %v655, 0.6931472
  %657 = vrot.lane.b32.xlu0 %v115, 65
  %v658 = vpop.permute.xlu0 %657
  %v659 = vrot.slane %v658, 4
  %v660 = vsel %vm526, %v659, %v658
  %v663 = vsub.f32 %v654, %v660
  %v664 = vsub.f32 %v656, %v659
  %v665 = vmul.f32 %v649, %v663
  %v666 = vmul.f32 %v650, %v664
  %v667 = vsel %vm651, %v665, 0.0
  %v668 = vsel %vm652, %v666, 0.0
  %v670 = vcombine.high %v667, %v667
  %vm672 = vcmask 1043976
  %v673 = vsel %vm672, %v667, 0.0
  %v674 = vrot.slane %v673, 4
  %v675 = vadd.f32 %v673, %v674
  %v676 = vrot.slane %v675, 2
  %v677 = vadd.f32 %v675, %v676
  %v678 = vrot.slane %v677, 1
  %v679 = vadd.f32 %v677, %v678
  %v680 = vsel %vm157, %v670, 0.0
  %v681 = vrot.slane %v680, 4
  %v682 = vadd.f32 %v680, %v681
  %v683 = vrot.slane %v682, 2
  %v684 = vadd.f32 %v682, %v683
  %v685 = vrot.slane %v684, 1
  %v686 = vadd.f32 %v684, %v685
  %vm687 = vcmask 527360
  %v688 = vsel %vm687, %v668, 0.0
  %v689 = vrot.slane %v688, 4
  %v690 = vadd.f32 %v688, %v689
  %v691 = vrot.slane %v690, 2
  %v692 = vadd.f32 %v690, %v691
  %v693 = vrot.slane %v692, 1
  %v694 = vadd.f32 %v692, %v693
  %v695 = vmul.f32 %v679, %v173
  %v696 = vmul.f32 %v686, %v173
  %v697 = vmul.f32 %v694, %v173
  %vm698 = vmand %vm177, %vm390
  %v702 = vcombine.low %v695, %v696
  %v704 = vunpack.c.l.s4 1966171168
  %v705 = vunpack.c.0.s8 %v704
  %v706 = vlaneseq
  %v707 = vshrl.u32 %v706, 7
  %v708 = vsub.s32 %v705, %v707
  %v709 = vrot.slane %v702, %v708
  %v711 = vunpack.c.l.s4 1966171168
  %v712 = vunpack.c.0.s8 %v711
  %v713 = vlaneseq
  %v714 = vshrl.u32 %v713, 7
  %v715 = vsub.s32 %v712, %v714
  %v716 = vrot.slane %v697, %v715
  %v717 = vcombine.low %v709, %v716
  %v719 = vunpack.c.l.s4 1966171168
  %v720 = vunpack.c.0.s8 %v719
  %v721 = vlaneseq
  %v722 = vshrl.u32 %v721, 7
  %v723 = vsub.s32 %v720, %v722
  %v724 = vrot.slane %v717, %v723
  %725 = vrot.lane.b32.xlu0 %v724, 63
  %v726 = vpop.permute.xlu0 %725
  %v727 = vrot.slane %v726, 1
  %v728 = vsel %vm457, %v726, %v727
  %v730 = vsel %vm698, %v728, 0.0
  %v731 = vmul.f32 %v730, 1.442695
  %v732 = vpow.pop %v731
  %v733 = vsel %vm217, %v732, 0.0
  %v734 = vsel %vm429, %v733, 0.0
  %s735 = scalar_lea.vmem [#allocation4], 5
  %736 = vst.msk [vmem:[%s735] ss:$8 sm:$0x3] %vm226, %v734
  %737 = vst.msk [vmem:[%s735] ss:$8 sm:$0x0] %vm226, %v734
  %v738 = vadd.f32 %v637, %v734
  %v739 = vld [vmem:[#allocation3] sm:$0x7]
  %741 = vrot.lane.b32.xlu0 %v739, 63
  %v742 = vpop.permute.xlu0 %741
  %v743 = vrot.slane %v742, 1
  %v744 = vsel %vm457, %v742, %v743
  %v746 = vsel %vm698, %v744, 0.0
  %vm747 = vcmp.lt.f32.partialorder %v746, %v648
  %v748 = vsel %vm747, 5.0, %v647
  %v749 = vsel %vm747, %v746, %v648
  %v750 = vld [vmem:[#allocation2] sm:$0xff]
  %v751 = vld [vmem:[#allocation2 + $0x8] sm:$0xf]
  %vm752 = vcmp.gt.f32.partialorder %v750, 0.0
  %vm753 = vcmp.gt.f32.partialorder %v751, 0.0
  %v754 = vlog2.pop %v750
  %v755 = vmul.f32 %v754, 0.6931472
  %v756 = vlog2.pop %v751
  %v757 = vmul.f32 %v756, 0.6931472
  %758 = vrot.lane.b32.xlu0 %v115, 71
  %v759 = vpop.permute.xlu0 %758
  %v760 = vrot.slane %v759, 4
  %v761 = vsel %vm421, %v760, %v759
  %v764 = vsub.f32 %v755, %v761
  %v765 = vsub.f32 %v757, %v760
  %v766 = vmul.f32 %v750, %v764
  %v767 = vmul.f32 %v751, %v765
  %v768 = vsel %vm752, %v766, 0.0
  %v769 = vsel %vm753, %v767, 0.0
  %v771 = vcombine.high %v768, %v768
  %vm773 = vcmask 1044024
  %v774 = vsel %vm773, %v768, 0.0
  %v775 = vrot.slane %v774, 4
  %v776 = vadd.f32 %v774, %v775
  %v777 = vrot.slane %v776, 2
  %v778 = vadd.f32 %v776, %v777
  %v779 = vrot.slane %v778, 1
  %v780 = vadd.f32 %v778, %v779
  %v781 = vsel %vm157, %v771, 0.0
  %v782 = vrot.slane %v781, 4
  %v783 = vadd.f32 %v781, %v782
  %v784 = vrot.slane %v783, 2
  %v785 = vadd.f32 %v783, %v784
  %v786 = vrot.slane %v785, 1
  %v787 = vadd.f32 %v785, %v786
  %vm788 = vcmask 576512
  %v789 = vsel %vm788, %v769, 0.0
  %v790 = vrot.slane %v789, 4
  %v791 = vadd.f32 %v789, %v790
  %v792 = vrot.slane %v791, 2
  %v793 = vadd.f32 %v791, %v792
  %v794 = vrot.slane %v793, 1
  %v795 = vadd.f32 %v793, %v794
  %v796 = vmul.f32 %v780, %v173
  %v797 = vmul.f32 %v787, %v173
  %v798 = vmul.f32 %v795, %v173
  %vm799 = vcmp.lt.f32.partialorder %v119, 7.0
  %vm800 = vmand %vm177, %vm799
  %vm801 = vmand %vm800, %vm180
  %v805 = vcombine.low %v796, %v797
  %v807 = vunpack.c.l.s4 1966171168
  %v808 = vunpack.c.0.s8 %v807
  %v809 = vlaneseq
  %v810 = vshrl.u32 %v809, 7
  %v811 = vsub.s32 %v808, %v810
  %v812 = vrot.slane %v805, %v811
  %v814 = vunpack.c.l.s4 1966171168
  %v815 = vunpack.c.0.s8 %v814
  %v816 = vlaneseq
  %v817 = vshrl.u32 %v816, 7
  %v818 = vsub.s32 %v815, %v817
  %v819 = vrot.slane %v798, %v818
  %v820 = vcombine.low %v812, %v819
  %v822 = vunpack.c.l.s4 1966171168
  %v823 = vunpack.c.0.s8 %v822
  %v824 = vlaneseq
  %v825 = vshrl.u32 %v824, 7
  %v826 = vsub.s32 %v823, %v825
  %v827 = vrot.slane %v820, %v826
  %828 = vrot.lane.b32.xlu0 %v827, 57
  %v829 = vpop.permute.xlu0 %828
  %v830 = vrot.slane %v829, 1
  %v831 = vsel %vm351, %v829, %v830
  %v833 = vsel %vm801, %v831, 0.0
  %v834 = vmul.f32 %v833, 1.442695
  %v835 = vpow.pop %v834
  %v836 = vsel %vm217, %v835, 0.0
  %vm837 = vcmp.eq.f32.partialorder %v117, 7.0
  %v838 = vsel %vm837, %v836, 0.0
  %v839 = vsel %vm221, %v838, 0.0
  %s840 = scalar_lea.vmem [#allocation4], 6
  %841 = vst.msk [vmem:[%s840] ss:$8 sm:$0x3] %vm226, %v839
  %842 = vst.msk [vmem:[%s840] ss:$8 sm:$0x0] %vm226, %v839
  %v843 = vadd.f32 %v738, %v839
  %v844 = vld [vmem:[#allocation3] sm:$0x7]
  %846 = vrot.lane.b32.xlu0 %v844, 57
  %v847 = vpop.permute.xlu0 %846
  %v848 = vrot.slane %v847, 1
  %v849 = vsel %vm351, %v847, %v848
  %v851 = vsel %vm801, %v849, 0.0
  %vm852 = vcmp.lt.f32.partialorder %v851, %v749
  %v853 = vsel %vm852, 6.0, %v748
  %v854 = vsel %vm852, %v851, %v749
  %v855 = vld [vmem:[#allocation2] sm:$0xff]
  %v856 = vld [vmem:[#allocation2 + $0x8] sm:$0xf]
  %vm857 = vcmp.gt.f32.partialorder %v855, 0.0
  %vm858 = vcmp.gt.f32.partialorder %v856, 0.0
  %v859 = vlog2.pop %v855
  %v860 = vmul.f32 %v859, 0.6931472
  %v861 = vlog2.pop %v856
  %v862 = vmul.f32 %v861, 0.6931472
  %863 = vrot.lane.b32.xlu0 %v115, 72
  %v864 = vpop.permute.xlu0 %863
  %v865 = vrot.slane %v864, 4
  %v866 = vsel %vm317, %v865, %v864
  %v869 = vsub.f32 %v860, %v866
  %v870 = vsub.f32 %v862, %v865
  %v871 = vmul.f32 %v855, %v869
  %v872 = vmul.f32 %v856, %v870
  %v873 = vsel %vm857, %v871, 0.0
  %v874 = vsel %vm858, %v872, 0.0
  %v876 = vcombine.high %v873, %v873
  %vm878 = vcmask 1044032
  %v879 = vsel %vm878, %v873, 0.0
  %v880 = vrot.slane %v879, 4
  %v881 = vadd.f32 %v879, %v880
  %v882 = vrot.slane %v881, 2
  %v883 = vadd.f32 %v881, %v882
  %v884 = vrot.slane %v883, 1
  %v885 = vadd.f32 %v883, %v884
  %v886 = vsel %vm157, %v876, 0.0
  %v887 = vrot.slane %v886, 4
  %v888 = vadd.f32 %v886, %v887
  %v889 = vrot.slane %v888, 2
  %v890 = vadd.f32 %v888, %v889
  %v891 = vrot.slane %v890, 1
  %v892 = vadd.f32 %v890, %v891
  %vm893 = vcmask 584704
  %v894 = vsel %vm893, %v874, 0.0
  %v895 = vrot.slane %v894, 4
  %v896 = vadd.f32 %v894, %v895
  %v897 = vrot.slane %v896, 2
  %v898 = vadd.f32 %v896, %v897
  %v899 = vrot.slane %v898, 1
  %v900 = vadd.f32 %v898, %v899
  %v901 = vmul.f32 %v885, %v173
  %v902 = vmul.f32 %v892, %v173
  %v903 = vmul.f32 %v900, %v173
  %v907 = vcombine.low %v901, %v902
  %v909 = vunpack.c.l.s4 1966171168
  %v910 = vunpack.c.0.s8 %v909
  %v911 = vlaneseq
  %v912 = vshrl.u32 %v911, 7
  %v913 = vsub.s32 %v910, %v912
  %v914 = vrot.slane %v907, %v913
  %v916 = vunpack.c.l.s4 1966171168
  %v917 = vunpack.c.0.s8 %v916
  %v918 = vlaneseq
  %v919 = vshrl.u32 %v918, 7
  %v920 = vsub.s32 %v917, %v919
  %v921 = vrot.slane %v903, %v920
  %v922 = vcombine.low %v914, %v921
  %v924 = vunpack.c.l.s4 1966171168
  %v925 = vunpack.c.0.s8 %v924
  %v926 = vlaneseq
  %v927 = vshrl.u32 %v926, 7
  %v928 = vsub.s32 %v925, %v927
  %v929 = vrot.slane %v922, %v928
  %930 = vrot.lane.b32.xlu0 %v929, 56
  %v931 = vpop.permute.xlu0 %930
  %v932 = vrot.slane %v931, 1
  %v933 = vsel %vm249, %v931, %v932
  %v935 = vsel %vm800, %v933, 0.0
  %v936 = vmul.f32 %v935, 1.442695
  %v937 = vpow.pop %v936
  %v938 = vsel %vm217, %v937, 0.0
  %v939 = vsel %vm837, %v938, 0.0
  %s940 = scalar_lea.vmem [#allocation4], 7
  %941 = vst.msk [vmem:[%s940] ss:$8 sm:$0x3] %vm226, %v939
  %942 = vst.msk [vmem:[%s940] ss:$8 sm:$0x0] %vm226, %v939
  %v943 = vadd.f32 %v843, %v939
  %v944 = vld [vmem:[#allocation3] sm:$0x7]
  %946 = vrot.lane.b32.xlu0 %v944, 56
  %v947 = vpop.permute.xlu0 %946
  %v948 = vrot.slane %v947, 1
  %v949 = vsel %vm249, %v947, %v948
  %v951 = vsel %vm800, %v949, 0.0
  %vm952 = vcmp.lt.f32.partialorder %v951, %v854
  %v953 = vsel %vm952, 7.0, %v853
  %v954 = vsel %vm952, %v951, %v854
  %v955 = vld [vmem:[#allocation2] sm:$0xff]
  %v956 = vld [vmem:[#allocation2 + $0x8] sm:$0xf]
  %vm957 = vcmp.gt.f32.partialorder %v955, 0.0
  %vm958 = vcmp.gt.f32.partialorder %v956, 0.0
  %v959 = vlog2.pop %v955
  %v960 = vmul.f32 %v959, 0.6931472
  %v961 = vlog2.pop %v956
  %v962 = vmul.f32 %v961, 0.6931472
  %963 = vrot.lane.b32.xlu0 %v115, 73
  %v964 = vpop.permute.xlu0 %963
  %v965 = vrot.slane %v964, 4
  %v966 = vsel %vm211, %v965, %v964
  %v969 = vsub.f32 %v960, %v966
  %v970 = vsub.f32 %v962, %v965
  %v971 = vmul.f32 %v955, %v969
  %v972 = vmul.f32 %v956, %v970
  %v973 = vsel %vm957, %v971, 0.0
  %v974 = vsel %vm958, %v972, 0.0
  %v976 = vcombine.high %v973, %v973
  %vm978 = vcmask 1044040
  %v979 = vsel %vm978, %v973, 0.0
  %v980 = vrot.slane %v979, 4
  %v981 = vadd.f32 %v979, %v980
  %v982 = vrot.slane %v981, 2
  %v983 = vadd.f32 %v981, %v982
  %v984 = vrot.slane %v983, 1
  %v985 = vadd.f32 %v983, %v984
  %v986 = vsel %vm157, %v976, 0.0
  %v987 = vrot.slane %v986, 4
  %v988 = vadd.f32 %v986, %v987
  %v989 = vrot.slane %v988, 2
  %v990 = vadd.f32 %v988, %v989
  %v991 = vrot.slane %v990, 1
  %v992 = vadd.f32 %v990, %v991
  %vm993 = vcmask 592896
  %v994 = vsel %vm993, %v974, 0.0
  %v995 = vrot.slane %v994, 4
  %v996 = vadd.f32 %v994, %v995
  %v997 = vrot.slane %v996, 2
  %v998 = vadd.f32 %v996, %v997
  %v999 = vrot.slane %v998, 1
  %v1000 = vadd.f32 %v998, %v999
  %v1001 = vmul.f32 %v985, %v173
  %v1002 = vmul.f32 %v992, %v173
  %v1003 = vmul.f32 %v1000, %v173
  %vm1004 = vmand %vm800, %vm390
  %v1008 = vcombine.low %v1001, %v1002
  %v1010 = vunpack.c.l.s4 1966171168
  %v1011 = vunpack.c.0.s8 %v1010
  %v1012 = vlaneseq
  %v1013 = vshrl.u32 %v1012, 7
  %v1014 = vsub.s32 %v1011, %v1013
  %v1015 = vrot.slane %v1008, %v1014
  %v1017 = vunpack.c.l.s4 1966171168
  %v1018 = vunpack.c.0.s8 %v1017
  %v1019 = vlaneseq
  %v1020 = vshrl.u32 %v1019, 7
  %v1021 = vsub.s32 %v1018, %v1020
  %v1022 = vrot.slane %v1003, %v1021
  %v1023 = vcombine.low %v1015, %v1022
  %v1025 = vunpack.c.l.s4 1966171168
  %v1026 = vunpack.c.0.s8 %v1025
  %v1027 = vlaneseq
  %v1028 = vshrl.u32 %v1027, 7
  %v1029 = vsub.s32 %v1026, %v1028
  %v1030 = vrot.slane %v1023, %v1029
  %1031 = vrot.lane.b32.xlu0 %v1030, 55
  %v1032 = vpop.permute.xlu0 %1031
  %v1033 = vrot.slane %v1032, 1
  %v1034 = vsel %vm136, %v1032, %v1033
  %v1036 = vsel %vm1004, %v1034, 0.0
  %v1037 = vmul.f32 %v1036, 1.442695
  %v1038 = vpow.pop %v1037
  %v1039 = vsel %vm217, %v1038, 0.0
  %v1040 = vsel %vm837, %v1039, 0.0
  %v1041 = vsel %vm429, %v1040, 0.0
  %s1042 = scalar_lea.vmem [#allocation4], 16
  %1043 = vst.msk [vmem:[%s1042] ss:$8 sm:$0x3] %vm226, %v1041
  %1044 = vst.msk [vmem:[%s1042] ss:$8 sm:$0x0] %vm226, %v1041
  %v1045 = vadd.f32 %v943, %v1041
  %v1046 = vld [vmem:[#allocation3] sm:$0x7]
  %1048 = vrot.lane.b32.xlu0 %v1046, 55
  %v1049 = vpop.permute.xlu0 %1048
  %v1050 = vrot.slane %v1049, 1
  %v1051 = vsel %vm136, %v1049, %v1050
  %v1053 = vsel %vm1004, %v1051, 0.0
  %vm1054 = vcmp.lt.f32.partialorder %v1053, %v954
  %v1055 = vsel %vm1054, 8.0, %v953
  %v1056 = vsel %vm1054, %v1053, %v954
  %v1057 = vld [vmem:[#allocation2] sm:$0xff]
  %v1058 = vld [vmem:[#allocation2 + $0x8] sm:$0xf]
  %vm1059 = vcmp.gt.f32.partialorder %v1057, 0.0
  %vm1060 = vcmp.gt.f32.partialorder %v1058, 0.0
  %v1061 = vlog2.pop %v1057
  %v1062 = vmul.f32 %v1061, 0.6931472
  %v1063 = vlog2.pop %v1058
  %v1064 = vmul.f32 %v1063, 0.6931472
  %1065 = vrot.lane.b32.xlu0 %v115, 119
  %v1066 = vpop.permute.xlu0 %1065
  %v1067 = vrot.slane %v1066, 4
  %vm1068 = vcmask 973824
  %v1069 = vsel %vm1068, %v1067, %v1066
  %v1072 = vsub.f32 %v1062, %v1069
  %v1073 = vsub.f32 %v1064, %v1067
  %v1074 = vmul.f32 %v1057, %v1072
  %v1075 = vmul.f32 %v1058, %v1073
  %v1076 = vsel %vm1059, %v1074, 0.0
  %v1077 = vsel %vm1060, %v1075, 0.0
  %v1079 = vcombine.high %v1076, %v1076
  %vm1081 = vcmask 1044408
  %v1082 = vsel %vm1081, %v1076, 0.0
  %v1083 = vrot.slane %v1082, 4
  %v1084 = vadd.f32 %v1082, %v1083
  %v1085 = vrot.slane %v1084, 2
  %v1086 = vadd.f32 %v1084, %v1085
  %v1087 = vrot.slane %v1086, 1
  %v1088 = vadd.f32 %v1086, %v1087
  %v1089 = vsel %vm157, %v1079, 0.0
  %v1090 = vrot.slane %v1089, 4
  %v1091 = vadd.f32 %v1089, %v1090
  %v1092 = vrot.slane %v1091, 2
  %v1093 = vadd.f32 %v1091, %v1092
  %v1094 = vrot.slane %v1093, 1
  %v1095 = vadd.f32 %v1093, %v1094
  %vm1096 = vcmask 969728
  %v1097 = vsel %vm1096, %v1077, 0.0
  %v1098 = vrot.slane %v1097, 4
  %v1099 = vadd.f32 %v1097, %v1098
  %v1100 = vrot.slane %v1099, 2
  %v1101 = vadd.f32 %v1099, %v1100
  %v1102 = vrot.slane %v1101, 1
  %v1103 = vadd.f32 %v1101, %v1102
  %v1104 = vmul.f32 %v1088, %v173
  %v1105 = vmul.f32 %v1095, %v173
  %v1106 = vmul.f32 %v1103, %v173
  %vm1107 = vmand %vm178, %vm180
  %v1111 = vcombine.low %v1104, %v1105
  %v1113 = vunpack.c.l.s4 1966171168
  %v1114 = vunpack.c.0.s8 %v1113
  %v1115 = vlaneseq
  %v1116 = vshrl.u32 %v1115, 7
  %v1117 = vsub.s32 %v1114, %v1116
  %v1118 = vrot.slane %v1111, %v1117
  %v1120 = vunpack.c.l.s4 1966171168
  %v1121 = vunpack.c.0.s8 %v1120
  %v1122 = vlaneseq
  %v1123 = vshrl.u32 %v1122, 7
  %v1124 = vsub.s32 %v1121, %v1123
  %v1125 = vrot.slane %v1106, %v1124
  %v1126 = vcombine.low %v1118, %v1125
  %v1128 = vunpack.c.l.s4 1966171168
  %v1129 = vunpack.c.0.s8 %v1128
  %v1130 = vlaneseq
  %v1131 = vshrl.u32 %v1130, 7
  %v1132 = vsub.s32 %v1129, %v1131
  %v1133 = vrot.slane %v1126, %v1132
  %1134 = vrot.lane.b32.xlu0 %v1133, 9
  %v1135 = vpop.permute.xlu0 %1134
  %v1136 = vrot.slane %v1135, 1
  %vm1137 = vcmask 72704
  %v1138 = vsel %vm1137, %v1135, %v1136
  %v1140 = vsel %vm1107, %v1138, 0.0
  %v1141 = vmul.f32 %v1140, 1.442695
  %v1142 = vpow.pop %v1141
  %v1143 = vsel %vm219, %v1142, 0.0
  %v1144 = vsel %vm221, %v1143, 0.0
  %s1145 = scalar_lea.vmem [#allocation4], 17
  %1146 = vst.msk [vmem:[%s1145] ss:$8 sm:$0x3] %vm226, %v1144
  %1147 = vst.msk [vmem:[%s1145] ss:$8 sm:$0x0] %vm226, %v1144
  %v1148 = vadd.f32 %v1045, %v1144
  %v1149 = vld [vmem:[#allocation3] sm:$0x7]
  %1151 = vrot.lane.b32.xlu0 %v1149, 9
  %v1152 = vpop.permute.xlu0 %1151
  %v1153 = vrot.slane %v1152, 1
  %v1154 = vsel %vm1137, %v1152, %v1153
  %v1156 = vsel %vm1107, %v1154, 0.0
  %vm1157 = vcmp.lt.f32.partialorder %v1156, %v1056
  %v1158 = vsel %vm1157, 9.0, %v1055
  %v1159 = vsel %vm1157, %v1156, %v1056
  %v1160 = vld [vmem:[#allocation2] sm:$0xff]
  %v1161 = vld [vmem:[#allocation2 + $0x8] sm:$0xf]
  %vm1162 = vcmp.gt.f32.partialorder %v1160, 0.0
  %vm1163 = vcmp.gt.f32.partialorder %v1161, 0.0
  %v1164 = vlog2.pop %v1160
  %v1165 = vmul.f32 %v1164, 0.6931472
  %v1166 = vlog2.pop %v1161
  %v1167 = vmul.f32 %v1166, 0.6931472
  %1168 = vrot.lane.b32.xlu0 %v115, 120
  %v1169 = vpop.permute.xlu0 %1168
  %v1170 = vrot.slane %v1169, 4
  %vm1171 = vcmask 982016
  %v1172 = vsel %vm1171, %v1170, %v1169
  %v1175 = vsub.f32 %v1165, %v1172
  %v1176 = vsub.f32 %v1167, %v1170
  %v1177 = vmul.f32 %v1160, %v1175
  %v1178 = vmul.f32 %v1161, %v1176
  %v1179 = vsel %vm1162, %v1177, 0.0
  %v1180 = vsel %vm1163, %v1178, 0.0
  %v1182 = vcombine.high %v1179, %v1179
  %vm1184 = vcmask 1044416
  %v1185 = vsel %vm1184, %v1179, 0.0
  %v1186 = vrot.slane %v1185, 4
  %v1187 = vadd.f32 %v1185, %v1186
  %v1188 = vrot.slane %v1187, 2
  %v1189 = vadd.f32 %v1187, %v1188
  %v1190 = vrot.slane %v1189, 1
  %v1191 = vadd.f32 %v1189, %v1190
  %v1192 = vsel %vm157, %v1182, 0.0
  %v1193 = vrot.slane %v1192, 4
  %v1194 = vadd.f32 %v1192, %v1193
  %v1195 = vrot.slane %v1194, 2
  %v1196 = vadd.f32 %v1194, %v1195
  %v1197 = vrot.slane %v1196, 1
  %v1198 = vadd.f32 %v1196, %v1197
  %vm1199 = vcmask 977920
  %v1200 = vsel %vm1199, %v1180, 0.0
  %v1201 = vrot.slane %v1200, 4
  %v1202 = vadd.f32 %v1200, %v1201
  %v1203 = vrot.slane %v1202, 2
  %v1204 = vadd.f32 %v1202, %v1203
  %v1205 = vrot.slane %v1204, 1
  %v1206 = vadd.f32 %v1204, %v1205
  %v1207 = vmul.f32 %v1191, %v173
  %v1208 = vmul.f32 %v1198, %v173
  %v1209 = vmul.f32 %v1206, %v173
  %v1213 = vcombine.low %v1207, %v1208
  %v1215 = vunpack.c.l.s4 1966171168
  %v1216 = vunpack.c.0.s8 %v1215
  %v1217 = vlaneseq
  %v1218 = vshrl.u32 %v1217, 7
  %v1219 = vsub.s32 %v1216, %v1218
  %v1220 = vrot.slane %v1213, %v1219
  %v1222 = vunpack.c.l.s4 1966171168
  %v1223 = vunpack.c.0.s8 %v1222
  %v1224 = vlaneseq
  %v1225 = vshrl.u32 %v1224, 7
  %v1226 = vsub.s32 %v1223, %v1225
  %v1227 = vrot.slane %v1209, %v1226
  %v1228 = vcombine.low %v1220, %v1227
  %v1230 = vunpack.c.l.s4 1966171168
  %v1231 = vunpack.c.0.s8 %v1230
  %v1232 = vlaneseq
  %v1233 = vshrl.u32 %v1232, 7
  %v1234 = vsub.s32 %v1231, %v1233
  %v1235 = vrot.slane %v1228, %v1234
  %1236 = vrot.lane.b32.xlu0 %v1235, 8
  %v1237 = vpop.permute.xlu0 %1236
  %v1238 = vrot.slane %v1237, 1
  %vm1239 = vcmask 64512
  %v1240 = vsel %vm1239, %v1237, %v1238
  %v1242 = vsel %vm178, %v1240, 0.0
  %v1243 = vmul.f32 %v1242, 1.442695
  %v1244 = vpow.pop %v1243
  %v1245 = vsel %vm219, %v1244, 0.0
  %s1246 = scalar_lea.vmem [#allocation4], 18
  %1247 = vst.msk [vmem:[%s1246] ss:$8 sm:$0x3] %vm226, %v1245
  %1248 = vst.msk [vmem:[%s1246] ss:$8 sm:$0x0] %vm226, %v1245
  %v1249 = vadd.f32 %v1148, %v1245
  %v1250 = vld [vmem:[#allocation3] sm:$0x7]
  %1252 = vrot.lane.b32.xlu0 %v1250, 8
  %v1253 = vpop.permute.xlu0 %1252
  %v1254 = vrot.slane %v1253, 1
  %v1255 = vsel %vm1239, %v1253, %v1254
  %v1257 = vsel %vm178, %v1255, 0.0
  %vm1258 = vcmp.lt.f32.partialorder %v1257, %v1159
  %v1259 = vsel %vm1258, 10.0, %v1158
  %v1260 = vsel %vm1258, %v1257, %v1159
  %v1261 = vld [vmem:[#allocation2] sm:$0xff]
  %v1262 = vld [vmem:[#allocation2 + $0x8] sm:$0xf]
  %vm1263 = vcmp.gt.f32.partialorder %v1261, 0.0
  %vm1264 = vcmp.gt.f32.partialorder %v1262, 0.0
  %v1265 = vlog2.pop %v1261
  %v1266 = vmul.f32 %v1265, 0.6931472
  %v1267 = vlog2.pop %v1262
  %v1268 = vmul.f32 %v1267, 0.6931472
  %1269 = vrot.lane.b32.xlu0 %v115, 121
  %v1270 = vpop.permute.xlu0 %1269
  %v1271 = vrot.slane %v1270, 4
  %vm1272 = vcmask 990208
  %v1273 = vsel %vm1272, %v1271, %v1270
  %v1276 = vsub.f32 %v1266, %v1273
  %v1277 = vsub.f32 %v1268, %v1271
  %v1278 = vmul.f32 %v1261, %v1276
  %v1279 = vmul.f32 %v1262, %v1277
  %v1280 = vsel %vm1263, %v1278, 0.0
  %v1281 = vsel %vm1264, %v1279, 0.0
  %v1283 = vcombine.high %v1280, %v1280
  %vm1285 = vcmask 1044424
  %v1286 = vsel %vm1285, %v1280, 0.0
  %v1287 = vrot.slane %v1286, 4
  %v1288 = vadd.f32 %v1286, %v1287
  %v1289 = vrot.slane %v1288, 2
  %v1290 = vadd.f32 %v1288, %v1289
  %v1291 = vrot.slane %v1290, 1
  %v1292 = vadd.f32 %v1290, %v1291
  %v1293 = vsel %vm157, %v1283, 0.0
  %v1294 = vrot.slane %v1293, 4
  %v1295 = vadd.f32 %v1293, %v1294
  %v1296 = vrot.slane %v1295, 2
  %v1297 = vadd.f32 %v1295, %v1296
  %v1298 = vrot.slane %v1297, 1
  %v1299 = vadd.f32 %v1297, %v1298
  %vm1300 = vcmask 986112
  %v1301 = vsel %vm1300, %v1281, 0.0
  %v1302 = vrot.slane %v1301, 4
  %v1303 = vadd.f32 %v1301, %v1302
  %v1304 = vrot.slane %v1303, 2
  %v1305 = vadd.f32 %v1303, %v1304
  %v1306 = vrot.slane %v1305, 1
  %v1307 = vadd.f32 %v1305, %v1306
  %v1308 = vmul.f32 %v1292, %v173
  %v1309 = vmul.f32 %v1299, %v173
  %v1310 = vmul.f32 %v1307, %v173
  %vm1311 = vmand %vm178, %vm390
  %v1315 = vcombine.low %v1308, %v1309
  %v1317 = vunpack.c.l.s4 1966171168
  %v1318 = vunpack.c.0.s8 %v1317
  %v1319 = vlaneseq
  %v1320 = vshrl.u32 %v1319, 7
  %v1321 = vsub.s32 %v1318, %v1320
  %v1322 = vrot.slane %v1315, %v1321
  %v1324 = vunpack.c.l.s4 1966171168
  %v1325 = vunpack.c.0.s8 %v1324
  %v1326 = vlaneseq
  %v1327 = vshrl.u32 %v1326, 7
  %v1328 = vsub.s32 %v1325, %v1327
  %v1329 = vrot.slane %v1310, %v1328
  %v1330 = vcombine.low %v1322, %v1329
  %v1332 = vunpack.c.l.s4 1966171168
  %v1333 = vunpack.c.0.s8 %v1332
  %v1334 = vlaneseq
  %v1335 = vshrl.u32 %v1334, 7
  %v1336 = vsub.s32 %v1333, %v1335
  %v1337 = vrot.slane %v1330, %v1336
  %1338 = vrot.lane.b32.xlu0 %v1337, 7
  %v1339 = vpop.permute.xlu0 %1338
  %v1340 = vrot.slane %v1339, 1
  %vm1341 = vcmask 56320
  %v1342 = vsel %vm1341, %v1339, %v1340
  %v1344 = vsel %vm1311, %v1342, 0.0
  %v1345 = vmul.f32 %v1344, 1.442695
  %v1346 = vpow.pop %v1345
  %v1347 = vsel %vm219, %v1346, 0.0
  %v1348 = vsel %vm429, %v1347, 0.0
  %s1349 = scalar_lea.vmem [#allocation4], 19
  %1350 = vst.msk [vmem:[%s1349] ss:$8 sm:$0x3] %vm226, %v1348
  %1351 = vst.msk [vmem:[%s1349] ss:$8 sm:$0x0] %vm226, %v1348
  %v1352 = vadd.f32 %v1249, %v1348
  %v1353 = vld [vmem:[#allocation3] sm:$0x7]
  %1355 = vrot.lane.b32.xlu0 %v1353, 7
  %v1356 = vpop.permute.xlu0 %1355
  %v1357 = vrot.slane %v1356, 1
  %v1358 = vsel %vm1341, %v1356, %v1357
  %v1360 = vsel %vm1311, %v1358, 0.0
  %vm1361 = vcmp.lt.f32.partialorder %v1360, %v1260
  %v1362 = vsel %vm1361, 11.0, %v1259
  %v1363 = vsel %vm1361, %v1360, %v1260
  %v1364 = vld [vmem:[#allocation2] sm:$0xff]
  %v1365 = vld [vmem:[#allocation2 + $0x8] sm:$0xf]
  %vm1366 = vcmp.gt.f32.partialorder %v1364, 0.0
  %vm1367 = vcmp.gt.f32.partialorder %v1365, 0.0
  %v1368 = vlog2.pop %v1364
  %v1369 = vmul.f32 %v1368, 0.6931472
  %v1370 = vlog2.pop %v1365
  %v1371 = vmul.f32 %v1370, 0.6931472
  %1372 = vrot.lane.b32.xlu0 %v115, 127
  %v1373 = vpop.permute.xlu0 %1372
  %v1374 = vrot.slane %v1373, 4
  %vm1375 = vcmask 1039360
  %v1376 = vsel %vm1375, %v1374, %v1373
  %v1379 = vsub.f32 %v1369, %v1376
  %v1380 = vsub.f32 %v1371, %v1374
  %v1381 = vmul.f32 %v1364, %v1379
  %v1382 = vmul.f32 %v1365, %v1380
  %v1383 = vsel %vm1366, %v1381, 0.0
  %v1384 = vsel %vm1367, %v1382, 0.0
  %v1386 = vcombine.high %v1383, %v1383
  %vm1388 = vcmask 1044472
  %v1389 = vsel %vm1388, %v1383, 0.0
  %v1390 = vrot.slane %v1389, 4
  %v1391 = vadd.f32 %v1389, %v1390
  %v1392 = vrot.slane %v1391, 2
  %v1393 = vadd.f32 %v1391, %v1392
  %v1394 = vrot.slane %v1393, 1
  %v1395 = vadd.f32 %v1393, %v1394
  %v1396 = vsel %vm157, %v1386, 0.0
  %v1397 = vrot.slane %v1396, 4
  %v1398 = vadd.f32 %v1396, %v1397
  %v1399 = vrot.slane %v1398, 2
  %v1400 = vadd.f32 %v1398, %v1399
  %v1401 = vrot.slane %v1400, 1
  %v1402 = vadd.f32 %v1400, %v1401
  %vm1403 = vcmask 1035264
  %v1404 = vsel %vm1403, %v1384, 0.0
  %v1405 = vrot.slane %v1404, 4
  %v1406 = vadd.f32 %v1404, %v1405
  %v1407 = vrot.slane %v1406, 2
  %v1408 = vadd.f32 %v1406, %v1407
  %v1409 = vrot.slane %v1408, 1
  %v1410 = vadd.f32 %v1408, %v1409
  %v1411 = vmul.f32 %v1395, %v173
  %v1412 = vmul.f32 %v1402, %v173
  %v1413 = vmul.f32 %v1410, %v173
  %v1417 = vcombine.low %v1411, %v1412
  %v1419 = vunpack.c.l.s4 1966171168
  %v1420 = vunpack.c.0.s8 %v1419
  %v1421 = vlaneseq
  %v1422 = vshrl.u32 %v1421, 7
  %v1423 = vsub.s32 %v1420, %v1422
  %v1424 = vrot.slane %v1417, %v1423
  %v1426 = vunpack.c.l.s4 1966171168
  %v1427 = vunpack.c.0.s8 %v1426
  %v1428 = vlaneseq
  %v1429 = vshrl.u32 %v1428, 7
  %v1430 = vsub.s32 %v1427, %v1429
  %v1431 = vrot.slane %v1413, %v1430
  %v1432 = vcombine.low %v1424, %v1431
  %v1434 = vunpack.c.l.s4 1966171168
  %v1435 = vunpack.c.0.s8 %v1434
  %v1436 = vlaneseq
  %v1437 = vshrl.u32 %v1436, 7
  %v1438 = vsub.s32 %v1435, %v1437
  %v1439 = vrot.slane %v1432, %v1438
  %1440 = vrot.lane.b32.xlu0 %v1439, 1
  %v1441 = vpop.permute.xlu0 %1440
  %v1442 = vrot.slane %v1441, 1
  %vm1443 = vcmask 7168
  %v1444 = vsel %vm1443, %v1441, %v1442
  %v1446 = vsel %vm180, %v1444, 0.0
  %v1447 = vmul.f32 %v1446, 1.442695
  %v1448 = vpow.pop %v1447
  %v1449 = vsel %vm221, %v1448, 0.0
  %s1450 = scalar_lea.vmem [#allocation4], 20
  %1451 = vst.msk [vmem:[%s1450] ss:$8 sm:$0x3] %vm226, %v1449
  %1452 = vst.msk [vmem:[%s1450] ss:$8 sm:$0x0] %vm226, %v1449
  %v1453 = vadd.f32 %v1352, %v1449
  %v1454 = vld [vmem:[#allocation3] sm:$0x7]
  %1456 = vrot.lane.b32.xlu0 %v1454, 1
  %v1457 = vpop.permute.xlu0 %1456
  %v1458 = vrot.slane %v1457, 1
  %v1459 = vsel %vm1443, %v1457, %v1458
  %v1461 = vsel %vm180, %v1459, 0.0
  %vm1462 = vcmp.lt.f32.partialorder %v1461, %v1363
  %v1463 = vsel %vm1462, 12.0, %v1362
  %v1464 = vsel %vm1462, %v1461, %v1363
  %v1465 = vld [vmem:[#allocation2 + $0x4] sm:$0xff]
  %v1466 = vld [vmem:[#allocation2 + $0xc] sm:$0xf]
  %vm1467 = vcmp.gt.f32.partialorder %v1465, 0.0
  %vm1468 = vcmp.gt.f32.partialorder %v1466, 0.0
  %v1469 = vlog2.pop %v1465
  %v1470 = vmul.f32 %v1469, 0.6931472
  %v1471 = vlog2.pop %v1466
  %v1472 = vmul.f32 %v1471, 0.6931472
  %1473 = vrot.lane.b32.xlu0 %v115, 1
  %v1474 = vpop.permute.xlu0 %1473
  %v1475 = vrot.slane %v1474, 4
  %v1476 = vsel %vm1443, %v1475, %v1474
  %v1479 = vsub.f32 %v1470, %v1476
  %v1480 = vsub.f32 %v1472, %v1475
  %v1481 = vmul.f32 %v1465, %v1479
  %v1482 = vmul.f32 %v1466, %v1480
  %v1483 = vsel %vm1467, %v1481, 0.0
  %v1484 = vsel %vm1468, %v1482, 0.0
  %v1486 = vcombine.high %v1483, %v1483
  %vm1488 = vcmask 1043464
  %v1489 = vsel %vm1488, %v1483, 0.0
  %v1490 = vrot.slane %v1489, 4
  %v1491 = vadd.f32 %v1489, %v1490
  %v1492 = vrot.slane %v1491, 2
  %v1493 = vadd.f32 %v1491, %v1492
  %v1494 = vrot.slane %v1493, 1
  %v1495 = vadd.f32 %v1493, %v1494
  %v1496 = vsel %vm157, %v1486, 0.0
  %v1497 = vrot.slane %v1496, 4
  %v1498 = vadd.f32 %v1496, %v1497
  %v1499 = vrot.slane %v1498, 2
  %v1500 = vadd.f32 %v1498, %v1499
  %v1501 = vrot.slane %v1500, 1
  %v1502 = vadd.f32 %v1500, %v1501
  %vm1503 = vcmask 3072
  %v1504 = vsel %vm1503, %v1484, 0.0
  %v1505 = vrot.slane %v1504, 4
  %v1506 = vadd.f32 %v1504, %v1505
  %v1507 = vrot.slane %v1506, 2
  %v1508 = vadd.f32 %v1506, %v1507
  %v1509 = vrot.slane %v1508, 1
  %v1510 = vadd.f32 %v1508, %v1509
  %v1511 = vmul.f32 %v1495, %v173
  %v1512 = vmul.f32 %v1502, %v173
  %v1513 = vmul.f32 %v1510, %v173
  %v1517 = vcombine.low %v1511, %v1512
  %v1519 = vunpack.c.l.s4 1966171168
  %v1520 = vunpack.c.0.s8 %v1519
  %v1521 = vlaneseq
  %v1522 = vshrl.u32 %v1521, 7
  %v1523 = vsub.s32 %v1520, %v1522
  %v1524 = vrot.slane %v1517, %v1523
  %v1526 = vunpack.c.l.s4 1966171168
  %v1527 = vunpack.c.0.s8 %v1526
  %v1528 = vlaneseq
  %v1529 = vshrl.u32 %v1528, 7
  %v1530 = vsub.s32 %v1527, %v1529
  %v1531 = vrot.slane %v1513, %v1530
  %v1532 = vcombine.low %v1524, %v1531
  %v1534 = vunpack.c.l.s4 1966171168
  %v1535 = vunpack.c.0.s8 %v1534
  %v1536 = vlaneseq
  %v1537 = vshrl.u32 %v1536, 7
  %v1538 = vsub.s32 %v1535, %v1537
  %v1539 = vrot.slane %v1532, %v1538
  %1540 = vrot.lane.b32.xlu0 %v1539, 127
  %v1541 = vpop.permute.xlu0 %1540
  %v1542 = vrot.slane %v1541, 1
  %v1543 = vsel %vm1375, %v1541, %v1542
  %v1545 = vsel %vm390, %v1543, 0.0
  %v1546 = vmul.f32 %v1545, 1.442695
  %v1547 = vpow.pop %v1546
  %v1548 = vsel %vm429, %v1547, 0.0
  %s1549 = scalar_lea.vmem [#allocation4], 21
  %1550 = vst.msk [vmem:[%s1549] ss:$8 sm:$0x3] %vm226, %v1548
  %1551 = vst.msk [vmem:[%s1549] ss:$8 sm:$0x0] %vm226, %v1548
  %v1552 = vadd.f32 %v1453, %v1548
  %v1553 = vld [vmem:[#allocation3 + $0x1] sm:$0x7]
  %1555 = vrot.lane.b32.xlu0 %v1553, 127
  %v1556 = vpop.permute.xlu0 %1555
  %v1557 = vrot.slane %v1556, 1
  %v1558 = vsel %vm1375, %v1556, %v1557
  %v1560 = vsel %vm390, %v1558, 0.0
  %vm1561 = vcmp.lt.f32.partialorder %v1560, %v1464
  %v1562 = vsel %vm1561, 13.0, %v1463
  %v1563 = vsel %vm1561, %v1560, %v1464
  %v1564 = vld [vmem:[#allocation2 + $0x4] sm:$0xff]
  %v1565 = vld [vmem:[#allocation2 + $0xc] sm:$0xf]
  %vm1566 = vcmp.gt.f32.partialorder %v1564, 0.0
  %vm1567 = vcmp.gt.f32.partialorder %v1565, 0.0
  %v1568 = vlog2.pop %v1564
  %v1569 = vmul.f32 %v1568, 0.6931472
  %v1570 = vlog2.pop %v1565
  %v1571 = vmul.f32 %v1570, 0.6931472
  %1572 = vrot.lane.b32.xlu0 %v115, 7
  %v1573 = vpop.permute.xlu0 %1572
  %v1574 = vrot.slane %v1573, 4
  %v1575 = vsel %vm1341, %v1574, %v1573
  %v1578 = vsub.f32 %v1569, %v1575
  %v1579 = vsub.f32 %v1571, %v1574
  %v1580 = vmul.f32 %v1564, %v1578
  %v1581 = vmul.f32 %v1565, %v1579
  %v1582 = vsel %vm1566, %v1580, 0.0
  %v1583 = vsel %vm1567, %v1581, 0.0
  %v1585 = vcombine.high %v1582, %v1582
  %vm1587 = vcmask 1043512
  %v1588 = vsel %vm1587, %v1582, 0.0
  %v1589 = vrot.slane %v1588, 4
  %v1590 = vadd.f32 %v1588, %v1589
  %v1591 = vrot.slane %v1590, 2
  %v1592 = vadd.f32 %v1590, %v1591
  %v1593 = vrot.slane %v1592, 1
  %v1594 = vadd.f32 %v1592, %v1593
  %v1595 = vsel %vm157, %v1585, 0.0
  %v1596 = vrot.slane %v1595, 4
  %v1597 = vadd.f32 %v1595, %v1596
  %v1598 = vrot.slane %v1597, 2
  %v1599 = vadd.f32 %v1597, %v1598
  %v1600 = vrot.slane %v1599, 1
  %v1601 = vadd.f32 %v1599, %v1600
  %vm1602 = vcmask 52224
  %v1603 = vsel %vm1602, %v1583, 0.0
  %v1604 = vrot.slane %v1603, 4
  %v1605 = vadd.f32 %v1603, %v1604
  %v1606 = vrot.slane %v1605, 2
  %v1607 = vadd.f32 %v1605, %v1606
  %v1608 = vrot.slane %v1607, 1
  %v1609 = vadd.f32 %v1607, %v1608
  %v1610 = vmul.f32 %v1594, %v173
  %v1611 = vmul.f32 %v1601, %v173
  %v1612 = vmul.f32 %v1609, %v173
  %vm1613 = vmand %vm799, %vm180
  %v1617 = vcombine.low %v1610, %v1611
  %v1619 = vunpack.c.l.s4 1966171168
  %v1620 = vunpack.c.0.s8 %v1619
  %v1621 = vlaneseq
  %v1622 = vshrl.u32 %v1621, 7
  %v1623 = vsub.s32 %v1620, %v1622
  %v1624 = vrot.slane %v1617, %v1623
  %v1626 = vunpack.c.l.s4 1966171168
  %v1627 = vunpack.c.0.s8 %v1626
  %v1628 = vlaneseq
  %v1629 = vshrl.u32 %v1628, 7
  %v1630 = vsub.s32 %v1627, %v1629
  %v1631 = vrot.slane %v1612, %v1630
  %v1632 = vcombine.low %v1624, %v1631
  %v1634 = vunpack.c.l.s4 1966171168
  %v1635 = vunpack.c.0.s8 %v1634
  %v1636 = vlaneseq
  %v1637 = vshrl.u32 %v1636, 7
  %v1638 = vsub.s32 %v1635, %v1637
  %v1639 = vrot.slane %v1632, %v1638
  %1640 = vrot.lane.b32.xlu0 %v1639, 121
  %v1641 = vpop.permute.xlu0 %1640
  %v1642 = vrot.slane %v1641, 1
  %v1643 = vsel %vm1272, %v1641, %v1642
  %v1645 = vsel %vm1613, %v1643, 0.0
  %v1646 = vmul.f32 %v1645, 1.442695
  %v1647 = vpow.pop %v1646
  %v1648 = vsel %vm837, %v1647, 0.0
  %v1649 = vsel %vm221, %v1648, 0.0
  %s1650 = scalar_lea.vmem [#allocation4], 22
  %1651 = vst.msk [vmem:[%s1650] ss:$8 sm:$0x3] %vm226, %v1649
  %1652 = vst.msk [vmem:[%s1650] ss:$8 sm:$0x0] %vm226, %v1649
  %v1653 = vadd.f32 %v1552, %v1649
  %v1654 = vld [vmem:[#allocation3 + $0x1] sm:$0x7]
  %1656 = vrot.lane.b32.xlu0 %v1654, 121
  %v1657 = vpop.permute.xlu0 %1656
  %v1658 = vrot.slane %v1657, 1
  %v1659 = vsel %vm1272, %v1657, %v1658
  %v1661 = vsel %vm1613, %v1659, 0.0
  %vm1662 = vcmp.lt.f32.partialorder %v1661, %v1563
  %v1663 = vsel %vm1662, 14.0, %v1562
  %v1664 = vsel %vm1662, %v1661, %v1563
  %v1665 = vld [vmem:[#allocation2 + $0x4] sm:$0xff]
  %v1666 = vld [vmem:[#allocation2 + $0xc] sm:$0xf]
  %vm1667 = vcmp.gt.f32.partialorder %v1665, 0.0
  %vm1668 = vcmp.gt.f32.partialorder %v1666, 0.0
  %v1669 = vlog2.pop %v1665
  %v1670 = vmul.f32 %v1669, 0.6931472
  %v1671 = vlog2.pop %v1666
  %v1672 = vmul.f32 %v1671, 0.6931472
  %1673 = vrot.lane.b32.xlu0 %v115, 8
  %v1674 = vpop.permute.xlu0 %1673
  %v1675 = vrot.slane %v1674, 4
  %v1676 = vsel %vm1239, %v1675, %v1674
  %v1679 = vsub.f32 %v1670, %v1676
  %v1680 = vsub.f32 %v1672, %v1675
  %v1681 = vmul.f32 %v1665, %v1679
  %v1682 = vmul.f32 %v1666, %v1680
  %v1683 = vsel %vm1667, %v1681, 0.0
  %v1684 = vsel %vm1668, %v1682, 0.0
  %v1686 = vcombine.high %v1683, %v1683
  %vm1688 = vcmask 1043520
  %v1689 = vsel %vm1688, %v1683, 0.0
  %v1690 = vrot.slane %v1689, 4
  %v1691 = vadd.f32 %v1689, %v1690
  %v1692 = vrot.slane %v1691, 2
  %v1693 = vadd.f32 %v1691, %v1692
  %v1694 = vrot.slane %v1693, 1
  %v1695 = vadd.f32 %v1693, %v1694
  %v1696 = vsel %vm157, %v1686, 0.0
  %v1697 = vrot.slane %v1696, 4
  %v1698 = vadd.f32 %v1696, %v1697
  %v1699 = vrot.slane %v1698, 2
  %v1700 = vadd.f32 %v1698, %v1699
  %v1701 = vrot.slane %v1700, 1
  %v1702 = vadd.f32 %v1700, %v1701
  %vm1703 = vcmask 60416
  %v1704 = vsel %vm1703, %v1684, 0.0
  %v1705 = vrot.slane %v1704, 4
  %v1706 = vadd.f32 %v1704, %v1705
  %v1707 = vrot.slane %v1706, 2
  %v1708 = vadd.f32 %v1706, %v1707
  %v1709 = vrot.slane %v1708, 1
  %v1710 = vadd.f32 %v1708, %v1709
  %v1711 = vmul.f32 %v1695, %v173
  %v1712 = vmul.f32 %v1702, %v173
  %v1713 = vmul.f32 %v1710, %v173
  %v1717 = vcombine.low %v1711, %v1712
  %v1719 = vunpack.c.l.s4 1966171168
  %v1720 = vunpack.c.0.s8 %v1719
  %v1721 = vlaneseq
  %v1722 = vshrl.u32 %v1721, 7
  %v1723 = vsub.s32 %v1720, %v1722
  %v1724 = vrot.slane %v1717, %v1723
  %v1726 = vunpack.c.l.s4 1966171168
  %v1727 = vunpack.c.0.s8 %v1726
  %v1728 = vlaneseq
  %v1729 = vshrl.u32 %v1728, 7
  %v1730 = vsub.s32 %v1727, %v1729
  %v1731 = vrot.slane %v1713, %v1730
  %v1732 = vcombine.low %v1724, %v1731
  %v1734 = vunpack.c.l.s4 1966171168
  %v1735 = vunpack.c.0.s8 %v1734
  %v1736 = vlaneseq
  %v1737 = vshrl.u32 %v1736, 7
  %v1738 = vsub.s32 %v1735, %v1737
  %v1739 = vrot.slane %v1732, %v1738
  %1740 = vrot.lane.b32.xlu0 %v1739, 120
  %v1741 = vpop.permute.xlu0 %1740
  %v1742 = vrot.slane %v1741, 1
  %v1743 = vsel %vm1171, %v1741, %v1742
  %v1745 = vsel %vm799, %v1743, 0.0
  %v1746 = vmul.f32 %v1745, 1.442695
  %v1747 = vpow.pop %v1746
  %v1748 = vsel %vm837, %v1747, 0.0
  %s1749 = scalar_lea.vmem [#allocation4], 23
  %1750 = vst.msk [vmem:[%s1749] ss:$8 sm:$0x3] %vm226, %v1748
  %1751 = vst.msk [vmem:[%s1749] ss:$8 sm:$0x0] %vm226, %v1748
  %v1752 = vadd.f32 %v1653, %v1748
  %v1753 = vld [vmem:[#allocation3 + $0x1] sm:$0x7]
  %1755 = vrot.lane.b32.xlu0 %v1753, 120
  %v1756 = vpop.permute.xlu0 %1755
  %v1757 = vrot.slane %v1756, 1
  %v1758 = vsel %vm1171, %v1756, %v1757
  %v1760 = vsel %vm799, %v1758, 0.0
  %vm1761 = vcmp.lt.f32.partialorder %v1760, %v1664
  %v1762 = vsel %vm1761, 15.0, %v1663
  %v1763 = vsel %vm1761, %v1760, %v1664
  %v1764 = vld [vmem:[#allocation2 + $0x4] sm:$0xff]
  %v1765 = vld [vmem:[#allocation2 + $0xc] sm:$0xf]
  %vm1766 = vcmp.gt.f32.partialorder %v1764, 0.0
  %vm1767 = vcmp.gt.f32.partialorder %v1765, 0.0
  %v1768 = vlog2.pop %v1764
  %v1769 = vmul.f32 %v1768, 0.6931472
  %v1770 = vlog2.pop %v1765
  %v1771 = vmul.f32 %v1770, 0.6931472
  %1772 = vrot.lane.b32.xlu0 %v115, 9
  %v1773 = vpop.permute.xlu0 %1772
  %v1774 = vrot.slane %v1773, 4
  %v1775 = vsel %vm1137, %v1774, %v1773
  %v1778 = vsub.f32 %v1769, %v1775
  %v1779 = vsub.f32 %v1771, %v1774
  %v1780 = vmul.f32 %v1764, %v1778
  %v1781 = vmul.f32 %v1765, %v1779
  %v1782 = vsel %vm1766, %v1780, 0.0
  %v1783 = vsel %vm1767, %v1781, 0.0
  %v1785 = vcombine.high %v1782, %v1782
  %vm1787 = vcmask 1043528
  %v1788 = vsel %vm1787, %v1782, 0.0
  %v1789 = vrot.slane %v1788, 4
  %v1790 = vadd.f32 %v1788, %v1789
  %v1791 = vrot.slane %v1790, 2
  %v1792 = vadd.f32 %v1790, %v1791
  %v1793 = vrot.slane %v1792, 1
  %v1794 = vadd.f32 %v1792, %v1793
  %v1795 = vsel %vm157, %v1785, 0.0
  %v1796 = vrot.slane %v1795, 4
  %v1797 = vadd.f32 %v1795, %v1796
  %v1798 = vrot.slane %v1797, 2
  %v1799 = vadd.f32 %v1797, %v1798
  %v1800 = vrot.slane %v1799, 1
  %v1801 = vadd.f32 %v1799, %v1800
  %vm1802 = vcmask 68608
  %v1803 = vsel %vm1802, %v1783, 0.0
  %v1804 = vrot.slane %v1803, 4
  %v1805 = vadd.f32 %v1803, %v1804
  %v1806 = vrot.slane %v1805, 2
  %v1807 = vadd.f32 %v1805, %v1806
  %v1808 = vrot.slane %v1807, 1
  %v1809 = vadd.f32 %v1807, %v1808
  %v1810 = vmul.f32 %v1794, %v173
  %v1811 = vmul.f32 %v1801, %v173
  %v1812 = vmul.f32 %v1809, %v173
  %vm1813 = vmand %vm799, %vm390
  %v1817 = vcombine.low %v1810, %v1811
  %v1819 = vunpack.c.l.s4 1966171168
  %v1820 = vunpack.c.0.s8 %v1819
  %v1821 = vlaneseq
  %v1822 = vshrl.u32 %v1821, 7
  %v1823 = vsub.s32 %v1820, %v1822
  %v1824 = vrot.slane %v1817, %v1823
  %v1826 = vunpack.c.l.s4 1966171168
  %v1827 = vunpack.c.0.s8 %v1826
  %v1828 = vlaneseq
  %v1829 = vshrl.u32 %v1828, 7
  %v1830 = vsub.s32 %v1827, %v1829
  %v1831 = vrot.slane %v1812, %v1830
  %v1832 = vcombine.low %v1824, %v1831
  %v1834 = vunpack.c.l.s4 1966171168
  %v1835 = vunpack.c.0.s8 %v1834
  %v1836 = vlaneseq
  %v1837 = vshrl.u32 %v1836, 7
  %v1838 = vsub.s32 %v1835, %v1837
  %v1839 = vrot.slane %v1832, %v1838
  %1840 = vrot.lane.b32.xlu0 %v1839, 119
  %v1841 = vpop.permute.xlu0 %1840
  %v1842 = vrot.slane %v1841, 1
  %v1843 = vsel %vm1068, %v1841, %v1842
  %v1845 = vsel %vm1813, %v1843, 0.0
  %v1846 = vmul.f32 %v1845, 1.442695
  %v1847 = vpow.pop %v1846
  %v1848 = vsel %vm837, %v1847, 0.0
  %v1849 = vsel %vm429, %v1848, 0.0
  %s1850 = scalar_lea.vmem [#allocation4], 32
  %1851 = vst.msk [vmem:[%s1850] ss:$8 sm:$0x3] %vm226, %v1849
  %1852 = vst.msk [vmem:[%s1850] ss:$8 sm:$0x0] %vm226, %v1849
  %v1853 = vadd.f32 %v1752, %v1849
  %v1854 = vld [vmem:[#allocation3 + $0x1] sm:$0x7]
  %1856 = vrot.lane.b32.xlu0 %v1854, 119
  %v1857 = vpop.permute.xlu0 %1856
  %v1858 = vrot.slane %v1857, 1
  %v1859 = vsel %vm1068, %v1857, %v1858
  %v1861 = vsel %vm1813, %v1859, 0.0
  %vm1862 = vcmp.lt.f32.partialorder %v1861, %v1763
  %v1863 = vsel %vm1862, 16.0, %v1762
  %v1864 = vsel %vm1862, %v1861, %v1763
  %v1865 = vld [vmem:[#allocation2 + $0x4] sm:$0xff]
  %v1866 = vld [vmem:[#allocation2 + $0xc] sm:$0xf]
  %vm1867 = vcmp.gt.f32.partialorder %v1865, 0.0
  %vm1868 = vcmp.gt.f32.partialorder %v1866, 0.0
  %v1869 = vlog2.pop %v1865
  %v1870 = vmul.f32 %v1869, 0.6931472
  %v1871 = vlog2.pop %v1866
  %v1872 = vmul.f32 %v1871, 0.6931472
  %v1873 = vsub.f32 %v1870, %v137
  %v1874 = vsub.f32 %v1872, %v135
  %v1875 = vmul.f32 %v1865, %v1873
  %v1876 = vmul.f32 %v1866, %v1874
  %v1877 = vsel %vm1867, %v1875, 0.0
  %v1878 = vsel %vm1868, %v1876, 0.0
  %v1880 = vcombine.high %v1877, %v1877
  %v1882 = vsel %vm149, %v1877, 0.0
  %v1883 = vrot.slane %v1882, 4
  %v1884 = vadd.f32 %v1882, %v1883
  %v1885 = vrot.slane %v1884, 2
  %v1886 = vadd.f32 %v1884, %v1885
  %v1887 = vrot.slane %v1886, 1
  %v1888 = vadd.f32 %v1886, %v1887
  %v1889 = vsel %vm157, %v1880, 0.0
  %v1890 = vrot.slane %v1889, 4
  %v1891 = vadd.f32 %v1889, %v1890
  %v1892 = vrot.slane %v1891, 2
  %v1893 = vadd.f32 %v1891, %v1892
  %v1894 = vrot.slane %v1893, 1
  %v1895 = vadd.f32 %v1893, %v1894
  %v1896 = vsel %vm165, %v1878, 0.0
  %v1897 = vrot.slane %v1896, 4
  %v1898 = vadd.f32 %v1896, %v1897
  %v1899 = vrot.slane %v1898, 2
  %v1900 = vadd.f32 %v1898, %v1899
  %v1901 = vrot.slane %v1900, 1
  %v1902 = vadd.f32 %v1900, %v1901
  %v1903 = vmul.f32 %v1888, %v173
  %v1904 = vmul.f32 %v1895, %v173
  %v1905 = vmul.f32 %v1902, %v173
  %vm1906 = vcmp.lt.f32.partialorder %v117, 1.0
  %vm1907 = vmand %vm1906, %vm178
  %vm1908 = vmand %vm1907, %vm180
  %v1912 = vcombine.low %v1903, %v1904
  %v1914 = vunpack.c.l.s4 1966171168
  %v1915 = vunpack.c.0.s8 %v1914
  %v1916 = vlaneseq
  %v1917 = vshrl.u32 %v1916, 7
  %v1918 = vsub.s32 %v1915, %v1917
  %v1919 = vrot.slane %v1912, %v1918
  %v1921 = vunpack.c.l.s4 1966171168
  %v1922 = vunpack.c.0.s8 %v1921
  %v1923 = vlaneseq
  %v1924 = vshrl.u32 %v1923, 7
  %v1925 = vsub.s32 %v1922, %v1924
  %v1926 = vrot.slane %v1905, %v1925
  %v1927 = vcombine.low %v1919, %v1926
  %v1929 = vunpack.c.l.s4 1966171168
  %v1930 = vunpack.c.0.s8 %v1929
  %v1931 = vlaneseq
  %v1932 = vshrl.u32 %v1931, 7
  %v1933 = vsub.s32 %v1930, %v1932
  %v1934 = vrot.slane %v1927, %v1933
  %1935 = vrot.lane.b32.xlu0 %v1934, 73
  %v1936 = vpop.permute.xlu0 %1935
  %v1937 = vrot.slane %v1936, 1
  %v1938 = vsel %vm211, %v1936, %v1937
  %v1940 = vsel %vm1908, %v1938, 0.0
  %v1941 = vmul.f32 %v1940, 1.442695
  %v1942 = vpow.pop %v1941
  %v1943 = vsel %vm219, %v1942, 0.0
  %v1944 = vsel %vm221, %v1943, 0.0
  %s1945 = scalar_lea.vmem [#allocation4], 33
  %1946 = vst.msk [vmem:[%s1945] ss:$8 sm:$0x3] %vm226, %v1944
  %1947 = vst.msk [vmem:[%s1945] ss:$8 sm:$0x0] %vm226, %v1944
  %v1948 = vadd.f32 %v1853, %v1944
  %v1949 = vld [vmem:[#allocation3 + $0x1] sm:$0x7]
  %1951 = vrot.lane.b32.xlu0 %v1949, 73
  %v1952 = vpop.permute.xlu0 %1951
  %v1953 = vrot.slane %v1952, 1
  %v1954 = vsel %vm211, %v1952, %v1953
  %v1956 = vsel %vm1908, %v1954, 0.0
  %vm1957 = vcmp.lt.f32.partialorder %v1956, %v1864
  %v1958 = vsel %vm1957, 17.0, %v1863
  %v1959 = vsel %vm1957, %v1956, %v1864
  %v1960 = vld [vmem:[#allocation2 + $0x4] sm:$0xff]
  %v1961 = vld [vmem:[#allocation2 + $0xc] sm:$0xf]
  %vm1962 = vcmp.gt.f32.partialorder %v1960, 0.0
  %vm1963 = vcmp.gt.f32.partialorder %v1961, 0.0
  %v1964 = vlog2.pop %v1960
  %v1965 = vmul.f32 %v1964, 0.6931472
  %v1966 = vlog2.pop %v1961
  %v1967 = vmul.f32 %v1966, 0.6931472
  %v1968 = vsub.f32 %v1965, %v250
  %v1969 = vsub.f32 %v1967, %v248
  %v1970 = vmul.f32 %v1960, %v1968
  %v1971 = vmul.f32 %v1961, %v1969
  %v1972 = vsel %vm1962, %v1970, 0.0
  %v1973 = vsel %vm1963, %v1971, 0.0
  %v1975 = vcombine.high %v1972, %v1972
  %v1977 = vsel %vm262, %v1972, 0.0
  %v1978 = vrot.slane %v1977, 4
  %v1979 = vadd.f32 %v1977, %v1978
  %v1980 = vrot.slane %v1979, 2
  %v1981 = vadd.f32 %v1979, %v1980
  %v1982 = vrot.slane %v1981, 1
  %v1983 = vadd.f32 %v1981, %v1982
  %v1984 = vsel %vm157, %v1975, 0.0
  %v1985 = vrot.slane %v1984, 4
  %v1986 = vadd.f32 %v1984, %v1985
  %v1987 = vrot.slane %v1986, 2
  %v1988 = vadd.f32 %v1986, %v1987
  %v1989 = vrot.slane %v1988, 1
  %v1990 = vadd.f32 %v1988, %v1989
  %v1991 = vsel %vm277, %v1973, 0.0
  %v1992 = vrot.slane %v1991, 4
  %v1993 = vadd.f32 %v1991, %v1992
  %v1994 = vrot.slane %v1993, 2
  %v1995 = vadd.f32 %v1993, %v1994
  %v1996 = vrot.slane %v1995, 1
  %v1997 = vadd.f32 %v1995, %v1996
  %v1998 = vmul.f32 %v1983, %v173
  %v1999 = vmul.f32 %v1990, %v173
  %v2000 = vmul.f32 %v1997, %v173
  %v2004 = vcombine.low %v1998, %v1999
  %v2006 = vunpack.c.l.s4 1966171168
  %v2007 = vunpack.c.0.s8 %v2006
  %v2008 = vlaneseq
  %v2009 = vshrl.u32 %v2008, 7
  %v2010 = vsub.s32 %v2007, %v2009
  %v2011 = vrot.slane %v2004, %v2010
  %v2013 = vunpack.c.l.s4 1966171168
  %v2014 = vunpack.c.0.s8 %v2013
  %v2015 = vlaneseq
  %v2016 = vshrl.u32 %v2015, 7
  %v2017 = vsub.s32 %v2014, %v2016
  %v2018 = vrot.slane %v2000, %v2017
  %v2019 = vcombine.low %v2011, %v2018
  %v2021 = vunpack.c.l.s4 1966171168
  %v2022 = vunpack.c.0.s8 %v2021
  %v2023 = vlaneseq
  %v2024 = vshrl.u32 %v2023, 7
  %v2025 = vsub.s32 %v2022, %v2024
  %v2026 = vrot.slane %v2019, %v2025
  %2027 = vrot.lane.b32.xlu0 %v2026, 72
  %v2028 = vpop.permute.xlu0 %2027
  %v2029 = vrot.slane %v2028, 1
  %v2030 = vsel %vm317, %v2028, %v2029
  %v2032 = vsel %vm1907, %v2030, 0.0
  %v2033 = vmul.f32 %v2032, 1.442695
  %v2034 = vpow.pop %v2033
  %v2035 = vsel %vm219, %v2034, 0.0
  %s2036 = scalar_lea.vmem [#allocation4], 34
  %2037 = vst.msk [vmem:[%s2036] ss:$8 sm:$0x3] %vm226, %v2035
  %2038 = vst.msk [vmem:[%s2036] ss:$8 sm:$0x0] %vm226, %v2035
  %v2039 = vadd.f32 %v1948, %v2035
  %v2040 = vld [vmem:[#allocation3 + $0x1] sm:$0x7]
  %2042 = vrot.lane.b32.xlu0 %v2040, 72
  %v2043 = vpop.permute.xlu0 %2042
  %v2044 = vrot.slane %v2043, 1
  %v2045 = vsel %vm317, %v2043, %v2044
  %v2047 = vsel %vm1907, %v2045, 0.0
  %vm2048 = vcmp.lt.f32.partialorder %v2047, %v1959
  %v2049 = vsel %vm2048, 18.0, %v1958
  %v2050 = vsel %vm2048, %v2047, %v1959
  %v2051 = vld [vmem:[#allocation2 + $0x4] sm:$0xff]
  %v2052 = vld [vmem:[#allocation2 + $0xc] sm:$0xf]
  %vm2053 = vcmp.gt.f32.partialorder %v2051, 0.0
  %vm2054 = vcmp.gt.f32.partialorder %v2052, 0.0
  %v2055 = vlog2.pop %v2051
  %v2056 = vmul.f32 %v2055, 0.6931472
  %v2057 = vlog2.pop %v2052
  %v2058 = vmul.f32 %v2057, 0.6931472
  %v2059 = vsub.f32 %v2056, %v352
  %v2060 = vsub.f32 %v2058, %v350
  %v2061 = vmul.f32 %v2051, %v2059
  %v2062 = vmul.f32 %v2052, %v2060
  %v2063 = vsel %vm2053, %v2061, 0.0
  %v2064 = vsel %vm2054, %v2062, 0.0
  %v2066 = vcombine.high %v2063, %v2063
  %v2068 = vsel %vm364, %v2063, 0.0
  %v2069 = vrot.slane %v2068, 4
  %v2070 = vadd.f32 %v2068, %v2069
  %v2071 = vrot.slane %v2070, 2
  %v2072 = vadd.f32 %v2070, %v2071
  %v2073 = vrot.slane %v2072, 1
  %v2074 = vadd.f32 %v2072, %v2073
  %v2075 = vsel %vm157, %v2066, 0.0
  %v2076 = vrot.slane %v2075, 4
  %v2077 = vadd.f32 %v2075, %v2076
  %v2078 = vrot.slane %v2077, 2
  %v2079 = vadd.f32 %v2077, %v2078
  %v2080 = vrot.slane %v2079, 1
  %v2081 = vadd.f32 %v2079, %v2080
  %v2082 = vsel %vm379, %v2064, 0.0
  %v2083 = vrot.slane %v2082, 4
  %v2084 = vadd.f32 %v2082, %v2083
  %v2085 = vrot.slane %v2084, 2
  %v2086 = vadd.f32 %v2084, %v2085
  %v2087 = vrot.slane %v2086, 1
  %v2088 = vadd.f32 %v2086, %v2087
  %v2089 = vmul.f32 %v2074, %v173
  %v2090 = vmul.f32 %v2081, %v173
  %v2091 = vmul.f32 %v2088, %v173
  %vm2092 = vmand %vm1907, %vm390
  %v2096 = vcombine.low %v2089, %v2090
  %v2098 = vunpack.c.l.s4 1966171168
  %v2099 = vunpack.c.0.s8 %v2098
  %v2100 = vlaneseq
  %v2101 = vshrl.u32 %v2100, 7
  %v2102 = vsub.s32 %v2099, %v2101
  %v2103 = vrot.slane %v2096, %v2102
  %v2105 = vunpack.c.l.s4 1966171168
  %v2106 = vunpack.c.0.s8 %v2105
  %v2107 = vlaneseq
  %v2108 = vshrl.u32 %v2107, 7
  %v2109 = vsub.s32 %v2106, %v2108
  %v2110 = vrot.slane %v2091, %v2109
  %v2111 = vcombine.low %v2103, %v2110
  %v2113 = vunpack.c.l.s4 1966171168
  %v2114 = vunpack.c.0.s8 %v2113
  %v2115 = vlaneseq
  %v2116 = vshrl.u32 %v2115, 7
  %v2117 = vsub.s32 %v2114, %v2116
  %v2118 = vrot.slane %v2111, %v2117
  %2119 = vrot.lane.b32.xlu0 %v2118, 71
  %v2120 = vpop.permute.xlu0 %2119
  %v2121 = vrot.slane %v2120, 1
  %v2122 = vsel %vm421, %v2120, %v2121
  %v2124 = vsel %vm2092, %v2122, 0.0
  %v2125 = vmul.f32 %v2124, 1.442695
  %v2126 = vpow.pop %v2125
  %v2127 = vsel %vm219, %v2126, 0.0
  %v2128 = vsel %vm429, %v2127, 0.0
  %s2129 = scalar_lea.vmem [#allocation4], 35
  %2130 = vst.msk [vmem:[%s2129] ss:$8 sm:$0x3] %vm226, %v2128
  %2131 = vst.msk [vmem:[%s2129] ss:$8 sm:$0x0] %vm226, %v2128
  %v2132 = vadd.f32 %v2039, %v2128
  %v2133 = vld [vmem:[#allocation3 + $0x1] sm:$0x7]
  %2135 = vrot.lane.b32.xlu0 %v2133, 71
  %v2136 = vpop.permute.xlu0 %2135
  %v2137 = vrot.slane %v2136, 1
  %v2138 = vsel %vm421, %v2136, %v2137
  %v2140 = vsel %vm2092, %v2138, 0.0
  %vm2141 = vcmp.lt.f32.partialorder %v2140, %v2050
  %v2142 = vsel %vm2141, 19.0, %v2049
  %v2143 = vsel %vm2141, %v2140, %v2050
  %v2144 = vld [vmem:[#allocation2 + $0x4] sm:$0xff]
  %v2145 = vld [vmem:[#allocation2 + $0xc] sm:$0xf]
  %vm2146 = vcmp.gt.f32.partialorder %v2144, 0.0
  %vm2147 = vcmp.gt.f32.partialorder %v2145, 0.0
  %v2148 = vlog2.pop %v2144
  %v2149 = vmul.f32 %v2148, 0.6931472
  %v2150 = vlog2.pop %v2145
  %v2151 = vmul.f32 %v2150, 0.6931472
  %v2152 = vsub.f32 %v2149, %v458
  %v2153 = vsub.f32 %v2151, %v456
  %v2154 = vmul.f32 %v2144, %v2152
  %v2155 = vmul.f32 %v2145, %v2153
  %v2156 = vsel %vm2146, %v2154, 0.0
  %v2157 = vsel %vm2147, %v2155, 0.0
  %v2159 = vcombine.high %v2156, %v2156
  %v2161 = vsel %vm470, %v2156, 0.0
  %v2162 = vrot.slane %v2161, 4
  %v2163 = vadd.f32 %v2161, %v2162
  %v2164 = vrot.slane %v2163, 2
  %v2165 = vadd.f32 %v2163, %v2164
  %v2166 = vrot.slane %v2165, 1
  %v2167 = vadd.f32 %v2165, %v2166
  %v2168 = vsel %vm157, %v2159, 0.0
  %v2169 = vrot.slane %v2168, 4
  %v2170 = vadd.f32 %v2168, %v2169
  %v2171 = vrot.slane %v2170, 2
  %v2172 = vadd.f32 %v2170, %v2171
  %v2173 = vrot.slane %v2172, 1
  %v2174 = vadd.f32 %v2172, %v2173
  %v2175 = vsel %vm485, %v2157, 0.0
  %v2176 = vrot.slane %v2175, 4
  %v2177 = vadd.f32 %v2175, %v2176
  %v2178 = vrot.slane %v2177, 2
  %v2179 = vadd.f32 %v2177, %v2178
  %v2180 = vrot.slane %v2179, 1
  %v2181 = vadd.f32 %v2179, %v2180
  %v2182 = vmul.f32 %v2167, %v173
  %v2183 = vmul.f32 %v2174, %v173
  %v2184 = vmul.f32 %v2181, %v173
  %vm2185 = vmand %vm1906, %vm180
  %v2189 = vcombine.low %v2182, %v2183
  %v2191 = vunpack.c.l.s4 1966171168
  %v2192 = vunpack.c.0.s8 %v2191
  %v2193 = vlaneseq
  %v2194 = vshrl.u32 %v2193, 7
  %v2195 = vsub.s32 %v2192, %v2194
  %v2196 = vrot.slane %v2189, %v2195
  %v2198 = vunpack.c.l.s4 1966171168
  %v2199 = vunpack.c.0.s8 %v2198
  %v2200 = vlaneseq
  %v2201 = vshrl.u32 %v2200, 7
  %v2202 = vsub.s32 %v2199, %v2201
  %v2203 = vrot.slane %v2184, %v2202
  %v2204 = vcombine.low %v2196, %v2203
  %v2206 = vunpack.c.l.s4 1966171168
  %v2207 = vunpack.c.0.s8 %v2206
  %v2208 = vlaneseq
  %v2209 = vshrl.u32 %v2208, 7
  %v2210 = vsub.s32 %v2207, %v2209
  %v2211 = vrot.slane %v2204, %v2210
  %2212 = vrot.lane.b32.xlu0 %v2211, 65
  %v2213 = vpop.permute.xlu0 %2212
  %v2214 = vrot.slane %v2213, 1
  %v2215 = vsel %vm526, %v2213, %v2214
  %v2217 = vsel %vm2185, %v2215, 0.0
  %v2218 = vmul.f32 %v2217, 1.442695
  %v2219 = vpow.pop %v2218
  %v2220 = vsel %vm221, %v2219, 0.0
  %s2221 = scalar_lea.vmem [#allocation4], 36
  %2222 = vst.msk [vmem:[%s2221] ss:$8 sm:$0x3] %vm226, %v2220
  %2223 = vst.msk [vmem:[%s2221] ss:$8 sm:$0x0] %vm226, %v2220
  %v2224 = vadd.f32 %v2132, %v2220
  %v2225 = vld [vmem:[#allocation3 + $0x1] sm:$0x7]
  %2227 = vrot.lane.b32.xlu0 %v2225, 65
  %v2228 = vpop.permute.xlu0 %2227
  %v2229 = vrot.slane %v2228, 1
  %v2230 = vsel %vm526, %v2228, %v2229
  %v2232 = vsel %vm2185, %v2230, 0.0
  %vm2233 = vcmp.lt.f32.partialorder %v2232, %v2143
  %v2234 = vsel %vm2233, 20.0, %v2142
  %v2235 = vsel %vm2233, %v2232, %v2143
  %v2236 = vld [vmem:[#allocation2 + $0x4] sm:$0xff]
  %v2237 = vld [vmem:[#allocation2 + $0xc] sm:$0xf]
  %vm2238 = vcmp.gt.f32.partialorder %v2236, 0.0
  %vm2239 = vcmp.gt.f32.partialorder %v2237, 0.0
  %v2240 = vlog2.pop %v2236
  %v2241 = vmul.f32 %v2240, 0.6931472
  %v2242 = vlog2.pop %v2237
  %v2243 = vmul.f32 %v2242, 0.6931472
  %v2244 = vsub.f32 %v2241, %v561
  %v2245 = vsub.f32 %v2243, %v559
  %v2246 = vmul.f32 %v2236, %v2244
  %v2247 = vmul.f32 %v2237, %v2245
  %v2248 = vsel %vm2238, %v2246, 0.0
  %v2249 = vsel %vm2239, %v2247, 0.0
  %v2251 = vcombine.high %v2248, %v2248
  %v2253 = vsel %vm573, %v2248, 0.0
  %v2254 = vrot.slane %v2253, 4
  %v2255 = vadd.f32 %v2253, %v2254
  %v2256 = vrot.slane %v2255, 2
  %v2257 = vadd.f32 %v2255, %v2256
  %v2258 = vrot.slane %v2257, 1
  %v2259 = vadd.f32 %v2257, %v2258
  %v2260 = vsel %vm157, %v2251, 0.0
  %v2261 = vrot.slane %v2260, 4
  %v2262 = vadd.f32 %v2260, %v2261
  %v2263 = vrot.slane %v2262, 2
  %v2264 = vadd.f32 %v2262, %v2263
  %v2265 = vrot.slane %v2264, 1
  %v2266 = vadd.f32 %v2264, %v2265
  %v2267 = vsel %vm588, %v2249, 0.0
  %v2268 = vrot.slane %v2267, 4
  %v2269 = vadd.f32 %v2267, %v2268
  %v2270 = vrot.slane %v2269, 2
  %v2271 = vadd.f32 %v2269, %v2270
  %v2272 = vrot.slane %v2271, 1
  %v2273 = vadd.f32 %v2271, %v2272
  %v2274 = vmul.f32 %v2259, %v173
  %v2275 = vmul.f32 %v2266, %v173
  %v2276 = vmul.f32 %v2273, %v173
  %v2280 = vcombine.low %v2274, %v2275
  %v2282 = vunpack.c.l.s4 1966171168
  %v2283 = vunpack.c.0.s8 %v2282
  %v2284 = vlaneseq
  %v2285 = vshrl.u32 %v2284, 7
  %v2286 = vsub.s32 %v2283, %v2285
  %v2287 = vrot.slane %v2280, %v2286
  %v2289 = vunpack.c.l.s4 1966171168
  %v2290 = vunpack.c.0.s8 %v2289
  %v2291 = vlaneseq
  %v2292 = vshrl.u32 %v2291, 7
  %v2293 = vsub.s32 %v2290, %v2292
  %v2294 = vrot.slane %v2276, %v2293
  %v2295 = vcombine.low %v2287, %v2294
  %v2297 = vunpack.c.l.s4 1966171168
  %v2298 = vunpack.c.0.s8 %v2297
  %v2299 = vlaneseq
  %v2300 = vshrl.u32 %v2299, 7
  %v2301 = vsub.s32 %v2298, %v2300
  %v2302 = vrot.slane %v2295, %v2301
  %2303 = vrot.lane.b32.xlu0 %v2302, 64
  %v2304 = vpop.permute.xlu0 %2303
  %v2305 = vrot.slane %v2304, 1
  %v2306 = vsel %vm560, %v2304, %v2305
  %v2308 = vsel %vm1906, %v2306, 0.0
  %v2309 = vmul.f32 %v2308, 1.442695
  %v2310 = vpow.pop %v2309
  %s2311 = scalar_lea.vmem [#allocation4], 37
  %2312 = vst.msk [vmem:[%s2311] ss:$8 sm:$0x3] %vm226, %v2310
  %2313 = vst.msk [vmem:[%s2311] ss:$8 sm:$0x0] %vm226, %v2310
  %v2314 = vadd.f32 %v2224, %v2310
  %v2315 = vld [vmem:[#allocation3 + $0x1] sm:$0x7]
  %2317 = vrot.lane.b32.xlu0 %v2315, 64
  %v2318 = vpop.permute.xlu0 %2317
  %v2319 = vrot.slane %v2318, 1
  %v2320 = vsel %vm560, %v2318, %v2319
  %v2322 = vsel %vm1906, %v2320, 0.0
  %vm2323 = vcmp.lt.f32.partialorder %v2322, %v2235
  %v2324 = vsel %vm2323, 21.0, %v2234
  %v2325 = vsel %vm2323, %v2322, %v2235
  %v2326 = vld [vmem:[#allocation2 + $0x4] sm:$0xff]
  %v2327 = vld [vmem:[#allocation2 + $0xc] sm:$0xf]
  %vm2328 = vcmp.gt.f32.partialorder %v2326, 0.0
  %vm2329 = vcmp.gt.f32.partialorder %v2327, 0.0
  %v2330 = vlog2.pop %v2326
  %v2331 = vmul.f32 %v2330, 0.6931472
  %v2332 = vlog2.pop %v2327
  %v2333 = vmul.f32 %v2332, 0.6931472
  %v2334 = vsub.f32 %v2331, %v660
  %v2335 = vsub.f32 %v2333, %v659
  %v2336 = vmul.f32 %v2326, %v2334
  %v2337 = vmul.f32 %v2327, %v2335
  %v2338 = vsel %vm2328, %v2336, 0.0
  %v2339 = vsel %vm2329, %v2337, 0.0
  %v2341 = vcombine.high %v2338, %v2338
  %v2343 = vsel %vm672, %v2338, 0.0
  %v2344 = vrot.slane %v2343, 4
  %v2345 = vadd.f32 %v2343, %v2344
  %v2346 = vrot.slane %v2345, 2
  %v2347 = vadd.f32 %v2345, %v2346
  %v2348 = vrot.slane %v2347, 1
  %v2349 = vadd.f32 %v2347, %v2348
  %v2350 = vsel %vm157, %v2341, 0.0
  %v2351 = vrot.slane %v2350, 4
  %v2352 = vadd.f32 %v2350, %v2351
  %v2353 = vrot.slane %v2352, 2
  %v2354 = vadd.f32 %v2352, %v2353
  %v2355 = vrot.slane %v2354, 1
  %v2356 = vadd.f32 %v2354, %v2355
  %v2357 = vsel %vm687, %v2339, 0.0
  %v2358 = vrot.slane %v2357, 4
  %v2359 = vadd.f32 %v2357, %v2358
  %v2360 = vrot.slane %v2359, 2
  %v2361 = vadd.f32 %v2359, %v2360
  %v2362 = vrot.slane %v2361, 1
  %v2363 = vadd.f32 %v2361, %v2362
  %v2364 = vmul.f32 %v2349, %v173
  %v2365 = vmul.f32 %v2356, %v173
  %v2366 = vmul.f32 %v2363, %v173
  %vm2367 = vmand %vm1906, %vm390
  %v2371 = vcombine.low %v2364, %v2365
  %v2373 = vunpack.c.l.s4 1966171168
  %v2374 = vunpack.c.0.s8 %v2373
  %v2375 = vlaneseq
  %v2376 = vshrl.u32 %v2375, 7
  %v2377 = vsub.s32 %v2374, %v2376
  %v2378 = vrot.slane %v2371, %v2377
  %v2380 = vunpack.c.l.s4 1966171168
  %v2381 = vunpack.c.0.s8 %v2380
  %v2382 = vlaneseq
  %v2383 = vshrl.u32 %v2382, 7
  %v2384 = vsub.s32 %v2381, %v2383
  %v2385 = vrot.slane %v2366, %v2384
  %v2386 = vcombine.low %v2378, %v2385
  %v2388 = vunpack.c.l.s4 1966171168
  %v2389 = vunpack.c.0.s8 %v2388
  %v2390 = vlaneseq
  %v2391 = vshrl.u32 %v2390, 7
  %v2392 = vsub.s32 %v2389, %v2391
  %v2393 = vrot.slane %v2386, %v2392
  %2394 = vrot.lane.b32.xlu0 %v2393, 63
  %v2395 = vpop.permute.xlu0 %2394
  %v2396 = vrot.slane %v2395, 1
  %v2397 = vsel %vm457, %v2395, %v2396
  %v2399 = vsel %vm2367, %v2397, 0.0
  %v2400 = vmul.f32 %v2399, 1.442695
  %v2401 = vpow.pop %v2400
  %v2402 = vsel %vm429, %v2401, 0.0
  %s2403 = scalar_lea.vmem [#allocation4], 38
  %2404 = vst.msk [vmem:[%s2403] ss:$8 sm:$0x3] %vm226, %v2402
  %2405 = vst.msk [vmem:[%s2403] ss:$8 sm:$0x0] %vm226, %v2402
  %v2406 = vadd.f32 %v2314, %v2402
  %v2407 = vld [vmem:[#allocation3 + $0x1] sm:$0x7]
  %2409 = vrot.lane.b32.xlu0 %v2407, 63
  %v2410 = vpop.permute.xlu0 %2409
  %v2411 = vrot.slane %v2410, 1
  %v2412 = vsel %vm457, %v2410, %v2411
  %v2414 = vsel %vm2367, %v2412, 0.0
  %vm2415 = vcmp.lt.f32.partialorder %v2414, %v2325
  %v2416 = vsel %vm2415, 22.0, %v2324
  %v2417 = vsel %vm2415, %v2414, %v2325
  %v2418 = vld [vmem:[#allocation2 + $0x4] sm:$0xff]
  %v2419 = vld [vmem:[#allocation2 + $0xc] sm:$0xf]
  %vm2420 = vcmp.gt.f32.partialorder %v2418, 0.0
  %vm2421 = vcmp.gt.f32.partialorder %v2419, 0.0
  %v2422 = vlog2.pop %v2418
  %v2423 = vmul.f32 %v2422, 0.6931472
  %v2424 = vlog2.pop %v2419
  %v2425 = vmul.f32 %v2424, 0.6931472
  %v2426 = vsub.f32 %v2423, %v761
  %v2427 = vsub.f32 %v2425, %v760
  %v2428 = vmul.f32 %v2418, %v2426
  %v2429 = vmul.f32 %v2419, %v2427
  %v2430 = vsel %vm2420, %v2428, 0.0
  %v2431 = vsel %vm2421, %v2429, 0.0
  %v2433 = vcombine.high %v2430, %v2430
  %v2435 = vsel %vm773, %v2430, 0.0
  %v2436 = vrot.slane %v2435, 4
  %v2437 = vadd.f32 %v2435, %v2436
  %v2438 = vrot.slane %v2437, 2
  %v2439 = vadd.f32 %v2437, %v2438
  %v2440 = vrot.slane %v2439, 1
  %v2441 = vadd.f32 %v2439, %v2440
  %v2442 = vsel %vm157, %v2433, 0.0
  %v2443 = vrot.slane %v2442, 4
  %v2444 = vadd.f32 %v2442, %v2443
  %v2445 = vrot.slane %v2444, 2
  %v2446 = vadd.f32 %v2444, %v2445
  %v2447 = vrot.slane %v2446, 1
  %v2448 = vadd.f32 %v2446, %v2447
  %v2449 = vsel %vm788, %v2431, 0.0
  %v2450 = vrot.slane %v2449, 4
  %v2451 = vadd.f32 %v2449, %v2450
  %v2452 = vrot.slane %v2451, 2
  %v2453 = vadd.f32 %v2451, %v2452
  %v2454 = vrot.slane %v2453, 1
  %v2455 = vadd.f32 %v2453, %v2454
  %v2456 = vmul.f32 %v2441, %v173
  %v2457 = vmul.f32 %v2448, %v173
  %v2458 = vmul.f32 %v2455, %v173
  %vm2459 = vmand %vm1906, %vm799
  %vm2460 = vmand %vm2459, %vm180
  %v2464 = vcombine.low %v2456, %v2457
  %v2466 = vunpack.c.l.s4 1966171168
  %v2467 = vunpack.c.0.s8 %v2466
  %v2468 = vlaneseq
  %v2469 = vshrl.u32 %v2468, 7
  %v2470 = vsub.s32 %v2467, %v2469
  %v2471 = vrot.slane %v2464, %v2470
  %v2473 = vunpack.c.l.s4 1966171168
  %v2474 = vunpack.c.0.s8 %v2473
  %v2475 = vlaneseq
  %v2476 = vshrl.u32 %v2475, 7
  %v2477 = vsub.s32 %v2474, %v2476
  %v2478 = vrot.slane %v2458, %v2477
  %v2479 = vcombine.low %v2471, %v2478
  %v2481 = vunpack.c.l.s4 1966171168
  %v2482 = vunpack.c.0.s8 %v2481
  %v2483 = vlaneseq
  %v2484 = vshrl.u32 %v2483, 7
  %v2485 = vsub.s32 %v2482, %v2484
  %v2486 = vrot.slane %v2479, %v2485
  %2487 = vrot.lane.b32.xlu0 %v2486, 57
  %v2488 = vpop.permute.xlu0 %2487
  %v2489 = vrot.slane %v2488, 1
  %v2490 = vsel %vm351, %v2488, %v2489
  %v2492 = vsel %vm2460, %v2490, 0.0
  %v2493 = vmul.f32 %v2492, 1.442695
  %v2494 = vpow.pop %v2493
  %v2495 = vsel %vm837, %v2494, 0.0
  %v2496 = vsel %vm221, %v2495, 0.0
  %s2497 = scalar_lea.vmem [#allocation4], 39
  %2498 = vst.msk [vmem:[%s2497] ss:$8 sm:$0x3] %vm226, %v2496
  %2499 = vst.msk [vmem:[%s2497] ss:$8 sm:$0x0] %vm226, %v2496
  %v2500 = vadd.f32 %v2406, %v2496
  %v2501 = vld [vmem:[#allocation3 + $0x1] sm:$0x7]
  %2503 = vrot.lane.b32.xlu0 %v2501, 57
  %v2504 = vpop.permute.xlu0 %2503
  %v2505 = vrot.slane %v2504, 1
  %v2506 = vsel %vm351, %v2504, %v2505
  %v2508 = vsel %vm2460, %v2506, 0.0
  %vm2509 = vcmp.lt.f32.partialorder %v2508, %v2417
  %v2510 = vsel %vm2509, 23.0, %v2416
  %v2511 = vsel %vm2509, %v2508, %v2417
  %v2512 = vld [vmem:[#allocation2 + $0x4] sm:$0xff]
  %v2513 = vld [vmem:[#allocation2 + $0xc] sm:$0xf]
  %vm2514 = vcmp.gt.f32.partialorder %v2512, 0.0
  %vm2515 = vcmp.gt.f32.partialorder %v2513, 0.0
  %v2516 = vlog2.pop %v2512
  %v2517 = vmul.f32 %v2516, 0.6931472
  %v2518 = vlog2.pop %v2513
  %v2519 = vmul.f32 %v2518, 0.6931472
  %v2520 = vsub.f32 %v2517, %v866
  %v2521 = vsub.f32 %v2519, %v865
  %v2522 = vmul.f32 %v2512, %v2520
  %v2523 = vmul.f32 %v2513, %v2521
  %v2524 = vsel %vm2514, %v2522, 0.0
  %v2525 = vsel %vm2515, %v2523, 0.0
  %v2527 = vcombine.high %v2524, %v2524
  %v2529 = vsel %vm878, %v2524, 0.0
  %v2530 = vrot.slane %v2529, 4
  %v2531 = vadd.f32 %v2529, %v2530
  %v2532 = vrot.slane %v2531, 2
  %v2533 = vadd.f32 %v2531, %v2532
  %v2534 = vrot.slane %v2533, 1
  %v2535 = vadd.f32 %v2533, %v2534
  %v2536 = vsel %vm157, %v2527, 0.0
  %v2537 = vrot.slane %v2536, 4
  %v2538 = vadd.f32 %v2536, %v2537
  %v2539 = vrot.slane %v2538, 2
  %v2540 = vadd.f32 %v2538, %v2539
  %v2541 = vrot.slane %v2540, 1
  %v2542 = vadd.f32 %v2540, %v2541
  %v2543 = vsel %vm893, %v2525, 0.0
  %v2544 = vrot.slane %v2543, 4
  %v2545 = vadd.f32 %v2543, %v2544
  %v2546 = vrot.slane %v2545, 2
  %v2547 = vadd.f32 %v2545, %v2546
  %v2548 = vrot.slane %v2547, 1
  %v2549 = vadd.f32 %v2547, %v2548
  %v2550 = vmul.f32 %v2535, %v173
  %v2551 = vmul.f32 %v2542, %v173
  %v2552 = vmul.f32 %v2549, %v173
  %v2556 = vcombine.low %v2550, %v2551
  %v2558 = vunpack.c.l.s4 1966171168
  %v2559 = vunpack.c.0.s8 %v2558
  %v2560 = vlaneseq
  %v2561 = vshrl.u32 %v2560, 7
  %v2562 = vsub.s32 %v2559, %v2561
  %v2563 = vrot.slane %v2556, %v2562
  %v2565 = vunpack.c.l.s4 1966171168
  %v2566 = vunpack.c.0.s8 %v2565
  %v2567 = vlaneseq
  %v2568 = vshrl.u32 %v2567, 7
  %v2569 = vsub.s32 %v2566, %v2568
  %v2570 = vrot.slane %v2552, %v2569
  %v2571 = vcombine.low %v2563, %v2570
  %v2573 = vunpack.c.l.s4 1966171168
  %v2574 = vunpack.c.0.s8 %v2573
  %v2575 = vlaneseq
  %v2576 = vshrl.u32 %v2575, 7
  %v2577 = vsub.s32 %v2574, %v2576
  %v2578 = vrot.slane %v2571, %v2577
  %2579 = vrot.lane.b32.xlu0 %v2578, 56
  %v2580 = vpop.permute.xlu0 %2579
  %v2581 = vrot.slane %v2580, 1
  %v2582 = vsel %vm249, %v2580, %v2581
  %v2584 = vsel %vm2459, %v2582, 0.0
  %v2585 = vmul.f32 %v2584, 1.442695
  %v2586 = vpow.pop %v2585
  %v2587 = vsel %vm837, %v2586, 0.0
  %s2588 = scalar_lea.vmem [#allocation4], 48
  %2589 = vst.msk [vmem:[%s2588] ss:$8 sm:$0x3] %vm226, %v2587
  %2590 = vst.msk [vmem:[%s2588] ss:$8 sm:$0x0] %vm226, %v2587
  %v2591 = vadd.f32 %v2500, %v2587
  %v2592 = vld [vmem:[#allocation3 + $0x1] sm:$0x7]
  %2594 = vrot.lane.b32.xlu0 %v2592, 56
  %v2595 = vpop.permute.xlu0 %2594
  %v2596 = vrot.slane %v2595, 1
  %v2597 = vsel %vm249, %v2595, %v2596
  %v2599 = vsel %vm2459, %v2597, 0.0
  %vm2600 = vcmp.lt.f32.partialorder %v2599, %v2511
  %v2601 = vsel %vm2600, 24.0, %v2510
  %v2602 = vsel %vm2600, %v2599, %v2511
  %v2603 = vld [vmem:[#allocation2 + $0x4] sm:$0xff]
  %v2604 = vld [vmem:[#allocation2 + $0xc] sm:$0xf]
  %vm2605 = vcmp.gt.f32.partialorder %v2603, 0.0
  %vm2606 = vcmp.gt.f32.partialorder %v2604, 0.0
  %v2607 = vlog2.pop %v2603
  %v2608 = vmul.f32 %v2607, 0.6931472
  %v2609 = vlog2.pop %v2604
  %v2610 = vmul.f32 %v2609, 0.6931472
  %v2611 = vsub.f32 %v2608, %v966
  %v2612 = vsub.f32 %v2610, %v965
  %v2613 = vmul.f32 %v2603, %v2611
  %v2614 = vmul.f32 %v2604, %v2612
  %v2615 = vsel %vm2605, %v2613, 0.0
  %v2616 = vsel %vm2606, %v2614, 0.0
  %v2618 = vcombine.high %v2615, %v2615
  %v2620 = vsel %vm978, %v2615, 0.0
  %v2621 = vrot.slane %v2620, 4
  %v2622 = vadd.f32 %v2620, %v2621
  %v2623 = vrot.slane %v2622, 2
  %v2624 = vadd.f32 %v2622, %v2623
  %v2625 = vrot.slane %v2624, 1
  %v2626 = vadd.f32 %v2624, %v2625
  %v2627 = vsel %vm157, %v2618, 0.0
  %v2628 = vrot.slane %v2627, 4
  %v2629 = vadd.f32 %v2627, %v2628
  %v2630 = vrot.slane %v2629, 2
  %v2631 = vadd.f32 %v2629, %v2630
  %v2632 = vrot.slane %v2631, 1
  %v2633 = vadd.f32 %v2631, %v2632
  %v2634 = vsel %vm993, %v2616, 0.0
  %v2635 = vrot.slane %v2634, 4
  %v2636 = vadd.f32 %v2634, %v2635
  %v2637 = vrot.slane %v2636, 2
  %v2638 = vadd.f32 %v2636, %v2637
  %v2639 = vrot.slane %v2638, 1
  %v2640 = vadd.f32 %v2638, %v2639
  %v2641 = vmul.f32 %v2626, %v173
  %v2642 = vmul.f32 %v2633, %v173
  %v2643 = vmul.f32 %v2640, %v173
  %vm2644 = vmand %vm2459, %vm390
  %v2648 = vcombine.low %v2641, %v2642
  %v2650 = vunpack.c.l.s4 1966171168
  %v2651 = vunpack.c.0.s8 %v2650
  %v2652 = vlaneseq
  %v2653 = vshrl.u32 %v2652, 7
  %v2654 = vsub.s32 %v2651, %v2653
  %v2655 = vrot.slane %v2648, %v2654
  %v2657 = vunpack.c.l.s4 1966171168
  %v2658 = vunpack.c.0.s8 %v2657
  %v2659 = vlaneseq
  %v2660 = vshrl.u32 %v2659, 7
  %v2661 = vsub.s32 %v2658, %v2660
  %v2662 = vrot.slane %v2643, %v2661
  %v2663 = vcombine.low %v2655, %v2662
  %v2665 = vunpack.c.l.s4 1966171168
  %v2666 = vunpack.c.0.s8 %v2665
  %v2667 = vlaneseq
  %v2668 = vshrl.u32 %v2667, 7
  %v2669 = vsub.s32 %v2666, %v2668
  %v2670 = vrot.slane %v2663, %v2669
  %2671 = vrot.lane.b32.xlu0 %v2670, 55
  %v2672 = vpop.permute.xlu0 %2671
  %v2673 = vrot.slane %v2672, 1
  %v2674 = vsel %vm136, %v2672, %v2673
  %v2676 = vsel %vm2644, %v2674, 0.0
  %v2677 = vmul.f32 %v2676, 1.442695
  %v2678 = vpow.pop %v2677
  %v2679 = vsel %vm837, %v2678, 0.0
  %v2680 = vsel %vm429, %v2679, 0.0
  %s2681 = scalar_lea.vmem [#allocation4], 49
  %2682 = vst.msk [vmem:[%s2681] ss:$8 sm:$0x3] %vm226, %v2680
  %2683 = vst.msk [vmem:[%s2681] ss:$8 sm:$0x0] %vm226, %v2680
  %v2684 = vadd.f32 %v2591, %v2680
  %v2685 = vld [vmem:[#allocation3 + $0x1] sm:$0x7]
  %2687 = vrot.lane.b32.xlu0 %v2685, 55
  %v2688 = vpop.permute.xlu0 %2687
  %v2689 = vrot.slane %v2688, 1
  %v2690 = vsel %vm136, %v2688, %v2689
  %v2692 = vsel %vm2644, %v2690, 0.0
  %vm2693 = vcmp.lt.f32.partialorder %v2692, %v2602
  %v2694 = vsel %vm2693, 25.0, %v2601
  %v2695 = vrcp.pop %v2684
  %v2696 = vld [vmem:[#allocation4] ss:$8 sm:$0x3]
  %v2697 = vmul.f32 %v2696, %v2695
  %vm2698 = vcmp.eq.f32.partialorder %v2694, 0.0
  %v2699 = vsel %vm2698, 0.8, 0.0076923077
  %v2700 = vsub.f32 1.0, %v2699
  %v2701 = vmul.f32 %v2700, %v2697
  %v2702 = vsub.f32 0.0, %v2697
  %v2703 = vmax.f32 %v2702, 0.0
  %v2704 = vadd.f32 %v2701, %v2703
  %v2705 = vand.u32 2147483647, %v2697
  %v2706 = vsub.f32 0.0, %v2705
  %v2707 = vmul.f32 %v2706, 1.442695
  %v2708 = vpow.pop %v2707
  %v2709 = vadd.f32 %v2708, 1.0
  %v2710 = vlog2.pop %v2709
  %v2711 = vmul.f32 %v2710, 0.6931472
  %v2712 = vadd.f32 %v2704, %v2711
  %v2713 = vadd.f32 %v2712, 0.0
  %v2714 = vld [vmem:[%s325] ss:$8 sm:$0x3]
  %v2715 = vmul.f32 %v2714, %v2695
  %vm2716 = vcmp.eq.f32.partialorder %v2694, 1.0
  %v2717 = vsel %vm2716, 0.8, 0.0076923077
  %v2718 = vsub.f32 1.0, %v2717
  %v2719 = vmul.f32 %v2718, %v2715
  %v2720 = vsub.f32 0.0, %v2715
  %v2721 = vmax.f32 %v2720, 0.0
  %v2722 = vadd.f32 %v2719, %v2721
  %v2723 = vand.u32 2147483647, %v2715
  %v2724 = vsub.f32 0.0, %v2723
  %v2725 = vmul.f32 %v2724, 1.442695
  %v2726 = vpow.pop %v2725
  %v2727 = vadd.f32 %v2726, 1.0
  %v2728 = vlog2.pop %v2727
  %v2729 = vmul.f32 %v2728, 0.6931472
  %v2730 = vadd.f32 %v2722, %v2729
  %v2731 = vadd.f32 %v2713, %v2730
  %v2732 = vld [vmem:[%s431] ss:$8 sm:$0x3]
  %v2733 = vmul.f32 %v2732, %v2695
  %vm2734 = vcmp.eq.f32.partialorder %v2694, 2.0
  %v2735 = vsel %vm2734, 0.8, 0.0076923077
  %v2736 = vsub.f32 1.0, %v2735
  %v2737 = vmul.f32 %v2736, %v2733
  %v2738 = vsub.f32 0.0, %v2733
  %v2739 = vmax.f32 %v2738, 0.0
  %v2740 = vadd.f32 %v2737, %v2739
  %v2741 = vand.u32 2147483647, %v2733
  %v2742 = vsub.f32 0.0, %v2741
  %v2743 = vmul.f32 %v2742, 1.442695
  %v2744 = vpow.pop %v2743
  %v2745 = vadd.f32 %v2744, 1.0
  %v2746 = vlog2.pop %v2745
  %v2747 = vmul.f32 %v2746, 0.6931472
  %v2748 = vadd.f32 %v2740, %v2747
  %v2749 = vadd.f32 %v2731, %v2748
  %v2750 = vld [vmem:[%s534] ss:$8 sm:$0x3]
  %v2751 = vmul.f32 %v2750, %v2695
  %vm2752 = vcmp.eq.f32.partialorder %v2694, 3.0
  %v2753 = vsel %vm2752, 0.8, 0.0076923077
  %v2754 = vsub.f32 1.0, %v2753
  %v2755 = vmul.f32 %v2754, %v2751
  %v2756 = vsub.f32 0.0, %v2751
  %v2757 = vmax.f32 %v2756, 0.0
  %v2758 = vadd.f32 %v2755, %v2757
  %v2759 = vand.u32 2147483647, %v2751
  %v2760 = vsub.f32 0.0, %v2759
  %v2761 = vmul.f32 %v2760, 1.442695
  %v2762 = vpow.pop %v2761
  %v2763 = vadd.f32 %v2762, 1.0
  %v2764 = vlog2.pop %v2763
  %v2765 = vmul.f32 %v2764, 0.6931472
  %v2766 = vadd.f32 %v2758, %v2765
  %v2767 = vadd.f32 %v2749, %v2766
  %v2768 = vld [vmem:[%s634] ss:$8 sm:$0x3]
  %v2769 = vmul.f32 %v2768, %v2695
  %vm2770 = vcmp.eq.f32.partialorder %v2694, 4.0
  %v2771 = vsel %vm2770, 0.8, 0.0076923077
  %v2772 = vsub.f32 1.0, %v2771
  %v2773 = vmul.f32 %v2772, %v2769
  %v2774 = vsub.f32 0.0, %v2769
  %v2775 = vmax.f32 %v2774, 0.0
  %v2776 = vadd.f32 %v2773, %v2775
  %v2777 = vand.u32 2147483647, %v2769
  %v2778 = vsub.f32 0.0, %v2777
  %v2779 = vmul.f32 %v2778, 1.442695
  %v2780 = vpow.pop %v2779
  %v2781 = vadd.f32 %v2780, 1.0
  %v2782 = vlog2.pop %v2781
  %v2783 = vmul.f32 %v2782, 0.6931472
  %v2784 = vadd.f32 %v2776, %v2783
  %v2785 = vadd.f32 %v2767, %v2784
  %v2786 = vld [vmem:[%s735] ss:$8 sm:$0x3]
  %v2787 = vmul.f32 %v2786, %v2695
  %vm2788 = vcmp.eq.f32.partialorder %v2694, 5.0
  %v2789 = vsel %vm2788, 0.8, 0.0076923077
  %v2790 = vsub.f32 1.0, %v2789
  %v2791 = vmul.f32 %v2790, %v2787
  %v2792 = vsub.f32 0.0, %v2787
  %v2793 = vmax.f32 %v2792, 0.0
  %v2794 = vadd.f32 %v2791, %v2793
  %v2795 = vand.u32 2147483647, %v2787
  %v2796 = vsub.f32 0.0, %v2795
  %v2797 = vmul.f32 %v2796, 1.442695
  %v2798 = vpow.pop %v2797
  %v2799 = vadd.f32 %v2798, 1.0
  %v2800 = vlog2.pop %v2799
  %v2801 = vmul.f32 %v2800, 0.6931472
  %v2802 = vadd.f32 %v2794, %v2801
  %v2803 = vadd.f32 %v2785, %v2802
  %v2804 = vld [vmem:[%s840] ss:$8 sm:$0x3]
  %v2805 = vmul.f32 %v2804, %v2695
  %vm2806 = vcmp.eq.f32.partialorder %v2694, 6.0
  %v2807 = vsel %vm2806, 0.8, 0.0076923077
  %v2808 = vsub.f32 1.0, %v2807
  %v2809 = vmul.f32 %v2808, %v2805
  %v2810 = vsub.f32 0.0, %v2805
  %v2811 = vmax.f32 %v2810, 0.0
  %v2812 = vadd.f32 %v2809, %v2811
  %v2813 = vand.u32 2147483647, %v2805
  %v2814 = vsub.f32 0.0, %v2813
  %v2815 = vmul.f32 %v2814, 1.442695
  %v2816 = vpow.pop %v2815
  %v2817 = vadd.f32 %v2816, 1.0
  %v2818 = vlog2.pop %v2817
  %v2819 = vmul.f32 %v2818, 0.6931472
  %v2820 = vadd.f32 %v2812, %v2819
  %v2821 = vadd.f32 %v2803, %v2820
  %v2822 = vld [vmem:[%s940] ss:$8 sm:$0x3]
  %v2823 = vmul.f32 %v2822, %v2695
  %vm2824 = vcmp.eq.f32.partialorder %v2694, 7.0
  %v2825 = vsel %vm2824, 0.8, 0.0076923077
  %v2826 = vsub.f32 1.0, %v2825
  %v2827 = vmul.f32 %v2826, %v2823
  %v2828 = vsub.f32 0.0, %v2823
  %v2829 = vmax.f32 %v2828, 0.0
  %v2830 = vadd.f32 %v2827, %v2829
  %v2831 = vand.u32 2147483647, %v2823
  %v2832 = vsub.f32 0.0, %v2831
  %v2833 = vmul.f32 %v2832, 1.442695
  %v2834 = vpow.pop %v2833
  %v2835 = vadd.f32 %v2834, 1.0
  %v2836 = vlog2.pop %v2835
  %v2837 = vmul.f32 %v2836, 0.6931472
  %v2838 = vadd.f32 %v2830, %v2837
  %v2839 = vadd.f32 %v2821, %v2838
  %v2840 = vld [vmem:[%s1042] ss:$8 sm:$0x3]
  %v2841 = vmul.f32 %v2840, %v2695
  %vm2842 = vcmp.eq.f32.partialorder %v2694, 8.0
  %v2843 = vsel %vm2842, 0.8, 0.0076923077
  %v2844 = vsub.f32 1.0, %v2843
  %v2845 = vmul.f32 %v2844, %v2841
  %v2846 = vsub.f32 0.0, %v2841
  %v2847 = vmax.f32 %v2846, 0.0
  %v2848 = vadd.f32 %v2845, %v2847
  %v2849 = vand.u32 2147483647, %v2841
  %v2850 = vsub.f32 0.0, %v2849
  %v2851 = vmul.f32 %v2850, 1.442695
  %v2852 = vpow.pop %v2851
  %v2853 = vadd.f32 %v2852, 1.0
  %v2854 = vlog2.pop %v2853
  %v2855 = vmul.f32 %v2854, 0.6931472
  %v2856 = vadd.f32 %v2848, %v2855
  %v2857 = vadd.f32 %v2839, %v2856
  %v2858 = vld [vmem:[%s1145] ss:$8 sm:$0x3]
  %v2859 = vmul.f32 %v2858, %v2695
  %vm2860 = vcmp.eq.f32.partialorder %v2694, 9.0
  %v2861 = vsel %vm2860, 0.8, 0.0076923077
  %v2862 = vsub.f32 1.0, %v2861
  %v2863 = vmul.f32 %v2862, %v2859
  %v2864 = vsub.f32 0.0, %v2859
  %v2865 = vmax.f32 %v2864, 0.0
  %v2866 = vadd.f32 %v2863, %v2865
  %v2867 = vand.u32 2147483647, %v2859
  %v2868 = vsub.f32 0.0, %v2867
  %v2869 = vmul.f32 %v2868, 1.442695
  %v2870 = vpow.pop %v2869
  %v2871 = vadd.f32 %v2870, 1.0
  %v2872 = vlog2.pop %v2871
  %v2873 = vmul.f32 %v2872, 0.6931472
  %v2874 = vadd.f32 %v2866, %v2873
  %v2875 = vadd.f32 %v2857, %v2874
  %v2876 = vld [vmem:[%s1246] ss:$8 sm:$0x3]
  %v2877 = vmul.f32 %v2876, %v2695
  %vm2878 = vcmp.eq.f32.partialorder %v2694, 10.0
  %v2879 = vsel %vm2878, 0.8, 0.0076923077
  %v2880 = vsub.f32 1.0, %v2879
  %v2881 = vmul.f32 %v2880, %v2877
  %v2882 = vsub.f32 0.0, %v2877
  %v2883 = vmax.f32 %v2882, 0.0
  %v2884 = vadd.f32 %v2881, %v2883
  %v2885 = vand.u32 2147483647, %v2877
  %v2886 = vsub.f32 0.0, %v2885
  %v2887 = vmul.f32 %v2886, 1.442695
  %v2888 = vpow.pop %v2887
  %v2889 = vadd.f32 %v2888, 1.0
  %v2890 = vlog2.pop %v2889
  %v2891 = vmul.f32 %v2890, 0.6931472
  %v2892 = vadd.f32 %v2884, %v2891
  %v2893 = vadd.f32 %v2875, %v2892
  %v2894 = vld [vmem:[%s1349] ss:$8 sm:$0x3]
  %v2895 = vmul.f32 %v2894, %v2695
  %vm2896 = vcmp.eq.f32.partialorder %v2694, 11.0
  %v2897 = vsel %vm2896, 0.8, 0.0076923077
  %v2898 = vsub.f32 1.0, %v2897
  %v2899 = vmul.f32 %v2898, %v2895
  %v2900 = vsub.f32 0.0, %v2895
  %v2901 = vmax.f32 %v2900, 0.0
  %v2902 = vadd.f32 %v2899, %v2901
  %v2903 = vand.u32 2147483647, %v2895
  %v2904 = vsub.f32 0.0, %v2903
  %v2905 = vmul.f32 %v2904, 1.442695
  %v2906 = vpow.pop %v2905
  %v2907 = vadd.f32 %v2906, 1.0
  %v2908 = vlog2.pop %v2907
  %v2909 = vmul.f32 %v2908, 0.6931472
  %v2910 = vadd.f32 %v2902, %v2909
  %v2911 = vadd.f32 %v2893, %v2910
  %v2912 = vld [vmem:[%s1450] ss:$8 sm:$0x3]
  %v2913 = vmul.f32 %v2912, %v2695
  %vm2914 = vcmp.eq.f32.partialorder %v2694, 12.0
  %v2915 = vsel %vm2914, 0.8, 0.0076923077
  %v2916 = vsub.f32 1.0, %v2915
  %v2917 = vmul.f32 %v2916, %v2913
  %v2918 = vsub.f32 0.0, %v2913
  %v2919 = vmax.f32 %v2918, 0.0
  %v2920 = vadd.f32 %v2917, %v2919
  %v2921 = vand.u32 2147483647, %v2913
  %v2922 = vsub.f32 0.0, %v2921
  %v2923 = vmul.f32 %v2922, 1.442695
  %v2924 = vpow.pop %v2923
  %v2925 = vadd.f32 %v2924, 1.0
  %v2926 = vlog2.pop %v2925
  %v2927 = vmul.f32 %v2926, 0.6931472
  %v2928 = vadd.f32 %v2920, %v2927
  %v2929 = vadd.f32 %v2911, %v2928
  %v2930 = vld [vmem:[%s1549] ss:$8 sm:$0x3]
  %v2931 = vmul.f32 %v2930, %v2695
  %vm2932 = vcmp.eq.f32.partialorder %v2694, 13.0
  %v2933 = vsel %vm2932, 0.8, 0.0076923077
  %v2934 = vsub.f32 1.0, %v2933
  %v2935 = vmul.f32 %v2934, %v2931
  %v2936 = vsub.f32 0.0, %v2931
  %v2937 = vmax.f32 %v2936, 0.0
  %v2938 = vadd.f32 %v2935, %v2937
  %v2939 = vand.u32 2147483647, %v2931
  %v2940 = vsub.f32 0.0, %v2939
  %v2941 = vmul.f32 %v2940, 1.442695
  %v2942 = vpow.pop %v2941
  %v2943 = vadd.f32 %v2942, 1.0
  %v2944 = vlog2.pop %v2943
  %v2945 = vmul.f32 %v2944, 0.6931472
  %v2946 = vadd.f32 %v2938, %v2945
  %v2947 = vadd.f32 %v2929, %v2946
  %v2948 = vld [vmem:[%s1650] ss:$8 sm:$0x3]
  %v2949 = vmul.f32 %v2948, %v2695
  %vm2950 = vcmp.eq.f32.partialorder %v2694, 14.0
  %v2951 = vsel %vm2950, 0.8, 0.0076923077
  %v2952 = vsub.f32 1.0, %v2951
  %v2953 = vmul.f32 %v2952, %v2949
  %v2954 = vsub.f32 0.0, %v2949
  %v2955 = vmax.f32 %v2954, 0.0
  %v2956 = vadd.f32 %v2953, %v2955
  %v2957 = vand.u32 2147483647, %v2949
  %v2958 = vsub.f32 0.0, %v2957
  %v2959 = vmul.f32 %v2958, 1.442695
  %v2960 = vpow.pop %v2959
  %v2961 = vadd.f32 %v2960, 1.0
  %v2962 = vlog2.pop %v2961
  %v2963 = vmul.f32 %v2962, 0.6931472
  %v2964 = vadd.f32 %v2956, %v2963
  %v2965 = vadd.f32 %v2947, %v2964
  %v2966 = vld [vmem:[%s1749] ss:$8 sm:$0x3]
  %v2967 = vmul.f32 %v2966, %v2695
  %vm2968 = vcmp.eq.f32.partialorder %v2694, 15.0
  %v2969 = vsel %vm2968, 0.8, 0.0076923077
  %v2970 = vsub.f32 1.0, %v2969
  %v2971 = vmul.f32 %v2970, %v2967
  %v2972 = vsub.f32 0.0, %v2967
  %v2973 = vmax.f32 %v2972, 0.0
  %v2974 = vadd.f32 %v2971, %v2973
  %v2975 = vand.u32 2147483647, %v2967
  %v2976 = vsub.f32 0.0, %v2975
  %v2977 = vmul.f32 %v2976, 1.442695
  %v2978 = vpow.pop %v2977
  %v2979 = vadd.f32 %v2978, 1.0
  %v2980 = vlog2.pop %v2979
  %v2981 = vmul.f32 %v2980, 0.6931472
  %v2982 = vadd.f32 %v2974, %v2981
  %v2983 = vadd.f32 %v2965, %v2982
  %v2984 = vld [vmem:[%s1850] ss:$8 sm:$0x3]
  %v2985 = vmul.f32 %v2984, %v2695
  %vm2986 = vcmp.eq.f32.partialorder %v2694, 16.0
  %v2987 = vsel %vm2986, 0.8, 0.0076923077
  %v2988 = vsub.f32 1.0, %v2987
  %v2989 = vmul.f32 %v2988, %v2985
  %v2990 = vsub.f32 0.0, %v2985
  %v2991 = vmax.f32 %v2990, 0.0
  %v2992 = vadd.f32 %v2989, %v2991
  %v2993 = vand.u32 2147483647, %v2985
  %v2994 = vsub.f32 0.0, %v2993
  %v2995 = vmul.f32 %v2994, 1.442695
  %v2996 = vpow.pop %v2995
  %v2997 = vadd.f32 %v2996, 1.0
  %v2998 = vlog2.pop %v2997
  %v2999 = vmul.f32 %v2998, 0.6931472
  %v3000 = vadd.f32 %v2992, %v2999
  %v3001 = vadd.f32 %v2983, %v3000
  %v3002 = vld [vmem:[%s1945] ss:$8 sm:$0x3]
  %v3003 = vmul.f32 %v3002, %v2695
  %vm3004 = vcmp.eq.f32.partialorder %v2694, 17.0
  %v3005 = vsel %vm3004, 0.8, 0.0076923077
  %v3006 = vsub.f32 1.0, %v3005
  %v3007 = vmul.f32 %v3006, %v3003
  %v3008 = vsub.f32 0.0, %v3003
  %v3009 = vmax.f32 %v3008, 0.0
  %v3010 = vadd.f32 %v3007, %v3009
  %v3011 = vand.u32 2147483647, %v3003
  %v3012 = vsub.f32 0.0, %v3011
  %v3013 = vmul.f32 %v3012, 1.442695
  %v3014 = vpow.pop %v3013
  %v3015 = vadd.f32 %v3014, 1.0
  %v3016 = vlog2.pop %v3015
  %v3017 = vmul.f32 %v3016, 0.6931472
  %v3018 = vadd.f32 %v3010, %v3017
  %v3019 = vadd.f32 %v3001, %v3018
  %v3020 = vld [vmem:[%s2036] ss:$8 sm:$0x3]
  %v3021 = vmul.f32 %v3020, %v2695
  %vm3022 = vcmp.eq.f32.partialorder %v2694, 18.0
  %v3023 = vsel %vm3022, 0.8, 0.0076923077
  %v3024 = vsub.f32 1.0, %v3023
  %v3025 = vmul.f32 %v3024, %v3021
  %v3026 = vsub.f32 0.0, %v3021
  %v3027 = vmax.f32 %v3026, 0.0
  %v3028 = vadd.f32 %v3025, %v3027
  %v3029 = vand.u32 2147483647, %v3021
  %v3030 = vsub.f32 0.0, %v3029
  %v3031 = vmul.f32 %v3030, 1.442695
  %v3032 = vpow.pop %v3031
  %v3033 = vadd.f32 %v3032, 1.0
  %v3034 = vlog2.pop %v3033
  %v3035 = vmul.f32 %v3034, 0.6931472
  %v3036 = vadd.f32 %v3028, %v3035
  %v3037 = vadd.f32 %v3019, %v3036
  %v3038 = vld [vmem:[%s2129] ss:$8 sm:$0x3]
  %v3039 = vmul.f32 %v3038, %v2695
  %vm3040 = vcmp.eq.f32.partialorder %v2694, 19.0
  %v3041 = vsel %vm3040, 0.8, 0.0076923077
  %v3042 = vsub.f32 1.0, %v3041
  %v3043 = vmul.f32 %v3042, %v3039
  %v3044 = vsub.f32 0.0, %v3039
  %v3045 = vmax.f32 %v3044, 0.0
  %v3046 = vadd.f32 %v3043, %v3045
  %v3047 = vand.u32 2147483647, %v3039
  %v3048 = vsub.f32 0.0, %v3047
  %v3049 = vmul.f32 %v3048, 1.442695
  %v3050 = vpow.pop %v3049
  %v3051 = vadd.f32 %v3050, 1.0
  %v3052 = vlog2.pop %v3051
  %v3053 = vmul.f32 %v3052, 0.6931472
  %v3054 = vadd.f32 %v3046, %v3053
  %v3055 = vadd.f32 %v3037, %v3054
  %v3056 = vld [vmem:[%s2221] ss:$8 sm:$0x3]
  %v3057 = vmul.f32 %v3056, %v2695
  %vm3058 = vcmp.eq.f32.partialorder %v2694, 20.0
  %v3059 = vsel %vm3058, 0.8, 0.0076923077
  %v3060 = vsub.f32 1.0, %v3059
  %v3061 = vmul.f32 %v3060, %v3057
  %v3062 = vsub.f32 0.0, %v3057
  %v3063 = vmax.f32 %v3062, 0.0
  %v3064 = vadd.f32 %v3061, %v3063
  %v3065 = vand.u32 2147483647, %v3057
  %v3066 = vsub.f32 0.0, %v3065
  %v3067 = vmul.f32 %v3066, 1.442695
  %v3068 = vpow.pop %v3067
  %v3069 = vadd.f32 %v3068, 1.0
  %v3070 = vlog2.pop %v3069
  %v3071 = vmul.f32 %v3070, 0.6931472
  %v3072 = vadd.f32 %v3064, %v3071
  %v3073 = vadd.f32 %v3055, %v3072
  %v3074 = vld [vmem:[%s2311] ss:$8 sm:$0x3]
  %v3075 = vmul.f32 %v3074, %v2695
  %vm3076 = vcmp.eq.f32.partialorder %v2694, 21.0
  %v3077 = vsel %vm3076, 0.8, 0.0076923077
  %v3078 = vsub.f32 1.0, %v3077
  %v3079 = vmul.f32 %v3078, %v3075
  %v3080 = vsub.f32 0.0, %v3075
  %v3081 = vmax.f32 %v3080, 0.0
  %v3082 = vadd.f32 %v3079, %v3081
  %v3083 = vand.u32 2147483647, %v3075
  %v3084 = vsub.f32 0.0, %v3083
  %v3085 = vmul.f32 %v3084, 1.442695
  %v3086 = vpow.pop %v3085
  %v3087 = vadd.f32 %v3086, 1.0
  %v3088 = vlog2.pop %v3087
  %v3089 = vmul.f32 %v3088, 0.6931472
  %v3090 = vadd.f32 %v3082, %v3089
  %v3091 = vadd.f32 %v3073, %v3090
  %v3092 = vld [vmem:[%s2403] ss:$8 sm:$0x3]
  %v3093 = vmul.f32 %v3092, %v2695
  %vm3094 = vcmp.eq.f32.partialorder %v2694, 22.0
  %v3095 = vsel %vm3094, 0.8, 0.0076923077
  %v3096 = vsub.f32 1.0, %v3095
  %v3097 = vmul.f32 %v3096, %v3093
  %v3098 = vsub.f32 0.0, %v3093
  %v3099 = vmax.f32 %v3098, 0.0
  %v3100 = vadd.f32 %v3097, %v3099
  %v3101 = vand.u32 2147483647, %v3093
  %v3102 = vsub.f32 0.0, %v3101
  %v3103 = vmul.f32 %v3102, 1.442695
  %v3104 = vpow.pop %v3103
  %v3105 = vadd.f32 %v3104, 1.0
  %v3106 = vlog2.pop %v3105
  %v3107 = vmul.f32 %v3106, 0.6931472
  %v3108 = vadd.f32 %v3100, %v3107
  %v3109 = vadd.f32 %v3091, %v3108
  %v3110 = vld [vmem:[%s2497] ss:$8 sm:$0x3]
  %v3111 = vmul.f32 %v3110, %v2695
  %vm3112 = vcmp.eq.f32.partialorder %v2694, 23.0
  %v3113 = vsel %vm3112, 0.8, 0.0076923077
  %v3114 = vsub.f32 1.0, %v3113
  %v3115 = vmul.f32 %v3114, %v3111
  %v3116 = vsub.f32 0.0, %v3111
  %v3117 = vmax.f32 %v3116, 0.0
  %v3118 = vadd.f32 %v3115, %v3117
  %v3119 = vand.u32 2147483647, %v3111
  %v3120 = vsub.f32 0.0, %v3119
  %v3121 = vmul.f32 %v3120, 1.442695
  %v3122 = vpow.pop %v3121
  %v3123 = vadd.f32 %v3122, 1.0
  %v3124 = vlog2.pop %v3123
  %v3125 = vmul.f32 %v3124, 0.6931472
  %v3126 = vadd.f32 %v3118, %v3125
  %v3127 = vadd.f32 %v3109, %v3126
  %v3128 = vld [vmem:[%s2588] ss:$8 sm:$0x3]
  %v3129 = vmul.f32 %v3128, %v2695
  %vm3130 = vcmp.eq.f32.partialorder %v2694, 24.0
  %v3131 = vsel %vm3130, 0.8, 0.0076923077
  %v3132 = vsub.f32 1.0, %v3131
  %v3133 = vmul.f32 %v3132, %v3129
  %v3134 = vsub.f32 0.0, %v3129
  %v3135 = vmax.f32 %v3134, 0.0
  %v3136 = vadd.f32 %v3133, %v3135
  %v3137 = vand.u32 2147483647, %v3129
  %v3138 = vsub.f32 0.0, %v3137
  %v3139 = vmul.f32 %v3138, 1.442695
  %v3140 = vpow.pop %v3139
  %v3141 = vadd.f32 %v3140, 1.0
  %v3142 = vlog2.pop %v3141
  %v3143 = vmul.f32 %v3142, 0.6931472
  %v3144 = vadd.f32 %v3136, %v3143
  %v3145 = vadd.f32 %v3127, %v3144
  %v3146 = vld [vmem:[%s2681] ss:$8 sm:$0x3]
  %v3147 = vmul.f32 %v3146, %v2695
  %vm3148 = vcmp.eq.f32.partialorder %v2694, 25.0
  %v3149 = vsel %vm3148, 0.8, 0.0076923077
  %v3150 = vsub.f32 1.0, %v3149
  %v3151 = vmul.f32 %v3150, %v3147
  %v3152 = vsub.f32 0.0, %v3147
  %v3153 = vmax.f32 %v3152, 0.0
  %v3154 = vadd.f32 %v3151, %v3153
  %v3155 = vand.u32 2147483647, %v3147
  %v3156 = vsub.f32 0.0, %v3155
  %v3157 = vmul.f32 %v3156, 1.442695
  %v3158 = vpow.pop %v3157
  %v3159 = vadd.f32 %v3158, 1.0
  %v3160 = vlog2.pop %v3159
  %v3161 = vmul.f32 %v3160, 0.6931472
  %v3162 = vadd.f32 %v3154, %v3161
  %v3163 = vadd.f32 %v3145, %v3162
  %v3164 = vmin.f32 %v116, 20.0
  %v3165 = vmul.f32 %v3164, 0.05
  %v3166 = vmul.f32 %v3163, 0.03846154
  %v3167 = vmul.f32 %v3165, %v3166
  %v3168 = vld [vmem:[%s1] sm:$0x3]
  %vm3169 = vcmp.gt.f32.partialorder %v3168, 0.0
  %vm3170 = vcmp.ne.f32.partialorder %v116, 0.0
  %vm3171 = vmand %vm3169, %vm3170
  %v3172 = vsel %vm3171, %v3167, 0.0
  %3173 = vst.msk [vmem:[%s4] sm:$0x3] %vm226, %v3172
  // Predicated region
  $region74: #{active_boundary_loss.5} parent=0 // pred_check
    _
  $region75: #{active_boundary_loss.5} parent=0 // pred_check_branch
    %3175 = sbr.rel (0) target = $region77
  $region76: #{active_boundary_loss.5} parent=0 // pred_region
    _
  $region77: #{active_boundary_loss.5} parent=0 // pred_fallthru
    _
  // Predicated region
  $region78: #{active_boundary_loss.5} parent=0 // pred_check
    _
  $region79: #{active_boundary_loss.5} parent=0 // pred_check_branch
    %3177 = sbr.rel (0) target = $region81
  $region80: #{active_boundary_loss.5} parent=0 // pred_region
    _
  $region81: #{active_boundary_loss.5} parent=0 // pred_fallthru
    _
  %3178 = vsyncmov [#allocation5]
  %s3179 = vpop.sfrf %3178
  %p3180 = scmp.eq.s32.totalorder %s3179, 0
  %p3181 = pneg %p3180
  %3183 = shalt.err (%p3181)
  %s3184 = scalar_lea.sflag [#allocation5], 1
  %3185 = vsyncmov %s3184
  %s3186 = vpop.sfrf %3185
  %p3187 = scmp.eq.s32.totalorder %s3186, 0
  %p3188 = pneg %p3187
  %3190 = shalt.err (%p3188)

</llo_original>
